<compile_context>
chip_gen: v7x
topology: tpu7x:2x2x1
jax: 0.10.0
libtpu: 0.0.40
codegen_flags: <defaults>
</compile_context>

<pallas_src>
import functools

import jax
import jax.numpy as jnp
import numpy as np
from jax import lax
from jax.experimental import pallas as pl
from jax.experimental.pallas import tpu as pltpu


# ----------------------------- Pallas kernels ------------------------------

def _conv_pool_kernel(xe_ref, xo_ref, w_ref, b_ref, o_ref, *, oh, half, kh):
    """Fused Conv2d(k=5, s=1, p=2) + bias + ReLU + MaxPool2d(2), one sample.

    xe_ref/xo_ref : (1, oh+2, Cin*Wp) bf16 - even/odd padded input rows,
                    channel-major within a row (col = ci*Wp + wp).
    w_ref         : (kh, Cin*Wp, Cout*W) bf16 - per-height-tap weight matrices
                    with the width taps and the output w-parity folded into the
                    column layout: col = (w % 2)*half + co*ow + w//2.
    b_ref         : (1, Cout*W) f32 - bias replicated to the same column layout.
    o_ref         : (1, oh, Cout*ow) bf16 - pooled output, col = co*ow + ow_i.
    """
    x_par = (xe_ref, xo_ref)
    acc0 = jnp.zeros((oh, 2 * half), jnp.float32)   # even pre-pool output rows
    acc1 = jnp.zeros((oh, 2 * half), jnp.float32)   # odd  pre-pool output rows
    for ki in range(kh):                            # 5 taps along kernel height
        w_k = w_ref[ki]                             # (Cin*Wp, Cout*W), resident
        # output row 2r   reads padded row 2r + ki
        # output row 2r+1 reads padded row 2r + 1 + ki
        q0, s0 = ki % 2, ki // 2
        q1, s1 = (ki + 1) % 2, (ki + 1) // 2
        acc0 = acc0 + jnp.dot(x_par[q0][0, s0:s0 + oh, :], w_k,
                              preferred_element_type=jnp.float32)
        acc1 = acc1 + jnp.dot(x_par[q1][0, s1:s1 + oh, :], w_k,
                              preferred_element_type=jnp.float32)
    # Max-pool over H (even vs odd rows), then bias + ReLU (both commute with max).
    y = jnp.maximum(acc0, acc1) + b_ref[...]
    y = jnp.maximum(y, 0.0)
    # Max-pool over W: even-w columns live in [:half], odd-w columns in [half:].
    o_ref[0] = jnp.maximum(y[:, :half], y[:, half:]).astype(o_ref.dtype)


def conv_relu_pool(xe, xo, w_folded, bias_folded, *, H, W, c_out):
    """Batch-gridded fused conv block; weights/bias stay VMEM-resident."""
    n, nrow, cwp = xe.shape
    kh = w_folded.shape[0]
    oh, ow = H // 2, W // 2
    cw = c_out * W
    kernel = functools.partial(_conv_pool_kernel, oh=oh, half=c_out * ow, kh=kh)
    return pl.pallas_call(
        kernel,
        out_shape=jax.ShapeDtypeStruct((n, oh, c_out * ow), jnp.bfloat16),
        grid=(n,),
        in_specs=[
            pl.BlockSpec((1, nrow, cwp), lambda i: (i, 0, 0)),
            pl.BlockSpec((1, nrow, cwp), lambda i: (i, 0, 0)),
            pl.BlockSpec((kh, cwp, cw), lambda i: (0, 0, 0)),   # resident weights
            pl.BlockSpec((1, cw), lambda i: (0, 0)),            # resident bias
        ],
        out_specs=pl.BlockSpec((1, oh, c_out * ow), lambda i: (i, 0, 0)),
        compiler_params=pltpu.CompilerParams(
            dimension_semantics=("parallel",)),
    )(xe, xo, w_folded, bias_folded)


def _fc_kernel(x_ref, w_ref, b_ref, o_ref):
    o_ref[...] = (jnp.dot(x_ref[...], w_ref[...],
                          preferred_element_type=jnp.float32) + b_ref[...])


def fc(x, w, b):
    """Final Linear: output padded to 128 lanes (sliced back in the wrapper)."""
    m, k = x.shape
    _, n = w.shape
    return pl.pallas_call(
        _fc_kernel,
        out_shape=jax.ShapeDtypeStruct((m, n), jnp.float32),
        grid=(1,),
        in_specs=[pl.BlockSpec((m, k), lambda i: (0, 0)),
                  pl.BlockSpec((k, n), lambda i: (0, 0)),
                  pl.BlockSpec((1, n), lambda i: (0, 0))],
        out_specs=pl.BlockSpec((m, n), lambda i: (0, 0)),
    )(x, w, b.reshape(1, n))


# ------------------------------- forward -----------------------------------

def cnn_forward(params, x_nchw):
    n = x_nchw.shape[0]
    # conv1: (N,1,28,28) -> pad to (N,32,32), split even/odd rows, cast bf16.
    xp = jnp.pad(x_nchw[:, 0], ((0, 0), (2, 2), (2, 2))).astype(jnp.bfloat16)
    h1 = conv_relu_pool(xp[:, 0::2], xp[:, 1::2], params["w1"], params["b1"],
                        H=28, W=28, c_out=16)          # (N, 14, 16*14), [h][c][w]
    # conv2 input: pad the (N,14,16,14) feature map in H and W, split parities.
    t = jnp.pad(h1.reshape(n, 14, 16, 14), ((0, 0), (2, 2), (0, 0), (2, 2)))
    h2 = conv_relu_pool(t[:, 0::2].reshape(n, 9, 16 * 18),
                        t[:, 1::2].reshape(n, 9, 16 * 18),
                        params["w2"], params["b2"],
                        H=14, W=14, c_out=32)          # (N, 7, 32*7), [h][c][w]
    # Flatten order is [oh][c][ow]; w_fc rows were permuted at init to match
    # PyTorch's NCHW .view(N, -1) semantics.
    flat = h2.reshape(n, 32 * 7 * 7).astype(jnp.float32)
    return fc(flat, params["w_fc"], params["b_fc"])[:, :10]


# ------------------------- weight folding (init time) ----------------------

def _fold_conv(w_oihw, width):
    """(Cout,Cin,KH,KW) -> (KH, Cin*Wp, Cout*W) with kj taps + w-parity folded."""
    c_out, c_in, kh, kw = w_oihw.shape
    wp = width + kw - 1
    ow = width // 2
    w = np.asarray(w_oihw, np.float32)
    out = np.zeros((kh, c_in * wp, c_out * width), np.float32)
    co_cols = np.arange(c_out) * ow
    for ki in range(kh):
        for kj in range(kw):
            for x in range(width):
                col0 = (x % 2) * (c_out * ow) + x // 2
                for ci in range(c_in):
                    out[ki, ci * wp + x + kj, col0 + co_cols] = w[:, ci, ki, kj]
    return jnp.asarray(out, jnp.bfloat16)


def _fold_bias(b, width):
    ow = width // 2
    v = np.tile(np.repeat(np.asarray(b, np.float32), ow), 2)
    return jnp.asarray(v[None, :])                      # (1, Cout*width) f32


def _fold_fc(w_fc_oi, b_fc):
    """Permute FC rows from NCHW-flatten order to [oh][c][ow]; pad out to 128."""
    oh = ow = 7
    c = 32
    idx = (np.arange(c)[None, :, None] * (oh * ow)
           + np.arange(oh)[:, None, None] * ow
           + np.arange(ow)[None, None, :]).reshape(-1)
    wf = np.asarray(w_fc_oi, np.float32).T[idx]          # (1568, 10)
    wf = np.pad(wf, ((0, 0), (0, 128 - wf.shape[1])))    # lane-dense output
    bf = np.pad(np.asarray(b_fc, np.float32), (0, 128 - np.asarray(b_fc).shape[0]))
    return jnp.asarray(wf), jnp.asarray(bf)


def prepare_params(raw):
    w_fc, b_fc = _fold_fc(raw["w_fc"], raw["b_fc"])
    return {
        "w1": _fold_conv(raw["w1"], 28), "b1": _fold_bias(raw["b1"], 28),
        "w2": _fold_conv(raw["w2"], 14), "b2": _fold_bias(raw["b2"], 14),
        "w_fc": w_fc, "b_fc": b_fc,
    }


def init_raw_params(key):
    """Deterministic synthetic params in the PyTorch layouts."""
    k1, k2, k3, k4, k5, k6 = jax.random.split(key, 6)
    return {
        "w1": 0.1 * jax.random.normal(k1, (16, 1, 5, 5), jnp.float32),
        "b1": 0.1 * jax.random.normal(k2, (16,), jnp.float32),
        "w2": 0.05 * jax.random.normal(k3, (32, 16, 5, 5), jnp.float32),
        "b2": 0.1 * jax.random.normal(k4, (32,), jnp.float32),
        "w_fc": 0.02 * jax.random.normal(k5, (10, 32 * 7 * 7), jnp.float32),
        "b_fc": 0.1 * jax.random.normal(k6, (10,), jnp.float32),
    }


def reference_forward(raw, x_nchw):
    """Pure-JAX f32 reference mirroring the PyTorch module exactly."""
    def block(x, w_oihw, b):
        y = lax.conv_general_dilated(
            x, w_oihw, (1, 1), [(2, 2), (2, 2)],
            dimension_numbers=("NCHW", "OIHW", "NCHW"))
        y = jnp.maximum(y + b[None, :, None, None], 0.0)
        n, c, h, w = y.shape
        return y.reshape(n, c, h // 2, 2, w // 2, 2).max(axis=(3, 5))

    h1 = block(x_nchw, raw["w1"], raw["b1"])
    h2 = block(h1, raw["w2"], raw["b2"])
    flat = h2.reshape(h2.shape[0], -1)
    return flat @ raw["w_fc"].T + raw["b_fc"]


if __name__ == "__main__":
    key = jax.random.PRNGKey(0)
    raw = init_raw_params(key)
    params = prepare_params(raw)
    # Input implied by the module (Linear expects 32*7*7): MNIST-like NCHW.
    x = jax.random.normal(jax.random.PRNGKey(0), (2, 1, 28, 28), jnp.float32)

    out = jax.block_until_ready(jax.jit(cnn_forward)(params, x))
    ref = jax.block_until_ready(reference_forward(raw, x))

    assert out.shape == (2, 10), out.shape
    # bf16 MXU inputs (f32 accumulation) -> tolerance loosened per review.
    np.testing.assert_allclose(np.asarray(out), np.asarray(ref),
                               rtol=5e-2, atol=5e-2)
    print("KERNEL_OK")
</pallas_src>

<mosaic_0001>
module attributes {stable_mosaic.version = 11 : i64} {
  func.func @_conv_pool_kernel(%arg0: i32, %arg1: memref<1x16x32xbf16, #tpu.memory_space<vmem>>, %arg2: memref<1x16x32xbf16, #tpu.memory_space<vmem>>, %arg3: memref<5x32x448xbf16, #tpu.memory_space<vmem>>, %arg4: memref<1x448xf32, #tpu.memory_space<vmem>>, %arg5: memref<1x14x224xbf16, #tpu.memory_space<vmem>>) attributes {dimension_semantics = [#tpu.dimension_semantics<parallel>], iteration_bounds = array<i64: 2>, scalar_prefetch = 0 : i64, scratch_operands = 0 : i64, tpu.core_type = #tpu.core_type<tc>, window_params = [{transform_indices = @transform_0, window_bounds = array<i64: 1, 16, 32>}, {transform_indices = @transform_1, window_bounds = array<i64: 1, 16, 32>}, {pipeline_mode = #tpu.pipeline_mode<synchronous>, transform_indices = @transform_2, window_bounds = array<i64: 5, 32, 448>}, {pipeline_mode = #tpu.pipeline_mode<synchronous>, transform_indices = @transform_3, window_bounds = array<i64: 1, 448>}, {transform_indices = @transform_4, window_bounds = array<i64: 1, 14, 224>}]} {
    %cst = arith.constant 0.000000e+00 : f32
    %0 = vector.broadcast %cst : f32 to vector<14x448xf32>
    %cst_0 = arith.constant 0.000000e+00 : f32
    %1 = vector.broadcast %cst_0 : f32 to vector<14x448xf32>
    %c0 = arith.constant 0 : index
    %c0_1 = arith.constant 0 : index
    %c0_2 = arith.constant 0 : index
    %2 = vector.load %arg3[%c0, %c0_1, %c0_2] : memref<5x32x448xbf16, #tpu.memory_space<vmem>>, vector<1x32x448xbf16>
    %3 = vector.shape_cast %2 : vector<1x32x448xbf16> to vector<32x448xbf16>
    %c0_3 = arith.constant 0 : index
    %c0_4 = arith.constant 0 : index
    %c0_5 = arith.constant 0 : index
    %4 = vector.load %arg1[%c0_3, %c0_4, %c0_5] : memref<1x16x32xbf16, #tpu.memory_space<vmem>>, vector<1x14x32xbf16>
    %5 = vector.shape_cast %4 : vector<1x14x32xbf16> to vector<14x32xbf16>
    %cst_6 = arith.constant dense<0.000000e+00> : vector<14x448xf32>
    %6 = tpu.matmul %5, %3, %cst_6 {dimension_numbers = #tpu.dot_dimension_numbers<[1], [0], [0], [1], [0, 0, 1, 1], [], []>} : vector<14x32xbf16>, vector<32x448xbf16>, vector<14x448xf32> -> vector<14x448xf32>
    %7 = arith.addf %0, %6 : vector<14x448xf32>
    %c0_7 = arith.constant 0 : index
    %c0_8 = arith.constant 0 : index
    %c0_9 = arith.constant 0 : index
    %8 = vector.load %arg2[%c0_7, %c0_8, %c0_9] : memref<1x16x32xbf16, #tpu.memory_space<vmem>>, vector<1x14x32xbf16>
    %9 = vector.shape_cast %8 : vector<1x14x32xbf16> to vector<14x32xbf16>
    %cst_10 = arith.constant dense<0.000000e+00> : vector<14x448xf32>
    %10 = tpu.matmul %9, %3, %cst_10 {dimension_numbers = #tpu.dot_dimension_numbers<[1], [0], [0], [1], [0, 0, 1, 1], [], []>} : vector<14x32xbf16>, vector<32x448xbf16>, vector<14x448xf32> -> vector<14x448xf32>
    %11 = arith.addf %1, %10 : vector<14x448xf32>
    %c1 = arith.constant 1 : index
    %c0_11 = arith.constant 0 : index
    %c0_12 = arith.constant 0 : index
    %12 = vector.load %arg3[%c1, %c0_11, %c0_12] : memref<5x32x448xbf16, #tpu.memory_space<vmem>>, vector<1x32x448xbf16>
    %13 = vector.shape_cast %12 : vector<1x32x448xbf16> to vector<32x448xbf16>
    %c0_13 = arith.constant 0 : index
    %c0_14 = arith.constant 0 : index
    %c0_15 = arith.constant 0 : index
    %14 = vector.load %arg2[%c0_13, %c0_14, %c0_15] : memref<1x16x32xbf16, #tpu.memory_space<vmem>>, vector<1x14x32xbf16>
    %15 = vector.shape_cast %14 : vector<1x14x32xbf16> to vector<14x32xbf16>
    %cst_16 = arith.constant dense<0.000000e+00> : vector<14x448xf32>
    %16 = tpu.matmul %15, %13, %cst_16 {dimension_numbers = #tpu.dot_dimension_numbers<[1], [0], [0], [1], [0, 0, 1, 1], [], []>} : vector<14x32xbf16>, vector<32x448xbf16>, vector<14x448xf32> -> vector<14x448xf32>
    %17 = arith.addf %7, %16 : vector<14x448xf32>
    %c0_17 = arith.constant 0 : index
    %c1_18 = arith.constant 1 : index
    %c0_19 = arith.constant 0 : index
    %18 = vector.load %arg1[%c0_17, %c1_18, %c0_19] : memref<1x16x32xbf16, #tpu.memory_space<vmem>>, vector<1x14x32xbf16>
    %19 = vector.shape_cast %18 : vector<1x14x32xbf16> to vector<14x32xbf16>
    %cst_20 = arith.constant dense<0.000000e+00> : vector<14x448xf32>
    %20 = tpu.matmul %19, %13, %cst_20 {dimension_numbers = #tpu.dot_dimension_numbers<[1], [0], [0], [1], [0, 0, 1, 1], [], []>} : vector<14x32xbf16>, vector<32x448xbf16>, vector<14x448xf32> -> vector<14x448xf32>
    %21 = arith.addf %11, %20 : vector<14x448xf32>
    %c2 = arith.constant 2 : index
    %c0_21 = arith.constant 0 : index
    %c0_22 = arith.constant 0 : index
    %22 = vector.load %arg3[%c2, %c0_21, %c0_22] : memref<5x32x448xbf16, #tpu.memory_space<vmem>>, vector<1x32x448xbf16>
    %23 = vector.shape_cast %22 : vector<1x32x448xbf16> to vector<32x448xbf16>
    %c0_23 = arith.constant 0 : index
    %c1_24 = arith.constant 1 : index
    %c0_25 = arith.constant 0 : index
    %24 = vector.load %arg1[%c0_23, %c1_24, %c0_25] : memref<1x16x32xbf16, #tpu.memory_space<vmem>>, vector<1x14x32xbf16>
    %25 = vector.shape_cast %24 : vector<1x14x32xbf16> to vector<14x32xbf16>
    %cst_26 = arith.constant dense<0.000000e+00> : vector<14x448xf32>
    %26 = tpu.matmul %25, %23, %cst_26 {dimension_numbers = #tpu.dot_dimension_numbers<[1], [0], [0], [1], [0, 0, 1, 1], [], []>} : vector<14x32xbf16>, vector<32x448xbf16>, vector<14x448xf32> -> vector<14x448xf32>
    %27 = arith.addf %17, %26 : vector<14x448xf32>
    %c0_27 = arith.constant 0 : index
    %c1_28 = arith.constant 1 : index
    %c0_29 = arith.constant 0 : index
    %28 = vector.load %arg2[%c0_27, %c1_28, %c0_29] : memref<1x16x32xbf16, #tpu.memory_space<vmem>>, vector<1x14x32xbf16>
    %29 = vector.shape_cast %28 : vector<1x14x32xbf16> to vector<14x32xbf16>
    %cst_30 = arith.constant dense<0.000000e+00> : vector<14x448xf32>
    %30 = tpu.matmul %29, %23, %cst_30 {dimension_numbers = #tpu.dot_dimension_numbers<[1], [0], [0], [1], [0, 0, 1, 1], [], []>} : vector<14x32xbf16>, vector<32x448xbf16>, vector<14x448xf32> -> vector<14x448xf32>
    %31 = arith.addf %21, %30 : vector<14x448xf32>
    %c3 = arith.constant 3 : index
    %c0_31 = arith.constant 0 : index
    %c0_32 = arith.constant 0 : index
    %32 = vector.load %arg3[%c3, %c0_31, %c0_32] : memref<5x32x448xbf16, #tpu.memory_space<vmem>>, vector<1x32x448xbf16>
    %33 = vector.shape_cast %32 : vector<1x32x448xbf16> to vector<32x448xbf16>
    %c0_33 = arith.constant 0 : index
    %c1_34 = arith.constant 1 : index
    %c0_35 = arith.constant 0 : index
    %34 = vector.load %arg2[%c0_33, %c1_34, %c0_35] : memref<1x16x32xbf16, #tpu.memory_space<vmem>>, vector<1x14x32xbf16>
    %35 = vector.shape_cast %34 : vector<1x14x32xbf16> to vector<14x32xbf16>
    %cst_36 = arith.constant dense<0.000000e+00> : vector<14x448xf32>
    %36 = tpu.matmul %35, %33, %cst_36 {dimension_numbers = #tpu.dot_dimension_numbers<[1], [0], [0], [1], [0, 0, 1, 1], [], []>} : vector<14x32xbf16>, vector<32x448xbf16>, vector<14x448xf32> -> vector<14x448xf32>
    %37 = arith.addf %27, %36 : vector<14x448xf32>
    %c0_37 = arith.constant 0 : index
    %c2_38 = arith.constant 2 : index
    %c0_39 = arith.constant 0 : index
    %38 = vector.load %arg1[%c0_37, %c2_38, %c0_39] : memref<1x16x32xbf16, #tpu.memory_space<vmem>>, vector<1x14x32xbf16>
    %39 = vector.shape_cast %38 : vector<1x14x32xbf16> to vector<14x32xbf16>
    %cst_40 = arith.constant dense<0.000000e+00> : vector<14x448xf32>
    %40 = tpu.matmul %39, %33, %cst_40 {dimension_numbers = #tpu.dot_dimension_numbers<[1], [0], [0], [1], [0, 0, 1, 1], [], []>} : vector<14x32xbf16>, vector<32x448xbf16>, vector<14x448xf32> -> vector<14x448xf32>
    %41 = arith.addf %31, %40 : vector<14x448xf32>
    %c4 = arith.constant 4 : index
    %c0_41 = arith.constant 0 : index
    %c0_42 = arith.constant 0 : index
    %42 = vector.load %arg3[%c4, %c0_41, %c0_42] : memref<5x32x448xbf16, #tpu.memory_space<vmem>>, vector<1x32x448xbf16>
    %43 = vector.shape_cast %42 : vector<1x32x448xbf16> to vector<32x448xbf16>
    %c0_43 = arith.constant 0 : index
    %c2_44 = arith.constant 2 : index
    %c0_45 = arith.constant 0 : index
    %44 = vector.load %arg1[%c0_43, %c2_44, %c0_45] : memref<1x16x32xbf16, #tpu.memory_space<vmem>>, vector<1x14x32xbf16>
    %45 = vector.shape_cast %44 : vector<1x14x32xbf16> to vector<14x32xbf16>
    %cst_46 = arith.constant dense<0.000000e+00> : vector<14x448xf32>
    %46 = tpu.matmul %45, %43, %cst_46 {dimension_numbers = #tpu.dot_dimension_numbers<[1], [0], [0], [1], [0, 0, 1, 1], [], []>} : vector<14x32xbf16>, vector<32x448xbf16>, vector<14x448xf32> -> vector<14x448xf32>
    %47 = arith.addf %37, %46 : vector<14x448xf32>
    %c0_47 = arith.constant 0 : index
    %c2_48 = arith.constant 2 : index
    %c0_49 = arith.constant 0 : index
    %48 = vector.load %arg2[%c0_47, %c2_48, %c0_49] : memref<1x16x32xbf16, #tpu.memory_space<vmem>>, vector<1x14x32xbf16>
    %49 = vector.shape_cast %48 : vector<1x14x32xbf16> to vector<14x32xbf16>
    %cst_50 = arith.constant dense<0.000000e+00> : vector<14x448xf32>
    %50 = tpu.matmul %49, %43, %cst_50 {dimension_numbers = #tpu.dot_dimension_numbers<[1], [0], [0], [1], [0, 0, 1, 1], [], []>} : vector<14x32xbf16>, vector<32x448xbf16>, vector<14x448xf32> -> vector<14x448xf32>
    %51 = arith.addf %41, %50 : vector<14x448xf32>
    %52 = arith.maximumf %47, %51 : vector<14x448xf32>
    %c0_51 = arith.constant 0 : index
    %c0_52 = arith.constant 0 : index
    %53 = vector.load %arg4[%c0_51, %c0_52] : memref<1x448xf32, #tpu.memory_space<vmem>>, vector<1x448xf32>
    %54 = vector.broadcast %53 : vector<1x448xf32> to vector<14x448xf32>
    %55 = arith.addf %52, %54 : vector<14x448xf32>
    %cst_53 = arith.constant 0.000000e+00 : f32
    %56 = vector.broadcast %cst_53 : f32 to vector<14x448xf32>
    %57 = arith.maximumf %55, %56 : vector<14x448xf32>
    %58 = vector.extract_strided_slice %57 {offsets = [0, 0], sizes = [14, 224], strides = [1, 1]} : vector<14x448xf32> to vector<14x224xf32>
    %59 = vector.extract_strided_slice %57 {offsets = [0, 224], sizes = [14, 224], strides = [1, 1]} : vector<14x448xf32> to vector<14x224xf32>
    %60 = arith.maximumf %58, %59 : vector<14x224xf32>
    %61 = arith.truncf %60 : vector<14x224xf32> to vector<14x224xbf16>
    %c0_54 = arith.constant 0 : index
    %c0_55 = arith.constant 0 : index
    %c0_56 = arith.constant 0 : index
    %62 = vector.load %arg5[%c0_54, %c0_55, %c0_56] : memref<1x14x224xbf16, #tpu.memory_space<vmem>>, vector<1x14x224xbf16>
    %63 = vector.shape_cast %62 : vector<1x14x224xbf16> to vector<14x224xbf16>
    %64 = vector.shape_cast %61 : vector<14x224xbf16> to vector<1x14x224xbf16>
    tpu.vector_store %arg5[%c0_54, %c0_55, %c0_56], %64 {strides = array<i32>} : memref<1x14x224xbf16, #tpu.memory_space<vmem>>, vector<1x14x224xbf16>,
    return
  }
  func.func @transform_0(%arg0: i32) -> (i32, i32, i32) {
    %c0_i32 = arith.constant 0 : i32
    %c0_i32_0 = arith.constant 0 : i32
    %c0_i32_1 = arith.constant 0 : i32
    return %arg0, %c0_i32, %c0_i32_0 : i32, i32, i32
  }
  func.func @transform_1(%arg0: i32) -> (i32, i32, i32) {
    %c0_i32 = arith.constant 0 : i32
    %c0_i32_0 = arith.constant 0 : i32
    %c0_i32_1 = arith.constant 0 : i32
    return %arg0, %c0_i32, %c0_i32_0 : i32, i32, i32
  }
  func.func @transform_2(%arg0: i32) -> (i32, i32, i32) {
    %c0_i32 = arith.constant 0 : i32
    %c0_i32_0 = arith.constant 0 : i32
    %c0_i32_1 = arith.constant 0 : i32
    %c0_i32_2 = arith.constant 0 : i32
    return %c0_i32, %c0_i32_0, %c0_i32_1 : i32, i32, i32
  }
  func.func @transform_3(%arg0: i32) -> (i32, i32) {
    %c0_i32 = arith.constant 0 : i32
    %c0_i32_0 = arith.constant 0 : i32
    %c0_i32_1 = arith.constant 0 : i32
    return %c0_i32, %c0_i32_0 : i32, i32
  }
  func.func @transform_4(%arg0: i32) -> (i32, i32, i32) {
    %c0_i32 = arith.constant 0 : i32
    %c0_i32_0 = arith.constant 0 : i32
    %c0_i32_1 = arith.constant 0 : i32
    return %arg0, %c0_i32, %c0_i32_0 : i32, i32, i32
  }
}

module attributes {stable_mosaic.version = 11 : i64} {
  func.func @_conv_pool_kernel(%arg0: i32, %arg1: memref<1x9x288xbf16, #tpu.memory_space<vmem>>, %arg2: memref<1x9x288xbf16, #tpu.memory_space<vmem>>, %arg3: memref<5x288x448xbf16, #tpu.memory_space<vmem>>, %arg4: memref<1x448xf32, #tpu.memory_space<vmem>>, %arg5: memref<1x7x224xbf16, #tpu.memory_space<vmem>>) attributes {dimension_semantics = [#tpu.dimension_semantics<parallel>], iteration_bounds = array<i64: 2>, scalar_prefetch = 0 : i64, scratch_operands = 0 : i64, tpu.core_type = #tpu.core_type<tc>, window_params = [{transform_indices = @transform_0, window_bounds = array<i64: 1, 9, 288>}, {transform_indices = @transform_1, window_bounds = array<i64: 1, 9, 288>}, {pipeline_mode = #tpu.pipeline_mode<synchronous>, transform_indices = @transform_2, window_bounds = array<i64: 5, 288, 448>}, {pipeline_mode = #tpu.pipeline_mode<synchronous>, transform_indices = @transform_3, window_bounds = array<i64: 1, 448>}, {transform_indices = @transform_4, window_bounds = array<i64: 1, 7, 224>}]} {
    %cst = arith.constant 0.000000e+00 : f32
    %0 = vector.broadcast %cst : f32 to vector<7x448xf32>
    %cst_0 = arith.constant 0.000000e+00 : f32
    %1 = vector.broadcast %cst_0 : f32 to vector<7x448xf32>
    %c0 = arith.constant 0 : index
    %c0_1 = arith.constant 0 : index
    %c0_2 = arith.constant 0 : index
    %2 = vector.load %arg3[%c0, %c0_1, %c0_2] : memref<5x288x448xbf16, #tpu.memory_space<vmem>>, vector<1x288x448xbf16>
    %3 = vector.shape_cast %2 : vector<1x288x448xbf16> to vector<288x448xbf16>
    %c0_3 = arith.constant 0 : index
    %c0_4 = arith.constant 0 : index
    %c0_5 = arith.constant 0 : index
    %4 = vector.load %arg1[%c0_3, %c0_4, %c0_5] : memref<1x9x288xbf16, #tpu.memory_space<vmem>>, vector<1x7x288xbf16>
    %5 = vector.shape_cast %4 : vector<1x7x288xbf16> to vector<7x288xbf16>
    %cst_6 = arith.constant dense<0.000000e+00> : vector<7x448xf32>
    %6 = tpu.matmul %5, %3, %cst_6 {dimension_numbers = #tpu.dot_dimension_numbers<[1], [0], [0], [1], [0, 0, 1, 1], [], []>} : vector<7x288xbf16>, vector<288x448xbf16>, vector<7x448xf32> -> vector<7x448xf32>
    %7 = arith.addf %0, %6 : vector<7x448xf32>
    %c0_7 = arith.constant 0 : index
    %c0_8 = arith.constant 0 : index
    %c0_9 = arith.constant 0 : index
    %8 = vector.load %arg2[%c0_7, %c0_8, %c0_9] : memref<1x9x288xbf16, #tpu.memory_space<vmem>>, vector<1x7x288xbf16>
    %9 = vector.shape_cast %8 : vector<1x7x288xbf16> to vector<7x288xbf16>
    %cst_10 = arith.constant dense<0.000000e+00> : vector<7x448xf32>
    %10 = tpu.matmul %9, %3, %cst_10 {dimension_numbers = #tpu.dot_dimension_numbers<[1], [0], [0], [1], [0, 0, 1, 1], [], []>} : vector<7x288xbf16>, vector<288x448xbf16>, vector<7x448xf32> -> vector<7x448xf32>
    %11 = arith.addf %1, %10 : vector<7x448xf32>
    %c1 = arith.constant 1 : index
    %c0_11 = arith.constant 0 : index
    %c0_12 = arith.constant 0 : index
    %12 = vector.load %arg3[%c1, %c0_11, %c0_12] : memref<5x288x448xbf16, #tpu.memory_space<vmem>>, vector<1x288x448xbf16>
    %13 = vector.shape_cast %12 : vector<1x288x448xbf16> to vector<288x448xbf16>
    %c0_13 = arith.constant 0 : index
    %c0_14 = arith.constant 0 : index
    %c0_15 = arith.constant 0 : index
    %14 = vector.load %arg2[%c0_13, %c0_14, %c0_15] : memref<1x9x288xbf16, #tpu.memory_space<vmem>>, vector<1x7x288xbf16>
    %15 = vector.shape_cast %14 : vector<1x7x288xbf16> to vector<7x288xbf16>
    %cst_16 = arith.constant dense<0.000000e+00> : vector<7x448xf32>
    %16 = tpu.matmul %15, %13, %cst_16 {dimension_numbers = #tpu.dot_dimension_numbers<[1], [0], [0], [1], [0, 0, 1, 1], [], []>} : vector<7x288xbf16>, vector<288x448xbf16>, vector<7x448xf32> -> vector<7x448xf32>
    %17 = arith.addf %7, %16 : vector<7x448xf32>
    %c0_17 = arith.constant 0 : index
    %c1_18 = arith.constant 1 : index
    %c0_19 = arith.constant 0 : index
    %18 = vector.load %arg1[%c0_17, %c1_18, %c0_19] : memref<1x9x288xbf16, #tpu.memory_space<vmem>>, vector<1x7x288xbf16>
    %19 = vector.shape_cast %18 : vector<1x7x288xbf16> to vector<7x288xbf16>
    %cst_20 = arith.constant dense<0.000000e+00> : vector<7x448xf32>
    %20 = tpu.matmul %19, %13, %cst_20 {dimension_numbers = #tpu.dot_dimension_numbers<[1], [0], [0], [1], [0, 0, 1, 1], [], []>} : vector<7x288xbf16>, vector<288x448xbf16>, vector<7x448xf32> -> vector<7x448xf32>
    %21 = arith.addf %11, %20 : vector<7x448xf32>
    %c2 = arith.constant 2 : index
    %c0_21 = arith.constant 0 : index
    %c0_22 = arith.constant 0 : index
    %22 = vector.load %arg3[%c2, %c0_21, %c0_22] : memref<5x288x448xbf16, #tpu.memory_space<vmem>>, vector<1x288x448xbf16>
    %23 = vector.shape_cast %22 : vector<1x288x448xbf16> to vector<288x448xbf16>
    %c0_23 = arith.constant 0 : index
    %c1_24 = arith.constant 1 : index
    %c0_25 = arith.constant 0 : index
    %24 = vector.load %arg1[%c0_23, %c1_24, %c0_25] : memref<1x9x288xbf16, #tpu.memory_space<vmem>>, vector<1x7x288xbf16>
    %25 = vector.shape_cast %24 : vector<1x7x288xbf16> to vector<7x288xbf16>
    %cst_26 = arith.constant dense<0.000000e+00> : vector<7x448xf32>
    %26 = tpu.matmul %25, %23, %cst_26 {dimension_numbers = #tpu.dot_dimension_numbers<[1], [0], [0], [1], [0, 0, 1, 1], [], []>} : vector<7x288xbf16>, vector<288x448xbf16>, vector<7x448xf32> -> vector<7x448xf32>
    %27 = arith.addf %17, %26 : vector<7x448xf32>
    %c0_27 = arith.constant 0 : index
    %c1_28 = arith.constant 1 : index
    %c0_29 = arith.constant 0 : index
    %28 = vector.load %arg2[%c0_27, %c1_28, %c0_29] : memref<1x9x288xbf16, #tpu.memory_space<vmem>>, vector<1x7x288xbf16>
    %29 = vector.shape_cast %28 : vector<1x7x288xbf16> to vector<7x288xbf16>
    %cst_30 = arith.constant dense<0.000000e+00> : vector<7x448xf32>
    %30 = tpu.matmul %29, %23, %cst_30 {dimension_numbers = #tpu.dot_dimension_numbers<[1], [0], [0], [1], [0, 0, 1, 1], [], []>} : vector<7x288xbf16>, vector<288x448xbf16>, vector<7x448xf32> -> vector<7x448xf32>
    %31 = arith.addf %21, %30 : vector<7x448xf32>
    %c3 = arith.constant 3 : index
    %c0_31 = arith.constant 0 : index
    %c0_32 = arith.constant 0 : index
    %32 = vector.load %arg3[%c3, %c0_31, %c0_32] : memref<5x288x448xbf16, #tpu.memory_space<vmem>>, vector<1x288x448xbf16>
    %33 = vector.shape_cast %32 : vector<1x288x448xbf16> to vector<288x448xbf16>
    %c0_33 = arith.constant 0 : index
    %c1_34 = arith.constant 1 : index
    %c0_35 = arith.constant 0 : index
    %34 = vector.load %arg2[%c0_33, %c1_34, %c0_35] : memref<1x9x288xbf16, #tpu.memory_space<vmem>>, vector<1x7x288xbf16>
    %35 = vector.shape_cast %34 : vector<1x7x288xbf16> to vector<7x288xbf16>
    %cst_36 = arith.constant dense<0.000000e+00> : vector<7x448xf32>
    %36 = tpu.matmul %35, %33, %cst_36 {dimension_numbers = #tpu.dot_dimension_numbers<[1], [0], [0], [1], [0, 0, 1, 1], [], []>} : vector<7x288xbf16>, vector<288x448xbf16>, vector<7x448xf32> -> vector<7x448xf32>
    %37 = arith.addf %27, %36 : vector<7x448xf32>
    %c0_37 = arith.constant 0 : index
    %c2_38 = arith.constant 2 : index
    %c0_39 = arith.constant 0 : index
    %38 = vector.load %arg1[%c0_37, %c2_38, %c0_39] : memref<1x9x288xbf16, #tpu.memory_space<vmem>>, vector<1x7x288xbf16>
    %39 = vector.shape_cast %38 : vector<1x7x288xbf16> to vector<7x288xbf16>
    %cst_40 = arith.constant dense<0.000000e+00> : vector<7x448xf32>
    %40 = tpu.matmul %39, %33, %cst_40 {dimension_numbers = #tpu.dot_dimension_numbers<[1], [0], [0], [1], [0, 0, 1, 1], [], []>} : vector<7x288xbf16>, vector<288x448xbf16>, vector<7x448xf32> -> vector<7x448xf32>
    %41 = arith.addf %31, %40 : vector<7x448xf32>
    %c4 = arith.constant 4 : index
    %c0_41 = arith.constant 0 : index
    %c0_42 = arith.constant 0 : index
    %42 = vector.load %arg3[%c4, %c0_41, %c0_42] : memref<5x288x448xbf16, #tpu.memory_space<vmem>>, vector<1x288x448xbf16>
    %43 = vector.shape_cast %42 : vector<1x288x448xbf16> to vector<288x448xbf16>
    %c0_43 = arith.constant 0 : index
    %c2_44 = arith.constant 2 : index
    %c0_45 = arith.constant 0 : index
    %44 = vector.load %arg1[%c0_43, %c2_44, %c0_45] : memref<1x9x288xbf16, #tpu.memory_space<vmem>>, vector<1x7x288xbf16>
    %45 = vector.shape_cast %44 : vector<1x7x288xbf16> to vector<7x288xbf16>
    %cst_46 = arith.constant dense<0.000000e+00> : vector<7x448xf32>
    %46 = tpu.matmul %45, %43, %cst_46 {dimension_numbers = #tpu.dot_dimension_numbers<[1], [0], [0], [1], [0, 0, 1, 1], [], []>} : vector<7x288xbf16>, vector<288x448xbf16>, vector<7x448xf32> -> vector<7x448xf32>
    %47 = arith.addf %37, %46 : vector<7x448xf32>
    %c0_47 = arith.constant 0 : index
    %c2_48 = arith.constant 2 : index
    %c0_49 = arith.constant 0 : index
    %48 = vector.load %arg2[%c0_47, %c2_48, %c0_49] : memref<1x9x288xbf16, #tpu.memory_space<vmem>>, vector<1x7x288xbf16>
    %49 = vector.shape_cast %48 : vector<1x7x288xbf16> to vector<7x288xbf16>
    %cst_50 = arith.constant dense<0.000000e+00> : vector<7x448xf32>
    %50 = tpu.matmul %49, %43, %cst_50 {dimension_numbers = #tpu.dot_dimension_numbers<[1], [0], [0], [1], [0, 0, 1, 1], [], []>} : vector<7x288xbf16>, vector<288x448xbf16>, vector<7x448xf32> -> vector<7x448xf32>
    %51 = arith.addf %41, %50 : vector<7x448xf32>
    %52 = arith.maximumf %47, %51 : vector<7x448xf32>
    %c0_51 = arith.constant 0 : index
    %c0_52 = arith.constant 0 : index
    %53 = vector.load %arg4[%c0_51, %c0_52] : memref<1x448xf32, #tpu.memory_space<vmem>>, vector<1x448xf32>
    %54 = vector.broadcast %53 : vector<1x448xf32> to vector<7x448xf32>
    %55 = arith.addf %52, %54 : vector<7x448xf32>
    %cst_53 = arith.constant 0.000000e+00 : f32
    %56 = vector.broadcast %cst_53 : f32 to vector<7x448xf32>
    %57 = arith.maximumf %55, %56 : vector<7x448xf32>
    %58 = vector.extract_strided_slice %57 {offsets = [0, 0], sizes = [7, 224], strides = [1, 1]} : vector<7x448xf32> to vector<7x224xf32>
    %59 = vector.extract_strided_slice %57 {offsets = [0, 224], sizes = [7, 224], strides = [1, 1]} : vector<7x448xf32> to vector<7x224xf32>
    %60 = arith.maximumf %58, %59 : vector<7x224xf32>
    %61 = arith.truncf %60 : vector<7x224xf32> to vector<7x224xbf16>
    %c0_54 = arith.constant 0 : index
    %c0_55 = arith.constant 0 : index
    %c0_56 = arith.constant 0 : index
    %62 = vector.load %arg5[%c0_54, %c0_55, %c0_56] : memref<1x7x224xbf16, #tpu.memory_space<vmem>>, vector<1x7x224xbf16>
    %63 = vector.shape_cast %62 : vector<1x7x224xbf16> to vector<7x224xbf16>
    %64 = vector.shape_cast %61 : vector<7x224xbf16> to vector<1x7x224xbf16>
    tpu.vector_store %arg5[%c0_54, %c0_55, %c0_56], %64 {strides = array<i32>} : memref<1x7x224xbf16, #tpu.memory_space<vmem>>, vector<1x7x224xbf16>,
    return
  }
  func.func @transform_0(%arg0: i32) -> (i32, i32, i32) {
    %c0_i32 = arith.constant 0 : i32
    %c0_i32_0 = arith.constant 0 : i32
    %c0_i32_1 = arith.constant 0 : i32
    return %arg0, %c0_i32, %c0_i32_0 : i32, i32, i32
  }
  func.func @transform_1(%arg0: i32) -> (i32, i32, i32) {
    %c0_i32 = arith.constant 0 : i32
    %c0_i32_0 = arith.constant 0 : i32
    %c0_i32_1 = arith.constant 0 : i32
    return %arg0, %c0_i32, %c0_i32_0 : i32, i32, i32
  }
  func.func @transform_2(%arg0: i32) -> (i32, i32, i32) {
    %c0_i32 = arith.constant 0 : i32
    %c0_i32_0 = arith.constant 0 : i32
    %c0_i32_1 = arith.constant 0 : i32
    %c0_i32_2 = arith.constant 0 : i32
    return %c0_i32, %c0_i32_0, %c0_i32_1 : i32, i32, i32
  }
  func.func @transform_3(%arg0: i32) -> (i32, i32) {
    %c0_i32 = arith.constant 0 : i32
    %c0_i32_0 = arith.constant 0 : i32
    %c0_i32_1 = arith.constant 0 : i32
    return %c0_i32, %c0_i32_0 : i32, i32
  }
  func.func @transform_4(%arg0: i32) -> (i32, i32, i32) {
    %c0_i32 = arith.constant 0 : i32
    %c0_i32_0 = arith.constant 0 : i32
    %c0_i32_1 = arith.constant 0 : i32
    return %arg0, %c0_i32, %c0_i32_0 : i32, i32, i32
  }
}

module attributes {stable_mosaic.version = 11 : i64} {
  func.func @_fc_kernel(%arg0: i32, %arg1: memref<2x1568xf32, #tpu.memory_space<vmem>>, %arg2: memref<1568x128xf32, #tpu.memory_space<vmem>>, %arg3: memref<1x128xf32, #tpu.memory_space<vmem>>, %arg4: memref<2x128xf32, #tpu.memory_space<vmem>>) attributes {dimension_semantics = [#tpu.dimension_semantics<arbitrary>], iteration_bounds = array<i64: 1>, scalar_prefetch = 0 : i64, scratch_operands = 0 : i64, tpu.core_type = #tpu.core_type<tc>, window_params = [{pipeline_mode = #tpu.pipeline_mode<synchronous>, transform_indices = @transform_0, window_bounds = array<i64: 2, 1568>}, {pipeline_mode = #tpu.pipeline_mode<synchronous>, transform_indices = @transform_1, window_bounds = array<i64: 1568, 128>}, {pipeline_mode = #tpu.pipeline_mode<synchronous>, transform_indices = @transform_2, window_bounds = array<i64: 1, 128>}, {pipeline_mode = #tpu.pipeline_mode<synchronous>, transform_indices = @transform_3, window_bounds = array<i64: 2, 128>}]} {
    %c0 = arith.constant 0 : index
    %c0_0 = arith.constant 0 : index
    %0 = vector.load %arg1[%c0, %c0_0] : memref<2x1568xf32, #tpu.memory_space<vmem>>, vector<2x1568xf32>
    %c0_1 = arith.constant 0 : index
    %c0_2 = arith.constant 0 : index
    %1 = vector.load %arg2[%c0_1, %c0_2] : memref<1568x128xf32, #tpu.memory_space<vmem>>, vector<1568x128xf32>
    %cst = arith.constant dense<0.000000e+00> : vector<2x128xf32>
    %2 = tpu.matmul %0, %1, %cst {dimension_numbers = #tpu.dot_dimension_numbers<[1], [0], [0], [1], [0, 0, 1, 1], [], []>} : vector<2x1568xf32>, vector<1568x128xf32>, vector<2x128xf32> -> vector<2x128xf32>
    %c0_3 = arith.constant 0 : index
    %c0_4 = arith.constant 0 : index
    %3 = vector.load %arg3[%c0_3, %c0_4] : memref<1x128xf32, #tpu.memory_space<vmem>>, vector<1x128xf32>
    %4 = vector.broadcast %3 : vector<1x128xf32> to vector<2x128xf32>
    %5 = arith.addf %2, %4 : vector<2x128xf32>
    %c0_5 = arith.constant 0 : index
    %c0_6 = arith.constant 0 : index
    %6 = vector.load %arg4[%c0_5, %c0_6] : memref<2x128xf32, #tpu.memory_space<vmem>>, vector<2x128xf32>
    tpu.vector_store %arg4[%c0_5, %c0_6], %5 {strides = array<i32>} : memref<2x128xf32, #tpu.memory_space<vmem>>, vector<2x128xf32>,
    return
  }
  func.func @transform_0(%arg0: i32) -> (i32, i32) {
    %c0_i32 = arith.constant 0 : i32
    %c0_i32_0 = arith.constant 0 : i32
    %c0_i32_1 = arith.constant 0 : i32
    return %c0_i32, %c0_i32_0 : i32, i32
  }
  func.func @transform_1(%arg0: i32) -> (i32, i32) {
    %c0_i32 = arith.constant 0 : i32
    %c0_i32_0 = arith.constant 0 : i32
    %c0_i32_1 = arith.constant 0 : i32
    return %c0_i32, %c0_i32_0 : i32, i32
  }
  func.func @transform_2(%arg0: i32) -> (i32, i32) {
    %c0_i32 = arith.constant 0 : i32
    %c0_i32_0 = arith.constant 0 : i32
    %c0_i32_1 = arith.constant 0 : i32
    return %c0_i32, %c0_i32_0 : i32, i32
  }
  func.func @transform_3(%arg0: i32) -> (i32, i32) {
    %c0_i32 = arith.constant 0 : i32
    %c0_i32_0 = arith.constant 0 : i32
    %c0_i32_1 = arith.constant 0 : i32
    return %c0_i32, %c0_i32_0 : i32, i32
  }
}

</mosaic_0001>

<llo_original>
// kernel: cnn_forward.3
$region0: #{cnn_forward.3}
  #allocation0 [shape = 'u32[]', space=smem, size = 0x4, offset = 0x4, fixed_abs, tag = 'smem constant byte address 0x4 - core index']
  #allocation1 [shape = 'u32[144,128]{1,0:T(1,128)}', space=vmem, size = 0x12000, scoped, tag = 'internal scratch']
  %s0 = inlined_call_operand.vmem [shape: bf16[2,16,32], index: 0, kind: input, shape index: {}]
  %s1 = inlined_call_operand.vmem [shape: bf16[2,16,32], index: 1, kind: input, shape index: {}]
  %s2 = inlined_call_operand.hbm [shape: bf16[5,32,448], index: 2, kind: input, shape index: {}]
  %s3 = inlined_call_operand.hbm [shape: f32[1,448], index: 3, kind: input, shape index: {}]
  %s4 = inlined_call_operand.vmem [shape: bf16[2,14,224], index: 4, kind: output, shape index: {}]
  %s5 = sld [smem:[#allocation0]]
  $region57: #{cnn_forward.3} parent=0
    _
  %s7 = ssub.s32 1, %s5
  %s8 = scalar_select 0, %s7, %s5
  $region1: #{cnn_forward.3} parent=0
    #allocation2 [shape = 'u8[163840]{0}', space=vmem, size = 0x28000, scoped, tag = 'input window, operand 2, single buffered']
    #allocation3 [shape = 's32[2]{0}', space=sflag, size = 0x8, scoped, tag = 'scoped memory for cnn_forward.3']
    #allocation4 [shape = 'u8[2048]{0}', space=vmem, size = 0x800, scoped, tag = 'input window, operand 3, single buffered']
    #allocation5 [shape = 's32[1]{0}', space=sflag, size = 0x4, scoped, tag = 'scoped memory for cnn_forward.3']
    %9 = vsyncpa [#allocation3], 0
    %10 = vsyncpa [#allocation5], 0
    loop: start=0, step=1, limit=4
    $region2: #{cnn_forward.3} parent=1 // loop_pre_header
      _
    $region3: #{cnn_forward.3} parent=1 // loop_header
      %s12 = sphi 0, %s16
      %p13 = scmp.ge.s32.totalorder %s12, 4
      %s22 = sphi 0, %s24
      %s25 = sphi 0, %s22
      %s26 = sphi 0, %s25
      %s42 = sphi 0, %s26
      %s48 = sphi 0, %s50
      %s51 = sphi 0, %s48
      %s52 = sphi 0, %s51
      %s68 = sphi 0, %s52
      %s72 = sphi 0, %s72
      %s74 = sphi 0, %s72
      %s75 = sphi 0, %s74
      %s89 = sphi 0, %s75
      %s93 = sphi 0, %s93
      %s95 = sphi 0, %s93
      %s96 = sphi 0, %s95
      %s110 = sphi 0, %s96
      %s116 = sphi 0, %s118
      %s119 = sphi 0, %s116
      %s120 = sphi 0, %s119
      %s136 = sphi 0, %s120
    $region4: #{cnn_forward.3} parent=1 // loop_header_branch
      %15 = sbr.rel (%p13) target = $region8
    $region5: #{cnn_forward.3} parent=1 // loop_body
      %s17 = ssub.s32 %s12, 1
      %s18 = ssub.s32 %s12, 2
      %s19 = sadd.s32 %s12, 1
      %s20 = ssub.s32 %s12, %s19
      %p21 = scmp.eq.s32.totalorder %s20, 0
      %s23 = sadd.s32 %s22, 1
      %s24 = scalar_select %p21, %s22, %s23
      %p27 = pneg %p21
      %p28 = scmp.eq.s32.totalorder %s12, 1
      %p29 = por %p27, %p28
      %p30 = scmp.ne.s32.totalorder %s22, %s25
      %p31 = scmp.eq.s32.totalorder %s12, 0
      %p32 = por %p30, %p31
      %p33 = scmp.ne.s32.totalorder %s22, %s25
      %p34 = scmp.eq.s32.totalorder %s17, 1
      %p35 = por %p33, %p34
      %p36 = scmp.ne.s32.totalorder %s25, %s26
      %p37 = scmp.eq.s32.totalorder %s17, 0
      %p38 = por %p36, %p37
      %p39 = scmp.ne.s32.totalorder %s25, %s26
      %p40 = scmp.eq.s32.totalorder %s18, 1
      %p41 = por %p39, %p40
      %p43 = scmp.ne.s32.totalorder %s26, %s42
      %p44 = scmp.eq.s32.totalorder %s18, 0
      %p45 = por %p43, %p44
      %s46 = ssub.s32 %s12, %s19
      %p47 = scmp.eq.s32.totalorder %s46, 0
      %s49 = sadd.s32 %s48, 1
      %s50 = scalar_select %p47, %s48, %s49
      %p53 = pneg %p47
      %p54 = scmp.eq.s32.totalorder %s12, 1
      %p55 = por %p53, %p54
      %p56 = scmp.ne.s32.totalorder %s48, %s51
      %p57 = scmp.eq.s32.totalorder %s12, 0
      %p58 = por %p56, %p57
      %p59 = scmp.ne.s32.totalorder %s48, %s51
      %p60 = scmp.eq.s32.totalorder %s17, 1
      %p61 = por %p59, %p60
      %p62 = scmp.ne.s32.totalorder %s51, %s52
      %p63 = scmp.eq.s32.totalorder %s17, 0
      %p64 = por %p62, %p63
      %p65 = scmp.ne.s32.totalorder %s51, %s52
      %p66 = scmp.eq.s32.totalorder %s18, 1
      %p67 = por %p65, %p66
      %p69 = scmp.ne.s32.totalorder %s52, %s68
      %p70 = scmp.eq.s32.totalorder %s18, 0
      %p71 = por %p69, %p70
      %s73 = sadd.s32 %s72, 1
      %p76 = scmp.eq.s32.totalorder %s12, 1
      %p77 = scmp.ne.s32.totalorder %s72, %s74
      %p78 = scmp.eq.s32.totalorder %s12, 0
      %p79 = por %p77, %p78
      %p80 = scmp.ne.s32.totalorder %s72, %s74
      %p81 = scmp.eq.s32.totalorder %s17, 1
      %p82 = por %p80, %p81
      %p83 = scmp.ne.s32.totalorder %s74, %s75
      %p84 = scmp.eq.s32.totalorder %s17, 0
      %p85 = por %p83, %p84
      %p86 = scmp.ne.s32.totalorder %s74, %s75
      %p87 = scmp.eq.s32.totalorder %s18, 1
      %p88 = por %p86, %p87
      %p90 = scmp.ne.s32.totalorder %s75, %s89
      %p91 = scmp.eq.s32.totalorder %s18, 0
      %p92 = por %p90, %p91
      %s94 = sadd.s32 %s93, 1
      %p97 = scmp.eq.s32.totalorder %s12, 1
      %p98 = scmp.ne.s32.totalorder %s93, %s95
      %p99 = scmp.eq.s32.totalorder %s12, 0
      %p100 = por %p98, %p99
      %p101 = scmp.ne.s32.totalorder %s93, %s95
      %p102 = scmp.eq.s32.totalorder %s17, 1
      %p103 = por %p101, %p102
      %p104 = scmp.ne.s32.totalorder %s95, %s96
      %p105 = scmp.eq.s32.totalorder %s17, 0
      %p106 = por %p104, %p105
      %p107 = scmp.ne.s32.totalorder %s95, %s96
      %p108 = scmp.eq.s32.totalorder %s18, 1
      %p109 = por %p107, %p108
      %p111 = scmp.ne.s32.totalorder %s96, %s110
      %p112 = scmp.eq.s32.totalorder %s18, 0
      %p113 = por %p111, %p112
      %s114 = ssub.s32 %s12, %s19
      %p115 = scmp.eq.s32.totalorder %s114, 0
      %s117 = sadd.s32 %s116, 1
      %s118 = scalar_select %p115, %s116, %s117
      %p121 = pneg %p115
      %p122 = scmp.eq.s32.totalorder %s12, 1
      %p123 = por %p121, %p122
      %p124 = scmp.ne.s32.totalorder %s116, %s119
      %p125 = scmp.eq.s32.totalorder %s12, 0
      %p126 = por %p124, %p125
      %p127 = scmp.ne.s32.totalorder %s116, %s119
      %p128 = scmp.eq.s32.totalorder %s17, 1
      %p129 = por %p127, %p128
      %p130 = scmp.ne.s32.totalorder %s119, %s120
      %p131 = scmp.eq.s32.totalorder %s17, 0
      %p132 = por %p130, %p131
      %p133 = scmp.ne.s32.totalorder %s119, %s120
      %p134 = scmp.eq.s32.totalorder %s18, 1
      %p135 = por %p133, %p134
      %p137 = scmp.ne.s32.totalorder %s120, %s136
      %p138 = scmp.eq.s32.totalorder %s18, 0
      %p139 = por %p137, %p138
      %p140 = scmp.le.s32.totalorder 1, %s12
      %p141 = scmp.lt.s32.totalorder %s12, 3
      %p142 = pnand %p140, %p141
      %p143 = pneg %p142
      // Predicated region
      $region9: #{cnn_forward.3} parent=5 // pred_check
        _
      $region10: #{cnn_forward.3} parent=5 // pred_check_branch
        %145 = sbr.rel (%p142) target = $region12
      $region11: #{cnn_forward.3} parent=5 // pred_region
        %s146 = ssub.s32 %s12, 1
        // Predicated region
        $region13: #{cnn_forward.3} parent=11 // pred_check
          %p147 = pneg %p85
        $region14: #{cnn_forward.3} parent=11 // pred_check_branch
          %149 = sbr.rel (%p147) target = $region16
        $region15: #{cnn_forward.3} parent=11 // pred_region
          %s151 = ssub.s32 5120, 5120
          %152 = vsyncadd [#allocation3], %s151
          %s153 = sshll.u32 [#allocation2], 4
          %s154 = int_to_ptr.vmem [resolvable:$true] %s153
          %159 = dma.hbm_to_vmem [thread:$0]  %s2, 5120, %s154, [#allocation3], 256, 256, 16
        $region16: #{cnn_forward.3} parent=11 // pred_fallthru
          _
        // Predicated region
        $region17: #{cnn_forward.3} parent=11 // pred_check
          %p160 = pneg %p106
        $region18: #{cnn_forward.3} parent=11 // pred_check_branch
          %162 = sbr.rel (%p160) target = $region20
        $region19: #{cnn_forward.3} parent=11 // pred_region
          %s164 = ssub.s32 64, 64
          %165 = vsyncadd [#allocation5], %s164
          %s167 = sshll.u32 [#allocation4], 4
          %s168 = int_to_ptr.vmem [resolvable:$true] %s167
          %170 = dma.hbm_to_vmem [thread:$0]  %s3, 64, %s168, [#allocation5]
        $region20: #{cnn_forward.3} parent=11 // pred_fallthru
          _
      $region12: #{cnn_forward.3} parent=5 // pred_fallthru
        _
      %p171 = scmp.lt.s32.totalorder %s12, 2
      // Predicated region
      $region21: #{cnn_forward.3} parent=5 // pred_check
        %p172 = pneg %p171
      $region22: #{cnn_forward.3} parent=5 // pred_check_branch
        %174 = sbr.rel (%p172) target = $region24
      $region23: #{cnn_forward.3} parent=5 // pred_region
        // Predicated region
        $region25: #{cnn_forward.3} parent=23 // pred_check
          %p175 = pneg %p32
        $region26: #{cnn_forward.3} parent=23 // pred_check_branch
          %177 = sbr.rel (%p175) target = $region28
        $region27: #{cnn_forward.3} parent=23 // pred_region
          %p178 = scmp.lt.s32.totalorder %s12, 1
          %s179 = scalar_select %p178, %s12, 1
          %s180 = smul.addr %s179, 2
          %s181 = smul.addr %s180, 4
          %s182 = scalar_lea.vmem %s0, %s181
        $region28: #{cnn_forward.3} parent=23 // pred_fallthru
          _
        // Predicated region
        $region29: #{cnn_forward.3} parent=23 // pred_check
          %p183 = pneg %p58
        $region30: #{cnn_forward.3} parent=23 // pred_check_branch
          %185 = sbr.rel (%p183) target = $region32
        $region31: #{cnn_forward.3} parent=23 // pred_region
          %p186 = scmp.lt.s32.totalorder %s12, 1
          %s187 = scalar_select %p186, %s12, 1
          %s188 = smul.addr %s187, 2
          %s189 = smul.addr %s188, 4
          %s190 = scalar_lea.vmem %s1, %s189
        $region32: #{cnn_forward.3} parent=23 // pred_fallthru
          _
      $region24: #{cnn_forward.3} parent=5 // pred_fallthru
        _
      %p191 = scmp.le.s32.totalorder 1, %s12
      %p192 = scmp.lt.s32.totalorder %s12, 3
      %p193 = pnand %p191, %p192
      %p194 = pneg %p193
      // Predicated region
      $region33: #{cnn_forward.3} parent=5 // pred_check
        _
      $region34: #{cnn_forward.3} parent=5 // pred_check_branch
        %196 = sbr.rel (%p193) target = $region36
      $region35: #{cnn_forward.3} parent=5 // pred_region
        %s197 = ssub.s32 %s12, 1
        // Predicated region
        $region37: #{cnn_forward.3} parent=35 // pred_check
          %p198 = pneg %p85
        $region38: #{cnn_forward.3} parent=35 // pred_check_branch
          %200 = sbr.rel (%p198) target = $region40
        $region39: #{cnn_forward.3} parent=35 // pred_region
          %201 = dma.done [#allocation3], 5120
        $region40: #{cnn_forward.3} parent=35 // pred_fallthru
          _
        // Predicated region
        $region41: #{cnn_forward.3} parent=35 // pred_check
          %p202 = pneg %p106
        $region42: #{cnn_forward.3} parent=35 // pred_check_branch
          %204 = sbr.rel (%p202) target = $region44
        $region43: #{cnn_forward.3} parent=35 // pred_region
          %205 = dma.done [#allocation5], 64
        $region44: #{cnn_forward.3} parent=35 // pred_fallthru
          _
        %p206 = scmp.lt.s32.totalorder %s17, 1
        %s207 = scalar_select %p206, %s17, 1
        %s208 = smul.addr %s207, 2
        %s209 = smul.addr %s208, 4
        %s210 = scalar_lea.vmem %s0, %s209
        %p211 = pneg %p38
        %p212 = pneg %p35
        %p213 = scmp.lt.s32.totalorder %s17, 1
        %s214 = scalar_select %p213, %s17, 1
        %s215 = smul.addr %s214, 2
        %s216 = smul.addr %s215, 4
        %s217 = scalar_lea.vmem %s1, %s216
        %p218 = pneg %p64
        %p219 = pneg %p61
        %p220 = pneg %p85
        %p221 = pneg %p82
        %p222 = pneg %p106
        %p223 = pneg %p103
        %p224 = pneg %p132
        %p225 = pneg %p129
        %p226 = scmp.lt.s32.totalorder %s17, 1
        %s227 = scalar_select %p226, %s17, 1
        %s228 = smul.addr %s227, 4
        %s229 = smul.addr %s228, 4
        %s230 = scalar_lea.vmem %s4, %s229
        %p231 = scmp.lt.s32.totalorder %s17, 1
        %s232 = scalar_select %p231, %s17, 1
        %s233 = smul.addr %s232, 2
        %s234 = smul.addr %s233, 4
        %s235 = scalar_lea.vmem %s0, %s234
        %p236 = scmp.lt.s32.totalorder %s17, 1
        %s237 = scalar_select %p236, %s17, 1
        %s238 = smul.addr %s237, 2
        %s239 = smul.addr %s238, 4
        %s240 = scalar_lea.vmem %s1, %s239
        %p241 = scmp.lt.s32.totalorder %s17, 1
        %s242 = scalar_select %p241, %s17, 1
        %s243 = smul.addr %s242, 4
        %s244 = smul.addr %s243, 4
        %s245 = scalar_lea.vmem %s4, %s244
        %v247 = vld [vmem:[#allocation2] sm:$0xff]
        %v248 = vld [vmem:[#allocation2 + $0x8] sm:$0xff]
        %v249 = vld [vmem:[#allocation2 + $0x10] sm:$0xff]
        %v250 = vld [vmem:[#allocation2 + $0x18] sm:$0xff]
        %v251 = vld [vmem:[#allocation2 + $0x20] sm:$0xff]
        %v252 = vld [vmem:[#allocation2 + $0x28] sm:$0xff]
        %v253 = vld [vmem:[#allocation2 + $0x30] sm:$0xff]
        %v254 = vld [vmem:[#allocation2 + $0x38] sm:$0xff]
        %v255 = vld [vmem:[%s235] sm:$0xf]
        %v256 = vld [vmem:[%s235 + $0x4] sm:$0x7]
        %v257 = vld [vmem:[%s240] sm:$0xf]
        %v258 = vld [vmem:[%s240 + $0x4] sm:$0x7]
        %s259 = scalar_lea.vmem [#allocation2], 64
        %v260 = vld [vmem:[%s259] sm:$0xff]
        %v261 = vld [vmem:[%s259 + $0x8] sm:$0xff]
        %v262 = vld [vmem:[%s259 + $0x10] sm:$0xff]
        %v263 = vld [vmem:[%s259 + $0x18] sm:$0xff]
        %v264 = vld [vmem:[%s259 + $0x20] sm:$0xff]
        %v265 = vld [vmem:[%s259 + $0x28] sm:$0xff]
        %v266 = vld [vmem:[%s259 + $0x30] sm:$0xff]
        %v267 = vld [vmem:[%s259 + $0x38] sm:$0xff]
        %v270 = vunpack.c.l.b16 %v257
        %v271 = vunpack.c.l.b16 %v258
        %v272 = vpack.c.b16 %v271, %v270
        %v281 = vunpack.c.l.b16 %v260
        %v282 = vunpack.c.h.b16 %v260
        %v283 = vunpack.c.l.b16 %v261
        %v284 = vunpack.c.h.b16 %v261
        %v285 = vunpack.c.l.b16 %v262
        %v286 = vunpack.c.h.b16 %v262
        %v287 = vunpack.c.l.b16 %v263
        %v288 = vunpack.c.h.b16 %v263
        %v289 = vunpack.c.l.b16 %v264
        %v290 = vunpack.c.h.b16 %v264
        %v291 = vunpack.c.l.b16 %v265
        %v292 = vunpack.c.h.b16 %v265
        %v293 = vunpack.c.l.b16 %v266
        %v294 = vunpack.c.h.b16 %v266
        %v295 = vunpack.c.l.b16 %v267
        %v296 = vunpack.c.h.b16 %v267
        %v297 = vpack.c.b16 %v285, %v281
        %v298 = vpack.c.b16 %v286, %v282
        %v299 = vpack.c.b16 %v287, %v283
        %v300 = vpack.c.b16 %v288, %v284
        %v301 = vpack.c.b16 %v293, %v289
        %v302 = vpack.c.b16 %v294, %v290
        %v303 = vpack.c.b16 %v295, %v291
        %v304 = vpack.c.b16 %v296, %v292
        %vm313 = vcmask 261120
        %v315 = vsel %vm313, %v272, 0
        %317 = vmatprep.subr.bf16.mxu0 %v298
        %318 = vmatpush1.bf16.msra.mxu0 %v297
        %319 = vmatprep.subr.bf16.mxu0 %v302
        %320 = vmatpush1.bf16.msra.mxu0 %v301
        %321 = vmatprep.subr.bf16.mxu0 0
        %322 = vmatpush1.bf16.msra.mxu0 0
        %323 = vmatprep.subr.bf16.mxu0 0
        %324 = vmatpush1.bf16.msra.mxu0 0
        %325 = vmatprep.subr.bf16.mxu0 0
        %326 = vmatpush1.bf16.msra.mxu0 0
        %327 = vmatprep.subr.bf16.mxu0 0
        %328 = vmatpush1.bf16.msra.mxu0 0
        %329 = vmatprep.subr.bf16.mxu0 0
        %330 = vmatpush1.bf16.msra.mxu0 0
        %331 = vmatprep.subr.bf16.mxu0 0
        %332 = vmatpush1.bf16.msra.mxu0 0
        %333 = vmatprep.subr.bf16.mxu0 0
        %334 = vmatpush1.bf16.msra.mxu0 0
        %335 = vmatprep.subr.bf16.mxu0 0
        %336 = vmatpush1.bf16.msra.mxu0 0
        %337 = vmatprep.subr.bf16.mxu0 0
        %338 = vmatpush1.bf16.msra.mxu0 0
        %339 = vmatprep.subr.bf16.mxu0 0
        %340 = vmatpush1.bf16.msra.mxu0 0
        %341 = vmatprep.subr.bf16.mxu0 0
        %342 = vmatpush1.bf16.msra.mxu0 0
        %343 = vmatprep.subr.bf16.mxu0 0
        %344 = vmatpush1.bf16.msra.mxu0 0
        %345 = vmatprep.subr.bf16.mxu0 0
        %346 = vmatpush1.bf16.msra.mxu0 0
        %347 = vmatprep.subr.bf16.mxu0 0
        %348 = vmatpush1.bf16.msra.mxu0 0
        %349 = vmatprep.mubr.bf16.mxu0 0
        %350 = vmatmul.mubr.bf16.gmra.mrb[0].mxu0 %v315
        %v351 = vpop.f32.mrb[0].mxu0
        %v352 = vadd.f32 0.0, %v351
        %v353 = vpop.f32.mrb[0].mxu0
        %v354 = vadd.f32 0.0, %v353
        %v355 = vpop.f32.mrb[0].mxu0
        %v356 = vadd.f32 0.0, %v355
        %v357 = vpop.f32.mrb[0].mxu0
        %v358 = vadd.f32 0.0, %v357
        %359 = vdwg.mxu0
        %360 = vmatprep.subr.bf16.mxu0 %v300
        %361 = vmatpush1.bf16.msra.mxu0 %v299
        %362 = vmatprep.subr.bf16.mxu0 %v304
        %363 = vmatpush1.bf16.msra.mxu0 %v303
        %364 = vmatprep.subr.bf16.mxu0 0
        %365 = vmatpush1.bf16.msra.mxu0 0
        %366 = vmatprep.subr.bf16.mxu0 0
        %367 = vmatpush1.bf16.msra.mxu0 0
        %368 = vmatprep.subr.bf16.mxu0 0
        %369 = vmatpush1.bf16.msra.mxu0 0
        %370 = vmatprep.subr.bf16.mxu0 0
        %371 = vmatpush1.bf16.msra.mxu0 0
        %372 = vmatprep.subr.bf16.mxu0 0
        %373 = vmatpush1.bf16.msra.mxu0 0
        %374 = vmatprep.subr.bf16.mxu0 0
        %375 = vmatpush1.bf16.msra.mxu0 0
        %376 = vmatprep.subr.bf16.mxu0 0
        %377 = vmatpush1.bf16.msra.mxu0 0
        %378 = vmatprep.subr.bf16.mxu0 0
        %379 = vmatpush1.bf16.msra.mxu0 0
        %380 = vmatprep.subr.bf16.mxu0 0
        %381 = vmatpush1.bf16.msra.mxu0 0
        %382 = vmatprep.subr.bf16.mxu0 0
        %383 = vmatpush1.bf16.msra.mxu0 0
        %384 = vmatprep.subr.bf16.mxu0 0
        %385 = vmatpush1.bf16.msra.mxu0 0
        %386 = vmatprep.subr.bf16.mxu0 0
        %387 = vmatpush1.bf16.msra.mxu0 0
        %388 = vmatprep.subr.bf16.mxu0 0
        %389 = vmatpush1.bf16.msra.mxu0 0
        %390 = vmatprep.subr.bf16.mxu0 0
        %391 = vmatpush1.bf16.msra.mxu0 0
        %392 = vmatprep.mubr.bf16.mxu0 0
        %393 = vmatmul.mubr.bf16.gmra.mrb[0].mxu0 %v315
        %v394 = vpop.f32.mrb[0].mxu0
        %v395 = vadd.f32 0.0, %v394
        %v396 = vpop.f32.mrb[0].mxu0
        %v397 = vadd.f32 0.0, %v396
        %v398 = vpop.f32.mrb[0].mxu0
        %v399 = vadd.f32 0.0, %v398
        %v400 = vpop.f32.mrb[0].mxu0
        %v401 = vadd.f32 0.0, %v400
        %402 = vdwg.mxu0
        %v405 = vunpack.c.l.b16 %v255
        %v406 = vunpack.c.l.b16 %v256
        %v407 = vpack.c.b16 %v406, %v405
        %v416 = vunpack.c.l.b16 %v247
        %v417 = vunpack.c.h.b16 %v247
        %v418 = vunpack.c.l.b16 %v248
        %v419 = vunpack.c.h.b16 %v248
        %v420 = vunpack.c.l.b16 %v249
        %v421 = vunpack.c.h.b16 %v249
        %v422 = vunpack.c.l.b16 %v250
        %v423 = vunpack.c.h.b16 %v250
        %v424 = vunpack.c.l.b16 %v251
        %v425 = vunpack.c.h.b16 %v251
        %v426 = vunpack.c.l.b16 %v252
        %v427 = vunpack.c.h.b16 %v252
        %v428 = vunpack.c.l.b16 %v253
        %v429 = vunpack.c.h.b16 %v253
        %v430 = vunpack.c.l.b16 %v254
        %v431 = vunpack.c.h.b16 %v254
        %v432 = vpack.c.b16 %v420, %v416
        %v433 = vpack.c.b16 %v421, %v417
        %v434 = vpack.c.b16 %v422, %v418
        %v435 = vpack.c.b16 %v423, %v419
        %v436 = vpack.c.b16 %v428, %v424
        %v437 = vpack.c.b16 %v429, %v425
        %v438 = vpack.c.b16 %v430, %v426
        %v439 = vpack.c.b16 %v431, %v427
        %v449 = vsel %vm313, %v407, 0
        %451 = vmatprep.subr.bf16.mxu0 %v433
        %452 = vmatpush1.bf16.msra.mxu0 %v432
        %453 = vmatprep.subr.bf16.mxu0 %v437
        %454 = vmatpush1.bf16.msra.mxu0 %v436
        %455 = vmatprep.subr.bf16.mxu0 0
        %456 = vmatpush1.bf16.msra.mxu0 0
        %457 = vmatprep.subr.bf16.mxu0 0
        %458 = vmatpush1.bf16.msra.mxu0 0
        %459 = vmatprep.subr.bf16.mxu0 0
        %460 = vmatpush1.bf16.msra.mxu0 0
        %461 = vmatprep.subr.bf16.mxu0 0
        %462 = vmatpush1.bf16.msra.mxu0 0
        %463 = vmatprep.subr.bf16.mxu0 0
        %464 = vmatpush1.bf16.msra.mxu0 0
        %465 = vmatprep.subr.bf16.mxu0 0
        %466 = vmatpush1.bf16.msra.mxu0 0
        %467 = vmatprep.subr.bf16.mxu0 0
        %468 = vmatpush1.bf16.msra.mxu0 0
        %469 = vmatprep.subr.bf16.mxu0 0
        %470 = vmatpush1.bf16.msra.mxu0 0
        %471 = vmatprep.subr.bf16.mxu0 0
        %472 = vmatpush1.bf16.msra.mxu0 0
        %473 = vmatprep.subr.bf16.mxu0 0
        %474 = vmatpush1.bf16.msra.mxu0 0
        %475 = vmatprep.subr.bf16.mxu0 0
        %476 = vmatpush1.bf16.msra.mxu0 0
        %477 = vmatprep.subr.bf16.mxu0 0
        %478 = vmatpush1.bf16.msra.mxu0 0
        %479 = vmatprep.subr.bf16.mxu0 0
        %480 = vmatpush1.bf16.msra.mxu0 0
        %481 = vmatprep.subr.bf16.mxu0 0
        %482 = vmatpush1.bf16.msra.mxu0 0
        %483 = vmatprep.mubr.bf16.mxu0 0
        %484 = vmatmul.mubr.bf16.gmra.mrb[0].mxu0 %v449
        %v485 = vpop.f32.mrb[0].mxu0
        %v486 = vadd.f32 %v352, %v485
        %v487 = vpop.f32.mrb[0].mxu0
        %v488 = vadd.f32 %v354, %v487
        %v489 = vpop.f32.mrb[0].mxu0
        %v490 = vadd.f32 %v356, %v489
        %v491 = vpop.f32.mrb[0].mxu0
        %v492 = vadd.f32 %v358, %v491
        %493 = vdwg.mxu0
        %494 = vmatprep.subr.bf16.mxu0 %v435
        %495 = vmatpush1.bf16.msra.mxu0 %v434
        %496 = vmatprep.subr.bf16.mxu0 %v439
        %497 = vmatpush1.bf16.msra.mxu0 %v438
        %498 = vmatprep.subr.bf16.mxu0 0
        %499 = vmatpush1.bf16.msra.mxu0 0
        %500 = vmatprep.subr.bf16.mxu0 0
        %501 = vmatpush1.bf16.msra.mxu0 0
        %502 = vmatprep.subr.bf16.mxu0 0
        %503 = vmatpush1.bf16.msra.mxu0 0
        %504 = vmatprep.subr.bf16.mxu0 0
        %505 = vmatpush1.bf16.msra.mxu0 0
        %506 = vmatprep.subr.bf16.mxu0 0
        %507 = vmatpush1.bf16.msra.mxu0 0
        %508 = vmatprep.subr.bf16.mxu0 0
        %509 = vmatpush1.bf16.msra.mxu0 0
        %510 = vmatprep.subr.bf16.mxu0 0
        %511 = vmatpush1.bf16.msra.mxu0 0
        %512 = vmatprep.subr.bf16.mxu0 0
        %513 = vmatpush1.bf16.msra.mxu0 0
        %514 = vmatprep.subr.bf16.mxu0 0
        %515 = vmatpush1.bf16.msra.mxu0 0
        %516 = vmatprep.subr.bf16.mxu0 0
        %517 = vmatpush1.bf16.msra.mxu0 0
        %518 = vmatprep.subr.bf16.mxu0 0
        %519 = vmatpush1.bf16.msra.mxu0 0
        %520 = vmatprep.subr.bf16.mxu0 0
        %521 = vmatpush1.bf16.msra.mxu0 0
        %522 = vmatprep.subr.bf16.mxu0 0
        %523 = vmatpush1.bf16.msra.mxu0 0
        %524 = vmatprep.subr.bf16.mxu0 0
        %525 = vmatpush1.bf16.msra.mxu0 0
        %526 = vmatprep.mubr.bf16.mxu0 0
        %527 = vmatmul.mubr.bf16.gmra.mrb[0].mxu0 %v449
        %v528 = vpop.f32.mrb[0].mxu0
        %v529 = vadd.f32 %v395, %v528
        %v530 = vpop.f32.mrb[0].mxu0
        %v531 = vadd.f32 %v397, %v530
        %v532 = vpop.f32.mrb[0].mxu0
        %v533 = vadd.f32 %v399, %v532
        %v534 = vpop.f32.mrb[0].mxu0
        %v535 = vadd.f32 %v401, %v534
        %536 = vdwg.mxu0
        %v537 = vld [vmem:[%s235 + $0x4] sm:$0xf]
        %v539 = vunpack.c.l.b16 %v537
        %v540 = vpack.c.b16 %v539, %v405
        %v542 = vshrl.u32 %v540, 16
        %v544 = vshll.u32 %v540, 16
        %v546 = vrot.slane %v544, 1
        %v547 = vor.u32 %v542, %v546
        %v549 = vsel %vm313, %v547, 0
        %551 = vmatprep.subr.bf16.mxu0 %v298
        %552 = vmatpush1.bf16.msra.mxu0 %v297
        %553 = vmatprep.subr.bf16.mxu0 %v302
        %554 = vmatpush1.bf16.msra.mxu0 %v301
        %555 = vmatprep.subr.bf16.mxu0 0
        %556 = vmatpush1.bf16.msra.mxu0 0
        %557 = vmatprep.subr.bf16.mxu0 0
        %558 = vmatpush1.bf16.msra.mxu0 0
        %559 = vmatprep.subr.bf16.mxu0 0
        %560 = vmatpush1.bf16.msra.mxu0 0
        %561 = vmatprep.subr.bf16.mxu0 0
        %562 = vmatpush1.bf16.msra.mxu0 0
        %563 = vmatprep.subr.bf16.mxu0 0
        %564 = vmatpush1.bf16.msra.mxu0 0
        %565 = vmatprep.subr.bf16.mxu0 0
        %566 = vmatpush1.bf16.msra.mxu0 0
        %567 = vmatprep.subr.bf16.mxu0 0
        %568 = vmatpush1.bf16.msra.mxu0 0
        %569 = vmatprep.subr.bf16.mxu0 0
        %570 = vmatpush1.bf16.msra.mxu0 0
        %571 = vmatprep.subr.bf16.mxu0 0
        %572 = vmatpush1.bf16.msra.mxu0 0
        %573 = vmatprep.subr.bf16.mxu0 0
        %574 = vmatpush1.bf16.msra.mxu0 0
        %575 = vmatprep.subr.bf16.mxu0 0
        %576 = vmatpush1.bf16.msra.mxu0 0
        %577 = vmatprep.subr.bf16.mxu0 0
        %578 = vmatpush1.bf16.msra.mxu0 0
        %579 = vmatprep.subr.bf16.mxu0 0
        %580 = vmatpush1.bf16.msra.mxu0 0
        %581 = vmatprep.subr.bf16.mxu0 0
        %582 = vmatpush1.bf16.msra.mxu0 0
        %583 = vmatprep.mubr.bf16.mxu0 0
        %584 = vmatmul.mubr.bf16.gmra.mrb[0].mxu0 %v549
        %v585 = vpop.f32.mrb[0].mxu0
        %v586 = vadd.f32 0.0, %v585
        %v587 = vpop.f32.mrb[0].mxu0
        %v588 = vadd.f32 0.0, %v587
        %v589 = vpop.f32.mrb[0].mxu0
        %v590 = vadd.f32 0.0, %v589
        %v591 = vpop.f32.mrb[0].mxu0
        %v592 = vadd.f32 0.0, %v591
        %593 = vdwg.mxu0
        %594 = vmatprep.subr.bf16.mxu0 %v300
        %595 = vmatpush1.bf16.msra.mxu0 %v299
        %596 = vmatprep.subr.bf16.mxu0 %v304
        %597 = vmatpush1.bf16.msra.mxu0 %v303
        %598 = vmatprep.subr.bf16.mxu0 0
        %599 = vmatpush1.bf16.msra.mxu0 0
        %600 = vmatprep.subr.bf16.mxu0 0
        %601 = vmatpush1.bf16.msra.mxu0 0
        %602 = vmatprep.subr.bf16.mxu0 0
        %603 = vmatpush1.bf16.msra.mxu0 0
        %604 = vmatprep.subr.bf16.mxu0 0
        %605 = vmatpush1.bf16.msra.mxu0 0
        %606 = vmatprep.subr.bf16.mxu0 0
        %607 = vmatpush1.bf16.msra.mxu0 0
        %608 = vmatprep.subr.bf16.mxu0 0
        %609 = vmatpush1.bf16.msra.mxu0 0
        %610 = vmatprep.subr.bf16.mxu0 0
        %611 = vmatpush1.bf16.msra.mxu0 0
        %612 = vmatprep.subr.bf16.mxu0 0
        %613 = vmatpush1.bf16.msra.mxu0 0
        %614 = vmatprep.subr.bf16.mxu0 0
        %615 = vmatpush1.bf16.msra.mxu0 0
        %616 = vmatprep.subr.bf16.mxu0 0
        %617 = vmatpush1.bf16.msra.mxu0 0
        %618 = vmatprep.subr.bf16.mxu0 0
        %619 = vmatpush1.bf16.msra.mxu0 0
        %620 = vmatprep.subr.bf16.mxu0 0
        %621 = vmatpush1.bf16.msra.mxu0 0
        %622 = vmatprep.subr.bf16.mxu0 0
        %623 = vmatpush1.bf16.msra.mxu0 0
        %624 = vmatprep.subr.bf16.mxu0 0
        %625 = vmatpush1.bf16.msra.mxu0 0
        %626 = vmatprep.mubr.bf16.mxu0 0
        %627 = vmatmul.mubr.bf16.gmra.mrb[0].mxu0 %v549
        %v628 = vpop.f32.mrb[0].mxu0
        %v629 = vadd.f32 0.0, %v628
        %v630 = vpop.f32.mrb[0].mxu0
        %v631 = vadd.f32 0.0, %v630
        %v632 = vpop.f32.mrb[0].mxu0
        %v633 = vadd.f32 0.0, %v632
        %v634 = vpop.f32.mrb[0].mxu0
        %v635 = vadd.f32 0.0, %v634
        %636 = vdwg.mxu0
        %637 = vmatprep.subr.bf16.mxu0 %v433
        %638 = vmatpush1.bf16.msra.mxu0 %v432
        %639 = vmatprep.subr.bf16.mxu0 %v437
        %640 = vmatpush1.bf16.msra.mxu0 %v436
        %641 = vmatprep.subr.bf16.mxu0 0
        %642 = vmatpush1.bf16.msra.mxu0 0
        %643 = vmatprep.subr.bf16.mxu0 0
        %644 = vmatpush1.bf16.msra.mxu0 0
        %645 = vmatprep.subr.bf16.mxu0 0
        %646 = vmatpush1.bf16.msra.mxu0 0
        %647 = vmatprep.subr.bf16.mxu0 0
        %648 = vmatpush1.bf16.msra.mxu0 0
        %649 = vmatprep.subr.bf16.mxu0 0
        %650 = vmatpush1.bf16.msra.mxu0 0
        %651 = vmatprep.subr.bf16.mxu0 0
        %652 = vmatpush1.bf16.msra.mxu0 0
        %653 = vmatprep.subr.bf16.mxu0 0
        %654 = vmatpush1.bf16.msra.mxu0 0
        %655 = vmatprep.subr.bf16.mxu0 0
        %656 = vmatpush1.bf16.msra.mxu0 0
        %657 = vmatprep.subr.bf16.mxu0 0
        %658 = vmatpush1.bf16.msra.mxu0 0
        %659 = vmatprep.subr.bf16.mxu0 0
        %660 = vmatpush1.bf16.msra.mxu0 0
        %661 = vmatprep.subr.bf16.mxu0 0
        %662 = vmatpush1.bf16.msra.mxu0 0
        %663 = vmatprep.subr.bf16.mxu0 0
        %664 = vmatpush1.bf16.msra.mxu0 0
        %665 = vmatprep.subr.bf16.mxu0 0
        %666 = vmatpush1.bf16.msra.mxu0 0
        %667 = vmatprep.subr.bf16.mxu0 0
        %668 = vmatpush1.bf16.msra.mxu0 0
        %669 = vmatprep.mubr.bf16.mxu0 0
        %670 = vmatmul.mubr.bf16.gmra.mrb[0].mxu0 %v315
        %v671 = vpop.f32.mrb[0].mxu0
        %v672 = vadd.f32 %v586, %v671
        %v673 = vpop.f32.mrb[0].mxu0
        %v674 = vadd.f32 %v588, %v673
        %v675 = vpop.f32.mrb[0].mxu0
        %v676 = vadd.f32 %v590, %v675
        %v677 = vpop.f32.mrb[0].mxu0
        %v678 = vadd.f32 %v592, %v677
        %679 = vdwg.mxu0
        %680 = vmatprep.subr.bf16.mxu0 %v435
        %681 = vmatpush1.bf16.msra.mxu0 %v434
        %682 = vmatprep.subr.bf16.mxu0 %v439
        %683 = vmatpush1.bf16.msra.mxu0 %v438
        %684 = vmatprep.subr.bf16.mxu0 0
        %685 = vmatpush1.bf16.msra.mxu0 0
        %686 = vmatprep.subr.bf16.mxu0 0
        %687 = vmatpush1.bf16.msra.mxu0 0
        %688 = vmatprep.subr.bf16.mxu0 0
        %689 = vmatpush1.bf16.msra.mxu0 0
        %690 = vmatprep.subr.bf16.mxu0 0
        %691 = vmatpush1.bf16.msra.mxu0 0
        %692 = vmatprep.subr.bf16.mxu0 0
        %693 = vmatpush1.bf16.msra.mxu0 0
        %694 = vmatprep.subr.bf16.mxu0 0
        %695 = vmatpush1.bf16.msra.mxu0 0
        %696 = vmatprep.subr.bf16.mxu0 0
        %697 = vmatpush1.bf16.msra.mxu0 0
        %698 = vmatprep.subr.bf16.mxu0 0
        %699 = vmatpush1.bf16.msra.mxu0 0
        %700 = vmatprep.subr.bf16.mxu0 0
        %701 = vmatpush1.bf16.msra.mxu0 0
        %702 = vmatprep.subr.bf16.mxu0 0
        %703 = vmatpush1.bf16.msra.mxu0 0
        %704 = vmatprep.subr.bf16.mxu0 0
        %705 = vmatpush1.bf16.msra.mxu0 0
        %706 = vmatprep.subr.bf16.mxu0 0
        %707 = vmatpush1.bf16.msra.mxu0 0
        %708 = vmatprep.subr.bf16.mxu0 0
        %709 = vmatpush1.bf16.msra.mxu0 0
        %710 = vmatprep.subr.bf16.mxu0 0
        %711 = vmatpush1.bf16.msra.mxu0 0
        %712 = vmatprep.mubr.bf16.mxu0 0
        %713 = vmatmul.mubr.bf16.gmra.mrb[0].mxu0 %v315
        %v714 = vpop.f32.mrb[0].mxu0
        %v715 = vadd.f32 %v629, %v714
        %v716 = vpop.f32.mrb[0].mxu0
        %v717 = vadd.f32 %v631, %v716
        %v718 = vpop.f32.mrb[0].mxu0
        %v719 = vadd.f32 %v633, %v718
        %v720 = vpop.f32.mrb[0].mxu0
        %v721 = vadd.f32 %v635, %v720
        %722 = vdwg.mxu0
        %s723 = scalar_lea.vmem [#allocation2], 128
        %v724 = vld [vmem:[%s723] sm:$0xff]
        %v725 = vld [vmem:[%s723 + $0x8] sm:$0xff]
        %v726 = vld [vmem:[%s723 + $0x10] sm:$0xff]
        %v727 = vld [vmem:[%s723 + $0x18] sm:$0xff]
        %v728 = vld [vmem:[%s723 + $0x20] sm:$0xff]
        %v729 = vld [vmem:[%s723 + $0x28] sm:$0xff]
        %v730 = vld [vmem:[%s723 + $0x30] sm:$0xff]
        %v731 = vld [vmem:[%s723 + $0x38] sm:$0xff]
        %v740 = vunpack.c.l.b16 %v724
        %v741 = vunpack.c.h.b16 %v724
        %v742 = vunpack.c.l.b16 %v725
        %v743 = vunpack.c.h.b16 %v725
        %v744 = vunpack.c.l.b16 %v726
        %v745 = vunpack.c.h.b16 %v726
        %v746 = vunpack.c.l.b16 %v727
        %v747 = vunpack.c.h.b16 %v727
        %v748 = vunpack.c.l.b16 %v728
        %v749 = vunpack.c.h.b16 %v728
        %v750 = vunpack.c.l.b16 %v729
        %v751 = vunpack.c.h.b16 %v729
        %v752 = vunpack.c.l.b16 %v730
        %v753 = vunpack.c.h.b16 %v730
        %v754 = vunpack.c.l.b16 %v731
        %v755 = vunpack.c.h.b16 %v731
        %v756 = vpack.c.b16 %v744, %v740
        %v757 = vpack.c.b16 %v745, %v741
        %v758 = vpack.c.b16 %v746, %v742
        %v759 = vpack.c.b16 %v747, %v743
        %v760 = vpack.c.b16 %v752, %v748
        %v761 = vpack.c.b16 %v753, %v749
        %v762 = vpack.c.b16 %v754, %v750
        %v763 = vpack.c.b16 %v755, %v751
        %772 = vmatprep.subr.bf16.mxu0 %v757
        %773 = vmatpush1.bf16.msra.mxu0 %v756
        %774 = vmatprep.subr.bf16.mxu0 %v761
        %775 = vmatpush1.bf16.msra.mxu0 %v760
        %776 = vmatprep.subr.bf16.mxu0 0
        %777 = vmatpush1.bf16.msra.mxu0 0
        %778 = vmatprep.subr.bf16.mxu0 0
        %779 = vmatpush1.bf16.msra.mxu0 0
        %780 = vmatprep.subr.bf16.mxu0 0
        %781 = vmatpush1.bf16.msra.mxu0 0
        %782 = vmatprep.subr.bf16.mxu0 0
        %783 = vmatpush1.bf16.msra.mxu0 0
        %784 = vmatprep.subr.bf16.mxu0 0
        %785 = vmatpush1.bf16.msra.mxu0 0
        %786 = vmatprep.subr.bf16.mxu0 0
        %787 = vmatpush1.bf16.msra.mxu0 0
        %788 = vmatprep.subr.bf16.mxu0 0
        %789 = vmatpush1.bf16.msra.mxu0 0
        %790 = vmatprep.subr.bf16.mxu0 0
        %791 = vmatpush1.bf16.msra.mxu0 0
        %792 = vmatprep.subr.bf16.mxu0 0
        %793 = vmatpush1.bf16.msra.mxu0 0
        %794 = vmatprep.subr.bf16.mxu0 0
        %795 = vmatpush1.bf16.msra.mxu0 0
        %796 = vmatprep.subr.bf16.mxu0 0
        %797 = vmatpush1.bf16.msra.mxu0 0
        %798 = vmatprep.subr.bf16.mxu0 0
        %799 = vmatpush1.bf16.msra.mxu0 0
        %800 = vmatprep.subr.bf16.mxu0 0
        %801 = vmatpush1.bf16.msra.mxu0 0
        %802 = vmatprep.subr.bf16.mxu0 0
        %803 = vmatpush1.bf16.msra.mxu0 0
        %804 = vmatprep.mubr.bf16.mxu0 0
        %805 = vmatmul.mubr.bf16.gmra.mrb[0].mxu0 %v549
        %v806 = vpop.f32.mrb[0].mxu0
        %v807 = vadd.f32 0.0, %v806
        %v808 = vpop.f32.mrb[0].mxu0
        %v809 = vadd.f32 0.0, %v808
        %v810 = vpop.f32.mrb[0].mxu0
        %v811 = vadd.f32 0.0, %v810
        %v812 = vpop.f32.mrb[0].mxu0
        %v813 = vadd.f32 0.0, %v812
        %814 = vdwg.mxu0
        %815 = vmatprep.subr.bf16.mxu0 %v759
        %816 = vmatpush1.bf16.msra.mxu0 %v758
        %817 = vmatprep.subr.bf16.mxu0 %v763
        %818 = vmatpush1.bf16.msra.mxu0 %v762
        %819 = vmatprep.subr.bf16.mxu0 0
        %820 = vmatpush1.bf16.msra.mxu0 0
        %821 = vmatprep.subr.bf16.mxu0 0
        %822 = vmatpush1.bf16.msra.mxu0 0
        %823 = vmatprep.subr.bf16.mxu0 0
        %824 = vmatpush1.bf16.msra.mxu0 0
        %825 = vmatprep.subr.bf16.mxu0 0
        %826 = vmatpush1.bf16.msra.mxu0 0
        %827 = vmatprep.subr.bf16.mxu0 0
        %828 = vmatpush1.bf16.msra.mxu0 0
        %829 = vmatprep.subr.bf16.mxu0 0
        %830 = vmatpush1.bf16.msra.mxu0 0
        %831 = vmatprep.subr.bf16.mxu0 0
        %832 = vmatpush1.bf16.msra.mxu0 0
        %833 = vmatprep.subr.bf16.mxu0 0
        %834 = vmatpush1.bf16.msra.mxu0 0
        %835 = vmatprep.subr.bf16.mxu0 0
        %836 = vmatpush1.bf16.msra.mxu0 0
        %837 = vmatprep.subr.bf16.mxu0 0
        %838 = vmatpush1.bf16.msra.mxu0 0
        %839 = vmatprep.subr.bf16.mxu0 0
        %840 = vmatpush1.bf16.msra.mxu0 0
        %841 = vmatprep.subr.bf16.mxu0 0
        %842 = vmatpush1.bf16.msra.mxu0 0
        %843 = vmatprep.subr.bf16.mxu0 0
        %844 = vmatpush1.bf16.msra.mxu0 0
        %845 = vmatprep.subr.bf16.mxu0 0
        %846 = vmatpush1.bf16.msra.mxu0 0
        %847 = vmatprep.mubr.bf16.mxu0 0
        %848 = vmatmul.mubr.bf16.gmra.mrb[0].mxu0 %v549
        %v849 = vpop.f32.mrb[0].mxu0
        %v850 = vadd.f32 0.0, %v849
        %v851 = vpop.f32.mrb[0].mxu0
        %v852 = vadd.f32 0.0, %v851
        %v853 = vpop.f32.mrb[0].mxu0
        %v854 = vadd.f32 0.0, %v853
        %v855 = vpop.f32.mrb[0].mxu0
        %v856 = vadd.f32 0.0, %v855
        %857 = vdwg.mxu0
        %v858 = vadd.f32 %v486, %v807
        %v859 = vadd.f32 %v488, %v809
        %v860 = vadd.f32 %v529, %v850
        %v861 = vadd.f32 %v531, %v852
        %v862 = vadd.f32 %v490, %v811
        %v863 = vadd.f32 %v492, %v813
        %v864 = vadd.f32 %v533, %v854
        %v865 = vadd.f32 %v535, %v856
        %v866 = vld [vmem:[%s240 + $0x4] sm:$0xf]
        %v868 = vunpack.c.l.b16 %v866
        %v869 = vpack.c.b16 %v868, %v270
        %v871 = vshrl.u32 %v869, 16
        %v873 = vshll.u32 %v869, 16
        %v875 = vrot.slane %v873, 1
        %v876 = vor.u32 %v871, %v875
        %v878 = vsel %vm313, %v876, 0
        %880 = vmatprep.subr.bf16.mxu0 %v757
        %881 = vmatpush1.bf16.msra.mxu0 %v756
        %882 = vmatprep.subr.bf16.mxu0 %v761
        %883 = vmatpush1.bf16.msra.mxu0 %v760
        %884 = vmatprep.subr.bf16.mxu0 0
        %885 = vmatpush1.bf16.msra.mxu0 0
        %886 = vmatprep.subr.bf16.mxu0 0
        %887 = vmatpush1.bf16.msra.mxu0 0
        %888 = vmatprep.subr.bf16.mxu0 0
        %889 = vmatpush1.bf16.msra.mxu0 0
        %890 = vmatprep.subr.bf16.mxu0 0
        %891 = vmatpush1.bf16.msra.mxu0 0
        %892 = vmatprep.subr.bf16.mxu0 0
        %893 = vmatpush1.bf16.msra.mxu0 0
        %894 = vmatprep.subr.bf16.mxu0 0
        %895 = vmatpush1.bf16.msra.mxu0 0
        %896 = vmatprep.subr.bf16.mxu0 0
        %897 = vmatpush1.bf16.msra.mxu0 0
        %898 = vmatprep.subr.bf16.mxu0 0
        %899 = vmatpush1.bf16.msra.mxu0 0
        %900 = vmatprep.subr.bf16.mxu0 0
        %901 = vmatpush1.bf16.msra.mxu0 0
        %902 = vmatprep.subr.bf16.mxu0 0
        %903 = vmatpush1.bf16.msra.mxu0 0
        %904 = vmatprep.subr.bf16.mxu0 0
        %905 = vmatpush1.bf16.msra.mxu0 0
        %906 = vmatprep.subr.bf16.mxu0 0
        %907 = vmatpush1.bf16.msra.mxu0 0
        %908 = vmatprep.subr.bf16.mxu0 0
        %909 = vmatpush1.bf16.msra.mxu0 0
        %910 = vmatprep.subr.bf16.mxu0 0
        %911 = vmatpush1.bf16.msra.mxu0 0
        %912 = vmatprep.mubr.bf16.mxu0 0
        %913 = vmatmul.mubr.bf16.gmra.mrb[0].mxu0 %v878
        %v914 = vpop.f32.mrb[0].mxu0
        %v915 = vadd.f32 0.0, %v914
        %v916 = vpop.f32.mrb[0].mxu0
        %v917 = vadd.f32 0.0, %v916
        %v918 = vpop.f32.mrb[0].mxu0
        %v919 = vadd.f32 0.0, %v918
        %v920 = vpop.f32.mrb[0].mxu0
        %v921 = vadd.f32 0.0, %v920
        %922 = vdwg.mxu0
        %923 = vmatprep.subr.bf16.mxu0 %v759
        %924 = vmatpush1.bf16.msra.mxu0 %v758
        %925 = vmatprep.subr.bf16.mxu0 %v763
        %926 = vmatpush1.bf16.msra.mxu0 %v762
        %927 = vmatprep.subr.bf16.mxu0 0
        %928 = vmatpush1.bf16.msra.mxu0 0
        %929 = vmatprep.subr.bf16.mxu0 0
        %930 = vmatpush1.bf16.msra.mxu0 0
        %931 = vmatprep.subr.bf16.mxu0 0
        %932 = vmatpush1.bf16.msra.mxu0 0
        %933 = vmatprep.subr.bf16.mxu0 0
        %934 = vmatpush1.bf16.msra.mxu0 0
        %935 = vmatprep.subr.bf16.mxu0 0
        %936 = vmatpush1.bf16.msra.mxu0 0
        %937 = vmatprep.subr.bf16.mxu0 0
        %938 = vmatpush1.bf16.msra.mxu0 0
        %939 = vmatprep.subr.bf16.mxu0 0
        %940 = vmatpush1.bf16.msra.mxu0 0
        %941 = vmatprep.subr.bf16.mxu0 0
        %942 = vmatpush1.bf16.msra.mxu0 0
        %943 = vmatprep.subr.bf16.mxu0 0
        %944 = vmatpush1.bf16.msra.mxu0 0
        %945 = vmatprep.subr.bf16.mxu0 0
        %946 = vmatpush1.bf16.msra.mxu0 0
        %947 = vmatprep.subr.bf16.mxu0 0
        %948 = vmatpush1.bf16.msra.mxu0 0
        %949 = vmatprep.subr.bf16.mxu0 0
        %950 = vmatpush1.bf16.msra.mxu0 0
        %951 = vmatprep.subr.bf16.mxu0 0
        %952 = vmatpush1.bf16.msra.mxu0 0
        %953 = vmatprep.subr.bf16.mxu0 0
        %954 = vmatpush1.bf16.msra.mxu0 0
        %955 = vmatprep.mubr.bf16.mxu0 0
        %956 = vmatmul.mubr.bf16.gmra.mrb[0].mxu0 %v878
        %v957 = vpop.f32.mrb[0].mxu0
        %v958 = vadd.f32 0.0, %v957
        %v959 = vpop.f32.mrb[0].mxu0
        %v960 = vadd.f32 0.0, %v959
        %v961 = vpop.f32.mrb[0].mxu0
        %v962 = vadd.f32 0.0, %v961
        %v963 = vpop.f32.mrb[0].mxu0
        %v964 = vadd.f32 0.0, %v963
        %965 = vdwg.mxu0
        %v966 = vadd.f32 %v672, %v915
        %v967 = vadd.f32 %v674, %v917
        %v968 = vadd.f32 %v715, %v958
        %v969 = vadd.f32 %v717, %v960
        %v970 = vadd.f32 %v676, %v919
        %v971 = vadd.f32 %v678, %v921
        %v972 = vadd.f32 %v719, %v962
        %v973 = vadd.f32 %v721, %v964
        %s974 = scalar_lea.vmem [#allocation2], 192
        %v975 = vld [vmem:[%s974] sm:$0xff]
        %v976 = vld [vmem:[%s974 + $0x8] sm:$0xff]
        %v977 = vld [vmem:[%s974 + $0x10] sm:$0xff]
        %v978 = vld [vmem:[%s974 + $0x18] sm:$0xff]
        %v979 = vld [vmem:[%s974 + $0x20] sm:$0xff]
        %v980 = vld [vmem:[%s974 + $0x28] sm:$0xff]
        %v981 = vld [vmem:[%s974 + $0x30] sm:$0xff]
        %v982 = vld [vmem:[%s974 + $0x38] sm:$0xff]
        %v991 = vunpack.c.l.b16 %v975
        %v992 = vunpack.c.h.b16 %v975
        %v993 = vunpack.c.l.b16 %v976
        %v994 = vunpack.c.h.b16 %v976
        %v995 = vunpack.c.l.b16 %v977
        %v996 = vunpack.c.h.b16 %v977
        %v997 = vunpack.c.l.b16 %v978
        %v998 = vunpack.c.h.b16 %v978
        %v999 = vunpack.c.l.b16 %v979
        %v1000 = vunpack.c.h.b16 %v979
        %v1001 = vunpack.c.l.b16 %v980
        %v1002 = vunpack.c.h.b16 %v980
        %v1003 = vunpack.c.l.b16 %v981
        %v1004 = vunpack.c.h.b16 %v981
        %v1005 = vunpack.c.l.b16 %v982
        %v1006 = vunpack.c.h.b16 %v982
        %v1007 = vpack.c.b16 %v995, %v991
        %v1008 = vpack.c.b16 %v996, %v992
        %v1009 = vpack.c.b16 %v997, %v993
        %v1010 = vpack.c.b16 %v998, %v994
        %v1011 = vpack.c.b16 %v1003, %v999
        %v1012 = vpack.c.b16 %v1004, %v1000
        %v1013 = vpack.c.b16 %v1005, %v1001
        %v1014 = vpack.c.b16 %v1006, %v1002
        %1023 = vmatprep.subr.bf16.mxu0 %v1008
        %1024 = vmatpush1.bf16.msra.mxu0 %v1007
        %1025 = vmatprep.subr.bf16.mxu0 %v1012
        %1026 = vmatpush1.bf16.msra.mxu0 %v1011
        %1027 = vmatprep.subr.bf16.mxu0 0
        %1028 = vmatpush1.bf16.msra.mxu0 0
        %1029 = vmatprep.subr.bf16.mxu0 0
        %1030 = vmatpush1.bf16.msra.mxu0 0
        %1031 = vmatprep.subr.bf16.mxu0 0
        %1032 = vmatpush1.bf16.msra.mxu0 0
        %1033 = vmatprep.subr.bf16.mxu0 0
        %1034 = vmatpush1.bf16.msra.mxu0 0
        %1035 = vmatprep.subr.bf16.mxu0 0
        %1036 = vmatpush1.bf16.msra.mxu0 0
        %1037 = vmatprep.subr.bf16.mxu0 0
        %1038 = vmatpush1.bf16.msra.mxu0 0
        %1039 = vmatprep.subr.bf16.mxu0 0
        %1040 = vmatpush1.bf16.msra.mxu0 0
        %1041 = vmatprep.subr.bf16.mxu0 0
        %1042 = vmatpush1.bf16.msra.mxu0 0
        %1043 = vmatprep.subr.bf16.mxu0 0
        %1044 = vmatpush1.bf16.msra.mxu0 0
        %1045 = vmatprep.subr.bf16.mxu0 0
        %1046 = vmatpush1.bf16.msra.mxu0 0
        %1047 = vmatprep.subr.bf16.mxu0 0
        %1048 = vmatpush1.bf16.msra.mxu0 0
        %1049 = vmatprep.subr.bf16.mxu0 0
        %1050 = vmatpush1.bf16.msra.mxu0 0
        %1051 = vmatprep.subr.bf16.mxu0 0
        %1052 = vmatpush1.bf16.msra.mxu0 0
        %1053 = vmatprep.subr.bf16.mxu0 0
        %1054 = vmatpush1.bf16.msra.mxu0 0
        %1055 = vmatprep.mubr.bf16.mxu0 0
        %1056 = vmatmul.mubr.bf16.gmra.mrb[0].mxu0 %v878
        %v1057 = vpop.f32.mrb[0].mxu0
        %v1058 = vadd.f32 0.0, %v1057
        %v1059 = vpop.f32.mrb[0].mxu0
        %v1060 = vadd.f32 0.0, %v1059
        %v1061 = vpop.f32.mrb[0].mxu0
        %v1062 = vadd.f32 0.0, %v1061
        %v1063 = vpop.f32.mrb[0].mxu0
        %v1064 = vadd.f32 0.0, %v1063
        %1065 = vdwg.mxu0
        %1066 = vmatprep.subr.bf16.mxu0 %v1010
        %1067 = vmatpush1.bf16.msra.mxu0 %v1009
        %1068 = vmatprep.subr.bf16.mxu0 %v1014
        %1069 = vmatpush1.bf16.msra.mxu0 %v1013
        %1070 = vmatprep.subr.bf16.mxu0 0
        %1071 = vmatpush1.bf16.msra.mxu0 0
        %1072 = vmatprep.subr.bf16.mxu0 0
        %1073 = vmatpush1.bf16.msra.mxu0 0
        %1074 = vmatprep.subr.bf16.mxu0 0
        %1075 = vmatpush1.bf16.msra.mxu0 0
        %1076 = vmatprep.subr.bf16.mxu0 0
        %1077 = vmatpush1.bf16.msra.mxu0 0
        %1078 = vmatprep.subr.bf16.mxu0 0
        %1079 = vmatpush1.bf16.msra.mxu0 0
        %1080 = vmatprep.subr.bf16.mxu0 0
        %1081 = vmatpush1.bf16.msra.mxu0 0
        %1082 = vmatprep.subr.bf16.mxu0 0
        %1083 = vmatpush1.bf16.msra.mxu0 0
        %1084 = vmatprep.subr.bf16.mxu0 0
        %1085 = vmatpush1.bf16.msra.mxu0 0
        %1086 = vmatprep.subr.bf16.mxu0 0
        %1087 = vmatpush1.bf16.msra.mxu0 0
        %1088 = vmatprep.subr.bf16.mxu0 0
        %1089 = vmatpush1.bf16.msra.mxu0 0
        %1090 = vmatprep.subr.bf16.mxu0 0
        %1091 = vmatpush1.bf16.msra.mxu0 0
        %1092 = vmatprep.subr.bf16.mxu0 0
        %1093 = vmatpush1.bf16.msra.mxu0 0
        %1094 = vmatprep.subr.bf16.mxu0 0
        %1095 = vmatpush1.bf16.msra.mxu0 0
        %1096 = vmatprep.subr.bf16.mxu0 0
        %1097 = vmatpush1.bf16.msra.mxu0 0
        %1098 = vmatprep.mubr.bf16.mxu0 0
        %1099 = vmatmul.mubr.bf16.gmra.mrb[0].mxu0 %v878
        %v1100 = vpop.f32.mrb[0].mxu0
        %v1101 = vadd.f32 0.0, %v1100
        %v1102 = vpop.f32.mrb[0].mxu0
        %v1103 = vadd.f32 0.0, %v1102
        %v1104 = vpop.f32.mrb[0].mxu0
        %v1105 = vadd.f32 0.0, %v1104
        %v1106 = vpop.f32.mrb[0].mxu0
        %v1107 = vadd.f32 0.0, %v1106
        %1108 = vdwg.mxu0
        %v1109 = vadd.f32 %v858, %v1058
        %v1110 = vadd.f32 %v859, %v1060
        %v1111 = vadd.f32 %v860, %v1101
        %v1112 = vadd.f32 %v861, %v1103
        %v1113 = vadd.f32 %v862, %v1062
        %v1114 = vadd.f32 %v863, %v1064
        %v1115 = vadd.f32 %v864, %v1105
        %v1116 = vadd.f32 %v865, %v1107
        %v1117 = vld [vmem:[%s235] sm:$0xe]
        %v1119 = vunpack.c.l.b16 %v1117
        %v1120 = vpack.c.b16 %v539, %v1119
        %v1121 = vrot.slane %v1120, 1
        %v1123 = vsel %vm313, %v1121, 0
        %1125 = vmatprep.subr.bf16.mxu0 %v1008
        %1126 = vmatpush1.bf16.msra.mxu0 %v1007
        %1127 = vmatprep.subr.bf16.mxu0 %v1012
        %1128 = vmatpush1.bf16.msra.mxu0 %v1011
        %1129 = vmatprep.subr.bf16.mxu0 0
        %1130 = vmatpush1.bf16.msra.mxu0 0
        %1131 = vmatprep.subr.bf16.mxu0 0
        %1132 = vmatpush1.bf16.msra.mxu0 0
        %1133 = vmatprep.subr.bf16.mxu0 0
        %1134 = vmatpush1.bf16.msra.mxu0 0
        %1135 = vmatprep.subr.bf16.mxu0 0
        %1136 = vmatpush1.bf16.msra.mxu0 0
        %1137 = vmatprep.subr.bf16.mxu0 0
        %1138 = vmatpush1.bf16.msra.mxu0 0
        %1139 = vmatprep.subr.bf16.mxu0 0
        %1140 = vmatpush1.bf16.msra.mxu0 0
        %1141 = vmatprep.subr.bf16.mxu0 0
        %1142 = vmatpush1.bf16.msra.mxu0 0
        %1143 = vmatprep.subr.bf16.mxu0 0
        %1144 = vmatpush1.bf16.msra.mxu0 0
        %1145 = vmatprep.subr.bf16.mxu0 0
        %1146 = vmatpush1.bf16.msra.mxu0 0
        %1147 = vmatprep.subr.bf16.mxu0 0
        %1148 = vmatpush1.bf16.msra.mxu0 0
        %1149 = vmatprep.subr.bf16.mxu0 0
        %1150 = vmatpush1.bf16.msra.mxu0 0
        %1151 = vmatprep.subr.bf16.mxu0 0
        %1152 = vmatpush1.bf16.msra.mxu0 0
        %1153 = vmatprep.subr.bf16.mxu0 0
        %1154 = vmatpush1.bf16.msra.mxu0 0
        %1155 = vmatprep.subr.bf16.mxu0 0
        %1156 = vmatpush1.bf16.msra.mxu0 0
        %1157 = vmatprep.mubr.bf16.mxu0 0
        %1158 = vmatmul.mubr.bf16.gmra.mrb[0].mxu0 %v1123
        %v1159 = vpop.f32.mrb[0].mxu0
        %v1160 = vadd.f32 0.0, %v1159
        %v1161 = vpop.f32.mrb[0].mxu0
        %v1162 = vadd.f32 0.0, %v1161
        %v1163 = vpop.f32.mrb[0].mxu0
        %v1164 = vadd.f32 0.0, %v1163
        %v1165 = vpop.f32.mrb[0].mxu0
        %v1166 = vadd.f32 0.0, %v1165
        %1167 = vdwg.mxu0
        %1168 = vmatprep.subr.bf16.mxu0 %v1010
        %1169 = vmatpush1.bf16.msra.mxu0 %v1009
        %1170 = vmatprep.subr.bf16.mxu0 %v1014
        %1171 = vmatpush1.bf16.msra.mxu0 %v1013
        %1172 = vmatprep.subr.bf16.mxu0 0
        %1173 = vmatpush1.bf16.msra.mxu0 0
        %1174 = vmatprep.subr.bf16.mxu0 0
        %1175 = vmatpush1.bf16.msra.mxu0 0
        %1176 = vmatprep.subr.bf16.mxu0 0
        %1177 = vmatpush1.bf16.msra.mxu0 0
        %1178 = vmatprep.subr.bf16.mxu0 0
        %1179 = vmatpush1.bf16.msra.mxu0 0
        %1180 = vmatprep.subr.bf16.mxu0 0
        %1181 = vmatpush1.bf16.msra.mxu0 0
        %1182 = vmatprep.subr.bf16.mxu0 0
        %1183 = vmatpush1.bf16.msra.mxu0 0
        %1184 = vmatprep.subr.bf16.mxu0 0
        %1185 = vmatpush1.bf16.msra.mxu0 0
        %1186 = vmatprep.subr.bf16.mxu0 0
        %1187 = vmatpush1.bf16.msra.mxu0 0
        %1188 = vmatprep.subr.bf16.mxu0 0
        %1189 = vmatpush1.bf16.msra.mxu0 0
        %1190 = vmatprep.subr.bf16.mxu0 0
        %1191 = vmatpush1.bf16.msra.mxu0 0
        %1192 = vmatprep.subr.bf16.mxu0 0
        %1193 = vmatpush1.bf16.msra.mxu0 0
        %1194 = vmatprep.subr.bf16.mxu0 0
        %1195 = vmatpush1.bf16.msra.mxu0 0
        %1196 = vmatprep.subr.bf16.mxu0 0
        %1197 = vmatpush1.bf16.msra.mxu0 0
        %1198 = vmatprep.subr.bf16.mxu0 0
        %1199 = vmatpush1.bf16.msra.mxu0 0
        %1200 = vmatprep.mubr.bf16.mxu0 0
        %1201 = vmatmul.mubr.bf16.gmra.mrb[0].mxu0 %v1123
        %v1202 = vpop.f32.mrb[0].mxu0
        %v1203 = vadd.f32 0.0, %v1202
        %v1204 = vpop.f32.mrb[0].mxu0
        %v1205 = vadd.f32 0.0, %v1204
        %v1206 = vpop.f32.mrb[0].mxu0
        %v1207 = vadd.f32 0.0, %v1206
        %v1208 = vpop.f32.mrb[0].mxu0
        %v1209 = vadd.f32 0.0, %v1208
        %1210 = vdwg.mxu0
        %v1211 = vadd.f32 %v966, %v1160
        %v1212 = vadd.f32 %v967, %v1162
        %v1213 = vadd.f32 %v968, %v1203
        %v1214 = vadd.f32 %v969, %v1205
        %v1215 = vadd.f32 %v970, %v1164
        %v1216 = vadd.f32 %v971, %v1166
        %v1217 = vadd.f32 %v972, %v1207
        %v1218 = vadd.f32 %v973, %v1209
        %s1219 = scalar_lea.vmem [#allocation2], 256
        %v1220 = vld [vmem:[%s1219] sm:$0xff]
        %v1221 = vld [vmem:[%s1219 + $0x8] sm:$0xff]
        %v1222 = vld [vmem:[%s1219 + $0x10] sm:$0xff]
        %v1223 = vld [vmem:[%s1219 + $0x18] sm:$0xff]
        %v1224 = vld [vmem:[%s1219 + $0x20] sm:$0xff]
        %v1225 = vld [vmem:[%s1219 + $0x28] sm:$0xff]
        %v1226 = vld [vmem:[%s1219 + $0x30] sm:$0xff]
        %v1227 = vld [vmem:[%s1219 + $0x38] sm:$0xff]
        %v1236 = vunpack.c.l.b16 %v1220
        %v1237 = vunpack.c.h.b16 %v1220
        %v1238 = vunpack.c.l.b16 %v1221
        %v1239 = vunpack.c.h.b16 %v1221
        %v1240 = vunpack.c.l.b16 %v1222
        %v1241 = vunpack.c.h.b16 %v1222
        %v1242 = vunpack.c.l.b16 %v1223
        %v1243 = vunpack.c.h.b16 %v1223
        %v1244 = vunpack.c.l.b16 %v1224
        %v1245 = vunpack.c.h.b16 %v1224
        %v1246 = vunpack.c.l.b16 %v1225
        %v1247 = vunpack.c.h.b16 %v1225
        %v1248 = vunpack.c.l.b16 %v1226
        %v1249 = vunpack.c.h.b16 %v1226
        %v1250 = vunpack.c.l.b16 %v1227
        %v1251 = vunpack.c.h.b16 %v1227
        %v1252 = vpack.c.b16 %v1240, %v1236
        %v1253 = vpack.c.b16 %v1241, %v1237
        %v1254 = vpack.c.b16 %v1242, %v1238
        %v1255 = vpack.c.b16 %v1243, %v1239
        %v1256 = vpack.c.b16 %v1248, %v1244
        %v1257 = vpack.c.b16 %v1249, %v1245
        %v1258 = vpack.c.b16 %v1250, %v1246
        %v1259 = vpack.c.b16 %v1251, %v1247
        %1268 = vmatprep.subr.bf16.mxu0 %v1253
        %1269 = vmatpush1.bf16.msra.mxu0 %v1252
        %1270 = vmatprep.subr.bf16.mxu0 %v1257
        %1271 = vmatpush1.bf16.msra.mxu0 %v1256
        %1272 = vmatprep.subr.bf16.mxu0 0
        %1273 = vmatpush1.bf16.msra.mxu0 0
        %1274 = vmatprep.subr.bf16.mxu0 0
        %1275 = vmatpush1.bf16.msra.mxu0 0
        %1276 = vmatprep.subr.bf16.mxu0 0
        %1277 = vmatpush1.bf16.msra.mxu0 0
        %1278 = vmatprep.subr.bf16.mxu0 0
        %1279 = vmatpush1.bf16.msra.mxu0 0
        %1280 = vmatprep.subr.bf16.mxu0 0
        %1281 = vmatpush1.bf16.msra.mxu0 0
        %1282 = vmatprep.subr.bf16.mxu0 0
        %1283 = vmatpush1.bf16.msra.mxu0 0
        %1284 = vmatprep.subr.bf16.mxu0 0
        %1285 = vmatpush1.bf16.msra.mxu0 0
        %1286 = vmatprep.subr.bf16.mxu0 0
        %1287 = vmatpush1.bf16.msra.mxu0 0
        %1288 = vmatprep.subr.bf16.mxu0 0
        %1289 = vmatpush1.bf16.msra.mxu0 0
        %1290 = vmatprep.subr.bf16.mxu0 0
        %1291 = vmatpush1.bf16.msra.mxu0 0
        %1292 = vmatprep.subr.bf16.mxu0 0
        %1293 = vmatpush1.bf16.msra.mxu0 0
        %1294 = vmatprep.subr.bf16.mxu0 0
        %1295 = vmatpush1.bf16.msra.mxu0 0
        %1296 = vmatprep.subr.bf16.mxu0 0
        %1297 = vmatpush1.bf16.msra.mxu0 0
        %1298 = vmatprep.subr.bf16.mxu0 0
        %1299 = vmatpush1.bf16.msra.mxu0 0
        %1300 = vmatprep.mubr.bf16.mxu0 0
        %1301 = vmatmul.mubr.bf16.gmra.mrb[0].mxu0 %v1123
        %v1302 = vpop.f32.mrb[0].mxu0
        %v1303 = vadd.f32 0.0, %v1302
        %v1304 = vpop.f32.mrb[0].mxu0
        %v1305 = vadd.f32 0.0, %v1304
        %v1306 = vpop.f32.mrb[0].mxu0
        %v1307 = vadd.f32 0.0, %v1306
        %v1308 = vpop.f32.mrb[0].mxu0
        %v1309 = vadd.f32 0.0, %v1308
        %1310 = vdwg.mxu0
        %1311 = vmatprep.subr.bf16.mxu0 %v1255
        %1312 = vmatpush1.bf16.msra.mxu0 %v1254
        %1313 = vmatprep.subr.bf16.mxu0 %v1259
        %1314 = vmatpush1.bf16.msra.mxu0 %v1258
        %1315 = vmatprep.subr.bf16.mxu0 0
        %1316 = vmatpush1.bf16.msra.mxu0 0
        %1317 = vmatprep.subr.bf16.mxu0 0
        %1318 = vmatpush1.bf16.msra.mxu0 0
        %1319 = vmatprep.subr.bf16.mxu0 0
        %1320 = vmatpush1.bf16.msra.mxu0 0
        %1321 = vmatprep.subr.bf16.mxu0 0
        %1322 = vmatpush1.bf16.msra.mxu0 0
        %1323 = vmatprep.subr.bf16.mxu0 0
        %1324 = vmatpush1.bf16.msra.mxu0 0
        %1325 = vmatprep.subr.bf16.mxu0 0
        %1326 = vmatpush1.bf16.msra.mxu0 0
        %1327 = vmatprep.subr.bf16.mxu0 0
        %1328 = vmatpush1.bf16.msra.mxu0 0
        %1329 = vmatprep.subr.bf16.mxu0 0
        %1330 = vmatpush1.bf16.msra.mxu0 0
        %1331 = vmatprep.subr.bf16.mxu0 0
        %1332 = vmatpush1.bf16.msra.mxu0 0
        %1333 = vmatprep.subr.bf16.mxu0 0
        %1334 = vmatpush1.bf16.msra.mxu0 0
        %1335 = vmatprep.subr.bf16.mxu0 0
        %1336 = vmatpush1.bf16.msra.mxu0 0
        %1337 = vmatprep.subr.bf16.mxu0 0
        %1338 = vmatpush1.bf16.msra.mxu0 0
        %1339 = vmatprep.subr.bf16.mxu0 0
        %1340 = vmatpush1.bf16.msra.mxu0 0
        %1341 = vmatprep.subr.bf16.mxu0 0
        %1342 = vmatpush1.bf16.msra.mxu0 0
        %1343 = vmatprep.mubr.bf16.mxu0 0
        %1344 = vmatmul.mubr.bf16.gmra.mrb[0].mxu0 %v1123
        %v1345 = vpop.f32.mrb[0].mxu0
        %v1346 = vadd.f32 0.0, %v1345
        %v1347 = vpop.f32.mrb[0].mxu0
        %v1348 = vadd.f32 0.0, %v1347
        %v1349 = vpop.f32.mrb[0].mxu0
        %v1350 = vadd.f32 0.0, %v1349
        %v1351 = vpop.f32.mrb[0].mxu0
        %v1352 = vadd.f32 0.0, %v1351
        %1353 = vdwg.mxu0
        %v1354 = vadd.f32 %v1109, %v1303
        %v1355 = vadd.f32 %v1110, %v1305
        %v1356 = vadd.f32 %v1111, %v1346
        %v1357 = vadd.f32 %v1112, %v1348
        %v1358 = vadd.f32 %v1113, %v1307
        %v1359 = vadd.f32 %v1114, %v1309
        %v1360 = vadd.f32 %v1115, %v1350
        %v1361 = vadd.f32 %v1116, %v1352
        %v1362 = vld [vmem:[%s240] sm:$0xe]
        %v1364 = vunpack.c.l.b16 %v1362
        %v1365 = vpack.c.b16 %v868, %v1364
        %v1366 = vrot.slane %v1365, 1
        %v1368 = vsel %vm313, %v1366, 0
        %1370 = vmatprep.subr.bf16.mxu0 %v1253
        %1371 = vmatpush1.bf16.msra.mxu0 %v1252
        %1372 = vmatprep.subr.bf16.mxu0 %v1257
        %1373 = vmatpush1.bf16.msra.mxu0 %v1256
        %1374 = vmatprep.subr.bf16.mxu0 0
        %1375 = vmatpush1.bf16.msra.mxu0 0
        %1376 = vmatprep.subr.bf16.mxu0 0
        %1377 = vmatpush1.bf16.msra.mxu0 0
        %1378 = vmatprep.subr.bf16.mxu0 0
        %1379 = vmatpush1.bf16.msra.mxu0 0
        %1380 = vmatprep.subr.bf16.mxu0 0
        %1381 = vmatpush1.bf16.msra.mxu0 0
        %1382 = vmatprep.subr.bf16.mxu0 0
        %1383 = vmatpush1.bf16.msra.mxu0 0
        %1384 = vmatprep.subr.bf16.mxu0 0
        %1385 = vmatpush1.bf16.msra.mxu0 0
        %1386 = vmatprep.subr.bf16.mxu0 0
        %1387 = vmatpush1.bf16.msra.mxu0 0
        %1388 = vmatprep.subr.bf16.mxu0 0
        %1389 = vmatpush1.bf16.msra.mxu0 0
        %1390 = vmatprep.subr.bf16.mxu0 0
        %1391 = vmatpush1.bf16.msra.mxu0 0
        %1392 = vmatprep.subr.bf16.mxu0 0
        %1393 = vmatpush1.bf16.msra.mxu0 0
        %1394 = vmatprep.subr.bf16.mxu0 0
        %1395 = vmatpush1.bf16.msra.mxu0 0
        %1396 = vmatprep.subr.bf16.mxu0 0
        %1397 = vmatpush1.bf16.msra.mxu0 0
        %1398 = vmatprep.subr.bf16.mxu0 0
        %1399 = vmatpush1.bf16.msra.mxu0 0
        %1400 = vmatprep.subr.bf16.mxu0 0
        %1401 = vmatpush1.bf16.msra.mxu0 0
        %1402 = vmatprep.mubr.bf16.mxu0 0
        %1403 = vmatmul.mubr.bf16.gmra.mrb[0].mxu0 %v1368
        %v1404 = vpop.f32.mrb[0].mxu0
        %v1405 = vadd.f32 0.0, %v1404
        %v1406 = vpop.f32.mrb[0].mxu0
        %v1407 = vadd.f32 0.0, %v1406
        %v1408 = vpop.f32.mrb[0].mxu0
        %v1409 = vadd.f32 0.0, %v1408
        %v1410 = vpop.f32.mrb[0].mxu0
        %v1411 = vadd.f32 0.0, %v1410
        %1412 = vdwg.mxu0
        %1413 = vmatprep.subr.bf16.mxu0 %v1255
        %1414 = vmatpush1.bf16.msra.mxu0 %v1254
        %1415 = vmatprep.subr.bf16.mxu0 %v1259
        %1416 = vmatpush1.bf16.msra.mxu0 %v1258
        %1417 = vmatprep.subr.bf16.mxu0 0
        %1418 = vmatpush1.bf16.msra.mxu0 0
        %1419 = vmatprep.subr.bf16.mxu0 0
        %1420 = vmatpush1.bf16.msra.mxu0 0
        %1421 = vmatprep.subr.bf16.mxu0 0
        %1422 = vmatpush1.bf16.msra.mxu0 0
        %1423 = vmatprep.subr.bf16.mxu0 0
        %1424 = vmatpush1.bf16.msra.mxu0 0
        %1425 = vmatprep.subr.bf16.mxu0 0
        %1426 = vmatpush1.bf16.msra.mxu0 0
        %1427 = vmatprep.subr.bf16.mxu0 0
        %1428 = vmatpush1.bf16.msra.mxu0 0
        %1429 = vmatprep.subr.bf16.mxu0 0
        %1430 = vmatpush1.bf16.msra.mxu0 0
        %1431 = vmatprep.subr.bf16.mxu0 0
        %1432 = vmatpush1.bf16.msra.mxu0 0
        %1433 = vmatprep.subr.bf16.mxu0 0
        %1434 = vmatpush1.bf16.msra.mxu0 0
        %1435 = vmatprep.subr.bf16.mxu0 0
        %1436 = vmatpush1.bf16.msra.mxu0 0
        %1437 = vmatprep.subr.bf16.mxu0 0
        %1438 = vmatpush1.bf16.msra.mxu0 0
        %1439 = vmatprep.subr.bf16.mxu0 0
        %1440 = vmatpush1.bf16.msra.mxu0 0
        %1441 = vmatprep.subr.bf16.mxu0 0
        %1442 = vmatpush1.bf16.msra.mxu0 0
        %1443 = vmatprep.subr.bf16.mxu0 0
        %1444 = vmatpush1.bf16.msra.mxu0 0
        %1445 = vmatprep.mubr.bf16.mxu0 0
        %1446 = vmatmul.mubr.bf16.gmra.mrb[0].mxu0 %v1368
        %v1447 = vpop.f32.mrb[0].mxu0
        %v1448 = vadd.f32 0.0, %v1447
        %v1449 = vpop.f32.mrb[0].mxu0
        %v1450 = vadd.f32 0.0, %v1449
        %v1451 = vpop.f32.mrb[0].mxu0
        %v1452 = vadd.f32 0.0, %v1451
        %v1453 = vpop.f32.mrb[0].mxu0
        %v1454 = vadd.f32 0.0, %v1453
        %1455 = vdwg.mxu0
        %v1456 = vadd.f32 %v1211, %v1405
        %v1457 = vadd.f32 %v1212, %v1407
        %v1458 = vadd.f32 %v1213, %v1448
        %v1459 = vadd.f32 %v1214, %v1450
        %v1460 = vadd.f32 %v1215, %v1409
        %v1461 = vadd.f32 %v1216, %v1411
        %v1462 = vadd.f32 %v1217, %v1452
        %v1463 = vadd.f32 %v1218, %v1454
        %v1464 = vmax.f32 %v1354, %v1456
        %v1465 = vmax.f32 %v1355, %v1457
        %v1466 = vmax.f32 %v1356, %v1458
        %v1467 = vmax.f32 %v1357, %v1459
        %v1468 = vmax.f32 %v1358, %v1460
        %v1469 = vmax.f32 %v1359, %v1461
        %v1470 = vmax.f32 %v1360, %v1462
        %v1471 = vmax.f32 %v1361, %v1463
        %v1472 = vld [vmem:[#allocation4] sm:$0xf]
        %v1474 = vlaneseq
        %v1475 = vshrl.u32 %v1474, 7
        %v1476 = vsub.s32 0, %v1475
        %v1477 = vrot.slane %v1472, %v1476
        %v1478 = vlaneseq
        %v1479 = vshrl.u32 %v1478, 7
        %v1480 = vsub.s32 1, %v1479
        %v1481 = vrot.slane %v1472, %v1480
        %v1482 = vlaneseq
        %v1483 = vshrl.u32 %v1482, 7
        %v1484 = vsub.s32 2, %v1483
        %v1485 = vrot.slane %v1472, %v1484
        %v1486 = vlaneseq
        %v1487 = vshrl.u32 %v1486, 7
        %v1488 = vsub.s32 3, %v1487
        %v1489 = vrot.slane %v1472, %v1488
        %v1494 = vadd.f32 %v1464, %v1477
        %v1495 = vadd.f32 %v1465, %v1481
        %v1496 = vadd.f32 %v1466, %v1485
        %v1497 = vadd.f32 %v1467, %v1489
        %v1498 = vadd.f32 %v1468, %v1477
        %v1499 = vadd.f32 %v1469, %v1481
        %v1500 = vadd.f32 %v1470, %v1485
        %v1501 = vadd.f32 %v1471, %v1489
        %v1502 = vmax.f32 %v1494, 0.0
        %v1503 = vmax.f32 %v1495, 0.0
        %v1504 = vmax.f32 %v1496, 0.0
        %v1505 = vmax.f32 %v1497, 0.0
        %v1506 = vmax.f32 %v1498, 0.0
        %v1507 = vmax.f32 %v1499, 0.0
        %v1508 = vmax.f32 %v1500, 0.0
        %v1509 = vmax.f32 %v1501, 0.0
        %1516 = vrot.lane.b32.xlu0 %v1503, 32
        %v1517 = vpop.permute.xlu0 %1516
        %1518 = vrot.lane.b32.xlu0 %v1504, 32
        %v1519 = vpop.permute.xlu0 %1518
        %1520 = vrot.lane.b32.xlu0 %v1505, 32
        %v1521 = vpop.permute.xlu0 %1520
        %1522 = vrot.lane.b32.xlu0 %v1507, 32
        %v1523 = vpop.permute.xlu0 %1522
        %1524 = vrot.lane.b32.xlu0 %v1508, 32
        %v1525 = vpop.permute.xlu0 %1524
        %1526 = vrot.lane.b32.xlu0 %v1509, 32
        %v1527 = vpop.permute.xlu0 %1526
        %v1528 = vsel %vm313, %v1517, %v1519
        %v1529 = vsel %vm313, %v1519, %v1521
        %v1530 = vsel %vm313, %v1523, %v1525
        %v1531 = vsel %vm313, %v1525, %v1527
        %v1536 = vmax.f32 %v1502, %v1528
        %v1537 = vmax.f32 %v1503, %v1529
        %v1538 = vmax.f32 %v1506, %v1530
        %v1539 = vmax.f32 %v1507, %v1531
        %v1540 = vpack.c.bf16 %v1538, %v1536
        %v1541 = vpack.c.bf16 %v1539, %v1537
        %v1544 = vunpack.c.l.b16 %v1540
        %v1545 = vunpack.c.l.b16 %v1541
        %v1546 = vunpack.c.h.b16 %v1540
        %v1547 = vunpack.c.h.b16 %v1541
        %v1548 = vpack.c.b16 %v1545, %v1544
        %v1549 = vpack.c.b16 %v1547, %v1546
        %vm1552 = vcmask 1043456
        %vm1553 = vcmask 785412
        %vm1554 = vmor %vm1553, %vm1552
        %1555 = vst.msk [vmem:[%s245] sm:$0xff] %vm1554, %v1548
        %vm1556 = vcmask 1042432
        %vm1557 = vcmask 784388
        %vm1558 = vmor %vm1557, %vm1556
        %1559 = vst.msk [vmem:[%s245 + $0x8] sm:$0x77] %vm1558, %v1549
        %p1560 = scmp.lt.s32.totalorder %s17, 1
        %s1561 = scalar_select %p1560, %s17, 1
        %s1562 = smul.addr %s1561, 4
        %s1563 = smul.addr %s1562, 4
        %s1564 = scalar_lea.vmem %s4, %s1563
        // Predicated region
        $region45: #{cnn_forward.3} parent=35 // pred_check
          %p1565 = pneg %p129
        $region46: #{cnn_forward.3} parent=35 // pred_check_branch
          %1567 = sbr.rel (%p1565) target = $region48
        $region47: #{cnn_forward.3} parent=35 // pred_region
          _
        $region48: #{cnn_forward.3} parent=35 // pred_fallthru
          _
      $region36: #{cnn_forward.3} parent=5 // pred_fallthru
        _
      %p1568 = scmp.le.s32.totalorder 2, %s12
      // Predicated region
      $region49: #{cnn_forward.3} parent=5 // pred_check
        %p1569 = pneg %p1568
      $region50: #{cnn_forward.3} parent=5 // pred_check_branch
        %1571 = sbr.rel (%p1569) target = $region52
      $region51: #{cnn_forward.3} parent=5 // pred_region
        %s1572 = ssub.s32 %s12, 2
        // Predicated region
        $region53: #{cnn_forward.3} parent=51 // pred_check
          %p1573 = pneg %p135
        $region54: #{cnn_forward.3} parent=51 // pred_check_branch
          %1575 = sbr.rel (%p1573) target = $region56
        $region55: #{cnn_forward.3} parent=51 // pred_region
          %p1576 = scmp.lt.s32.totalorder %s18, 1
          %s1577 = scalar_select %p1576, %s18, 1
          %s1578 = smul.addr %s1577, 4
          %s1579 = smul.addr %s1578, 4
          %s1580 = scalar_lea.vmem %s4, %s1579
        $region56: #{cnn_forward.3} parent=51 // pred_fallthru
          _
      $region52: #{cnn_forward.3} parent=5 // pred_fallthru
        _
    $region6: #{cnn_forward.3} parent=1 // loop_footer
      %s16 = sadd.s32 1, %s12
    $region7: #{cnn_forward.3} parent=1 // loop_footer_branch
      %11 = sbr.rel target = $region3
    $region8: #{cnn_forward.3} parent=1 // loop_exit
      _
    %1581 = vsyncpa [#allocation3], 1
    %s1582 = scalar_lea.sflag [#allocation3], 1
    %1583 = vsyncpa %s1582, 1
    %1584 = vsyncpa [#allocation5], 1

// kernel: cnn_forward.5
$region0: #{cnn_forward.5}
  #allocation0 [shape = 'u32[]', space=smem, size = 0x4, offset = 0x4, fixed_abs, tag = 'smem constant byte address 0x4 - core index']
  #allocation1 [shape = 'u32[144,128]{1,0:T(1,128)}', space=vmem, size = 0x12000, scoped, tag = 'internal scratch']
  %s0 = inlined_call_operand.vmem [shape: f32[2,1568], index: 0, kind: input, shape index: {}]
  %s1 = inlined_call_operand.vmem [shape: f32[1568,128], index: 1, kind: input, shape index: {}]
  %s2 = inlined_call_operand.vmem [shape: f32[1,128], index: 2, kind: input, shape index: {}]
  %s3 = inlined_call_operand.hbm [shape: f32[2,128], index: 3, kind: output, shape index: {}]
  %s4 = sld [smem:[#allocation0]]
  $region22: #{cnn_forward.5} parent=0
    _
  %s6 = ssub.s32 1, %s4
  %s7 = scalar_select 0, %s6, %s4
  $region1: #{cnn_forward.5} parent=0
    #allocation2 [shape = 'u8[1024]{0}', space=vmem, size = 0x400, scoped, tag = 'output window, operand 0, single buffered']
    #allocation3 [shape = 's32[1]{0}', space=sflag, size = 0x4, scoped, tag = 'scoped memory for cnn_forward.5']
    %8 = vsyncpa [#allocation3], 0
    // Predicated region
    $region2: #{cnn_forward.5} parent=1 // pred_check
      _
    $region3: #{cnn_forward.5} parent=1 // pred_check_branch
      %10 = sbr.rel (0) target = $region5
    $region4: #{cnn_forward.5} parent=1 // pred_region
      _
    $region5: #{cnn_forward.5} parent=1 // pred_fallthru
      _
    // Predicated region
    $region6: #{cnn_forward.5} parent=1 // pred_check
      _
    $region7: #{cnn_forward.5} parent=1 // pred_check_branch
      %12 = sbr.rel (0) target = $region9
    $region8: #{cnn_forward.5} parent=1 // pred_region
      _
    $region9: #{cnn_forward.5} parent=1 // pred_fallthru
      _
    // Predicated region
    $region10: #{cnn_forward.5} parent=1 // pred_check
      _
    $region11: #{cnn_forward.5} parent=1 // pred_check_branch
      %14 = sbr.rel (0) target = $region13
    $region12: #{cnn_forward.5} parent=1 // pred_region
      _
    $region13: #{cnn_forward.5} parent=1 // pred_fallthru
      _
    %v15 = vld [vmem:[%s0] sm:$0xff]
    %v16 = vld [vmem:[%s0 + $0x8] sm:$0xff]
    %v17 = vld [vmem:[%s0 + $0x10] sm:$0xff]
    %v18 = vld [vmem:[%s0 + $0x18] sm:$0x3]
    %v19 = vld [vmem:[%s1] sm:$0xff]
    %v20 = vld [vmem:[%s1 + $0x8] sm:$0xff]
    %v21 = vld [vmem:[%s1 + $0x10] sm:$0xff]
    %v22 = vld [vmem:[%s1 + $0x18] sm:$0xff]
    %v23 = vld [vmem:[%s1 + $0x20] sm:$0xff]
    %v24 = vld [vmem:[%s1 + $0x28] sm:$0xff]
    %v25 = vld [vmem:[%s1 + $0x30] sm:$0xff]
    %v26 = vld [vmem:[%s1 + $0x38] sm:$0xff]
    %v27 = vld [vmem:[%s1 + $0x40] sm:$0xff]
    %v28 = vld [vmem:[%s1 + $0x48] sm:$0xff]
    %v29 = vld [vmem:[%s1 + $0x50] sm:$0xff]
    %v30 = vld [vmem:[%s1 + $0x58] sm:$0xff]
    %v31 = vld [vmem:[%s1 + $0x60] sm:$0xff]
    %v32 = vld [vmem:[%s1 + $0x68] sm:$0xff]
    %v33 = vld [vmem:[%s1 + $0x70] sm:$0xff]
    %v34 = vld [vmem:[%s1 + $0x78] sm:$0xff]
    %v35 = vld [vmem:[%s1 + $0x80] sm:$0xff]
    %v36 = vld [vmem:[%s1 + $0x88] sm:$0xff]
    %v37 = vld [vmem:[%s1 + $0x90] sm:$0xff]
    %v38 = vld [vmem:[%s1 + $0x98] sm:$0xff]
    %v39 = vld [vmem:[%s1 + $0xa0] sm:$0xff]
    %v40 = vld [vmem:[%s1 + $0xa8] sm:$0xff]
    %v41 = vld [vmem:[%s1 + $0xb0] sm:$0xff]
    %v42 = vld [vmem:[%s1 + $0xb8] sm:$0xff]
    %v43 = vld [vmem:[%s1 + $0xc0] sm:$0xff]
    %v44 = vld [vmem:[%s1 + $0xc8] sm:$0xff]
    %v45 = vld [vmem:[%s1 + $0xd0] sm:$0xff]
    %v46 = vld [vmem:[%s1 + $0xd8] sm:$0xff]
    %v47 = vld [vmem:[%s1 + $0xe0] sm:$0xff]
    %v48 = vld [vmem:[%s1 + $0xe8] sm:$0xff]
    %v49 = vld [vmem:[%s1 + $0xf0] sm:$0xff]
    %v50 = vld [vmem:[%s1 + $0xf8] sm:$0xff]
    %v51 = vld [vmem:[%s1 + $0x100] sm:$0xff]
    %v52 = vld [vmem:[%s1 + $0x108] sm:$0xff]
    %v53 = vld [vmem:[%s1 + $0x110] sm:$0xff]
    %v54 = vld [vmem:[%s1 + $0x118] sm:$0xff]
    %v55 = vld [vmem:[%s1 + $0x120] sm:$0xff]
    %v56 = vld [vmem:[%s1 + $0x128] sm:$0xff]
    %v57 = vld [vmem:[%s1 + $0x130] sm:$0xff]
    %v58 = vld [vmem:[%s1 + $0x138] sm:$0xff]
    %v59 = vld [vmem:[%s1 + $0x140] sm:$0xff]
    %v60 = vld [vmem:[%s1 + $0x148] sm:$0xff]
    %v61 = vld [vmem:[%s1 + $0x150] sm:$0xff]
    %v62 = vld [vmem:[%s1 + $0x158] sm:$0xff]
    %v63 = vld [vmem:[%s1 + $0x160] sm:$0xff]
    %v64 = vld [vmem:[%s1 + $0x168] sm:$0xff]
    %v65 = vld [vmem:[%s1 + $0x170] sm:$0xff]
    %v66 = vld [vmem:[%s1 + $0x178] sm:$0xff]
    %v67 = vld [vmem:[%s1 + $0x180] sm:$0xff]
    %v68 = vld [vmem:[%s1 + $0x188] sm:$0xff]
    %v69 = vld [vmem:[%s1 + $0x190] sm:$0xff]
    %v70 = vld [vmem:[%s1 + $0x198] sm:$0xff]
    %v71 = vld [vmem:[%s1 + $0x1a0] sm:$0xff]
    %v72 = vld [vmem:[%s1 + $0x1a8] sm:$0xff]
    %v73 = vld [vmem:[%s1 + $0x1b0] sm:$0xff]
    %v74 = vld [vmem:[%s1 + $0x1b8] sm:$0xff]
    %v75 = vld [vmem:[%s1 + $0x1c0] sm:$0xff]
    %v76 = vld [vmem:[%s1 + $0x1c8] sm:$0xff]
    %v77 = vld [vmem:[%s1 + $0x1d0] sm:$0xff]
    %v78 = vld [vmem:[%s1 + $0x1d8] sm:$0xff]
    %v79 = vld [vmem:[%s1 + $0x1e0] sm:$0xff]
    %v80 = vld [vmem:[%s1 + $0x1e8] sm:$0xff]
    %v81 = vld [vmem:[%s1 + $0x1f0] sm:$0xff]
    %v82 = vld [vmem:[%s1 + $0x1f8] sm:$0xff]
    %v83 = vld [vmem:[%s1 + $0x200] sm:$0xff]
    %v84 = vld [vmem:[%s1 + $0x208] sm:$0xff]
    %v85 = vld [vmem:[%s1 + $0x210] sm:$0xff]
    %v86 = vld [vmem:[%s1 + $0x218] sm:$0xff]
    %v87 = vld [vmem:[%s1 + $0x220] sm:$0xff]
    %v88 = vld [vmem:[%s1 + $0x228] sm:$0xff]
    %v89 = vld [vmem:[%s1 + $0x230] sm:$0xff]
    %v90 = vld [vmem:[%s1 + $0x238] sm:$0xff]
    %v91 = vld [vmem:[%s1 + $0x240] sm:$0xff]
    %v92 = vld [vmem:[%s1 + $0x248] sm:$0xff]
    %v93 = vld [vmem:[%s1 + $0x250] sm:$0xff]
    %v94 = vld [vmem:[%s1 + $0x258] sm:$0xff]
    %v95 = vld [vmem:[%s1 + $0x260] sm:$0xff]
    %v96 = vld [vmem:[%s1 + $0x268] sm:$0xff]
    %v97 = vld [vmem:[%s1 + $0x270] sm:$0xff]
    %v98 = vld [vmem:[%s1 + $0x278] sm:$0xff]
    %v99 = vld [vmem:[%s1 + $0x280] sm:$0xff]
    %v100 = vld [vmem:[%s1 + $0x288] sm:$0xff]
    %v101 = vld [vmem:[%s1 + $0x290] sm:$0xff]
    %v102 = vld [vmem:[%s1 + $0x298] sm:$0xff]
    %v103 = vld [vmem:[%s1 + $0x2a0] sm:$0xff]
    %v104 = vld [vmem:[%s1 + $0x2a8] sm:$0xff]
    %v105 = vld [vmem:[%s1 + $0x2b0] sm:$0xff]
    %v106 = vld [vmem:[%s1 + $0x2b8] sm:$0xff]
    %v107 = vld [vmem:[%s1 + $0x2c0] sm:$0xff]
    %v108 = vld [vmem:[%s1 + $0x2c8] sm:$0xff]
    %v109 = vld [vmem:[%s1 + $0x2d0] sm:$0xff]
    %v110 = vld [vmem:[%s1 + $0x2d8] sm:$0xff]
    %v111 = vld [vmem:[%s1 + $0x2e0] sm:$0xff]
    %v112 = vld [vmem:[%s1 + $0x2e8] sm:$0xff]
    %v113 = vld [vmem:[%s1 + $0x2f0] sm:$0xff]
    %v114 = vld [vmem:[%s1 + $0x2f8] sm:$0xff]
    %v115 = vld [vmem:[%s1 + $0x300] sm:$0xff]
    %v116 = vld [vmem:[%s1 + $0x308] sm:$0xff]
    %v117 = vld [vmem:[%s1 + $0x310] sm:$0xff]
    %v118 = vld [vmem:[%s1 + $0x318] sm:$0xff]
    %v119 = vld [vmem:[%s1 + $0x320] sm:$0xff]
    %v120 = vld [vmem:[%s1 + $0x328] sm:$0xff]
    %v121 = vld [vmem:[%s1 + $0x330] sm:$0xff]
    %v122 = vld [vmem:[%s1 + $0x338] sm:$0xff]
    %v123 = vld [vmem:[%s1 + $0x340] sm:$0xff]
    %v124 = vld [vmem:[%s1 + $0x348] sm:$0xff]
    %v125 = vld [vmem:[%s1 + $0x350] sm:$0xff]
    %v126 = vld [vmem:[%s1 + $0x358] sm:$0xff]
    %v127 = vld [vmem:[%s1 + $0x360] sm:$0xff]
    %v128 = vld [vmem:[%s1 + $0x368] sm:$0xff]
    %v129 = vld [vmem:[%s1 + $0x370] sm:$0xff]
    %v130 = vld [vmem:[%s1 + $0x378] sm:$0xff]
    %v131 = vld [vmem:[%s1 + $0x380] sm:$0xff]
    %v132 = vld [vmem:[%s1 + $0x388] sm:$0xff]
    %v133 = vld [vmem:[%s1 + $0x390] sm:$0xff]
    %v134 = vld [vmem:[%s1 + $0x398] sm:$0xff]
    %v135 = vld [vmem:[%s1 + $0x3a0] sm:$0xff]
    %v136 = vld [vmem:[%s1 + $0x3a8] sm:$0xff]
    %v137 = vld [vmem:[%s1 + $0x3b0] sm:$0xff]
    %v138 = vld [vmem:[%s1 + $0x3b8] sm:$0xff]
    %v139 = vld [vmem:[%s1 + $0x3c0] sm:$0xff]
    %v140 = vld [vmem:[%s1 + $0x3c8] sm:$0xff]
    %v141 = vld [vmem:[%s1 + $0x3d0] sm:$0xff]
    %v142 = vld [vmem:[%s1 + $0x3d8] sm:$0xff]
    %v143 = vld [vmem:[%s1 + $0x3e0] sm:$0xff]
    %v144 = vld [vmem:[%s1 + $0x3e8] sm:$0xff]
    %v145 = vld [vmem:[%s1 + $0x3f0] sm:$0xff]
    %v146 = vld [vmem:[%s1 + $0x3f8] sm:$0xff]
    %v147 = vld [vmem:[%s1 + $0x400] sm:$0xff]
    %v148 = vld [vmem:[%s1 + $0x408] sm:$0xff]
    %v149 = vld [vmem:[%s1 + $0x410] sm:$0xff]
    %v150 = vld [vmem:[%s1 + $0x418] sm:$0xff]
    %v151 = vld [vmem:[%s1 + $0x420] sm:$0xff]
    %v152 = vld [vmem:[%s1 + $0x428] sm:$0xff]
    %v153 = vld [vmem:[%s1 + $0x430] sm:$0xff]
    %v154 = vld [vmem:[%s1 + $0x438] sm:$0xff]
    %v155 = vld [vmem:[%s1 + $0x440] sm:$0xff]
    %v156 = vld [vmem:[%s1 + $0x448] sm:$0xff]
    %v157 = vld [vmem:[%s1 + $0x450] sm:$0xff]
    %v158 = vld [vmem:[%s1 + $0x458] sm:$0xff]
    %v159 = vld [vmem:[%s1 + $0x460] sm:$0xff]
    %v160 = vld [vmem:[%s1 + $0x468] sm:$0xff]
    %v161 = vld [vmem:[%s1 + $0x470] sm:$0xff]
    %v162 = vld [vmem:[%s1 + $0x478] sm:$0xff]
    %v163 = vld [vmem:[%s1 + $0x480] sm:$0xff]
    %v164 = vld [vmem:[%s1 + $0x488] sm:$0xff]
    %v165 = vld [vmem:[%s1 + $0x490] sm:$0xff]
    %v166 = vld [vmem:[%s1 + $0x498] sm:$0xff]
    %v167 = vld [vmem:[%s1 + $0x4a0] sm:$0xff]
    %v168 = vld [vmem:[%s1 + $0x4a8] sm:$0xff]
    %v169 = vld [vmem:[%s1 + $0x4b0] sm:$0xff]
    %v170 = vld [vmem:[%s1 + $0x4b8] sm:$0xff]
    %v171 = vld [vmem:[%s1 + $0x4c0] sm:$0xff]
    %v172 = vld [vmem:[%s1 + $0x4c8] sm:$0xff]
    %v173 = vld [vmem:[%s1 + $0x4d0] sm:$0xff]
    %v174 = vld [vmem:[%s1 + $0x4d8] sm:$0xff]
    %v175 = vld [vmem:[%s1 + $0x4e0] sm:$0xff]
    %v176 = vld [vmem:[%s1 + $0x4e8] sm:$0xff]
    %v177 = vld [vmem:[%s1 + $0x4f0] sm:$0xff]
    %v178 = vld [vmem:[%s1 + $0x4f8] sm:$0xff]
    %v179 = vld [vmem:[%s1 + $0x500] sm:$0xff]
    %v180 = vld [vmem:[%s1 + $0x508] sm:$0xff]
    %v181 = vld [vmem:[%s1 + $0x510] sm:$0xff]
    %v182 = vld [vmem:[%s1 + $0x518] sm:$0xff]
    %v183 = vld [vmem:[%s1 + $0x520] sm:$0xff]
    %v184 = vld [vmem:[%s1 + $0x528] sm:$0xff]
    %v185 = vld [vmem:[%s1 + $0x530] sm:$0xff]
    %v186 = vld [vmem:[%s1 + $0x538] sm:$0xff]
    %v187 = vld [vmem:[%s1 + $0x540] sm:$0xff]
    %v188 = vld [vmem:[%s1 + $0x548] sm:$0xff]
    %v189 = vld [vmem:[%s1 + $0x550] sm:$0xff]
    %v190 = vld [vmem:[%s1 + $0x558] sm:$0xff]
    %v191 = vld [vmem:[%s1 + $0x560] sm:$0xff]
    %v192 = vld [vmem:[%s1 + $0x568] sm:$0xff]
    %v193 = vld [vmem:[%s1 + $0x570] sm:$0xff]
    %v194 = vld [vmem:[%s1 + $0x578] sm:$0xff]
    %v195 = vld [vmem:[%s1 + $0x580] sm:$0xff]
    %v196 = vld [vmem:[%s1 + $0x588] sm:$0xff]
    %v197 = vld [vmem:[%s1 + $0x590] sm:$0xff]
    %v198 = vld [vmem:[%s1 + $0x598] sm:$0xff]
    %v199 = vld [vmem:[%s1 + $0x5a0] sm:$0xff]
    %v200 = vld [vmem:[%s1 + $0x5a8] sm:$0xff]
    %v201 = vld [vmem:[%s1 + $0x5b0] sm:$0xff]
    %v202 = vld [vmem:[%s1 + $0x5b8] sm:$0xff]
    %v203 = vld [vmem:[%s1 + $0x5c0] sm:$0xff]
    %v204 = vld [vmem:[%s1 + $0x5c8] sm:$0xff]
    %v205 = vld [vmem:[%s1 + $0x5d0] sm:$0xff]
    %v206 = vld [vmem:[%s1 + $0x5d8] sm:$0xff]
    %v207 = vld [vmem:[%s1 + $0x5e0] sm:$0xff]
    %v208 = vld [vmem:[%s1 + $0x5e8] sm:$0xff]
    %v209 = vld [vmem:[%s1 + $0x5f0] sm:$0xff]
    %v210 = vld [vmem:[%s1 + $0x5f8] sm:$0xff]
    %v211 = vld [vmem:[%s1 + $0x600] sm:$0xff]
    %v212 = vld [vmem:[%s1 + $0x608] sm:$0xff]
    %v213 = vld [vmem:[%s1 + $0x610] sm:$0xff]
    %v214 = vld [vmem:[%s1 + $0x618] sm:$0xff]
    %v215 = vld [vmem:[%s2] sm:$0x1]
    %v217 = vlaneseq
    %v218 = vshrl.u32 %v217, 7
    %v219 = vsub.s32 0, %v218
    %v220 = vrot.slane %v215, %v219
    %v226 = vcombine.high %v15, %v15
    %v228 = vunpack.c.l.s4 1983009808
    %v229 = vunpack.c.0.s8 %v228
    %v230 = vlaneseq
    %v231 = vshrl.u32 %v230, 7
    %v232 = vsub.s32 %v229, %v231
    %v233 = vrot.slane %v15, %v232
    %v235 = vunpack.c.l.s4 1983009808
    %v236 = vunpack.c.0.s8 %v235
    %v237 = vlaneseq
    %v238 = vshrl.u32 %v237, 7
    %v239 = vsub.s32 %v236, %v238
    %v240 = vrot.slane %v226, %v239
    %v241 = vcombine.high %v233, %v233
    %v242 = vcombine.high %v240, %v240
    %v243 = vcombine.high %v16, %v16
    %v245 = vunpack.c.l.s4 1983009808
    %v246 = vunpack.c.0.s8 %v245
    %v247 = vlaneseq
    %v248 = vshrl.u32 %v247, 7
    %v249 = vsub.s32 %v246, %v248
    %v250 = vrot.slane %v16, %v249
    %v252 = vunpack.c.l.s4 1983009808
    %v253 = vunpack.c.0.s8 %v252
    %v254 = vlaneseq
    %v255 = vshrl.u32 %v254, 7
    %v256 = vsub.s32 %v253, %v255
    %v257 = vrot.slane %v243, %v256
    %v258 = vcombine.high %v250, %v250
    %v259 = vcombine.high %v257, %v257
    %v260 = vcombine.high %v17, %v17
    %v262 = vunpack.c.l.s4 1983009808
    %v263 = vunpack.c.0.s8 %v262
    %v264 = vlaneseq
    %v265 = vshrl.u32 %v264, 7
    %v266 = vsub.s32 %v263, %v265
    %v267 = vrot.slane %v17, %v266
    %v269 = vunpack.c.l.s4 1983009808
    %v270 = vunpack.c.0.s8 %v269
    %v271 = vlaneseq
    %v272 = vshrl.u32 %v271, 7
    %v273 = vsub.s32 %v270, %v272
    %v274 = vrot.slane %v260, %v273
    %v275 = vcombine.high %v267, %v267
    %v276 = vcombine.high %v274, %v274
    %v278 = vunpack.c.l.s4 1983009808
    %v279 = vunpack.c.0.s8 %v278
    %v280 = vlaneseq
    %v281 = vshrl.u32 %v280, 7
    %v282 = vsub.s32 %v279, %v281
    %v283 = vrot.slane %v18, %v282
    %vm296 = vcmask 261120
    %v297 = vsel %vm296, %v283, 0
    %299 = vmatprep.subr.mxu0 0.0
    %300 = vmatpush1.msra.mxu0 %v19
    %301 = vmatprep.subr.mxu0 0.0
    %302 = vmatpush1.msra.mxu0 %v20
    %303 = vmatprep.subr.mxu0 0.0
    %304 = vmatpush1.msra.mxu0 %v21
    %305 = vmatprep.subr.mxu0 0.0
    %306 = vmatpush1.msra.mxu0 %v22
    %307 = vmatprep.subr.mxu0 0.0
    %308 = vmatpush1.msra.mxu0 %v23
    %309 = vmatprep.subr.mxu0 0.0
    %310 = vmatpush1.msra.mxu0 %v24
    %311 = vmatprep.subr.mxu0 0.0
    %312 = vmatpush1.msra.mxu0 %v25
    %313 = vmatprep.subr.mxu0 0.0
    %314 = vmatpush1.msra.mxu0 %v26
    %315 = vmatprep.subr.mxu0 0.0
    %316 = vmatpush1.msra.mxu0 %v27
    %317 = vmatprep.subr.mxu0 0.0
    %318 = vmatpush1.msra.mxu0 %v28
    %319 = vmatprep.subr.mxu0 0.0
    %320 = vmatpush1.msra.mxu0 %v29
    %321 = vmatprep.subr.mxu0 0.0
    %322 = vmatpush1.msra.mxu0 %v30
    %323 = vmatprep.subr.mxu0 0.0
    %324 = vmatpush1.msra.mxu0 %v31
    %325 = vmatprep.subr.mxu0 0.0
    %326 = vmatpush1.msra.mxu0 %v32
    %327 = vmatprep.subr.mxu0 0.0
    %328 = vmatpush1.msra.mxu0 %v33
    %329 = vmatprep.subr.mxu0 0.0
    %330 = vmatpush1.msra.mxu0 %v34
    %331 = vmatprep.subr.mxu0 0.0
    %332 = vmatpush1.msra.mxu0 %v35
    %333 = vmatprep.subr.mxu0 0.0
    %334 = vmatpush1.msra.mxu0 %v36
    %335 = vmatprep.subr.mxu0 0.0
    %336 = vmatpush1.msra.mxu0 %v37
    %337 = vmatprep.subr.mxu0 0.0
    %338 = vmatpush1.msra.mxu0 %v38
    %339 = vmatprep.subr.mxu0 0.0
    %340 = vmatpush1.msra.mxu0 %v39
    %341 = vmatprep.subr.mxu0 0.0
    %342 = vmatpush1.msra.mxu0 %v40
    %343 = vmatprep.subr.mxu0 0.0
    %344 = vmatpush1.msra.mxu0 %v41
    %345 = vmatprep.subr.mxu0 0.0
    %346 = vmatpush1.msra.mxu0 %v42
    %347 = vmatprep.subr.mxu0 0.0
    %348 = vmatpush1.msra.mxu0 %v43
    %349 = vmatprep.subr.mxu0 0.0
    %350 = vmatpush1.msra.mxu0 %v44
    %351 = vmatprep.subr.mxu0 0.0
    %352 = vmatpush1.msra.mxu0 %v45
    %353 = vmatprep.subr.mxu0 0.0
    %354 = vmatpush1.msra.mxu0 %v46
    %355 = vmatprep.subr.mxu0 0.0
    %356 = vmatpush1.msra.mxu0 %v47
    %357 = vmatprep.subr.mxu0 0.0
    %358 = vmatpush1.msra.mxu0 %v48
    %359 = vmatprep.subr.mxu0 0.0
    %360 = vmatpush1.msra.mxu0 %v49
    %361 = vmatprep.subr.mxu0 0.0
    %362 = vmatpush1.msra.mxu0 %v50
    %363 = vmatprep.mubr.f32.mxu0 %v241
    %364 = vmatmul.mubr.f32.gmra.mrb[0].mxu0 %v233
    %v365 = vpop.f32.mrb[0].mxu0
    %v366 = vadd.f32 %v220, %v365
    %v367 = vpop.f32.mrb[0].mxu0
    %368 = vdwg.mxu0
    %369 = vmatprep.subr.mxu0 0.0
    %370 = vmatpush1.msra.mxu0 %v51
    %371 = vmatprep.subr.mxu0 0.0
    %372 = vmatpush1.msra.mxu0 %v52
    %373 = vmatprep.subr.mxu0 0.0
    %374 = vmatpush1.msra.mxu0 %v53
    %375 = vmatprep.subr.mxu0 0.0
    %376 = vmatpush1.msra.mxu0 %v54
    %377 = vmatprep.subr.mxu0 0.0
    %378 = vmatpush1.msra.mxu0 %v55
    %379 = vmatprep.subr.mxu0 0.0
    %380 = vmatpush1.msra.mxu0 %v56
    %381 = vmatprep.subr.mxu0 0.0
    %382 = vmatpush1.msra.mxu0 %v57
    %383 = vmatprep.subr.mxu0 0.0
    %384 = vmatpush1.msra.mxu0 %v58
    %385 = vmatprep.subr.mxu0 0.0
    %386 = vmatpush1.msra.mxu0 %v59
    %387 = vmatprep.subr.mxu0 0.0
    %388 = vmatpush1.msra.mxu0 %v60
    %389 = vmatprep.subr.mxu0 0.0
    %390 = vmatpush1.msra.mxu0 %v61
    %391 = vmatprep.subr.mxu0 0.0
    %392 = vmatpush1.msra.mxu0 %v62
    %393 = vmatprep.subr.mxu0 0.0
    %394 = vmatpush1.msra.mxu0 %v63
    %395 = vmatprep.subr.mxu0 0.0
    %396 = vmatpush1.msra.mxu0 %v64
    %397 = vmatprep.subr.mxu0 0.0
    %398 = vmatpush1.msra.mxu0 %v65
    %399 = vmatprep.subr.mxu0 0.0
    %400 = vmatpush1.msra.mxu0 %v66
    %401 = vmatprep.subr.mxu0 0.0
    %402 = vmatpush1.msra.mxu0 %v67
    %403 = vmatprep.subr.mxu0 0.0
    %404 = vmatpush1.msra.mxu0 %v68
    %405 = vmatprep.subr.mxu0 0.0
    %406 = vmatpush1.msra.mxu0 %v69
    %407 = vmatprep.subr.mxu0 0.0
    %408 = vmatpush1.msra.mxu0 %v70
    %409 = vmatprep.subr.mxu0 0.0
    %410 = vmatpush1.msra.mxu0 %v71
    %411 = vmatprep.subr.mxu0 0.0
    %412 = vmatpush1.msra.mxu0 %v72
    %413 = vmatprep.subr.mxu0 0.0
    %414 = vmatpush1.msra.mxu0 %v73
    %415 = vmatprep.subr.mxu0 0.0
    %416 = vmatpush1.msra.mxu0 %v74
    %417 = vmatprep.subr.mxu0 0.0
    %418 = vmatpush1.msra.mxu0 %v75
    %419 = vmatprep.subr.mxu0 0.0
    %420 = vmatpush1.msra.mxu0 %v76
    %421 = vmatprep.subr.mxu0 0.0
    %422 = vmatpush1.msra.mxu0 %v77
    %423 = vmatprep.subr.mxu0 0.0
    %424 = vmatpush1.msra.mxu0 %v78
    %425 = vmatprep.subr.mxu0 0.0
    %426 = vmatpush1.msra.mxu0 %v79
    %427 = vmatprep.subr.mxu0 0.0
    %428 = vmatpush1.msra.mxu0 %v80
    %429 = vmatprep.subr.mxu0 0.0
    %430 = vmatpush1.msra.mxu0 %v81
    %431 = vmatprep.subr.mxu0 0.0
    %432 = vmatpush1.msra.mxu0 %v82
    %433 = vmatprep.mubr.f32.mxu0 %v242
    %434 = vmatmul.mubr.f32.gmra.mrb[0].mxu0 %v240
    %v435 = vpop.f32.mrb[0].mxu0
    %v436 = vadd.f32 %v366, %v435
    %v437 = vpop.f32.mrb[0].mxu0
    %438 = vdwg.mxu0
    %439 = vmatprep.subr.mxu0 0.0
    %440 = vmatpush1.msra.mxu0 %v83
    %441 = vmatprep.subr.mxu0 0.0
    %442 = vmatpush1.msra.mxu0 %v84
    %443 = vmatprep.subr.mxu0 0.0
    %444 = vmatpush1.msra.mxu0 %v85
    %445 = vmatprep.subr.mxu0 0.0
    %446 = vmatpush1.msra.mxu0 %v86
    %447 = vmatprep.subr.mxu0 0.0
    %448 = vmatpush1.msra.mxu0 %v87
    %449 = vmatprep.subr.mxu0 0.0
    %450 = vmatpush1.msra.mxu0 %v88
    %451 = vmatprep.subr.mxu0 0.0
    %452 = vmatpush1.msra.mxu0 %v89
    %453 = vmatprep.subr.mxu0 0.0
    %454 = vmatpush1.msra.mxu0 %v90
    %455 = vmatprep.subr.mxu0 0.0
    %456 = vmatpush1.msra.mxu0 %v91
    %457 = vmatprep.subr.mxu0 0.0
    %458 = vmatpush1.msra.mxu0 %v92
    %459 = vmatprep.subr.mxu0 0.0
    %460 = vmatpush1.msra.mxu0 %v93
    %461 = vmatprep.subr.mxu0 0.0
    %462 = vmatpush1.msra.mxu0 %v94
    %463 = vmatprep.subr.mxu0 0.0
    %464 = vmatpush1.msra.mxu0 %v95
    %465 = vmatprep.subr.mxu0 0.0
    %466 = vmatpush1.msra.mxu0 %v96
    %467 = vmatprep.subr.mxu0 0.0
    %468 = vmatpush1.msra.mxu0 %v97
    %469 = vmatprep.subr.mxu0 0.0
    %470 = vmatpush1.msra.mxu0 %v98
    %471 = vmatprep.subr.mxu0 0.0
    %472 = vmatpush1.msra.mxu0 %v99
    %473 = vmatprep.subr.mxu0 0.0
    %474 = vmatpush1.msra.mxu0 %v100
    %475 = vmatprep.subr.mxu0 0.0
    %476 = vmatpush1.msra.mxu0 %v101
    %477 = vmatprep.subr.mxu0 0.0
    %478 = vmatpush1.msra.mxu0 %v102
    %479 = vmatprep.subr.mxu0 0.0
    %480 = vmatpush1.msra.mxu0 %v103
    %481 = vmatprep.subr.mxu0 0.0
    %482 = vmatpush1.msra.mxu0 %v104
    %483 = vmatprep.subr.mxu0 0.0
    %484 = vmatpush1.msra.mxu0 %v105
    %485 = vmatprep.subr.mxu0 0.0
    %486 = vmatpush1.msra.mxu0 %v106
    %487 = vmatprep.subr.mxu0 0.0
    %488 = vmatpush1.msra.mxu0 %v107
    %489 = vmatprep.subr.mxu0 0.0
    %490 = vmatpush1.msra.mxu0 %v108
    %491 = vmatprep.subr.mxu0 0.0
    %492 = vmatpush1.msra.mxu0 %v109
    %493 = vmatprep.subr.mxu0 0.0
    %494 = vmatpush1.msra.mxu0 %v110
    %495 = vmatprep.subr.mxu0 0.0
    %496 = vmatpush1.msra.mxu0 %v111
    %497 = vmatprep.subr.mxu0 0.0
    %498 = vmatpush1.msra.mxu0 %v112
    %499 = vmatprep.subr.mxu0 0.0
    %500 = vmatpush1.msra.mxu0 %v113
    %501 = vmatprep.subr.mxu0 0.0
    %502 = vmatpush1.msra.mxu0 %v114
    %503 = vmatprep.mubr.f32.mxu0 %v258
    %504 = vmatmul.mubr.f32.gmra.mrb[0].mxu0 %v250
    %v505 = vpop.f32.mrb[0].mxu0
    %v506 = vadd.f32 %v436, %v505
    %v507 = vpop.f32.mrb[0].mxu0
    %508 = vdwg.mxu0
    %509 = vmatprep.subr.mxu0 0.0
    %510 = vmatpush1.msra.mxu0 %v115
    %511 = vmatprep.subr.mxu0 0.0
    %512 = vmatpush1.msra.mxu0 %v116
    %513 = vmatprep.subr.mxu0 0.0
    %514 = vmatpush1.msra.mxu0 %v117
    %515 = vmatprep.subr.mxu0 0.0
    %516 = vmatpush1.msra.mxu0 %v118
    %517 = vmatprep.subr.mxu0 0.0
    %518 = vmatpush1.msra.mxu0 %v119
    %519 = vmatprep.subr.mxu0 0.0
    %520 = vmatpush1.msra.mxu0 %v120
    %521 = vmatprep.subr.mxu0 0.0
    %522 = vmatpush1.msra.mxu0 %v121
    %523 = vmatprep.subr.mxu0 0.0
    %524 = vmatpush1.msra.mxu0 %v122
    %525 = vmatprep.subr.mxu0 0.0
    %526 = vmatpush1.msra.mxu0 %v123
    %527 = vmatprep.subr.mxu0 0.0
    %528 = vmatpush1.msra.mxu0 %v124
    %529 = vmatprep.subr.mxu0 0.0
    %530 = vmatpush1.msra.mxu0 %v125
    %531 = vmatprep.subr.mxu0 0.0
    %532 = vmatpush1.msra.mxu0 %v126
    %533 = vmatprep.subr.mxu0 0.0
    %534 = vmatpush1.msra.mxu0 %v127
    %535 = vmatprep.subr.mxu0 0.0
    %536 = vmatpush1.msra.mxu0 %v128
    %537 = vmatprep.subr.mxu0 0.0
    %538 = vmatpush1.msra.mxu0 %v129
    %539 = vmatprep.subr.mxu0 0.0
    %540 = vmatpush1.msra.mxu0 %v130
    %541 = vmatprep.subr.mxu0 0.0
    %542 = vmatpush1.msra.mxu0 %v131
    %543 = vmatprep.subr.mxu0 0.0
    %544 = vmatpush1.msra.mxu0 %v132
    %545 = vmatprep.subr.mxu0 0.0
    %546 = vmatpush1.msra.mxu0 %v133
    %547 = vmatprep.subr.mxu0 0.0
    %548 = vmatpush1.msra.mxu0 %v134
    %549 = vmatprep.subr.mxu0 0.0
    %550 = vmatpush1.msra.mxu0 %v135
    %551 = vmatprep.subr.mxu0 0.0
    %552 = vmatpush1.msra.mxu0 %v136
    %553 = vmatprep.subr.mxu0 0.0
    %554 = vmatpush1.msra.mxu0 %v137
    %555 = vmatprep.subr.mxu0 0.0
    %556 = vmatpush1.msra.mxu0 %v138
    %557 = vmatprep.subr.mxu0 0.0
    %558 = vmatpush1.msra.mxu0 %v139
    %559 = vmatprep.subr.mxu0 0.0
    %560 = vmatpush1.msra.mxu0 %v140
    %561 = vmatprep.subr.mxu0 0.0
    %562 = vmatpush1.msra.mxu0 %v141
    %563 = vmatprep.subr.mxu0 0.0
    %564 = vmatpush1.msra.mxu0 %v142
    %565 = vmatprep.subr.mxu0 0.0
    %566 = vmatpush1.msra.mxu0 %v143
    %567 = vmatprep.subr.mxu0 0.0
    %568 = vmatpush1.msra.mxu0 %v144
    %569 = vmatprep.subr.mxu0 0.0
    %570 = vmatpush1.msra.mxu0 %v145
    %571 = vmatprep.subr.mxu0 0.0
    %572 = vmatpush1.msra.mxu0 %v146
    %573 = vmatprep.mubr.f32.mxu0 %v259
    %574 = vmatmul.mubr.f32.gmra.mrb[0].mxu0 %v257
    %v575 = vpop.f32.mrb[0].mxu0
    %v576 = vadd.f32 %v506, %v575
    %v577 = vpop.f32.mrb[0].mxu0
    %578 = vdwg.mxu0
    %579 = vmatprep.subr.mxu0 0.0
    %580 = vmatpush1.msra.mxu0 %v147
    %581 = vmatprep.subr.mxu0 0.0
    %582 = vmatpush1.msra.mxu0 %v148
    %583 = vmatprep.subr.mxu0 0.0
    %584 = vmatpush1.msra.mxu0 %v149
    %585 = vmatprep.subr.mxu0 0.0
    %586 = vmatpush1.msra.mxu0 %v150
    %587 = vmatprep.subr.mxu0 0.0
    %588 = vmatpush1.msra.mxu0 %v151
    %589 = vmatprep.subr.mxu0 0.0
    %590 = vmatpush1.msra.mxu0 %v152
    %591 = vmatprep.subr.mxu0 0.0
    %592 = vmatpush1.msra.mxu0 %v153
    %593 = vmatprep.subr.mxu0 0.0
    %594 = vmatpush1.msra.mxu0 %v154
    %595 = vmatprep.subr.mxu0 0.0
    %596 = vmatpush1.msra.mxu0 %v155
    %597 = vmatprep.subr.mxu0 0.0
    %598 = vmatpush1.msra.mxu0 %v156
    %599 = vmatprep.subr.mxu0 0.0
    %600 = vmatpush1.msra.mxu0 %v157
    %601 = vmatprep.subr.mxu0 0.0
    %602 = vmatpush1.msra.mxu0 %v158
    %603 = vmatprep.subr.mxu0 0.0
    %604 = vmatpush1.msra.mxu0 %v159
    %605 = vmatprep.subr.mxu0 0.0
    %606 = vmatpush1.msra.mxu0 %v160
    %607 = vmatprep.subr.mxu0 0.0
    %608 = vmatpush1.msra.mxu0 %v161
    %609 = vmatprep.subr.mxu0 0.0
    %610 = vmatpush1.msra.mxu0 %v162
    %611 = vmatprep.subr.mxu0 0.0
    %612 = vmatpush1.msra.mxu0 %v163
    %613 = vmatprep.subr.mxu0 0.0
    %614 = vmatpush1.msra.mxu0 %v164
    %615 = vmatprep.subr.mxu0 0.0
    %616 = vmatpush1.msra.mxu0 %v165
    %617 = vmatprep.subr.mxu0 0.0
    %618 = vmatpush1.msra.mxu0 %v166
    %619 = vmatprep.subr.mxu0 0.0
    %620 = vmatpush1.msra.mxu0 %v167
    %621 = vmatprep.subr.mxu0 0.0
    %622 = vmatpush1.msra.mxu0 %v168
    %623 = vmatprep.subr.mxu0 0.0
    %624 = vmatpush1.msra.mxu0 %v169
    %625 = vmatprep.subr.mxu0 0.0
    %626 = vmatpush1.msra.mxu0 %v170
    %627 = vmatprep.subr.mxu0 0.0
    %628 = vmatpush1.msra.mxu0 %v171
    %629 = vmatprep.subr.mxu0 0.0
    %630 = vmatpush1.msra.mxu0 %v172
    %631 = vmatprep.subr.mxu0 0.0
    %632 = vmatpush1.msra.mxu0 %v173
    %633 = vmatprep.subr.mxu0 0.0
    %634 = vmatpush1.msra.mxu0 %v174
    %635 = vmatprep.subr.mxu0 0.0
    %636 = vmatpush1.msra.mxu0 %v175
    %637 = vmatprep.subr.mxu0 0.0
    %638 = vmatpush1.msra.mxu0 %v176
    %639 = vmatprep.subr.mxu0 0.0
    %640 = vmatpush1.msra.mxu0 %v177
    %641 = vmatprep.subr.mxu0 0.0
    %642 = vmatpush1.msra.mxu0 %v178
    %643 = vmatprep.mubr.f32.mxu0 %v275
    %644 = vmatmul.mubr.f32.gmra.mrb[0].mxu0 %v267
    %v645 = vpop.f32.mrb[0].mxu0
    %v646 = vadd.f32 %v576, %v645
    %v647 = vpop.f32.mrb[0].mxu0
    %648 = vdwg.mxu0
    %649 = vmatprep.subr.mxu0 0.0
    %650 = vmatpush1.msra.mxu0 %v179
    %651 = vmatprep.subr.mxu0 0.0
    %652 = vmatpush1.msra.mxu0 %v180
    %653 = vmatprep.subr.mxu0 0.0
    %654 = vmatpush1.msra.mxu0 %v181
    %655 = vmatprep.subr.mxu0 0.0
    %656 = vmatpush1.msra.mxu0 %v182
    %657 = vmatprep.subr.mxu0 0.0
    %658 = vmatpush1.msra.mxu0 %v183
    %659 = vmatprep.subr.mxu0 0.0
    %660 = vmatpush1.msra.mxu0 %v184
    %661 = vmatprep.subr.mxu0 0.0
    %662 = vmatpush1.msra.mxu0 %v185
    %663 = vmatprep.subr.mxu0 0.0
    %664 = vmatpush1.msra.mxu0 %v186
    %665 = vmatprep.subr.mxu0 0.0
    %666 = vmatpush1.msra.mxu0 %v187
    %667 = vmatprep.subr.mxu0 0.0
    %668 = vmatpush1.msra.mxu0 %v188
    %669 = vmatprep.subr.mxu0 0.0
    %670 = vmatpush1.msra.mxu0 %v189
    %671 = vmatprep.subr.mxu0 0.0
    %672 = vmatpush1.msra.mxu0 %v190
    %673 = vmatprep.subr.mxu0 0.0
    %674 = vmatpush1.msra.mxu0 %v191
    %675 = vmatprep.subr.mxu0 0.0
    %676 = vmatpush1.msra.mxu0 %v192
    %677 = vmatprep.subr.mxu0 0.0
    %678 = vmatpush1.msra.mxu0 %v193
    %679 = vmatprep.subr.mxu0 0.0
    %680 = vmatpush1.msra.mxu0 %v194
    %681 = vmatprep.subr.mxu0 0.0
    %682 = vmatpush1.msra.mxu0 %v195
    %683 = vmatprep.subr.mxu0 0.0
    %684 = vmatpush1.msra.mxu0 %v196
    %685 = vmatprep.subr.mxu0 0.0
    %686 = vmatpush1.msra.mxu0 %v197
    %687 = vmatprep.subr.mxu0 0.0
    %688 = vmatpush1.msra.mxu0 %v198
    %689 = vmatprep.subr.mxu0 0.0
    %690 = vmatpush1.msra.mxu0 %v199
    %691 = vmatprep.subr.mxu0 0.0
    %692 = vmatpush1.msra.mxu0 %v200
    %693 = vmatprep.subr.mxu0 0.0
    %694 = vmatpush1.msra.mxu0 %v201
    %695 = vmatprep.subr.mxu0 0.0
    %696 = vmatpush1.msra.mxu0 %v202
    %697 = vmatprep.subr.mxu0 0.0
    %698 = vmatpush1.msra.mxu0 %v203
    %699 = vmatprep.subr.mxu0 0.0
    %700 = vmatpush1.msra.mxu0 %v204
    %701 = vmatprep.subr.mxu0 0.0
    %702 = vmatpush1.msra.mxu0 %v205
    %703 = vmatprep.subr.mxu0 0.0
    %704 = vmatpush1.msra.mxu0 %v206
    %705 = vmatprep.subr.mxu0 0.0
    %706 = vmatpush1.msra.mxu0 %v207
    %707 = vmatprep.subr.mxu0 0.0
    %708 = vmatpush1.msra.mxu0 %v208
    %709 = vmatprep.subr.mxu0 0.0
    %710 = vmatpush1.msra.mxu0 %v209
    %711 = vmatprep.subr.mxu0 0.0
    %712 = vmatpush1.msra.mxu0 %v210
    %713 = vmatprep.mubr.f32.mxu0 %v276
    %714 = vmatmul.mubr.f32.gmra.mrb[0].mxu0 %v274
    %v715 = vpop.f32.mrb[0].mxu0
    %v716 = vadd.f32 %v646, %v715
    %v717 = vpop.f32.mrb[0].mxu0
    %718 = vdwg.mxu0
    %719 = vmatprep.subr.mxu0 0.0
    %720 = vmatpush1.msra.mxu0 %v211
    %721 = vmatprep.subr.mxu0 0.0
    %722 = vmatpush1.msra.mxu0 %v212
    %723 = vmatprep.subr.mxu0 0.0
    %724 = vmatpush1.msra.mxu0 %v213
    %725 = vmatprep.subr.mxu0 0.0
    %726 = vmatpush1.msra.mxu0 %v214
    %727 = vmatprep.subr.mxu0 0.0
    %728 = vmatpush1.msra.mxu0 0.0
    %729 = vmatprep.subr.mxu0 0.0
    %730 = vmatpush1.msra.mxu0 0.0
    %731 = vmatprep.subr.mxu0 0.0
    %732 = vmatpush1.msra.mxu0 0.0
    %733 = vmatprep.subr.mxu0 0.0
    %734 = vmatpush1.msra.mxu0 0.0
    %735 = vmatprep.subr.mxu0 0.0
    %736 = vmatpush1.msra.mxu0 0.0
    %737 = vmatprep.subr.mxu0 0.0
    %738 = vmatpush1.msra.mxu0 0.0
    %739 = vmatprep.subr.mxu0 0.0
    %740 = vmatpush1.msra.mxu0 0.0
    %741 = vmatprep.subr.mxu0 0.0
    %742 = vmatpush1.msra.mxu0 0.0
    %743 = vmatprep.subr.mxu0 0.0
    %744 = vmatpush1.msra.mxu0 0.0
    %745 = vmatprep.subr.mxu0 0.0
    %746 = vmatpush1.msra.mxu0 0.0
    %747 = vmatprep.subr.mxu0 0.0
    %748 = vmatpush1.msra.mxu0 0.0
    %749 = vmatprep.subr.mxu0 0.0
    %750 = vmatpush1.msra.mxu0 0.0
    %751 = vmatprep.subr.mxu0 0.0
    %752 = vmatpush1.msra.mxu0 0.0
    %753 = vmatprep.subr.mxu0 0.0
    %754 = vmatpush1.msra.mxu0 0.0
    %755 = vmatprep.subr.mxu0 0.0
    %756 = vmatpush1.msra.mxu0 0.0
    %757 = vmatprep.subr.mxu0 0.0
    %758 = vmatpush1.msra.mxu0 0.0
    %759 = vmatprep.subr.mxu0 0.0
    %760 = vmatpush1.msra.mxu0 0.0
    %761 = vmatprep.subr.mxu0 0.0
    %762 = vmatpush1.msra.mxu0 0.0
    %763 = vmatprep.subr.mxu0 0.0
    %764 = vmatpush1.msra.mxu0 0.0
    %765 = vmatprep.subr.mxu0 0.0
    %766 = vmatpush1.msra.mxu0 0.0
    %767 = vmatprep.subr.mxu0 0.0
    %768 = vmatpush1.msra.mxu0 0.0
    %769 = vmatprep.subr.mxu0 0.0
    %770 = vmatpush1.msra.mxu0 0.0
    %771 = vmatprep.subr.mxu0 0.0
    %772 = vmatpush1.msra.mxu0 0.0
    %773 = vmatprep.subr.mxu0 0.0
    %774 = vmatpush1.msra.mxu0 0.0
    %775 = vmatprep.subr.mxu0 0.0
    %776 = vmatpush1.msra.mxu0 0.0
    %777 = vmatprep.subr.mxu0 0.0
    %778 = vmatpush1.msra.mxu0 0.0
    %779 = vmatprep.subr.mxu0 0.0
    %780 = vmatpush1.msra.mxu0 0.0
    %781 = vmatprep.subr.mxu0 0.0
    %782 = vmatpush1.msra.mxu0 0.0
    %783 = vmatprep.mubr.f32.mxu0 0.0
    %784 = vmatmul.mubr.f32.gmra.mrb[0].mxu0 %v297
    %v785 = vpop.f32.mrb[0].mxu0
    %v786 = vadd.f32 %v716, %v785
    %v787 = vpop.f32.mrb[0].mxu0
    %788 = vdwg.mxu0
    %789 = vst [vmem:[#allocation2] sm:$0x3] %v786
    // Predicated region
    $region14: #{cnn_forward.5} parent=1 // pred_check
      _
    $region15: #{cnn_forward.5} parent=1 // pred_check_branch
      %791 = sbr.rel (0) target = $region17
    $region16: #{cnn_forward.5} parent=1 // pred_region
      %s793 = ssub.s32 32, 32
      %794 = vsyncadd [#allocation3], %s793
      %s796 = sshll.u32 [#allocation2], 4
      %s797 = int_to_ptr.vmem [resolvable:$true] %s796
      %799 = dma.vmem_to_hbm [thread:$0]  %s797, 32, %s3, [#allocation3]
    $region17: #{cnn_forward.5} parent=1 // pred_fallthru
      _
    // Predicated region
    $region18: #{cnn_forward.5} parent=1 // pred_check
      _
    $region19: #{cnn_forward.5} parent=1 // pred_check_branch
      %801 = sbr.rel (0) target = $region21
    $region20: #{cnn_forward.5} parent=1 // pred_region
      %802 = dma.done [#allocation3], 32
    $region21: #{cnn_forward.5} parent=1 // pred_fallthru
      _
    %803 = vsyncpa [#allocation3], 1

// kernel: cnn_forward.4
$region0: #{cnn_forward.4}
  #allocation0 [shape = 'u32[]', space=smem, size = 0x4, offset = 0x4, fixed_abs, tag = 'smem constant byte address 0x4 - core index']
  #allocation1 [shape = 'u32[144,128]{1,0:T(1,128)}', space=vmem, size = 0x12000, scoped, tag = 'internal scratch']
  %s0 = inlined_call_operand.vmem [shape: bf16[2,9,288], index: 0, kind: input, shape index: {}]
  %s1 = inlined_call_operand.vmem [shape: bf16[2,9,288], index: 1, kind: input, shape index: {}]
  %s2 = inlined_call_operand.hbm [shape: bf16[5,288,448], index: 2, kind: input, shape index: {}]
  %s3 = inlined_call_operand.hbm [shape: f32[1,448], index: 3, kind: input, shape index: {}]
  %s4 = inlined_call_operand.vmem [shape: bf16[2,7,224], index: 4, kind: output, shape index: {}]
  %s5 = sld [smem:[#allocation0]]
  $region57: #{cnn_forward.4} parent=0
    _
  %s7 = ssub.s32 1, %s5
  %s8 = scalar_select 0, %s7, %s5
  $region1: #{cnn_forward.4} parent=0
    #allocation2 [shape = 'u8[1474560]{0}', space=vmem, size = 0x168000, scoped, tag = 'input window, operand 2, single buffered']
    #allocation3 [shape = 's32[2]{0}', space=sflag, size = 0x8, scoped, tag = 'scoped memory for cnn_forward.4']
    #allocation4 [shape = 'u8[2048]{0}', space=vmem, size = 0x800, scoped, tag = 'input window, operand 3, single buffered']
    #allocation5 [shape = 's32[1]{0}', space=sflag, size = 0x4, scoped, tag = 'scoped memory for cnn_forward.4']
    %9 = vsyncpa [#allocation3], 0
    %10 = vsyncpa [#allocation5], 0
    loop: start=0, step=1, limit=4
    $region2: #{cnn_forward.4} parent=1 // loop_pre_header
      _
    $region3: #{cnn_forward.4} parent=1 // loop_header
      %s12 = sphi 0, %s16
      %p13 = scmp.ge.s32.totalorder %s12, 4
      %s22 = sphi 0, %s24
      %s25 = sphi 0, %s22
      %s26 = sphi 0, %s25
      %s42 = sphi 0, %s26
      %s48 = sphi 0, %s50
      %s51 = sphi 0, %s48
      %s52 = sphi 0, %s51
      %s68 = sphi 0, %s52
      %s72 = sphi 0, %s72
      %s74 = sphi 0, %s72
      %s75 = sphi 0, %s74
      %s89 = sphi 0, %s75
      %s93 = sphi 0, %s93
      %s95 = sphi 0, %s93
      %s96 = sphi 0, %s95
      %s110 = sphi 0, %s96
      %s116 = sphi 0, %s118
      %s119 = sphi 0, %s116
      %s120 = sphi 0, %s119
      %s136 = sphi 0, %s120
    $region4: #{cnn_forward.4} parent=1 // loop_header_branch
      %15 = sbr.rel (%p13) target = $region8
    $region5: #{cnn_forward.4} parent=1 // loop_body
      %s17 = ssub.s32 %s12, 1
      %s18 = ssub.s32 %s12, 2
      %s19 = sadd.s32 %s12, 1
      %s20 = ssub.s32 %s12, %s19
      %p21 = scmp.eq.s32.totalorder %s20, 0
      %s23 = sadd.s32 %s22, 1
      %s24 = scalar_select %p21, %s22, %s23
      %p27 = pneg %p21
      %p28 = scmp.eq.s32.totalorder %s12, 1
      %p29 = por %p27, %p28
      %p30 = scmp.ne.s32.totalorder %s22, %s25
      %p31 = scmp.eq.s32.totalorder %s12, 0
      %p32 = por %p30, %p31
      %p33 = scmp.ne.s32.totalorder %s22, %s25
      %p34 = scmp.eq.s32.totalorder %s17, 1
      %p35 = por %p33, %p34
      %p36 = scmp.ne.s32.totalorder %s25, %s26
      %p37 = scmp.eq.s32.totalorder %s17, 0
      %p38 = por %p36, %p37
      %p39 = scmp.ne.s32.totalorder %s25, %s26
      %p40 = scmp.eq.s32.totalorder %s18, 1
      %p41 = por %p39, %p40
      %p43 = scmp.ne.s32.totalorder %s26, %s42
      %p44 = scmp.eq.s32.totalorder %s18, 0
      %p45 = por %p43, %p44
      %s46 = ssub.s32 %s12, %s19
      %p47 = scmp.eq.s32.totalorder %s46, 0
      %s49 = sadd.s32 %s48, 1
      %s50 = scalar_select %p47, %s48, %s49
      %p53 = pneg %p47
      %p54 = scmp.eq.s32.totalorder %s12, 1
      %p55 = por %p53, %p54
      %p56 = scmp.ne.s32.totalorder %s48, %s51
      %p57 = scmp.eq.s32.totalorder %s12, 0
      %p58 = por %p56, %p57
      %p59 = scmp.ne.s32.totalorder %s48, %s51
      %p60 = scmp.eq.s32.totalorder %s17, 1
      %p61 = por %p59, %p60
      %p62 = scmp.ne.s32.totalorder %s51, %s52
      %p63 = scmp.eq.s32.totalorder %s17, 0
      %p64 = por %p62, %p63
      %p65 = scmp.ne.s32.totalorder %s51, %s52
      %p66 = scmp.eq.s32.totalorder %s18, 1
      %p67 = por %p65, %p66
      %p69 = scmp.ne.s32.totalorder %s52, %s68
      %p70 = scmp.eq.s32.totalorder %s18, 0
      %p71 = por %p69, %p70
      %s73 = sadd.s32 %s72, 1
      %p76 = scmp.eq.s32.totalorder %s12, 1
      %p77 = scmp.ne.s32.totalorder %s72, %s74
      %p78 = scmp.eq.s32.totalorder %s12, 0
      %p79 = por %p77, %p78
      %p80 = scmp.ne.s32.totalorder %s72, %s74
      %p81 = scmp.eq.s32.totalorder %s17, 1
      %p82 = por %p80, %p81
      %p83 = scmp.ne.s32.totalorder %s74, %s75
      %p84 = scmp.eq.s32.totalorder %s17, 0
      %p85 = por %p83, %p84
      %p86 = scmp.ne.s32.totalorder %s74, %s75
      %p87 = scmp.eq.s32.totalorder %s18, 1
      %p88 = por %p86, %p87
      %p90 = scmp.ne.s32.totalorder %s75, %s89
      %p91 = scmp.eq.s32.totalorder %s18, 0
      %p92 = por %p90, %p91
      %s94 = sadd.s32 %s93, 1
      %p97 = scmp.eq.s32.totalorder %s12, 1
      %p98 = scmp.ne.s32.totalorder %s93, %s95
      %p99 = scmp.eq.s32.totalorder %s12, 0
      %p100 = por %p98, %p99
      %p101 = scmp.ne.s32.totalorder %s93, %s95
      %p102 = scmp.eq.s32.totalorder %s17, 1
      %p103 = por %p101, %p102
      %p104 = scmp.ne.s32.totalorder %s95, %s96
      %p105 = scmp.eq.s32.totalorder %s17, 0
      %p106 = por %p104, %p105
      %p107 = scmp.ne.s32.totalorder %s95, %s96
      %p108 = scmp.eq.s32.totalorder %s18, 1
      %p109 = por %p107, %p108
      %p111 = scmp.ne.s32.totalorder %s96, %s110
      %p112 = scmp.eq.s32.totalorder %s18, 0
      %p113 = por %p111, %p112
      %s114 = ssub.s32 %s12, %s19
      %p115 = scmp.eq.s32.totalorder %s114, 0
      %s117 = sadd.s32 %s116, 1
      %s118 = scalar_select %p115, %s116, %s117
      %p121 = pneg %p115
      %p122 = scmp.eq.s32.totalorder %s12, 1
      %p123 = por %p121, %p122
      %p124 = scmp.ne.s32.totalorder %s116, %s119
      %p125 = scmp.eq.s32.totalorder %s12, 0
      %p126 = por %p124, %p125
      %p127 = scmp.ne.s32.totalorder %s116, %s119
      %p128 = scmp.eq.s32.totalorder %s17, 1
      %p129 = por %p127, %p128
      %p130 = scmp.ne.s32.totalorder %s119, %s120
      %p131 = scmp.eq.s32.totalorder %s17, 0
      %p132 = por %p130, %p131
      %p133 = scmp.ne.s32.totalorder %s119, %s120
      %p134 = scmp.eq.s32.totalorder %s18, 1
      %p135 = por %p133, %p134
      %p137 = scmp.ne.s32.totalorder %s120, %s136
      %p138 = scmp.eq.s32.totalorder %s18, 0
      %p139 = por %p137, %p138
      %p140 = scmp.le.s32.totalorder 1, %s12
      %p141 = scmp.lt.s32.totalorder %s12, 3
      %p142 = pnand %p140, %p141
      %p143 = pneg %p142
      // Predicated region
      $region9: #{cnn_forward.4} parent=5 // pred_check
        _
      $region10: #{cnn_forward.4} parent=5 // pred_check_branch
        %145 = sbr.rel (%p142) target = $region12
      $region11: #{cnn_forward.4} parent=5 // pred_region
        %s146 = ssub.s32 %s12, 1
        // Predicated region
        $region13: #{cnn_forward.4} parent=11 // pred_check
          %p147 = pneg %p85
        $region14: #{cnn_forward.4} parent=11 // pred_check_branch
          %149 = sbr.rel (%p147) target = $region16
        $region15: #{cnn_forward.4} parent=11 // pred_region
          %s151 = ssub.s32 46080, 46080
          %152 = vsyncadd [#allocation3], %s151
          %s153 = sshll.u32 [#allocation2], 4
          %s154 = int_to_ptr.vmem [resolvable:$true] %s153
          %159 = dma.hbm_to_vmem [thread:$0]  %s2, 46080, %s154, [#allocation3], 256, 256, 16
        $region16: #{cnn_forward.4} parent=11 // pred_fallthru
          _
        // Predicated region
        $region17: #{cnn_forward.4} parent=11 // pred_check
          %p160 = pneg %p106
        $region18: #{cnn_forward.4} parent=11 // pred_check_branch
          %162 = sbr.rel (%p160) target = $region20
        $region19: #{cnn_forward.4} parent=11 // pred_region
          %s164 = ssub.s32 64, 64
          %165 = vsyncadd [#allocation5], %s164
          %s167 = sshll.u32 [#allocation4], 4
          %s168 = int_to_ptr.vmem [resolvable:$true] %s167
          %170 = dma.hbm_to_vmem [thread:$0]  %s3, 64, %s168, [#allocation5]
        $region20: #{cnn_forward.4} parent=11 // pred_fallthru
          _
      $region12: #{cnn_forward.4} parent=5 // pred_fallthru
        _
      %p171 = scmp.lt.s32.totalorder %s12, 2
      // Predicated region
      $region21: #{cnn_forward.4} parent=5 // pred_check
        %p172 = pneg %p171
      $region22: #{cnn_forward.4} parent=5 // pred_check_branch
        %174 = sbr.rel (%p172) target = $region24
      $region23: #{cnn_forward.4} parent=5 // pred_region
        // Predicated region
        $region25: #{cnn_forward.4} parent=23 // pred_check
          %p175 = pneg %p32
        $region26: #{cnn_forward.4} parent=23 // pred_check_branch
          %177 = sbr.rel (%p175) target = $region28
        $region27: #{cnn_forward.4} parent=23 // pred_region
          %p178 = scmp.lt.s32.totalorder %s12, 1
          %s179 = scalar_select %p178, %s12, 1
          %s180 = smul.addr %s179, 6
          %s181 = smul.addr %s180, 4
          %s182 = scalar_lea.vmem %s0, %s181
        $region28: #{cnn_forward.4} parent=23 // pred_fallthru
          _
        // Predicated region
        $region29: #{cnn_forward.4} parent=23 // pred_check
          %p183 = pneg %p58
        $region30: #{cnn_forward.4} parent=23 // pred_check_branch
          %185 = sbr.rel (%p183) target = $region32
        $region31: #{cnn_forward.4} parent=23 // pred_region
          %p186 = scmp.lt.s32.totalorder %s12, 1
          %s187 = scalar_select %p186, %s12, 1
          %s188 = smul.addr %s187, 6
          %s189 = smul.addr %s188, 4
          %s190 = scalar_lea.vmem %s1, %s189
        $region32: #{cnn_forward.4} parent=23 // pred_fallthru
          _
      $region24: #{cnn_forward.4} parent=5 // pred_fallthru
        _
      %p191 = scmp.le.s32.totalorder 1, %s12
      %p192 = scmp.lt.s32.totalorder %s12, 3
      %p193 = pnand %p191, %p192
      %p194 = pneg %p193
      // Predicated region
      $region33: #{cnn_forward.4} parent=5 // pred_check
        _
      $region34: #{cnn_forward.4} parent=5 // pred_check_branch
        %196 = sbr.rel (%p193) target = $region36
      $region35: #{cnn_forward.4} parent=5 // pred_region
        %s197 = ssub.s32 %s12, 1
        // Predicated region
        $region37: #{cnn_forward.4} parent=35 // pred_check
          %p198 = pneg %p85
        $region38: #{cnn_forward.4} parent=35 // pred_check_branch
          %200 = sbr.rel (%p198) target = $region40
        $region39: #{cnn_forward.4} parent=35 // pred_region
          %201 = dma.done [#allocation3], 46080
        $region40: #{cnn_forward.4} parent=35 // pred_fallthru
          _
        // Predicated region
        $region41: #{cnn_forward.4} parent=35 // pred_check
          %p202 = pneg %p106
        $region42: #{cnn_forward.4} parent=35 // pred_check_branch
          %204 = sbr.rel (%p202) target = $region44
        $region43: #{cnn_forward.4} parent=35 // pred_region
          %205 = dma.done [#allocation5], 64
        $region44: #{cnn_forward.4} parent=35 // pred_fallthru
          _
        %p206 = scmp.lt.s32.totalorder %s17, 1
        %s207 = scalar_select %p206, %s17, 1
        %s208 = smul.addr %s207, 6
        %s209 = smul.addr %s208, 4
        %s210 = scalar_lea.vmem %s0, %s209
        %p211 = pneg %p38
        %p212 = pneg %p35
        %p213 = scmp.lt.s32.totalorder %s17, 1
        %s214 = scalar_select %p213, %s17, 1
        %s215 = smul.addr %s214, 6
        %s216 = smul.addr %s215, 4
        %s217 = scalar_lea.vmem %s1, %s216
        %p218 = pneg %p64
        %p219 = pneg %p61
        %p220 = pneg %p85
        %p221 = pneg %p82
        %p222 = pneg %p106
        %p223 = pneg %p103
        %p224 = pneg %p132
        %p225 = pneg %p129
        %p226 = scmp.lt.s32.totalorder %s17, 1
        %s227 = scalar_select %p226, %s17, 1
        %s228 = smul.addr %s227, 2
        %s229 = smul.addr %s228, 4
        %s230 = scalar_lea.vmem %s4, %s229
        %p231 = scmp.lt.s32.totalorder %s17, 1
        %s232 = scalar_select %p231, %s17, 1
        %s233 = smul.addr %s232, 6
        %s234 = smul.addr %s233, 4
        %s235 = scalar_lea.vmem %s0, %s234
        %p236 = scmp.lt.s32.totalorder %s17, 1
        %s237 = scalar_select %p236, %s17, 1
        %s238 = smul.addr %s237, 6
        %s239 = smul.addr %s238, 4
        %s240 = scalar_lea.vmem %s1, %s239
        %p241 = scmp.lt.s32.totalorder %s17, 1
        %s242 = scalar_select %p241, %s17, 1
        %s243 = smul.addr %s242, 2
        %s244 = smul.addr %s243, 4
        %s245 = scalar_lea.vmem %s4, %s244
        %v247 = vld [vmem:[#allocation2] sm:$0xff]
        %v248 = vld [vmem:[#allocation2 + $0x8] sm:$0xff]
        %v249 = vld [vmem:[#allocation2 + $0x10] sm:$0xff]
        %v250 = vld [vmem:[#allocation2 + $0x18] sm:$0xff]
        %v251 = vld [vmem:[#allocation2 + $0x20] sm:$0xff]
        %v252 = vld [vmem:[#allocation2 + $0x28] sm:$0xff]
        %v253 = vld [vmem:[#allocation2 + $0x30] sm:$0xff]
        %v254 = vld [vmem:[#allocation2 + $0x38] sm:$0xff]
        %v255 = vld [vmem:[#allocation2 + $0x40] sm:$0xff]
        %v256 = vld [vmem:[#allocation2 + $0x48] sm:$0xff]
        %v257 = vld [vmem:[#allocation2 + $0x50] sm:$0xff]
        %v258 = vld [vmem:[#allocation2 + $0x58] sm:$0xff]
        %v259 = vld [vmem:[#allocation2 + $0x60] sm:$0xff]
        %v260 = vld [vmem:[#allocation2 + $0x68] sm:$0xff]
        %v261 = vld [vmem:[#allocation2 + $0x70] sm:$0xff]
        %v262 = vld [vmem:[#allocation2 + $0x78] sm:$0xff]
        %v263 = vld [vmem:[#allocation2 + $0x80] sm:$0xff]
        %v264 = vld [vmem:[#allocation2 + $0x88] sm:$0xff]
        %v265 = vld [vmem:[#allocation2 + $0x90] sm:$0xff]
        %v266 = vld [vmem:[#allocation2 + $0x98] sm:$0xff]
        %v267 = vld [vmem:[#allocation2 + $0xa0] sm:$0xff]
        %v268 = vld [vmem:[#allocation2 + $0xa8] sm:$0xff]
        %v269 = vld [vmem:[#allocation2 + $0xb0] sm:$0xff]
        %v270 = vld [vmem:[#allocation2 + $0xb8] sm:$0xff]
        %v271 = vld [vmem:[#allocation2 + $0xc0] sm:$0xff]
        %v272 = vld [vmem:[#allocation2 + $0xc8] sm:$0xff]
        %v273 = vld [vmem:[#allocation2 + $0xd0] sm:$0xff]
        %v274 = vld [vmem:[#allocation2 + $0xd8] sm:$0xff]
        %v275 = vld [vmem:[#allocation2 + $0xe0] sm:$0xff]
        %v276 = vld [vmem:[#allocation2 + $0xe8] sm:$0xff]
        %v277 = vld [vmem:[#allocation2 + $0xf0] sm:$0xff]
        %v278 = vld [vmem:[#allocation2 + $0xf8] sm:$0xff]
        %v279 = vld [vmem:[#allocation2 + $0x100] sm:$0xff]
        %v280 = vld [vmem:[#allocation2 + $0x108] sm:$0xff]
        %v281 = vld [vmem:[#allocation2 + $0x110] sm:$0xff]
        %v282 = vld [vmem:[#allocation2 + $0x118] sm:$0xff]
        %v283 = vld [vmem:[#allocation2 + $0x120] sm:$0xff]
        %v284 = vld [vmem:[#allocation2 + $0x128] sm:$0xff]
        %v285 = vld [vmem:[#allocation2 + $0x130] sm:$0xff]
        %v286 = vld [vmem:[#allocation2 + $0x138] sm:$0xff]
        %v287 = vld [vmem:[#allocation2 + $0x140] sm:$0xff]
        %v288 = vld [vmem:[#allocation2 + $0x148] sm:$0xff]
        %v289 = vld [vmem:[#allocation2 + $0x150] sm:$0xff]
        %v290 = vld [vmem:[#allocation2 + $0x158] sm:$0xff]
        %v291 = vld [vmem:[#allocation2 + $0x160] sm:$0xff]
        %v292 = vld [vmem:[#allocation2 + $0x168] sm:$0xff]
        %v293 = vld [vmem:[#allocation2 + $0x170] sm:$0xff]
        %v294 = vld [vmem:[#allocation2 + $0x178] sm:$0xff]
        %v295 = vld [vmem:[#allocation2 + $0x180] sm:$0xff]
        %v296 = vld [vmem:[#allocation2 + $0x188] sm:$0xff]
        %v297 = vld [vmem:[#allocation2 + $0x190] sm:$0xff]
        %v298 = vld [vmem:[#allocation2 + $0x198] sm:$0xff]
        %v299 = vld [vmem:[#allocation2 + $0x1a0] sm:$0xff]
        %v300 = vld [vmem:[#allocation2 + $0x1a8] sm:$0xff]
        %v301 = vld [vmem:[#allocation2 + $0x1b0] sm:$0xff]
        %v302 = vld [vmem:[#allocation2 + $0x1b8] sm:$0xff]
        %v303 = vld [vmem:[#allocation2 + $0x1c0] sm:$0xff]
        %v304 = vld [vmem:[#allocation2 + $0x1c8] sm:$0xff]
        %v305 = vld [vmem:[#allocation2 + $0x1d0] sm:$0xff]
        %v306 = vld [vmem:[#allocation2 + $0x1d8] sm:$0xff]
        %v307 = vld [vmem:[#allocation2 + $0x1e0] sm:$0xff]
        %v308 = vld [vmem:[#allocation2 + $0x1e8] sm:$0xff]
        %v309 = vld [vmem:[#allocation2 + $0x1f0] sm:$0xff]
        %v310 = vld [vmem:[#allocation2 + $0x1f8] sm:$0xff]
        %v311 = vld [vmem:[#allocation2 + $0x200] sm:$0xff]
        %v312 = vld [vmem:[#allocation2 + $0x208] sm:$0xff]
        %v313 = vld [vmem:[#allocation2 + $0x210] sm:$0xff]
        %v314 = vld [vmem:[#allocation2 + $0x218] sm:$0xff]
        %v315 = vld [vmem:[#allocation2 + $0x220] sm:$0xff]
        %v316 = vld [vmem:[#allocation2 + $0x228] sm:$0xff]
        %v317 = vld [vmem:[#allocation2 + $0x230] sm:$0xff]
        %v318 = vld [vmem:[#allocation2 + $0x238] sm:$0xff]
        %v319 = vld [vmem:[%s235] sm:$0xff]
        %v320 = vld [vmem:[%s235 + $0x8] sm:$0xf]
        %v321 = vld [vmem:[%s240] sm:$0xff]
        %v322 = vld [vmem:[%s240 + $0x8] sm:$0xf]
        %s323 = scalar_lea.vmem [#allocation2], 576
        %v324 = vld [vmem:[%s323] sm:$0xff]
        %v325 = vld [vmem:[%s323 + $0x8] sm:$0xff]
        %v326 = vld [vmem:[%s323 + $0x10] sm:$0xff]
        %v327 = vld [vmem:[%s323 + $0x18] sm:$0xff]
        %v328 = vld [vmem:[%s323 + $0x20] sm:$0xff]
        %v329 = vld [vmem:[%s323 + $0x28] sm:$0xff]
        %v330 = vld [vmem:[%s323 + $0x30] sm:$0xff]
        %v331 = vld [vmem:[%s323 + $0x38] sm:$0xff]
        %v332 = vld [vmem:[%s323 + $0x40] sm:$0xff]
        %v333 = vld [vmem:[%s323 + $0x48] sm:$0xff]
        %v334 = vld [vmem:[%s323 + $0x50] sm:$0xff]
        %v335 = vld [vmem:[%s323 + $0x58] sm:$0xff]
        %v336 = vld [vmem:[%s323 + $0x60] sm:$0xff]
        %v337 = vld [vmem:[%s323 + $0x68] sm:$0xff]
        %v338 = vld [vmem:[%s323 + $0x70] sm:$0xff]
        %v339 = vld [vmem:[%s323 + $0x78] sm:$0xff]
        %v340 = vld [vmem:[%s323 + $0x80] sm:$0xff]
        %v341 = vld [vmem:[%s323 + $0x88] sm:$0xff]
        %v342 = vld [vmem:[%s323 + $0x90] sm:$0xff]
        %v343 = vld [vmem:[%s323 + $0x98] sm:$0xff]
        %v344 = vld [vmem:[%s323 + $0xa0] sm:$0xff]
        %v345 = vld [vmem:[%s323 + $0xa8] sm:$0xff]
        %v346 = vld [vmem:[%s323 + $0xb0] sm:$0xff]
        %v347 = vld [vmem:[%s323 + $0xb8] sm:$0xff]
        %v348 = vld [vmem:[%s323 + $0xc0] sm:$0xff]
        %v349 = vld [vmem:[%s323 + $0xc8] sm:$0xff]
        %v350 = vld [vmem:[%s323 + $0xd0] sm:$0xff]
        %v351 = vld [vmem:[%s323 + $0xd8] sm:$0xff]
        %v352 = vld [vmem:[%s323 + $0xe0] sm:$0xff]
        %v353 = vld [vmem:[%s323 + $0xe8] sm:$0xff]
        %v354 = vld [vmem:[%s323 + $0xf0] sm:$0xff]
        %v355 = vld [vmem:[%s323 + $0xf8] sm:$0xff]
        %v356 = vld [vmem:[%s323 + $0x100] sm:$0xff]
        %v357 = vld [vmem:[%s323 + $0x108] sm:$0xff]
        %v358 = vld [vmem:[%s323 + $0x110] sm:$0xff]
        %v359 = vld [vmem:[%s323 + $0x118] sm:$0xff]
        %v360 = vld [vmem:[%s323 + $0x120] sm:$0xff]
        %v361 = vld [vmem:[%s323 + $0x128] sm:$0xff]
        %v362 = vld [vmem:[%s323 + $0x130] sm:$0xff]
        %v363 = vld [vmem:[%s323 + $0x138] sm:$0xff]
        %v364 = vld [vmem:[%s323 + $0x140] sm:$0xff]
        %v365 = vld [vmem:[%s323 + $0x148] sm:$0xff]
        %v366 = vld [vmem:[%s323 + $0x150] sm:$0xff]
        %v367 = vld [vmem:[%s323 + $0x158] sm:$0xff]
        %v368 = vld [vmem:[%s323 + $0x160] sm:$0xff]
        %v369 = vld [vmem:[%s323 + $0x168] sm:$0xff]
        %v370 = vld [vmem:[%s323 + $0x170] sm:$0xff]
        %v371 = vld [vmem:[%s323 + $0x178] sm:$0xff]
        %v372 = vld [vmem:[%s323 + $0x180] sm:$0xff]
        %v373 = vld [vmem:[%s323 + $0x188] sm:$0xff]
        %v374 = vld [vmem:[%s323 + $0x190] sm:$0xff]
        %v375 = vld [vmem:[%s323 + $0x198] sm:$0xff]
        %v376 = vld [vmem:[%s323 + $0x1a0] sm:$0xff]
        %v377 = vld [vmem:[%s323 + $0x1a8] sm:$0xff]
        %v378 = vld [vmem:[%s323 + $0x1b0] sm:$0xff]
        %v379 = vld [vmem:[%s323 + $0x1b8] sm:$0xff]
        %v380 = vld [vmem:[%s323 + $0x1c0] sm:$0xff]
        %v381 = vld [vmem:[%s323 + $0x1c8] sm:$0xff]
        %v382 = vld [vmem:[%s323 + $0x1d0] sm:$0xff]
        %v383 = vld [vmem:[%s323 + $0x1d8] sm:$0xff]
        %v384 = vld [vmem:[%s323 + $0x1e0] sm:$0xff]
        %v385 = vld [vmem:[%s323 + $0x1e8] sm:$0xff]
        %v386 = vld [vmem:[%s323 + $0x1f0] sm:$0xff]
        %v387 = vld [vmem:[%s323 + $0x1f8] sm:$0xff]
        %v388 = vld [vmem:[%s323 + $0x200] sm:$0xff]
        %v389 = vld [vmem:[%s323 + $0x208] sm:$0xff]
        %v390 = vld [vmem:[%s323 + $0x210] sm:$0xff]
        %v391 = vld [vmem:[%s323 + $0x218] sm:$0xff]
        %v392 = vld [vmem:[%s323 + $0x220] sm:$0xff]
        %v393 = vld [vmem:[%s323 + $0x228] sm:$0xff]
        %v394 = vld [vmem:[%s323 + $0x230] sm:$0xff]
        %v395 = vld [vmem:[%s323 + $0x238] sm:$0xff]
        %v398 = vunpack.c.l.b16 %v321
        %v399 = vunpack.c.h.b16 %v321
        %v400 = vunpack.c.l.b16 %v322
        %v401 = vpack.c.b16 %v398, %v398
        %v402 = vpack.c.b16 %v399, %v399
        %v403 = vpack.c.b16 %v400, %v400
        %v478 = vunpack.c.l.b16 %v324
        %v479 = vunpack.c.h.b16 %v324
        %v480 = vunpack.c.l.b16 %v325
        %v481 = vunpack.c.h.b16 %v325
        %v482 = vunpack.c.l.b16 %v326
        %v483 = vunpack.c.h.b16 %v326
        %v484 = vunpack.c.l.b16 %v327
        %v485 = vunpack.c.h.b16 %v327
        %v486 = vunpack.c.l.b16 %v328
        %v487 = vunpack.c.h.b16 %v328
        %v488 = vunpack.c.l.b16 %v329
        %v489 = vunpack.c.h.b16 %v329
        %v490 = vunpack.c.l.b16 %v330
        %v491 = vunpack.c.h.b16 %v330
        %v492 = vunpack.c.l.b16 %v331
        %v493 = vunpack.c.h.b16 %v331
        %v494 = vunpack.c.l.b16 %v332
        %v495 = vunpack.c.h.b16 %v332
        %v496 = vunpack.c.l.b16 %v333
        %v497 = vunpack.c.h.b16 %v333
        %v498 = vunpack.c.l.b16 %v334
        %v499 = vunpack.c.h.b16 %v334
        %v500 = vunpack.c.l.b16 %v335
        %v501 = vunpack.c.h.b16 %v335
        %v502 = vunpack.c.l.b16 %v336
        %v503 = vunpack.c.h.b16 %v336
        %v504 = vunpack.c.l.b16 %v337
        %v505 = vunpack.c.h.b16 %v337
        %v506 = vunpack.c.l.b16 %v338
        %v507 = vunpack.c.h.b16 %v338
        %v508 = vunpack.c.l.b16 %v339
        %v509 = vunpack.c.h.b16 %v339
        %v510 = vunpack.c.l.b16 %v340
        %v511 = vunpack.c.h.b16 %v340
        %v512 = vunpack.c.l.b16 %v341
        %v513 = vunpack.c.h.b16 %v341
        %v514 = vunpack.c.l.b16 %v342
        %v515 = vunpack.c.h.b16 %v342
        %v516 = vunpack.c.l.b16 %v343
        %v517 = vunpack.c.h.b16 %v343
        %v518 = vunpack.c.l.b16 %v344
        %v519 = vunpack.c.h.b16 %v344
        %v520 = vunpack.c.l.b16 %v345
        %v521 = vunpack.c.h.b16 %v345
        %v522 = vunpack.c.l.b16 %v346
        %v523 = vunpack.c.h.b16 %v346
        %v524 = vunpack.c.l.b16 %v347
        %v525 = vunpack.c.h.b16 %v347
        %v526 = vunpack.c.l.b16 %v348
        %v527 = vunpack.c.h.b16 %v348
        %v528 = vunpack.c.l.b16 %v349
        %v529 = vunpack.c.h.b16 %v349
        %v530 = vunpack.c.l.b16 %v350
        %v531 = vunpack.c.h.b16 %v350
        %v532 = vunpack.c.l.b16 %v351
        %v533 = vunpack.c.h.b16 %v351
        %v534 = vunpack.c.l.b16 %v352
        %v535 = vunpack.c.h.b16 %v352
        %v536 = vunpack.c.l.b16 %v353
        %v537 = vunpack.c.h.b16 %v353
        %v538 = vunpack.c.l.b16 %v354
        %v539 = vunpack.c.h.b16 %v354
        %v540 = vunpack.c.l.b16 %v355
        %v541 = vunpack.c.h.b16 %v355
        %v542 = vunpack.c.l.b16 %v356
        %v543 = vunpack.c.h.b16 %v356
        %v544 = vunpack.c.l.b16 %v357
        %v545 = vunpack.c.h.b16 %v357
        %v546 = vunpack.c.l.b16 %v358
        %v547 = vunpack.c.h.b16 %v358
        %v548 = vunpack.c.l.b16 %v359
        %v549 = vunpack.c.h.b16 %v359
        %v550 = vunpack.c.l.b16 %v360
        %v551 = vunpack.c.h.b16 %v360
        %v552 = vunpack.c.l.b16 %v361
        %v553 = vunpack.c.h.b16 %v361
        %v554 = vunpack.c.l.b16 %v362
        %v555 = vunpack.c.h.b16 %v362
        %v556 = vunpack.c.l.b16 %v363
        %v557 = vunpack.c.h.b16 %v363
        %v558 = vunpack.c.l.b16 %v364
        %v559 = vunpack.c.h.b16 %v364
        %v560 = vunpack.c.l.b16 %v365
        %v561 = vunpack.c.h.b16 %v365
        %v562 = vunpack.c.l.b16 %v366
        %v563 = vunpack.c.h.b16 %v366
        %v564 = vunpack.c.l.b16 %v367
        %v565 = vunpack.c.h.b16 %v367
        %v566 = vunpack.c.l.b16 %v368
        %v567 = vunpack.c.h.b16 %v368
        %v568 = vunpack.c.l.b16 %v369
        %v569 = vunpack.c.h.b16 %v369
        %v570 = vunpack.c.l.b16 %v370
        %v571 = vunpack.c.h.b16 %v370
        %v572 = vunpack.c.l.b16 %v371
        %v573 = vunpack.c.h.b16 %v371
        %v574 = vunpack.c.l.b16 %v372
        %v575 = vunpack.c.h.b16 %v372
        %v576 = vunpack.c.l.b16 %v373
        %v577 = vunpack.c.h.b16 %v373
        %v578 = vunpack.c.l.b16 %v374
        %v579 = vunpack.c.h.b16 %v374
        %v580 = vunpack.c.l.b16 %v375
        %v581 = vunpack.c.h.b16 %v375
        %v582 = vunpack.c.l.b16 %v376
        %v583 = vunpack.c.h.b16 %v376
        %v584 = vunpack.c.l.b16 %v377
        %v585 = vunpack.c.h.b16 %v377
        %v586 = vunpack.c.l.b16 %v378
        %v587 = vunpack.c.h.b16 %v378
        %v588 = vunpack.c.l.b16 %v379
        %v589 = vunpack.c.h.b16 %v379
        %v590 = vunpack.c.l.b16 %v380
        %v591 = vunpack.c.h.b16 %v380
        %v592 = vunpack.c.l.b16 %v381
        %v593 = vunpack.c.h.b16 %v381
        %v594 = vunpack.c.l.b16 %v382
        %v595 = vunpack.c.h.b16 %v382
        %v596 = vunpack.c.l.b16 %v383
        %v597 = vunpack.c.h.b16 %v383
        %v598 = vunpack.c.l.b16 %v384
        %v599 = vunpack.c.h.b16 %v384
        %v600 = vunpack.c.l.b16 %v385
        %v601 = vunpack.c.h.b16 %v385
        %v602 = vunpack.c.l.b16 %v386
        %v603 = vunpack.c.h.b16 %v386
        %v604 = vunpack.c.l.b16 %v387
        %v605 = vunpack.c.h.b16 %v387
        %v606 = vunpack.c.l.b16 %v388
        %v607 = vunpack.c.h.b16 %v388
        %v608 = vunpack.c.l.b16 %v389
        %v609 = vunpack.c.h.b16 %v389
        %v610 = vunpack.c.l.b16 %v390
        %v611 = vunpack.c.h.b16 %v390
        %v612 = vunpack.c.l.b16 %v391
        %v613 = vunpack.c.h.b16 %v391
        %v614 = vunpack.c.l.b16 %v392
        %v615 = vunpack.c.h.b16 %v392
        %v616 = vunpack.c.l.b16 %v393
        %v617 = vunpack.c.h.b16 %v393
        %v618 = vunpack.c.l.b16 %v394
        %v619 = vunpack.c.h.b16 %v394
        %v620 = vunpack.c.l.b16 %v395
        %v621 = vunpack.c.h.b16 %v395
        %v622 = vpack.c.b16 %v482, %v478
        %v623 = vpack.c.b16 %v483, %v479
        %v624 = vpack.c.b16 %v484, %v480
        %v625 = vpack.c.b16 %v485, %v481
        %v626 = vpack.c.b16 %v490, %v486
        %v627 = vpack.c.b16 %v491, %v487
        %v628 = vpack.c.b16 %v492, %v488
        %v629 = vpack.c.b16 %v493, %v489
        %v630 = vpack.c.b16 %v498, %v494
        %v631 = vpack.c.b16 %v499, %v495
        %v632 = vpack.c.b16 %v500, %v496
        %v633 = vpack.c.b16 %v501, %v497
        %v634 = vpack.c.b16 %v506, %v502
        %v635 = vpack.c.b16 %v507, %v503
        %v636 = vpack.c.b16 %v508, %v504
        %v637 = vpack.c.b16 %v509, %v505
        %v638 = vpack.c.b16 %v514, %v510
        %v639 = vpack.c.b16 %v515, %v511
        %v640 = vpack.c.b16 %v516, %v512
        %v641 = vpack.c.b16 %v517, %v513
        %v642 = vpack.c.b16 %v522, %v518
        %v643 = vpack.c.b16 %v523, %v519
        %v644 = vpack.c.b16 %v524, %v520
        %v645 = vpack.c.b16 %v525, %v521
        %v646 = vpack.c.b16 %v530, %v526
        %v647 = vpack.c.b16 %v531, %v527
        %v648 = vpack.c.b16 %v532, %v528
        %v649 = vpack.c.b16 %v533, %v529
        %v650 = vpack.c.b16 %v538, %v534
        %v651 = vpack.c.b16 %v539, %v535
        %v652 = vpack.c.b16 %v540, %v536
        %v653 = vpack.c.b16 %v541, %v537
        %v654 = vpack.c.b16 %v546, %v542
        %v655 = vpack.c.b16 %v547, %v543
        %v656 = vpack.c.b16 %v548, %v544
        %v657 = vpack.c.b16 %v549, %v545
        %v658 = vpack.c.b16 %v554, %v550
        %v659 = vpack.c.b16 %v555, %v551
        %v660 = vpack.c.b16 %v556, %v552
        %v661 = vpack.c.b16 %v557, %v553
        %v662 = vpack.c.b16 %v562, %v558
        %v663 = vpack.c.b16 %v563, %v559
        %v664 = vpack.c.b16 %v564, %v560
        %v665 = vpack.c.b16 %v565, %v561
        %v666 = vpack.c.b16 %v570, %v566
        %v667 = vpack.c.b16 %v571, %v567
        %v668 = vpack.c.b16 %v572, %v568
        %v669 = vpack.c.b16 %v573, %v569
        %v670 = vpack.c.b16 %v578, %v574
        %v671 = vpack.c.b16 %v579, %v575
        %v672 = vpack.c.b16 %v580, %v576
        %v673 = vpack.c.b16 %v581, %v577
        %v674 = vpack.c.b16 %v586, %v582
        %v675 = vpack.c.b16 %v587, %v583
        %v676 = vpack.c.b16 %v588, %v584
        %v677 = vpack.c.b16 %v589, %v585
        %v678 = vpack.c.b16 %v594, %v590
        %v679 = vpack.c.b16 %v595, %v591
        %v680 = vpack.c.b16 %v596, %v592
        %v681 = vpack.c.b16 %v597, %v593
        %v682 = vpack.c.b16 %v602, %v598
        %v683 = vpack.c.b16 %v603, %v599
        %v684 = vpack.c.b16 %v604, %v600
        %v685 = vpack.c.b16 %v605, %v601
        %v686 = vpack.c.b16 %v610, %v606
        %v687 = vpack.c.b16 %v611, %v607
        %v688 = vpack.c.b16 %v612, %v608
        %v689 = vpack.c.b16 %v613, %v609
        %v690 = vpack.c.b16 %v618, %v614
        %v691 = vpack.c.b16 %v619, %v615
        %v692 = vpack.c.b16 %v620, %v616
        %v693 = vpack.c.b16 %v621, %v617
        %vm766 = vcmask 261120
        %v768 = vsel %vm766, %v403, 0
        %770 = vmatprep.subr.bf16.mxu0 %v623
        %771 = vmatpush1.bf16.msra.mxu0 %v622
        %772 = vmatprep.subr.bf16.mxu0 %v627
        %773 = vmatpush1.bf16.msra.mxu0 %v626
        %774 = vmatprep.subr.bf16.mxu0 %v631
        %775 = vmatpush1.bf16.msra.mxu0 %v630
        %776 = vmatprep.subr.bf16.mxu0 %v635
        %777 = vmatpush1.bf16.msra.mxu0 %v634
        %778 = vmatprep.subr.bf16.mxu0 %v639
        %779 = vmatpush1.bf16.msra.mxu0 %v638
        %780 = vmatprep.subr.bf16.mxu0 %v643
        %781 = vmatpush1.bf16.msra.mxu0 %v642
        %782 = vmatprep.subr.bf16.mxu0 %v647
        %783 = vmatpush1.bf16.msra.mxu0 %v646
        %784 = vmatprep.subr.bf16.mxu0 %v651
        %785 = vmatpush1.bf16.msra.mxu0 %v650
        %786 = vmatprep.subr.bf16.mxu0 %v655
        %787 = vmatpush1.bf16.msra.mxu0 %v654
        %788 = vmatprep.subr.bf16.mxu0 %v659
        %789 = vmatpush1.bf16.msra.mxu0 %v658
        %790 = vmatprep.subr.bf16.mxu0 %v663
        %791 = vmatpush1.bf16.msra.mxu0 %v662
        %792 = vmatprep.subr.bf16.mxu0 %v667
        %793 = vmatpush1.bf16.msra.mxu0 %v666
        %794 = vmatprep.subr.bf16.mxu0 %v671
        %795 = vmatpush1.bf16.msra.mxu0 %v670
        %796 = vmatprep.subr.bf16.mxu0 %v675
        %797 = vmatpush1.bf16.msra.mxu0 %v674
        %798 = vmatprep.subr.bf16.mxu0 %v679
        %799 = vmatpush1.bf16.msra.mxu0 %v678
        %800 = vmatprep.subr.bf16.mxu0 %v683
        %801 = vmatpush1.bf16.msra.mxu0 %v682
        %802 = vmatprep.mubr.bf16.mxu0 %v402
        %803 = vmatmul.mubr.bf16.gmra.mrb[0].mxu0 %v401
        %v804 = vpop.f32.mrb[0].mxu0
        %v805 = vadd.f32 0.0, %v804
        %v806 = vpop.f32.mrb[0].mxu0
        %v807 = vadd.f32 0.0, %v806
        %v808 = vpop.f32.mrb[0].mxu0
        %v809 = vpop.f32.mrb[0].mxu0
        %810 = vdwg.mxu0
        %811 = vmatprep.subr.bf16.mxu0 %v687
        %812 = vmatpush1.bf16.msra.mxu0 %v686
        %813 = vmatprep.subr.bf16.mxu0 %v691
        %814 = vmatpush1.bf16.msra.mxu0 %v690
        %815 = vmatprep.subr.bf16.mxu0 0
        %816 = vmatpush1.bf16.msra.mxu0 0
        %817 = vmatprep.subr.bf16.mxu0 0
        %818 = vmatpush1.bf16.msra.mxu0 0
        %819 = vmatprep.subr.bf16.mxu0 0
        %820 = vmatpush1.bf16.msra.mxu0 0
        %821 = vmatprep.subr.bf16.mxu0 0
        %822 = vmatpush1.bf16.msra.mxu0 0
        %823 = vmatprep.subr.bf16.mxu0 0
        %824 = vmatpush1.bf16.msra.mxu0 0
        %825 = vmatprep.subr.bf16.mxu0 0
        %826 = vmatpush1.bf16.msra.mxu0 0
        %827 = vmatprep.subr.bf16.mxu0 0
        %828 = vmatpush1.bf16.msra.mxu0 0
        %829 = vmatprep.subr.bf16.mxu0 0
        %830 = vmatpush1.bf16.msra.mxu0 0
        %831 = vmatprep.subr.bf16.mxu0 0
        %832 = vmatpush1.bf16.msra.mxu0 0
        %833 = vmatprep.subr.bf16.mxu0 0
        %834 = vmatpush1.bf16.msra.mxu0 0
        %835 = vmatprep.subr.bf16.mxu0 0
        %836 = vmatpush1.bf16.msra.mxu0 0
        %837 = vmatprep.subr.bf16.mxu0 0
        %838 = vmatpush1.bf16.msra.mxu0 0
        %839 = vmatprep.subr.bf16.mxu0 0
        %840 = vmatpush1.bf16.msra.mxu0 0
        %841 = vmatprep.subr.bf16.mxu0 0
        %842 = vmatpush1.bf16.msra.mxu0 0
        %843 = vmatprep.mubr.bf16.mxu0 0
        %844 = vmatmul.mubr.bf16.gmra.mrb[0].mxu0 %v768
        %v845 = vpop.f32.mrb[0].mxu0
        %v846 = vadd.f32 %v805, %v845
        %v847 = vpop.f32.mrb[0].mxu0
        %v848 = vadd.f32 %v807, %v847
        %v849 = vpop.f32.mrb[0].mxu0
        %v850 = vpop.f32.mrb[0].mxu0
        %851 = vdwg.mxu0
        %852 = vmatprep.subr.bf16.mxu0 %v625
        %853 = vmatpush1.bf16.msra.mxu0 %v624
        %854 = vmatprep.subr.bf16.mxu0 %v629
        %855 = vmatpush1.bf16.msra.mxu0 %v628
        %856 = vmatprep.subr.bf16.mxu0 %v633
        %857 = vmatpush1.bf16.msra.mxu0 %v632
        %858 = vmatprep.subr.bf16.mxu0 %v637
        %859 = vmatpush1.bf16.msra.mxu0 %v636
        %860 = vmatprep.subr.bf16.mxu0 %v641
        %861 = vmatpush1.bf16.msra.mxu0 %v640
        %862 = vmatprep.subr.bf16.mxu0 %v645
        %863 = vmatpush1.bf16.msra.mxu0 %v644
        %864 = vmatprep.subr.bf16.mxu0 %v649
        %865 = vmatpush1.bf16.msra.mxu0 %v648
        %866 = vmatprep.subr.bf16.mxu0 %v653
        %867 = vmatpush1.bf16.msra.mxu0 %v652
        %868 = vmatprep.subr.bf16.mxu0 %v657
        %869 = vmatpush1.bf16.msra.mxu0 %v656
        %870 = vmatprep.subr.bf16.mxu0 %v661
        %871 = vmatpush1.bf16.msra.mxu0 %v660
        %872 = vmatprep.subr.bf16.mxu0 %v665
        %873 = vmatpush1.bf16.msra.mxu0 %v664
        %874 = vmatprep.subr.bf16.mxu0 %v669
        %875 = vmatpush1.bf16.msra.mxu0 %v668
        %876 = vmatprep.subr.bf16.mxu0 %v673
        %877 = vmatpush1.bf16.msra.mxu0 %v672
        %878 = vmatprep.subr.bf16.mxu0 %v677
        %879 = vmatpush1.bf16.msra.mxu0 %v676
        %880 = vmatprep.subr.bf16.mxu0 %v681
        %881 = vmatpush1.bf16.msra.mxu0 %v680
        %882 = vmatprep.subr.bf16.mxu0 %v685
        %883 = vmatpush1.bf16.msra.mxu0 %v684
        %884 = vmatprep.mubr.bf16.mxu0 %v402
        %885 = vmatmul.mubr.bf16.gmra.mrb[0].mxu0 %v401
        %v886 = vpop.f32.mrb[0].mxu0
        %v887 = vadd.f32 0.0, %v886
        %v888 = vpop.f32.mrb[0].mxu0
        %v889 = vadd.f32 0.0, %v888
        %v890 = vpop.f32.mrb[0].mxu0
        %v891 = vpop.f32.mrb[0].mxu0
        %892 = vdwg.mxu0
        %893 = vmatprep.subr.bf16.mxu0 %v689
        %894 = vmatpush1.bf16.msra.mxu0 %v688
        %895 = vmatprep.subr.bf16.mxu0 %v693
        %896 = vmatpush1.bf16.msra.mxu0 %v692
        %897 = vmatprep.subr.bf16.mxu0 0
        %898 = vmatpush1.bf16.msra.mxu0 0
        %899 = vmatprep.subr.bf16.mxu0 0
        %900 = vmatpush1.bf16.msra.mxu0 0
        %901 = vmatprep.subr.bf16.mxu0 0
        %902 = vmatpush1.bf16.msra.mxu0 0
        %903 = vmatprep.subr.bf16.mxu0 0
        %904 = vmatpush1.bf16.msra.mxu0 0
        %905 = vmatprep.subr.bf16.mxu0 0
        %906 = vmatpush1.bf16.msra.mxu0 0
        %907 = vmatprep.subr.bf16.mxu0 0
        %908 = vmatpush1.bf16.msra.mxu0 0
        %909 = vmatprep.subr.bf16.mxu0 0
        %910 = vmatpush1.bf16.msra.mxu0 0
        %911 = vmatprep.subr.bf16.mxu0 0
        %912 = vmatpush1.bf16.msra.mxu0 0
        %913 = vmatprep.subr.bf16.mxu0 0
        %914 = vmatpush1.bf16.msra.mxu0 0
        %915 = vmatprep.subr.bf16.mxu0 0
        %916 = vmatpush1.bf16.msra.mxu0 0
        %917 = vmatprep.subr.bf16.mxu0 0
        %918 = vmatpush1.bf16.msra.mxu0 0
        %919 = vmatprep.subr.bf16.mxu0 0
        %920 = vmatpush1.bf16.msra.mxu0 0
        %921 = vmatprep.subr.bf16.mxu0 0
        %922 = vmatpush1.bf16.msra.mxu0 0
        %923 = vmatprep.subr.bf16.mxu0 0
        %924 = vmatpush1.bf16.msra.mxu0 0
        %925 = vmatprep.mubr.bf16.mxu0 0
        %926 = vmatmul.mubr.bf16.gmra.mrb[0].mxu0 %v768
        %v927 = vpop.f32.mrb[0].mxu0
        %v928 = vadd.f32 %v887, %v927
        %v929 = vpop.f32.mrb[0].mxu0
        %v930 = vadd.f32 %v889, %v929
        %v931 = vpop.f32.mrb[0].mxu0
        %v932 = vpop.f32.mrb[0].mxu0
        %933 = vdwg.mxu0
        %v936 = vunpack.c.l.b16 %v319
        %v937 = vunpack.c.h.b16 %v319
        %v938 = vunpack.c.l.b16 %v320
        %v939 = vpack.c.b16 %v936, %v936
        %v940 = vpack.c.b16 %v937, %v937
        %v941 = vpack.c.b16 %v938, %v938
        %v1016 = vunpack.c.l.b16 %v247
        %v1017 = vunpack.c.h.b16 %v247
        %v1018 = vunpack.c.l.b16 %v248
        %v1019 = vunpack.c.h.b16 %v248
        %v1020 = vunpack.c.l.b16 %v249
        %v1021 = vunpack.c.h.b16 %v249
        %v1022 = vunpack.c.l.b16 %v250
        %v1023 = vunpack.c.h.b16 %v250
        %v1024 = vunpack.c.l.b16 %v251
        %v1025 = vunpack.c.h.b16 %v251
        %v1026 = vunpack.c.l.b16 %v252
        %v1027 = vunpack.c.h.b16 %v252
        %v1028 = vunpack.c.l.b16 %v253
        %v1029 = vunpack.c.h.b16 %v253
        %v1030 = vunpack.c.l.b16 %v254
        %v1031 = vunpack.c.h.b16 %v254
        %v1032 = vunpack.c.l.b16 %v255
        %v1033 = vunpack.c.h.b16 %v255
        %v1034 = vunpack.c.l.b16 %v256
        %v1035 = vunpack.c.h.b16 %v256
        %v1036 = vunpack.c.l.b16 %v257
        %v1037 = vunpack.c.h.b16 %v257
        %v1038 = vunpack.c.l.b16 %v258
        %v1039 = vunpack.c.h.b16 %v258
        %v1040 = vunpack.c.l.b16 %v259
        %v1041 = vunpack.c.h.b16 %v259
        %v1042 = vunpack.c.l.b16 %v260
        %v1043 = vunpack.c.h.b16 %v260
        %v1044 = vunpack.c.l.b16 %v261
        %v1045 = vunpack.c.h.b16 %v261
        %v1046 = vunpack.c.l.b16 %v262
        %v1047 = vunpack.c.h.b16 %v262
        %v1048 = vunpack.c.l.b16 %v263
        %v1049 = vunpack.c.h.b16 %v263
        %v1050 = vunpack.c.l.b16 %v264
        %v1051 = vunpack.c.h.b16 %v264
        %v1052 = vunpack.c.l.b16 %v265
        %v1053 = vunpack.c.h.b16 %v265
        %v1054 = vunpack.c.l.b16 %v266
        %v1055 = vunpack.c.h.b16 %v266
        %v1056 = vunpack.c.l.b16 %v267
        %v1057 = vunpack.c.h.b16 %v267
        %v1058 = vunpack.c.l.b16 %v268
        %v1059 = vunpack.c.h.b16 %v268
        %v1060 = vunpack.c.l.b16 %v269
        %v1061 = vunpack.c.h.b16 %v269
        %v1062 = vunpack.c.l.b16 %v270
        %v1063 = vunpack.c.h.b16 %v270
        %v1064 = vunpack.c.l.b16 %v271
        %v1065 = vunpack.c.h.b16 %v271
        %v1066 = vunpack.c.l.b16 %v272
        %v1067 = vunpack.c.h.b16 %v272
        %v1068 = vunpack.c.l.b16 %v273
        %v1069 = vunpack.c.h.b16 %v273
        %v1070 = vunpack.c.l.b16 %v274
        %v1071 = vunpack.c.h.b16 %v274
        %v1072 = vunpack.c.l.b16 %v275
        %v1073 = vunpack.c.h.b16 %v275
        %v1074 = vunpack.c.l.b16 %v276
        %v1075 = vunpack.c.h.b16 %v276
        %v1076 = vunpack.c.l.b16 %v277
        %v1077 = vunpack.c.h.b16 %v277
        %v1078 = vunpack.c.l.b16 %v278
        %v1079 = vunpack.c.h.b16 %v278
        %v1080 = vunpack.c.l.b16 %v279
        %v1081 = vunpack.c.h.b16 %v279
        %v1082 = vunpack.c.l.b16 %v280
        %v1083 = vunpack.c.h.b16 %v280
        %v1084 = vunpack.c.l.b16 %v281
        %v1085 = vunpack.c.h.b16 %v281
        %v1086 = vunpack.c.l.b16 %v282
        %v1087 = vunpack.c.h.b16 %v282
        %v1088 = vunpack.c.l.b16 %v283
        %v1089 = vunpack.c.h.b16 %v283
        %v1090 = vunpack.c.l.b16 %v284
        %v1091 = vunpack.c.h.b16 %v284
        %v1092 = vunpack.c.l.b16 %v285
        %v1093 = vunpack.c.h.b16 %v285
        %v1094 = vunpack.c.l.b16 %v286
        %v1095 = vunpack.c.h.b16 %v286
        %v1096 = vunpack.c.l.b16 %v287
        %v1097 = vunpack.c.h.b16 %v287
        %v1098 = vunpack.c.l.b16 %v288
        %v1099 = vunpack.c.h.b16 %v288
        %v1100 = vunpack.c.l.b16 %v289
        %v1101 = vunpack.c.h.b16 %v289
        %v1102 = vunpack.c.l.b16 %v290
        %v1103 = vunpack.c.h.b16 %v290
        %v1104 = vunpack.c.l.b16 %v291
        %v1105 = vunpack.c.h.b16 %v291
        %v1106 = vunpack.c.l.b16 %v292
        %v1107 = vunpack.c.h.b16 %v292
        %v1108 = vunpack.c.l.b16 %v293
        %v1109 = vunpack.c.h.b16 %v293
        %v1110 = vunpack.c.l.b16 %v294
        %v1111 = vunpack.c.h.b16 %v294
        %v1112 = vunpack.c.l.b16 %v295
        %v1113 = vunpack.c.h.b16 %v295
        %v1114 = vunpack.c.l.b16 %v296
        %v1115 = vunpack.c.h.b16 %v296
        %v1116 = vunpack.c.l.b16 %v297
        %v1117 = vunpack.c.h.b16 %v297
        %v1118 = vunpack.c.l.b16 %v298
        %v1119 = vunpack.c.h.b16 %v298
        %v1120 = vunpack.c.l.b16 %v299
        %v1121 = vunpack.c.h.b16 %v299
        %v1122 = vunpack.c.l.b16 %v300
        %v1123 = vunpack.c.h.b16 %v300
        %v1124 = vunpack.c.l.b16 %v301
        %v1125 = vunpack.c.h.b16 %v301
        %v1126 = vunpack.c.l.b16 %v302
        %v1127 = vunpack.c.h.b16 %v302
        %v1128 = vunpack.c.l.b16 %v303
        %v1129 = vunpack.c.h.b16 %v303
        %v1130 = vunpack.c.l.b16 %v304
        %v1131 = vunpack.c.h.b16 %v304
        %v1132 = vunpack.c.l.b16 %v305
        %v1133 = vunpack.c.h.b16 %v305
        %v1134 = vunpack.c.l.b16 %v306
        %v1135 = vunpack.c.h.b16 %v306
        %v1136 = vunpack.c.l.b16 %v307
        %v1137 = vunpack.c.h.b16 %v307
        %v1138 = vunpack.c.l.b16 %v308
        %v1139 = vunpack.c.h.b16 %v308
        %v1140 = vunpack.c.l.b16 %v309
        %v1141 = vunpack.c.h.b16 %v309
        %v1142 = vunpack.c.l.b16 %v310
        %v1143 = vunpack.c.h.b16 %v310
        %v1144 = vunpack.c.l.b16 %v311
        %v1145 = vunpack.c.h.b16 %v311
        %v1146 = vunpack.c.l.b16 %v312
        %v1147 = vunpack.c.h.b16 %v312
        %v1148 = vunpack.c.l.b16 %v313
        %v1149 = vunpack.c.h.b16 %v313
        %v1150 = vunpack.c.l.b16 %v314
        %v1151 = vunpack.c.h.b16 %v314
        %v1152 = vunpack.c.l.b16 %v315
        %v1153 = vunpack.c.h.b16 %v315
        %v1154 = vunpack.c.l.b16 %v316
        %v1155 = vunpack.c.h.b16 %v316
        %v1156 = vunpack.c.l.b16 %v317
        %v1157 = vunpack.c.h.b16 %v317
        %v1158 = vunpack.c.l.b16 %v318
        %v1159 = vunpack.c.h.b16 %v318
        %v1160 = vpack.c.b16 %v1020, %v1016
        %v1161 = vpack.c.b16 %v1021, %v1017
        %v1162 = vpack.c.b16 %v1022, %v1018
        %v1163 = vpack.c.b16 %v1023, %v1019
        %v1164 = vpack.c.b16 %v1028, %v1024
        %v1165 = vpack.c.b16 %v1029, %v1025
        %v1166 = vpack.c.b16 %v1030, %v1026
        %v1167 = vpack.c.b16 %v1031, %v1027
        %v1168 = vpack.c.b16 %v1036, %v1032
        %v1169 = vpack.c.b16 %v1037, %v1033
        %v1170 = vpack.c.b16 %v1038, %v1034
        %v1171 = vpack.c.b16 %v1039, %v1035
        %v1172 = vpack.c.b16 %v1044, %v1040
        %v1173 = vpack.c.b16 %v1045, %v1041
        %v1174 = vpack.c.b16 %v1046, %v1042
        %v1175 = vpack.c.b16 %v1047, %v1043
        %v1176 = vpack.c.b16 %v1052, %v1048
        %v1177 = vpack.c.b16 %v1053, %v1049
        %v1178 = vpack.c.b16 %v1054, %v1050
        %v1179 = vpack.c.b16 %v1055, %v1051
        %v1180 = vpack.c.b16 %v1060, %v1056
        %v1181 = vpack.c.b16 %v1061, %v1057
        %v1182 = vpack.c.b16 %v1062, %v1058
        %v1183 = vpack.c.b16 %v1063, %v1059
        %v1184 = vpack.c.b16 %v1068, %v1064
        %v1185 = vpack.c.b16 %v1069, %v1065
        %v1186 = vpack.c.b16 %v1070, %v1066
        %v1187 = vpack.c.b16 %v1071, %v1067
        %v1188 = vpack.c.b16 %v1076, %v1072
        %v1189 = vpack.c.b16 %v1077, %v1073
        %v1190 = vpack.c.b16 %v1078, %v1074
        %v1191 = vpack.c.b16 %v1079, %v1075
        %v1192 = vpack.c.b16 %v1084, %v1080
        %v1193 = vpack.c.b16 %v1085, %v1081
        %v1194 = vpack.c.b16 %v1086, %v1082
        %v1195 = vpack.c.b16 %v1087, %v1083
        %v1196 = vpack.c.b16 %v1092, %v1088
        %v1197 = vpack.c.b16 %v1093, %v1089
        %v1198 = vpack.c.b16 %v1094, %v1090
        %v1199 = vpack.c.b16 %v1095, %v1091
        %v1200 = vpack.c.b16 %v1100, %v1096
        %v1201 = vpack.c.b16 %v1101, %v1097
        %v1202 = vpack.c.b16 %v1102, %v1098
        %v1203 = vpack.c.b16 %v1103, %v1099
        %v1204 = vpack.c.b16 %v1108, %v1104
        %v1205 = vpack.c.b16 %v1109, %v1105
        %v1206 = vpack.c.b16 %v1110, %v1106
        %v1207 = vpack.c.b16 %v1111, %v1107
        %v1208 = vpack.c.b16 %v1116, %v1112
        %v1209 = vpack.c.b16 %v1117, %v1113
        %v1210 = vpack.c.b16 %v1118, %v1114
        %v1211 = vpack.c.b16 %v1119, %v1115
        %v1212 = vpack.c.b16 %v1124, %v1120
        %v1213 = vpack.c.b16 %v1125, %v1121
        %v1214 = vpack.c.b16 %v1126, %v1122
        %v1215 = vpack.c.b16 %v1127, %v1123
        %v1216 = vpack.c.b16 %v1132, %v1128
        %v1217 = vpack.c.b16 %v1133, %v1129
        %v1218 = vpack.c.b16 %v1134, %v1130
        %v1219 = vpack.c.b16 %v1135, %v1131
        %v1220 = vpack.c.b16 %v1140, %v1136
        %v1221 = vpack.c.b16 %v1141, %v1137
        %v1222 = vpack.c.b16 %v1142, %v1138
        %v1223 = vpack.c.b16 %v1143, %v1139
        %v1224 = vpack.c.b16 %v1148, %v1144
        %v1225 = vpack.c.b16 %v1149, %v1145
        %v1226 = vpack.c.b16 %v1150, %v1146
        %v1227 = vpack.c.b16 %v1151, %v1147
        %v1228 = vpack.c.b16 %v1156, %v1152
        %v1229 = vpack.c.b16 %v1157, %v1153
        %v1230 = vpack.c.b16 %v1158, %v1154
        %v1231 = vpack.c.b16 %v1159, %v1155
        %v1305 = vsel %vm766, %v941, 0
        %1307 = vmatprep.subr.bf16.mxu0 %v1161
        %1308 = vmatpush1.bf16.msra.mxu0 %v1160
        %1309 = vmatprep.subr.bf16.mxu0 %v1165
        %1310 = vmatpush1.bf16.msra.mxu0 %v1164
        %1311 = vmatprep.subr.bf16.mxu0 %v1169
        %1312 = vmatpush1.bf16.msra.mxu0 %v1168
        %1313 = vmatprep.subr.bf16.mxu0 %v1173
        %1314 = vmatpush1.bf16.msra.mxu0 %v1172
        %1315 = vmatprep.subr.bf16.mxu0 %v1177
        %1316 = vmatpush1.bf16.msra.mxu0 %v1176
        %1317 = vmatprep.subr.bf16.mxu0 %v1181
        %1318 = vmatpush1.bf16.msra.mxu0 %v1180
        %1319 = vmatprep.subr.bf16.mxu0 %v1185
        %1320 = vmatpush1.bf16.msra.mxu0 %v1184
        %1321 = vmatprep.subr.bf16.mxu0 %v1189
        %1322 = vmatpush1.bf16.msra.mxu0 %v1188
        %1323 = vmatprep.subr.bf16.mxu0 %v1193
        %1324 = vmatpush1.bf16.msra.mxu0 %v1192
        %1325 = vmatprep.subr.bf16.mxu0 %v1197
        %1326 = vmatpush1.bf16.msra.mxu0 %v1196
        %1327 = vmatprep.subr.bf16.mxu0 %v1201
        %1328 = vmatpush1.bf16.msra.mxu0 %v1200
        %1329 = vmatprep.subr.bf16.mxu0 %v1205
        %1330 = vmatpush1.bf16.msra.mxu0 %v1204
        %1331 = vmatprep.subr.bf16.mxu0 %v1209
        %1332 = vmatpush1.bf16.msra.mxu0 %v1208
        %1333 = vmatprep.subr.bf16.mxu0 %v1213
        %1334 = vmatpush1.bf16.msra.mxu0 %v1212
        %1335 = vmatprep.subr.bf16.mxu0 %v1217
        %1336 = vmatpush1.bf16.msra.mxu0 %v1216
        %1337 = vmatprep.subr.bf16.mxu0 %v1221
        %1338 = vmatpush1.bf16.msra.mxu0 %v1220
        %1339 = vmatprep.mubr.bf16.mxu0 %v940
        %1340 = vmatmul.mubr.bf16.gmra.mrb[0].mxu0 %v939
        %v1341 = vpop.f32.mrb[0].mxu0
        %v1342 = vadd.f32 %v846, %v1341
        %v1343 = vpop.f32.mrb[0].mxu0
        %v1344 = vadd.f32 %v848, %v1343
        %v1345 = vpop.f32.mrb[0].mxu0
        %v1346 = vpop.f32.mrb[0].mxu0
        %1347 = vdwg.mxu0
        %1348 = vmatprep.subr.bf16.mxu0 %v1225
        %1349 = vmatpush1.bf16.msra.mxu0 %v1224
        %1350 = vmatprep.subr.bf16.mxu0 %v1229
        %1351 = vmatpush1.bf16.msra.mxu0 %v1228
        %1352 = vmatprep.subr.bf16.mxu0 0
        %1353 = vmatpush1.bf16.msra.mxu0 0
        %1354 = vmatprep.subr.bf16.mxu0 0
        %1355 = vmatpush1.bf16.msra.mxu0 0
        %1356 = vmatprep.subr.bf16.mxu0 0
        %1357 = vmatpush1.bf16.msra.mxu0 0
        %1358 = vmatprep.subr.bf16.mxu0 0
        %1359 = vmatpush1.bf16.msra.mxu0 0
        %1360 = vmatprep.subr.bf16.mxu0 0
        %1361 = vmatpush1.bf16.msra.mxu0 0
        %1362 = vmatprep.subr.bf16.mxu0 0
        %1363 = vmatpush1.bf16.msra.mxu0 0
        %1364 = vmatprep.subr.bf16.mxu0 0
        %1365 = vmatpush1.bf16.msra.mxu0 0
        %1366 = vmatprep.subr.bf16.mxu0 0
        %1367 = vmatpush1.bf16.msra.mxu0 0
        %1368 = vmatprep.subr.bf16.mxu0 0
        %1369 = vmatpush1.bf16.msra.mxu0 0
        %1370 = vmatprep.subr.bf16.mxu0 0
        %1371 = vmatpush1.bf16.msra.mxu0 0
        %1372 = vmatprep.subr.bf16.mxu0 0
        %1373 = vmatpush1.bf16.msra.mxu0 0
        %1374 = vmatprep.subr.bf16.mxu0 0
        %1375 = vmatpush1.bf16.msra.mxu0 0
        %1376 = vmatprep.subr.bf16.mxu0 0
        %1377 = vmatpush1.bf16.msra.mxu0 0
        %1378 = vmatprep.subr.bf16.mxu0 0
        %1379 = vmatpush1.bf16.msra.mxu0 0
        %1380 = vmatprep.mubr.bf16.mxu0 0
        %1381 = vmatmul.mubr.bf16.gmra.mrb[0].mxu0 %v1305
        %v1382 = vpop.f32.mrb[0].mxu0
        %v1383 = vadd.f32 %v1342, %v1382
        %v1384 = vpop.f32.mrb[0].mxu0
        %v1385 = vadd.f32 %v1344, %v1384
        %v1386 = vpop.f32.mrb[0].mxu0
        %v1387 = vpop.f32.mrb[0].mxu0
        %1388 = vdwg.mxu0
        %1389 = vmatprep.subr.bf16.mxu0 %v1163
        %1390 = vmatpush1.bf16.msra.mxu0 %v1162
        %1391 = vmatprep.subr.bf16.mxu0 %v1167
        %1392 = vmatpush1.bf16.msra.mxu0 %v1166
        %1393 = vmatprep.subr.bf16.mxu0 %v1171
        %1394 = vmatpush1.bf16.msra.mxu0 %v1170
        %1395 = vmatprep.subr.bf16.mxu0 %v1175
        %1396 = vmatpush1.bf16.msra.mxu0 %v1174
        %1397 = vmatprep.subr.bf16.mxu0 %v1179
        %1398 = vmatpush1.bf16.msra.mxu0 %v1178
        %1399 = vmatprep.subr.bf16.mxu0 %v1183
        %1400 = vmatpush1.bf16.msra.mxu0 %v1182
        %1401 = vmatprep.subr.bf16.mxu0 %v1187
        %1402 = vmatpush1.bf16.msra.mxu0 %v1186
        %1403 = vmatprep.subr.bf16.mxu0 %v1191
        %1404 = vmatpush1.bf16.msra.mxu0 %v1190
        %1405 = vmatprep.subr.bf16.mxu0 %v1195
        %1406 = vmatpush1.bf16.msra.mxu0 %v1194
        %1407 = vmatprep.subr.bf16.mxu0 %v1199
        %1408 = vmatpush1.bf16.msra.mxu0 %v1198
        %1409 = vmatprep.subr.bf16.mxu0 %v1203
        %1410 = vmatpush1.bf16.msra.mxu0 %v1202
        %1411 = vmatprep.subr.bf16.mxu0 %v1207
        %1412 = vmatpush1.bf16.msra.mxu0 %v1206
        %1413 = vmatprep.subr.bf16.mxu0 %v1211
        %1414 = vmatpush1.bf16.msra.mxu0 %v1210
        %1415 = vmatprep.subr.bf16.mxu0 %v1215
        %1416 = vmatpush1.bf16.msra.mxu0 %v1214
        %1417 = vmatprep.subr.bf16.mxu0 %v1219
        %1418 = vmatpush1.bf16.msra.mxu0 %v1218
        %1419 = vmatprep.subr.bf16.mxu0 %v1223
        %1420 = vmatpush1.bf16.msra.mxu0 %v1222
        %1421 = vmatprep.mubr.bf16.mxu0 %v940
        %1422 = vmatmul.mubr.bf16.gmra.mrb[0].mxu0 %v939
        %v1423 = vpop.f32.mrb[0].mxu0
        %v1424 = vadd.f32 %v928, %v1423
        %v1425 = vpop.f32.mrb[0].mxu0
        %v1426 = vadd.f32 %v930, %v1425
        %v1427 = vpop.f32.mrb[0].mxu0
        %v1428 = vpop.f32.mrb[0].mxu0
        %1429 = vdwg.mxu0
        %1430 = vmatprep.subr.bf16.mxu0 %v1227
        %1431 = vmatpush1.bf16.msra.mxu0 %v1226
        %1432 = vmatprep.subr.bf16.mxu0 %v1231
        %1433 = vmatpush1.bf16.msra.mxu0 %v1230
        %1434 = vmatprep.subr.bf16.mxu0 0
        %1435 = vmatpush1.bf16.msra.mxu0 0
        %1436 = vmatprep.subr.bf16.mxu0 0
        %1437 = vmatpush1.bf16.msra.mxu0 0
        %1438 = vmatprep.subr.bf16.mxu0 0
        %1439 = vmatpush1.bf16.msra.mxu0 0
        %1440 = vmatprep.subr.bf16.mxu0 0
        %1441 = vmatpush1.bf16.msra.mxu0 0
        %1442 = vmatprep.subr.bf16.mxu0 0
        %1443 = vmatpush1.bf16.msra.mxu0 0
        %1444 = vmatprep.subr.bf16.mxu0 0
        %1445 = vmatpush1.bf16.msra.mxu0 0
        %1446 = vmatprep.subr.bf16.mxu0 0
        %1447 = vmatpush1.bf16.msra.mxu0 0
        %1448 = vmatprep.subr.bf16.mxu0 0
        %1449 = vmatpush1.bf16.msra.mxu0 0
        %1450 = vmatprep.subr.bf16.mxu0 0
        %1451 = vmatpush1.bf16.msra.mxu0 0
        %1452 = vmatprep.subr.bf16.mxu0 0
        %1453 = vmatpush1.bf16.msra.mxu0 0
        %1454 = vmatprep.subr.bf16.mxu0 0
        %1455 = vmatpush1.bf16.msra.mxu0 0
        %1456 = vmatprep.subr.bf16.mxu0 0
        %1457 = vmatpush1.bf16.msra.mxu0 0
        %1458 = vmatprep.subr.bf16.mxu0 0
        %1459 = vmatpush1.bf16.msra.mxu0 0
        %1460 = vmatprep.subr.bf16.mxu0 0
        %1461 = vmatpush1.bf16.msra.mxu0 0
        %1462 = vmatprep.mubr.bf16.mxu0 0
        %1463 = vmatmul.mubr.bf16.gmra.mrb[0].mxu0 %v1305
        %v1464 = vpop.f32.mrb[0].mxu0
        %v1465 = vadd.f32 %v1424, %v1464
        %v1466 = vpop.f32.mrb[0].mxu0
        %v1467 = vadd.f32 %v1426, %v1466
        %v1468 = vpop.f32.mrb[0].mxu0
        %v1469 = vpop.f32.mrb[0].mxu0
        %1470 = vdwg.mxu0
        %v1472 = vshrl.u32 %v939, 16
        %v1474 = vshll.u32 %v939, 16
        %v1476 = vrot.slane %v1474, 1
        %v1477 = vor.u32 %v1472, %v1476
        %v1479 = vshrl.u32 %v940, 16
        %v1481 = vshll.u32 %v940, 16
        %v1483 = vrot.slane %v1481, 1
        %v1484 = vor.u32 %v1479, %v1483
        %v1485 = vshrl.u32 %v941, 16
        %v1487 = vshll.u32 %v941, 16
        %v1489 = vrot.slane %v1487, 1
        %v1490 = vor.u32 %v1485, %v1489
        %v1494 = vsel %vm766, %v1490, 0
        %1496 = vmatprep.subr.bf16.mxu0 %v623
        %1497 = vmatpush1.bf16.msra.mxu0 %v622
        %1498 = vmatprep.subr.bf16.mxu0 %v627
        %1499 = vmatpush1.bf16.msra.mxu0 %v626
        %1500 = vmatprep.subr.bf16.mxu0 %v631
        %1501 = vmatpush1.bf16.msra.mxu0 %v630
        %1502 = vmatprep.subr.bf16.mxu0 %v635
        %1503 = vmatpush1.bf16.msra.mxu0 %v634
        %1504 = vmatprep.subr.bf16.mxu0 %v639
        %1505 = vmatpush1.bf16.msra.mxu0 %v638
        %1506 = vmatprep.subr.bf16.mxu0 %v643
        %1507 = vmatpush1.bf16.msra.mxu0 %v642
        %1508 = vmatprep.subr.bf16.mxu0 %v647
        %1509 = vmatpush1.bf16.msra.mxu0 %v646
        %1510 = vmatprep.subr.bf16.mxu0 %v651
        %1511 = vmatpush1.bf16.msra.mxu0 %v650
        %1512 = vmatprep.subr.bf16.mxu0 %v655
        %1513 = vmatpush1.bf16.msra.mxu0 %v654
        %1514 = vmatprep.subr.bf16.mxu0 %v659
        %1515 = vmatpush1.bf16.msra.mxu0 %v658
        %1516 = vmatprep.subr.bf16.mxu0 %v663
        %1517 = vmatpush1.bf16.msra.mxu0 %v662
        %1518 = vmatprep.subr.bf16.mxu0 %v667
        %1519 = vmatpush1.bf16.msra.mxu0 %v666
        %1520 = vmatprep.subr.bf16.mxu0 %v671
        %1521 = vmatpush1.bf16.msra.mxu0 %v670
        %1522 = vmatprep.subr.bf16.mxu0 %v675
        %1523 = vmatpush1.bf16.msra.mxu0 %v674
        %1524 = vmatprep.subr.bf16.mxu0 %v679
        %1525 = vmatpush1.bf16.msra.mxu0 %v678
        %1526 = vmatprep.subr.bf16.mxu0 %v683
        %1527 = vmatpush1.bf16.msra.mxu0 %v682
        %1528 = vmatprep.mubr.bf16.mxu0 %v1484
        %1529 = vmatmul.mubr.bf16.gmra.mrb[0].mxu0 %v1477
        %v1530 = vpop.f32.mrb[0].mxu0
        %v1531 = vadd.f32 0.0, %v1530
        %v1532 = vpop.f32.mrb[0].mxu0
        %v1533 = vadd.f32 0.0, %v1532
        %v1534 = vpop.f32.mrb[0].mxu0
        %v1535 = vpop.f32.mrb[0].mxu0
        %1536 = vdwg.mxu0
        %1537 = vmatprep.subr.bf16.mxu0 %v687
        %1538 = vmatpush1.bf16.msra.mxu0 %v686
        %1539 = vmatprep.subr.bf16.mxu0 %v691
        %1540 = vmatpush1.bf16.msra.mxu0 %v690
        %1541 = vmatprep.subr.bf16.mxu0 0
        %1542 = vmatpush1.bf16.msra.mxu0 0
        %1543 = vmatprep.subr.bf16.mxu0 0
        %1544 = vmatpush1.bf16.msra.mxu0 0
        %1545 = vmatprep.subr.bf16.mxu0 0
        %1546 = vmatpush1.bf16.msra.mxu0 0
        %1547 = vmatprep.subr.bf16.mxu0 0
        %1548 = vmatpush1.bf16.msra.mxu0 0
        %1549 = vmatprep.subr.bf16.mxu0 0
        %1550 = vmatpush1.bf16.msra.mxu0 0
        %1551 = vmatprep.subr.bf16.mxu0 0
        %1552 = vmatpush1.bf16.msra.mxu0 0
        %1553 = vmatprep.subr.bf16.mxu0 0
        %1554 = vmatpush1.bf16.msra.mxu0 0
        %1555 = vmatprep.subr.bf16.mxu0 0
        %1556 = vmatpush1.bf16.msra.mxu0 0
        %1557 = vmatprep.subr.bf16.mxu0 0
        %1558 = vmatpush1.bf16.msra.mxu0 0
        %1559 = vmatprep.subr.bf16.mxu0 0
        %1560 = vmatpush1.bf16.msra.mxu0 0
        %1561 = vmatprep.subr.bf16.mxu0 0
        %1562 = vmatpush1.bf16.msra.mxu0 0
        %1563 = vmatprep.subr.bf16.mxu0 0
        %1564 = vmatpush1.bf16.msra.mxu0 0
        %1565 = vmatprep.subr.bf16.mxu0 0
        %1566 = vmatpush1.bf16.msra.mxu0 0
        %1567 = vmatprep.subr.bf16.mxu0 0
        %1568 = vmatpush1.bf16.msra.mxu0 0
        %1569 = vmatprep.mubr.bf16.mxu0 0
        %1570 = vmatmul.mubr.bf16.gmra.mrb[0].mxu0 %v1494
        %v1571 = vpop.f32.mrb[0].mxu0
        %v1572 = vadd.f32 %v1531, %v1571
        %v1573 = vpop.f32.mrb[0].mxu0
        %v1574 = vadd.f32 %v1533, %v1573
        %v1575 = vpop.f32.mrb[0].mxu0
        %v1576 = vpop.f32.mrb[0].mxu0
        %1577 = vdwg.mxu0
        %1578 = vmatprep.subr.bf16.mxu0 %v625
        %1579 = vmatpush1.bf16.msra.mxu0 %v624
        %1580 = vmatprep.subr.bf16.mxu0 %v629
        %1581 = vmatpush1.bf16.msra.mxu0 %v628
        %1582 = vmatprep.subr.bf16.mxu0 %v633
        %1583 = vmatpush1.bf16.msra.mxu0 %v632
        %1584 = vmatprep.subr.bf16.mxu0 %v637
        %1585 = vmatpush1.bf16.msra.mxu0 %v636
        %1586 = vmatprep.subr.bf16.mxu0 %v641
        %1587 = vmatpush1.bf16.msra.mxu0 %v640
        %1588 = vmatprep.subr.bf16.mxu0 %v645
        %1589 = vmatpush1.bf16.msra.mxu0 %v644
        %1590 = vmatprep.subr.bf16.mxu0 %v649
        %1591 = vmatpush1.bf16.msra.mxu0 %v648
        %1592 = vmatprep.subr.bf16.mxu0 %v653
        %1593 = vmatpush1.bf16.msra.mxu0 %v652
        %1594 = vmatprep.subr.bf16.mxu0 %v657
        %1595 = vmatpush1.bf16.msra.mxu0 %v656
        %1596 = vmatprep.subr.bf16.mxu0 %v661
        %1597 = vmatpush1.bf16.msra.mxu0 %v660
        %1598 = vmatprep.subr.bf16.mxu0 %v665
        %1599 = vmatpush1.bf16.msra.mxu0 %v664
        %1600 = vmatprep.subr.bf16.mxu0 %v669
        %1601 = vmatpush1.bf16.msra.mxu0 %v668
        %1602 = vmatprep.subr.bf16.mxu0 %v673
        %1603 = vmatpush1.bf16.msra.mxu0 %v672
        %1604 = vmatprep.subr.bf16.mxu0 %v677
        %1605 = vmatpush1.bf16.msra.mxu0 %v676
        %1606 = vmatprep.subr.bf16.mxu0 %v681
        %1607 = vmatpush1.bf16.msra.mxu0 %v680
        %1608 = vmatprep.subr.bf16.mxu0 %v685
        %1609 = vmatpush1.bf16.msra.mxu0 %v684
        %1610 = vmatprep.mubr.bf16.mxu0 %v1484
        %1611 = vmatmul.mubr.bf16.gmra.mrb[0].mxu0 %v1477
        %v1612 = vpop.f32.mrb[0].mxu0
        %v1613 = vadd.f32 0.0, %v1612
        %v1614 = vpop.f32.mrb[0].mxu0
        %v1615 = vadd.f32 0.0, %v1614
        %v1616 = vpop.f32.mrb[0].mxu0
        %v1617 = vpop.f32.mrb[0].mxu0
        %1618 = vdwg.mxu0
        %1619 = vmatprep.subr.bf16.mxu0 %v689
        %1620 = vmatpush1.bf16.msra.mxu0 %v688
        %1621 = vmatprep.subr.bf16.mxu0 %v693
        %1622 = vmatpush1.bf16.msra.mxu0 %v692
        %1623 = vmatprep.subr.bf16.mxu0 0
        %1624 = vmatpush1.bf16.msra.mxu0 0
        %1625 = vmatprep.subr.bf16.mxu0 0
        %1626 = vmatpush1.bf16.msra.mxu0 0
        %1627 = vmatprep.subr.bf16.mxu0 0
        %1628 = vmatpush1.bf16.msra.mxu0 0
        %1629 = vmatprep.subr.bf16.mxu0 0
        %1630 = vmatpush1.bf16.msra.mxu0 0
        %1631 = vmatprep.subr.bf16.mxu0 0
        %1632 = vmatpush1.bf16.msra.mxu0 0
        %1633 = vmatprep.subr.bf16.mxu0 0
        %1634 = vmatpush1.bf16.msra.mxu0 0
        %1635 = vmatprep.subr.bf16.mxu0 0
        %1636 = vmatpush1.bf16.msra.mxu0 0
        %1637 = vmatprep.subr.bf16.mxu0 0
        %1638 = vmatpush1.bf16.msra.mxu0 0
        %1639 = vmatprep.subr.bf16.mxu0 0
        %1640 = vmatpush1.bf16.msra.mxu0 0
        %1641 = vmatprep.subr.bf16.mxu0 0
        %1642 = vmatpush1.bf16.msra.mxu0 0
        %1643 = vmatprep.subr.bf16.mxu0 0
        %1644 = vmatpush1.bf16.msra.mxu0 0
        %1645 = vmatprep.subr.bf16.mxu0 0
        %1646 = vmatpush1.bf16.msra.mxu0 0
        %1647 = vmatprep.subr.bf16.mxu0 0
        %1648 = vmatpush1.bf16.msra.mxu0 0
        %1649 = vmatprep.subr.bf16.mxu0 0
        %1650 = vmatpush1.bf16.msra.mxu0 0
        %1651 = vmatprep.mubr.bf16.mxu0 0
        %1652 = vmatmul.mubr.bf16.gmra.mrb[0].mxu0 %v1494
        %v1653 = vpop.f32.mrb[0].mxu0
        %v1654 = vadd.f32 %v1613, %v1653
        %v1655 = vpop.f32.mrb[0].mxu0
        %v1656 = vadd.f32 %v1615, %v1655
        %v1657 = vpop.f32.mrb[0].mxu0
        %v1658 = vpop.f32.mrb[0].mxu0
        %1659 = vdwg.mxu0
        %1660 = vmatprep.subr.bf16.mxu0 %v1161
        %1661 = vmatpush1.bf16.msra.mxu0 %v1160
        %1662 = vmatprep.subr.bf16.mxu0 %v1165
        %1663 = vmatpush1.bf16.msra.mxu0 %v1164
        %1664 = vmatprep.subr.bf16.mxu0 %v1169
        %1665 = vmatpush1.bf16.msra.mxu0 %v1168
        %1666 = vmatprep.subr.bf16.mxu0 %v1173
        %1667 = vmatpush1.bf16.msra.mxu0 %v1172
        %1668 = vmatprep.subr.bf16.mxu0 %v1177
        %1669 = vmatpush1.bf16.msra.mxu0 %v1176
        %1670 = vmatprep.subr.bf16.mxu0 %v1181
        %1671 = vmatpush1.bf16.msra.mxu0 %v1180
        %1672 = vmatprep.subr.bf16.mxu0 %v1185
        %1673 = vmatpush1.bf16.msra.mxu0 %v1184
        %1674 = vmatprep.subr.bf16.mxu0 %v1189
        %1675 = vmatpush1.bf16.msra.mxu0 %v1188
        %1676 = vmatprep.subr.bf16.mxu0 %v1193
        %1677 = vmatpush1.bf16.msra.mxu0 %v1192
        %1678 = vmatprep.subr.bf16.mxu0 %v1197
        %1679 = vmatpush1.bf16.msra.mxu0 %v1196
        %1680 = vmatprep.subr.bf16.mxu0 %v1201
        %1681 = vmatpush1.bf16.msra.mxu0 %v1200
        %1682 = vmatprep.subr.bf16.mxu0 %v1205
        %1683 = vmatpush1.bf16.msra.mxu0 %v1204
        %1684 = vmatprep.subr.bf16.mxu0 %v1209
        %1685 = vmatpush1.bf16.msra.mxu0 %v1208
        %1686 = vmatprep.subr.bf16.mxu0 %v1213
        %1687 = vmatpush1.bf16.msra.mxu0 %v1212
        %1688 = vmatprep.subr.bf16.mxu0 %v1217
        %1689 = vmatpush1.bf16.msra.mxu0 %v1216
        %1690 = vmatprep.subr.bf16.mxu0 %v1221
        %1691 = vmatpush1.bf16.msra.mxu0 %v1220
        %1692 = vmatprep.mubr.bf16.mxu0 %v402
        %1693 = vmatmul.mubr.bf16.gmra.mrb[0].mxu0 %v401
        %v1694 = vpop.f32.mrb[0].mxu0
        %v1695 = vadd.f32 %v1572, %v1694
        %v1696 = vpop.f32.mrb[0].mxu0
        %v1697 = vadd.f32 %v1574, %v1696
        %v1698 = vpop.f32.mrb[0].mxu0
        %v1699 = vpop.f32.mrb[0].mxu0
        %1700 = vdwg.mxu0
        %1701 = vmatprep.subr.bf16.mxu0 %v1225
        %1702 = vmatpush1.bf16.msra.mxu0 %v1224
        %1703 = vmatprep.subr.bf16.mxu0 %v1229
        %1704 = vmatpush1.bf16.msra.mxu0 %v1228
        %1705 = vmatprep.subr.bf16.mxu0 0
        %1706 = vmatpush1.bf16.msra.mxu0 0
        %1707 = vmatprep.subr.bf16.mxu0 0
        %1708 = vmatpush1.bf16.msra.mxu0 0
        %1709 = vmatprep.subr.bf16.mxu0 0
        %1710 = vmatpush1.bf16.msra.mxu0 0
        %1711 = vmatprep.subr.bf16.mxu0 0
        %1712 = vmatpush1.bf16.msra.mxu0 0
        %1713 = vmatprep.subr.bf16.mxu0 0
        %1714 = vmatpush1.bf16.msra.mxu0 0
        %1715 = vmatprep.subr.bf16.mxu0 0
        %1716 = vmatpush1.bf16.msra.mxu0 0
        %1717 = vmatprep.subr.bf16.mxu0 0
        %1718 = vmatpush1.bf16.msra.mxu0 0
        %1719 = vmatprep.subr.bf16.mxu0 0
        %1720 = vmatpush1.bf16.msra.mxu0 0
        %1721 = vmatprep.subr.bf16.mxu0 0
        %1722 = vmatpush1.bf16.msra.mxu0 0
        %1723 = vmatprep.subr.bf16.mxu0 0
        %1724 = vmatpush1.bf16.msra.mxu0 0
        %1725 = vmatprep.subr.bf16.mxu0 0
        %1726 = vmatpush1.bf16.msra.mxu0 0
        %1727 = vmatprep.subr.bf16.mxu0 0
        %1728 = vmatpush1.bf16.msra.mxu0 0
        %1729 = vmatprep.subr.bf16.mxu0 0
        %1730 = vmatpush1.bf16.msra.mxu0 0
        %1731 = vmatprep.subr.bf16.mxu0 0
        %1732 = vmatpush1.bf16.msra.mxu0 0
        %1733 = vmatprep.mubr.bf16.mxu0 0
        %1734 = vmatmul.mubr.bf16.gmra.mrb[0].mxu0 %v768
        %v1735 = vpop.f32.mrb[0].mxu0
        %v1736 = vadd.f32 %v1695, %v1735
        %v1737 = vpop.f32.mrb[0].mxu0
        %v1738 = vadd.f32 %v1697, %v1737
        %v1739 = vpop.f32.mrb[0].mxu0
        %v1740 = vpop.f32.mrb[0].mxu0
        %1741 = vdwg.mxu0
        %1742 = vmatprep.subr.bf16.mxu0 %v1163
        %1743 = vmatpush1.bf16.msra.mxu0 %v1162
        %1744 = vmatprep.subr.bf16.mxu0 %v1167
        %1745 = vmatpush1.bf16.msra.mxu0 %v1166
        %1746 = vmatprep.subr.bf16.mxu0 %v1171
        %1747 = vmatpush1.bf16.msra.mxu0 %v1170
        %1748 = vmatprep.subr.bf16.mxu0 %v1175
        %1749 = vmatpush1.bf16.msra.mxu0 %v1174
        %1750 = vmatprep.subr.bf16.mxu0 %v1179
        %1751 = vmatpush1.bf16.msra.mxu0 %v1178
        %1752 = vmatprep.subr.bf16.mxu0 %v1183
        %1753 = vmatpush1.bf16.msra.mxu0 %v1182
        %1754 = vmatprep.subr.bf16.mxu0 %v1187
        %1755 = vmatpush1.bf16.msra.mxu0 %v1186
        %1756 = vmatprep.subr.bf16.mxu0 %v1191
        %1757 = vmatpush1.bf16.msra.mxu0 %v1190
        %1758 = vmatprep.subr.bf16.mxu0 %v1195
        %1759 = vmatpush1.bf16.msra.mxu0 %v1194
        %1760 = vmatprep.subr.bf16.mxu0 %v1199
        %1761 = vmatpush1.bf16.msra.mxu0 %v1198
        %1762 = vmatprep.subr.bf16.mxu0 %v1203
        %1763 = vmatpush1.bf16.msra.mxu0 %v1202
        %1764 = vmatprep.subr.bf16.mxu0 %v1207
        %1765 = vmatpush1.bf16.msra.mxu0 %v1206
        %1766 = vmatprep.subr.bf16.mxu0 %v1211
        %1767 = vmatpush1.bf16.msra.mxu0 %v1210
        %1768 = vmatprep.subr.bf16.mxu0 %v1215
        %1769 = vmatpush1.bf16.msra.mxu0 %v1214
        %1770 = vmatprep.subr.bf16.mxu0 %v1219
        %1771 = vmatpush1.bf16.msra.mxu0 %v1218
        %1772 = vmatprep.subr.bf16.mxu0 %v1223
        %1773 = vmatpush1.bf16.msra.mxu0 %v1222
        %1774 = vmatprep.mubr.bf16.mxu0 %v402
        %1775 = vmatmul.mubr.bf16.gmra.mrb[0].mxu0 %v401
        %v1776 = vpop.f32.mrb[0].mxu0
        %v1777 = vadd.f32 %v1654, %v1776
        %v1778 = vpop.f32.mrb[0].mxu0
        %v1779 = vadd.f32 %v1656, %v1778
        %v1780 = vpop.f32.mrb[0].mxu0
        %v1781 = vpop.f32.mrb[0].mxu0
        %1782 = vdwg.mxu0
        %1783 = vmatprep.subr.bf16.mxu0 %v1227
        %1784 = vmatpush1.bf16.msra.mxu0 %v1226
        %1785 = vmatprep.subr.bf16.mxu0 %v1231
        %1786 = vmatpush1.bf16.msra.mxu0 %v1230
        %1787 = vmatprep.subr.bf16.mxu0 0
        %1788 = vmatpush1.bf16.msra.mxu0 0
        %1789 = vmatprep.subr.bf16.mxu0 0
        %1790 = vmatpush1.bf16.msra.mxu0 0
        %1791 = vmatprep.subr.bf16.mxu0 0
        %1792 = vmatpush1.bf16.msra.mxu0 0
        %1793 = vmatprep.subr.bf16.mxu0 0
        %1794 = vmatpush1.bf16.msra.mxu0 0
        %1795 = vmatprep.subr.bf16.mxu0 0
        %1796 = vmatpush1.bf16.msra.mxu0 0
        %1797 = vmatprep.subr.bf16.mxu0 0
        %1798 = vmatpush1.bf16.msra.mxu0 0
        %1799 = vmatprep.subr.bf16.mxu0 0
        %1800 = vmatpush1.bf16.msra.mxu0 0
        %1801 = vmatprep.subr.bf16.mxu0 0
        %1802 = vmatpush1.bf16.msra.mxu0 0
        %1803 = vmatprep.subr.bf16.mxu0 0
        %1804 = vmatpush1.bf16.msra.mxu0 0
        %1805 = vmatprep.subr.bf16.mxu0 0
        %1806 = vmatpush1.bf16.msra.mxu0 0
        %1807 = vmatprep.subr.bf16.mxu0 0
        %1808 = vmatpush1.bf16.msra.mxu0 0
        %1809 = vmatprep.subr.bf16.mxu0 0
        %1810 = vmatpush1.bf16.msra.mxu0 0
        %1811 = vmatprep.subr.bf16.mxu0 0
        %1812 = vmatpush1.bf16.msra.mxu0 0
        %1813 = vmatprep.subr.bf16.mxu0 0
        %1814 = vmatpush1.bf16.msra.mxu0 0
        %1815 = vmatprep.mubr.bf16.mxu0 0
        %1816 = vmatmul.mubr.bf16.gmra.mrb[0].mxu0 %v768
        %v1817 = vpop.f32.mrb[0].mxu0
        %v1818 = vadd.f32 %v1777, %v1817
        %v1819 = vpop.f32.mrb[0].mxu0
        %v1820 = vadd.f32 %v1779, %v1819
        %v1821 = vpop.f32.mrb[0].mxu0
        %v1822 = vpop.f32.mrb[0].mxu0
        %1823 = vdwg.mxu0
        %s1824 = scalar_lea.vmem [#allocation2], 1152
        %v1825 = vld [vmem:[%s1824] sm:$0xff]
        %v1826 = vld [vmem:[%s1824 + $0x8] sm:$0xff]
        %v1827 = vld [vmem:[%s1824 + $0x10] sm:$0xff]
        %v1828 = vld [vmem:[%s1824 + $0x18] sm:$0xff]
        %v1829 = vld [vmem:[%s1824 + $0x20] sm:$0xff]
        %v1830 = vld [vmem:[%s1824 + $0x28] sm:$0xff]
        %v1831 = vld [vmem:[%s1824 + $0x30] sm:$0xff]
        %v1832 = vld [vmem:[%s1824 + $0x38] sm:$0xff]
        %v1833 = vld [vmem:[%s1824 + $0x40] sm:$0xff]
        %v1834 = vld [vmem:[%s1824 + $0x48] sm:$0xff]
        %v1835 = vld [vmem:[%s1824 + $0x50] sm:$0xff]
        %v1836 = vld [vmem:[%s1824 + $0x58] sm:$0xff]
        %v1837 = vld [vmem:[%s1824 + $0x60] sm:$0xff]
        %v1838 = vld [vmem:[%s1824 + $0x68] sm:$0xff]
        %v1839 = vld [vmem:[%s1824 + $0x70] sm:$0xff]
        %v1840 = vld [vmem:[%s1824 + $0x78] sm:$0xff]
        %v1841 = vld [vmem:[%s1824 + $0x80] sm:$0xff]
        %v1842 = vld [vmem:[%s1824 + $0x88] sm:$0xff]
        %v1843 = vld [vmem:[%s1824 + $0x90] sm:$0xff]
        %v1844 = vld [vmem:[%s1824 + $0x98] sm:$0xff]
        %v1845 = vld [vmem:[%s1824 + $0xa0] sm:$0xff]
        %v1846 = vld [vmem:[%s1824 + $0xa8] sm:$0xff]
        %v1847 = vld [vmem:[%s1824 + $0xb0] sm:$0xff]
        %v1848 = vld [vmem:[%s1824 + $0xb8] sm:$0xff]
        %v1849 = vld [vmem:[%s1824 + $0xc0] sm:$0xff]
        %v1850 = vld [vmem:[%s1824 + $0xc8] sm:$0xff]
        %v1851 = vld [vmem:[%s1824 + $0xd0] sm:$0xff]
        %v1852 = vld [vmem:[%s1824 + $0xd8] sm:$0xff]
        %v1853 = vld [vmem:[%s1824 + $0xe0] sm:$0xff]
        %v1854 = vld [vmem:[%s1824 + $0xe8] sm:$0xff]
        %v1855 = vld [vmem:[%s1824 + $0xf0] sm:$0xff]
        %v1856 = vld [vmem:[%s1824 + $0xf8] sm:$0xff]
        %v1857 = vld [vmem:[%s1824 + $0x100] sm:$0xff]
        %v1858 = vld [vmem:[%s1824 + $0x108] sm:$0xff]
        %v1859 = vld [vmem:[%s1824 + $0x110] sm:$0xff]
        %v1860 = vld [vmem:[%s1824 + $0x118] sm:$0xff]
        %v1861 = vld [vmem:[%s1824 + $0x120] sm:$0xff]
        %v1862 = vld [vmem:[%s1824 + $0x128] sm:$0xff]
        %v1863 = vld [vmem:[%s1824 + $0x130] sm:$0xff]
        %v1864 = vld [vmem:[%s1824 + $0x138] sm:$0xff]
        %v1865 = vld [vmem:[%s1824 + $0x140] sm:$0xff]
        %v1866 = vld [vmem:[%s1824 + $0x148] sm:$0xff]
        %v1867 = vld [vmem:[%s1824 + $0x150] sm:$0xff]
        %v1868 = vld [vmem:[%s1824 + $0x158] sm:$0xff]
        %v1869 = vld [vmem:[%s1824 + $0x160] sm:$0xff]
        %v1870 = vld [vmem:[%s1824 + $0x168] sm:$0xff]
        %v1871 = vld [vmem:[%s1824 + $0x170] sm:$0xff]
        %v1872 = vld [vmem:[%s1824 + $0x178] sm:$0xff]
        %v1873 = vld [vmem:[%s1824 + $0x180] sm:$0xff]
        %v1874 = vld [vmem:[%s1824 + $0x188] sm:$0xff]
        %v1875 = vld [vmem:[%s1824 + $0x190] sm:$0xff]
        %v1876 = vld [vmem:[%s1824 + $0x198] sm:$0xff]
        %v1877 = vld [vmem:[%s1824 + $0x1a0] sm:$0xff]
        %v1878 = vld [vmem:[%s1824 + $0x1a8] sm:$0xff]
        %v1879 = vld [vmem:[%s1824 + $0x1b0] sm:$0xff]
        %v1880 = vld [vmem:[%s1824 + $0x1b8] sm:$0xff]
        %v1881 = vld [vmem:[%s1824 + $0x1c0] sm:$0xff]
        %v1882 = vld [vmem:[%s1824 + $0x1c8] sm:$0xff]
        %v1883 = vld [vmem:[%s1824 + $0x1d0] sm:$0xff]
        %v1884 = vld [vmem:[%s1824 + $0x1d8] sm:$0xff]
        %v1885 = vld [vmem:[%s1824 + $0x1e0] sm:$0xff]
        %v1886 = vld [vmem:[%s1824 + $0x1e8] sm:$0xff]
        %v1887 = vld [vmem:[%s1824 + $0x1f0] sm:$0xff]
        %v1888 = vld [vmem:[%s1824 + $0x1f8] sm:$0xff]
        %v1889 = vld [vmem:[%s1824 + $0x200] sm:$0xff]
        %v1890 = vld [vmem:[%s1824 + $0x208] sm:$0xff]
        %v1891 = vld [vmem:[%s1824 + $0x210] sm:$0xff]
        %v1892 = vld [vmem:[%s1824 + $0x218] sm:$0xff]
        %v1893 = vld [vmem:[%s1824 + $0x220] sm:$0xff]
        %v1894 = vld [vmem:[%s1824 + $0x228] sm:$0xff]
        %v1895 = vld [vmem:[%s1824 + $0x230] sm:$0xff]
        %v1896 = vld [vmem:[%s1824 + $0x238] sm:$0xff]
        %v1969 = vunpack.c.l.b16 %v1825
        %v1970 = vunpack.c.h.b16 %v1825
        %v1971 = vunpack.c.l.b16 %v1826
        %v1972 = vunpack.c.h.b16 %v1826
        %v1973 = vunpack.c.l.b16 %v1827
        %v1974 = vunpack.c.h.b16 %v1827
        %v1975 = vunpack.c.l.b16 %v1828
        %v1976 = vunpack.c.h.b16 %v1828
        %v1977 = vunpack.c.l.b16 %v1829
        %v1978 = vunpack.c.h.b16 %v1829
        %v1979 = vunpack.c.l.b16 %v1830
        %v1980 = vunpack.c.h.b16 %v1830
        %v1981 = vunpack.c.l.b16 %v1831
        %v1982 = vunpack.c.h.b16 %v1831
        %v1983 = vunpack.c.l.b16 %v1832
        %v1984 = vunpack.c.h.b16 %v1832
        %v1985 = vunpack.c.l.b16 %v1833
        %v1986 = vunpack.c.h.b16 %v1833
        %v1987 = vunpack.c.l.b16 %v1834
        %v1988 = vunpack.c.h.b16 %v1834
        %v1989 = vunpack.c.l.b16 %v1835
        %v1990 = vunpack.c.h.b16 %v1835
        %v1991 = vunpack.c.l.b16 %v1836
        %v1992 = vunpack.c.h.b16 %v1836
        %v1993 = vunpack.c.l.b16 %v1837
        %v1994 = vunpack.c.h.b16 %v1837
        %v1995 = vunpack.c.l.b16 %v1838
        %v1996 = vunpack.c.h.b16 %v1838
        %v1997 = vunpack.c.l.b16 %v1839
        %v1998 = vunpack.c.h.b16 %v1839
        %v1999 = vunpack.c.l.b16 %v1840
        %v2000 = vunpack.c.h.b16 %v1840
        %v2001 = vunpack.c.l.b16 %v1841
        %v2002 = vunpack.c.h.b16 %v1841
        %v2003 = vunpack.c.l.b16 %v1842
        %v2004 = vunpack.c.h.b16 %v1842
        %v2005 = vunpack.c.l.b16 %v1843
        %v2006 = vunpack.c.h.b16 %v1843
        %v2007 = vunpack.c.l.b16 %v1844
        %v2008 = vunpack.c.h.b16 %v1844
        %v2009 = vunpack.c.l.b16 %v1845
        %v2010 = vunpack.c.h.b16 %v1845
        %v2011 = vunpack.c.l.b16 %v1846
        %v2012 = vunpack.c.h.b16 %v1846
        %v2013 = vunpack.c.l.b16 %v1847
        %v2014 = vunpack.c.h.b16 %v1847
        %v2015 = vunpack.c.l.b16 %v1848
        %v2016 = vunpack.c.h.b16 %v1848
        %v2017 = vunpack.c.l.b16 %v1849
        %v2018 = vunpack.c.h.b16 %v1849
        %v2019 = vunpack.c.l.b16 %v1850
        %v2020 = vunpack.c.h.b16 %v1850
        %v2021 = vunpack.c.l.b16 %v1851
        %v2022 = vunpack.c.h.b16 %v1851
        %v2023 = vunpack.c.l.b16 %v1852
        %v2024 = vunpack.c.h.b16 %v1852
        %v2025 = vunpack.c.l.b16 %v1853
        %v2026 = vunpack.c.h.b16 %v1853
        %v2027 = vunpack.c.l.b16 %v1854
        %v2028 = vunpack.c.h.b16 %v1854
        %v2029 = vunpack.c.l.b16 %v1855
        %v2030 = vunpack.c.h.b16 %v1855
        %v2031 = vunpack.c.l.b16 %v1856
        %v2032 = vunpack.c.h.b16 %v1856
        %v2033 = vunpack.c.l.b16 %v1857
        %v2034 = vunpack.c.h.b16 %v1857
        %v2035 = vunpack.c.l.b16 %v1858
        %v2036 = vunpack.c.h.b16 %v1858
        %v2037 = vunpack.c.l.b16 %v1859
        %v2038 = vunpack.c.h.b16 %v1859
        %v2039 = vunpack.c.l.b16 %v1860
        %v2040 = vunpack.c.h.b16 %v1860
        %v2041 = vunpack.c.l.b16 %v1861
        %v2042 = vunpack.c.h.b16 %v1861
        %v2043 = vunpack.c.l.b16 %v1862
        %v2044 = vunpack.c.h.b16 %v1862
        %v2045 = vunpack.c.l.b16 %v1863
        %v2046 = vunpack.c.h.b16 %v1863
        %v2047 = vunpack.c.l.b16 %v1864
        %v2048 = vunpack.c.h.b16 %v1864
        %v2049 = vunpack.c.l.b16 %v1865
        %v2050 = vunpack.c.h.b16 %v1865
        %v2051 = vunpack.c.l.b16 %v1866
        %v2052 = vunpack.c.h.b16 %v1866
        %v2053 = vunpack.c.l.b16 %v1867
        %v2054 = vunpack.c.h.b16 %v1867
        %v2055 = vunpack.c.l.b16 %v1868
        %v2056 = vunpack.c.h.b16 %v1868
        %v2057 = vunpack.c.l.b16 %v1869
        %v2058 = vunpack.c.h.b16 %v1869
        %v2059 = vunpack.c.l.b16 %v1870
        %v2060 = vunpack.c.h.b16 %v1870
        %v2061 = vunpack.c.l.b16 %v1871
        %v2062 = vunpack.c.h.b16 %v1871
        %v2063 = vunpack.c.l.b16 %v1872
        %v2064 = vunpack.c.h.b16 %v1872
        %v2065 = vunpack.c.l.b16 %v1873
        %v2066 = vunpack.c.h.b16 %v1873
        %v2067 = vunpack.c.l.b16 %v1874
        %v2068 = vunpack.c.h.b16 %v1874
        %v2069 = vunpack.c.l.b16 %v1875
        %v2070 = vunpack.c.h.b16 %v1875
        %v2071 = vunpack.c.l.b16 %v1876
        %v2072 = vunpack.c.h.b16 %v1876
        %v2073 = vunpack.c.l.b16 %v1877
        %v2074 = vunpack.c.h.b16 %v1877
        %v2075 = vunpack.c.l.b16 %v1878
        %v2076 = vunpack.c.h.b16 %v1878
        %v2077 = vunpack.c.l.b16 %v1879
        %v2078 = vunpack.c.h.b16 %v1879
        %v2079 = vunpack.c.l.b16 %v1880
        %v2080 = vunpack.c.h.b16 %v1880
        %v2081 = vunpack.c.l.b16 %v1881
        %v2082 = vunpack.c.h.b16 %v1881
        %v2083 = vunpack.c.l.b16 %v1882
        %v2084 = vunpack.c.h.b16 %v1882
        %v2085 = vunpack.c.l.b16 %v1883
        %v2086 = vunpack.c.h.b16 %v1883
        %v2087 = vunpack.c.l.b16 %v1884
        %v2088 = vunpack.c.h.b16 %v1884
        %v2089 = vunpack.c.l.b16 %v1885
        %v2090 = vunpack.c.h.b16 %v1885
        %v2091 = vunpack.c.l.b16 %v1886
        %v2092 = vunpack.c.h.b16 %v1886
        %v2093 = vunpack.c.l.b16 %v1887
        %v2094 = vunpack.c.h.b16 %v1887
        %v2095 = vunpack.c.l.b16 %v1888
        %v2096 = vunpack.c.h.b16 %v1888
        %v2097 = vunpack.c.l.b16 %v1889
        %v2098 = vunpack.c.h.b16 %v1889
        %v2099 = vunpack.c.l.b16 %v1890
        %v2100 = vunpack.c.h.b16 %v1890
        %v2101 = vunpack.c.l.b16 %v1891
        %v2102 = vunpack.c.h.b16 %v1891
        %v2103 = vunpack.c.l.b16 %v1892
        %v2104 = vunpack.c.h.b16 %v1892
        %v2105 = vunpack.c.l.b16 %v1893
        %v2106 = vunpack.c.h.b16 %v1893
        %v2107 = vunpack.c.l.b16 %v1894
        %v2108 = vunpack.c.h.b16 %v1894
        %v2109 = vunpack.c.l.b16 %v1895
        %v2110 = vunpack.c.h.b16 %v1895
        %v2111 = vunpack.c.l.b16 %v1896
        %v2112 = vunpack.c.h.b16 %v1896
        %v2113 = vpack.c.b16 %v1973, %v1969
        %v2114 = vpack.c.b16 %v1974, %v1970
        %v2115 = vpack.c.b16 %v1975, %v1971
        %v2116 = vpack.c.b16 %v1976, %v1972
        %v2117 = vpack.c.b16 %v1981, %v1977
        %v2118 = vpack.c.b16 %v1982, %v1978
        %v2119 = vpack.c.b16 %v1983, %v1979
        %v2120 = vpack.c.b16 %v1984, %v1980
        %v2121 = vpack.c.b16 %v1989, %v1985
        %v2122 = vpack.c.b16 %v1990, %v1986
        %v2123 = vpack.c.b16 %v1991, %v1987
        %v2124 = vpack.c.b16 %v1992, %v1988
        %v2125 = vpack.c.b16 %v1997, %v1993
        %v2126 = vpack.c.b16 %v1998, %v1994
        %v2127 = vpack.c.b16 %v1999, %v1995
        %v2128 = vpack.c.b16 %v2000, %v1996
        %v2129 = vpack.c.b16 %v2005, %v2001
        %v2130 = vpack.c.b16 %v2006, %v2002
        %v2131 = vpack.c.b16 %v2007, %v2003
        %v2132 = vpack.c.b16 %v2008, %v2004
        %v2133 = vpack.c.b16 %v2013, %v2009
        %v2134 = vpack.c.b16 %v2014, %v2010
        %v2135 = vpack.c.b16 %v2015, %v2011
        %v2136 = vpack.c.b16 %v2016, %v2012
        %v2137 = vpack.c.b16 %v2021, %v2017
        %v2138 = vpack.c.b16 %v2022, %v2018
        %v2139 = vpack.c.b16 %v2023, %v2019
        %v2140 = vpack.c.b16 %v2024, %v2020
        %v2141 = vpack.c.b16 %v2029, %v2025
        %v2142 = vpack.c.b16 %v2030, %v2026
        %v2143 = vpack.c.b16 %v2031, %v2027
        %v2144 = vpack.c.b16 %v2032, %v2028
        %v2145 = vpack.c.b16 %v2037, %v2033
        %v2146 = vpack.c.b16 %v2038, %v2034
        %v2147 = vpack.c.b16 %v2039, %v2035
        %v2148 = vpack.c.b16 %v2040, %v2036
        %v2149 = vpack.c.b16 %v2045, %v2041
        %v2150 = vpack.c.b16 %v2046, %v2042
        %v2151 = vpack.c.b16 %v2047, %v2043
        %v2152 = vpack.c.b16 %v2048, %v2044
        %v2153 = vpack.c.b16 %v2053, %v2049
        %v2154 = vpack.c.b16 %v2054, %v2050
        %v2155 = vpack.c.b16 %v2055, %v2051
        %v2156 = vpack.c.b16 %v2056, %v2052
        %v2157 = vpack.c.b16 %v2061, %v2057
        %v2158 = vpack.c.b16 %v2062, %v2058
        %v2159 = vpack.c.b16 %v2063, %v2059
        %v2160 = vpack.c.b16 %v2064, %v2060
        %v2161 = vpack.c.b16 %v2069, %v2065
        %v2162 = vpack.c.b16 %v2070, %v2066
        %v2163 = vpack.c.b16 %v2071, %v2067
        %v2164 = vpack.c.b16 %v2072, %v2068
        %v2165 = vpack.c.b16 %v2077, %v2073
        %v2166 = vpack.c.b16 %v2078, %v2074
        %v2167 = vpack.c.b16 %v2079, %v2075
        %v2168 = vpack.c.b16 %v2080, %v2076
        %v2169 = vpack.c.b16 %v2085, %v2081
        %v2170 = vpack.c.b16 %v2086, %v2082
        %v2171 = vpack.c.b16 %v2087, %v2083
        %v2172 = vpack.c.b16 %v2088, %v2084
        %v2173 = vpack.c.b16 %v2093, %v2089
        %v2174 = vpack.c.b16 %v2094, %v2090
        %v2175 = vpack.c.b16 %v2095, %v2091
        %v2176 = vpack.c.b16 %v2096, %v2092
        %v2177 = vpack.c.b16 %v2101, %v2097
        %v2178 = vpack.c.b16 %v2102, %v2098
        %v2179 = vpack.c.b16 %v2103, %v2099
        %v2180 = vpack.c.b16 %v2104, %v2100
        %v2181 = vpack.c.b16 %v2109, %v2105
        %v2182 = vpack.c.b16 %v2110, %v2106
        %v2183 = vpack.c.b16 %v2111, %v2107
        %v2184 = vpack.c.b16 %v2112, %v2108
        %2257 = vmatprep.subr.bf16.mxu0 %v2114
        %2258 = vmatpush1.bf16.msra.mxu0 %v2113
        %2259 = vmatprep.subr.bf16.mxu0 %v2118
        %2260 = vmatpush1.bf16.msra.mxu0 %v2117
        %2261 = vmatprep.subr.bf16.mxu0 %v2122
        %2262 = vmatpush1.bf16.msra.mxu0 %v2121
        %2263 = vmatprep.subr.bf16.mxu0 %v2126
        %2264 = vmatpush1.bf16.msra.mxu0 %v2125
        %2265 = vmatprep.subr.bf16.mxu0 %v2130
        %2266 = vmatpush1.bf16.msra.mxu0 %v2129
        %2267 = vmatprep.subr.bf16.mxu0 %v2134
        %2268 = vmatpush1.bf16.msra.mxu0 %v2133
        %2269 = vmatprep.subr.bf16.mxu0 %v2138
        %2270 = vmatpush1.bf16.msra.mxu0 %v2137
        %2271 = vmatprep.subr.bf16.mxu0 %v2142
        %2272 = vmatpush1.bf16.msra.mxu0 %v2141
        %2273 = vmatprep.subr.bf16.mxu0 %v2146
        %2274 = vmatpush1.bf16.msra.mxu0 %v2145
        %2275 = vmatprep.subr.bf16.mxu0 %v2150
        %2276 = vmatpush1.bf16.msra.mxu0 %v2149
        %2277 = vmatprep.subr.bf16.mxu0 %v2154
        %2278 = vmatpush1.bf16.msra.mxu0 %v2153
        %2279 = vmatprep.subr.bf16.mxu0 %v2158
        %2280 = vmatpush1.bf16.msra.mxu0 %v2157
        %2281 = vmatprep.subr.bf16.mxu0 %v2162
        %2282 = vmatpush1.bf16.msra.mxu0 %v2161
        %2283 = vmatprep.subr.bf16.mxu0 %v2166
        %2284 = vmatpush1.bf16.msra.mxu0 %v2165
        %2285 = vmatprep.subr.bf16.mxu0 %v2170
        %2286 = vmatpush1.bf16.msra.mxu0 %v2169
        %2287 = vmatprep.subr.bf16.mxu0 %v2174
        %2288 = vmatpush1.bf16.msra.mxu0 %v2173
        %2289 = vmatprep.mubr.bf16.mxu0 %v1484
        %2290 = vmatmul.mubr.bf16.gmra.mrb[0].mxu0 %v1477
        %v2291 = vpop.f32.mrb[0].mxu0
        %v2292 = vadd.f32 0.0, %v2291
        %v2293 = vpop.f32.mrb[0].mxu0
        %v2294 = vadd.f32 0.0, %v2293
        %v2295 = vpop.f32.mrb[0].mxu0
        %v2296 = vpop.f32.mrb[0].mxu0
        %2297 = vdwg.mxu0
        %2298 = vmatprep.subr.bf16.mxu0 %v2178
        %2299 = vmatpush1.bf16.msra.mxu0 %v2177
        %2300 = vmatprep.subr.bf16.mxu0 %v2182
        %2301 = vmatpush1.bf16.msra.mxu0 %v2181
        %2302 = vmatprep.subr.bf16.mxu0 0
        %2303 = vmatpush1.bf16.msra.mxu0 0
        %2304 = vmatprep.subr.bf16.mxu0 0
        %2305 = vmatpush1.bf16.msra.mxu0 0
        %2306 = vmatprep.subr.bf16.mxu0 0
        %2307 = vmatpush1.bf16.msra.mxu0 0
        %2308 = vmatprep.subr.bf16.mxu0 0
        %2309 = vmatpush1.bf16.msra.mxu0 0
        %2310 = vmatprep.subr.bf16.mxu0 0
        %2311 = vmatpush1.bf16.msra.mxu0 0
        %2312 = vmatprep.subr.bf16.mxu0 0
        %2313 = vmatpush1.bf16.msra.mxu0 0
        %2314 = vmatprep.subr.bf16.mxu0 0
        %2315 = vmatpush1.bf16.msra.mxu0 0
        %2316 = vmatprep.subr.bf16.mxu0 0
        %2317 = vmatpush1.bf16.msra.mxu0 0
        %2318 = vmatprep.subr.bf16.mxu0 0
        %2319 = vmatpush1.bf16.msra.mxu0 0
        %2320 = vmatprep.subr.bf16.mxu0 0
        %2321 = vmatpush1.bf16.msra.mxu0 0
        %2322 = vmatprep.subr.bf16.mxu0 0
        %2323 = vmatpush1.bf16.msra.mxu0 0
        %2324 = vmatprep.subr.bf16.mxu0 0
        %2325 = vmatpush1.bf16.msra.mxu0 0
        %2326 = vmatprep.subr.bf16.mxu0 0
        %2327 = vmatpush1.bf16.msra.mxu0 0
        %2328 = vmatprep.subr.bf16.mxu0 0
        %2329 = vmatpush1.bf16.msra.mxu0 0
        %2330 = vmatprep.mubr.bf16.mxu0 0
        %2331 = vmatmul.mubr.bf16.gmra.mrb[0].mxu0 %v1494
        %v2332 = vpop.f32.mrb[0].mxu0
        %v2333 = vadd.f32 %v2292, %v2332
        %v2334 = vpop.f32.mrb[0].mxu0
        %v2335 = vadd.f32 %v2294, %v2334
        %v2336 = vpop.f32.mrb[0].mxu0
        %v2337 = vpop.f32.mrb[0].mxu0
        %2338 = vdwg.mxu0
        %2339 = vmatprep.subr.bf16.mxu0 %v2116
        %2340 = vmatpush1.bf16.msra.mxu0 %v2115
        %2341 = vmatprep.subr.bf16.mxu0 %v2120
        %2342 = vmatpush1.bf16.msra.mxu0 %v2119
        %2343 = vmatprep.subr.bf16.mxu0 %v2124
        %2344 = vmatpush1.bf16.msra.mxu0 %v2123
        %2345 = vmatprep.subr.bf16.mxu0 %v2128
        %2346 = vmatpush1.bf16.msra.mxu0 %v2127
        %2347 = vmatprep.subr.bf16.mxu0 %v2132
        %2348 = vmatpush1.bf16.msra.mxu0 %v2131
        %2349 = vmatprep.subr.bf16.mxu0 %v2136
        %2350 = vmatpush1.bf16.msra.mxu0 %v2135
        %2351 = vmatprep.subr.bf16.mxu0 %v2140
        %2352 = vmatpush1.bf16.msra.mxu0 %v2139
        %2353 = vmatprep.subr.bf16.mxu0 %v2144
        %2354 = vmatpush1.bf16.msra.mxu0 %v2143
        %2355 = vmatprep.subr.bf16.mxu0 %v2148
        %2356 = vmatpush1.bf16.msra.mxu0 %v2147
        %2357 = vmatprep.subr.bf16.mxu0 %v2152
        %2358 = vmatpush1.bf16.msra.mxu0 %v2151
        %2359 = vmatprep.subr.bf16.mxu0 %v2156
        %2360 = vmatpush1.bf16.msra.mxu0 %v2155
        %2361 = vmatprep.subr.bf16.mxu0 %v2160
        %2362 = vmatpush1.bf16.msra.mxu0 %v2159
        %2363 = vmatprep.subr.bf16.mxu0 %v2164
        %2364 = vmatpush1.bf16.msra.mxu0 %v2163
        %2365 = vmatprep.subr.bf16.mxu0 %v2168
        %2366 = vmatpush1.bf16.msra.mxu0 %v2167
        %2367 = vmatprep.subr.bf16.mxu0 %v2172
        %2368 = vmatpush1.bf16.msra.mxu0 %v2171
        %2369 = vmatprep.subr.bf16.mxu0 %v2176
        %2370 = vmatpush1.bf16.msra.mxu0 %v2175
        %2371 = vmatprep.mubr.bf16.mxu0 %v1484
        %2372 = vmatmul.mubr.bf16.gmra.mrb[0].mxu0 %v1477
        %v2373 = vpop.f32.mrb[0].mxu0
        %v2374 = vadd.f32 0.0, %v2373
        %v2375 = vpop.f32.mrb[0].mxu0
        %v2376 = vadd.f32 0.0, %v2375
        %v2377 = vpop.f32.mrb[0].mxu0
        %v2378 = vpop.f32.mrb[0].mxu0
        %2379 = vdwg.mxu0
        %2380 = vmatprep.subr.bf16.mxu0 %v2180
        %2381 = vmatpush1.bf16.msra.mxu0 %v2179
        %2382 = vmatprep.subr.bf16.mxu0 %v2184
        %2383 = vmatpush1.bf16.msra.mxu0 %v2183
        %2384 = vmatprep.subr.bf16.mxu0 0
        %2385 = vmatpush1.bf16.msra.mxu0 0
        %2386 = vmatprep.subr.bf16.mxu0 0
        %2387 = vmatpush1.bf16.msra.mxu0 0
        %2388 = vmatprep.subr.bf16.mxu0 0
        %2389 = vmatpush1.bf16.msra.mxu0 0
        %2390 = vmatprep.subr.bf16.mxu0 0
        %2391 = vmatpush1.bf16.msra.mxu0 0
        %2392 = vmatprep.subr.bf16.mxu0 0
        %2393 = vmatpush1.bf16.msra.mxu0 0
        %2394 = vmatprep.subr.bf16.mxu0 0
        %2395 = vmatpush1.bf16.msra.mxu0 0
        %2396 = vmatprep.subr.bf16.mxu0 0
        %2397 = vmatpush1.bf16.msra.mxu0 0
        %2398 = vmatprep.subr.bf16.mxu0 0
        %2399 = vmatpush1.bf16.msra.mxu0 0
        %2400 = vmatprep.subr.bf16.mxu0 0
        %2401 = vmatpush1.bf16.msra.mxu0 0
        %2402 = vmatprep.subr.bf16.mxu0 0
        %2403 = vmatpush1.bf16.msra.mxu0 0
        %2404 = vmatprep.subr.bf16.mxu0 0
        %2405 = vmatpush1.bf16.msra.mxu0 0
        %2406 = vmatprep.subr.bf16.mxu0 0
        %2407 = vmatpush1.bf16.msra.mxu0 0
        %2408 = vmatprep.subr.bf16.mxu0 0
        %2409 = vmatpush1.bf16.msra.mxu0 0
        %2410 = vmatprep.subr.bf16.mxu0 0
        %2411 = vmatpush1.bf16.msra.mxu0 0
        %2412 = vmatprep.mubr.bf16.mxu0 0
        %2413 = vmatmul.mubr.bf16.gmra.mrb[0].mxu0 %v1494
        %v2414 = vpop.f32.mrb[0].mxu0
        %v2415 = vadd.f32 %v2374, %v2414
        %v2416 = vpop.f32.mrb[0].mxu0
        %v2417 = vadd.f32 %v2376, %v2416
        %v2418 = vpop.f32.mrb[0].mxu0
        %v2419 = vpop.f32.mrb[0].mxu0
        %2420 = vdwg.mxu0
        %v2421 = vadd.f32 %v1383, %v2333
        %v2422 = vadd.f32 %v1385, %v2335
        %v2423 = vadd.f32 %v1465, %v2415
        %v2424 = vadd.f32 %v1467, %v2417
        %v2426 = vshrl.u32 %v401, 16
        %v2428 = vshll.u32 %v401, 16
        %v2430 = vrot.slane %v2428, 1
        %v2431 = vor.u32 %v2426, %v2430
        %v2433 = vshrl.u32 %v402, 16
        %v2435 = vshll.u32 %v402, 16
        %v2437 = vrot.slane %v2435, 1
        %v2438 = vor.u32 %v2433, %v2437
        %v2439 = vshrl.u32 %v403, 16
        %v2441 = vshll.u32 %v403, 16
        %v2443 = vrot.slane %v2441, 1
        %v2444 = vor.u32 %v2439, %v2443
        %v2448 = vsel %vm766, %v2444, 0
        %2450 = vmatprep.subr.bf16.mxu0 %v2114
        %2451 = vmatpush1.bf16.msra.mxu0 %v2113
        %2452 = vmatprep.subr.bf16.mxu0 %v2118
        %2453 = vmatpush1.bf16.msra.mxu0 %v2117
        %2454 = vmatprep.subr.bf16.mxu0 %v2122
        %2455 = vmatpush1.bf16.msra.mxu0 %v2121
        %2456 = vmatprep.subr.bf16.mxu0 %v2126
        %2457 = vmatpush1.bf16.msra.mxu0 %v2125
        %2458 = vmatprep.subr.bf16.mxu0 %v2130
        %2459 = vmatpush1.bf16.msra.mxu0 %v2129
        %2460 = vmatprep.subr.bf16.mxu0 %v2134
        %2461 = vmatpush1.bf16.msra.mxu0 %v2133
        %2462 = vmatprep.subr.bf16.mxu0 %v2138
        %2463 = vmatpush1.bf16.msra.mxu0 %v2137
        %2464 = vmatprep.subr.bf16.mxu0 %v2142
        %2465 = vmatpush1.bf16.msra.mxu0 %v2141
        %2466 = vmatprep.subr.bf16.mxu0 %v2146
        %2467 = vmatpush1.bf16.msra.mxu0 %v2145
        %2468 = vmatprep.subr.bf16.mxu0 %v2150
        %2469 = vmatpush1.bf16.msra.mxu0 %v2149
        %2470 = vmatprep.subr.bf16.mxu0 %v2154
        %2471 = vmatpush1.bf16.msra.mxu0 %v2153
        %2472 = vmatprep.subr.bf16.mxu0 %v2158
        %2473 = vmatpush1.bf16.msra.mxu0 %v2157
        %2474 = vmatprep.subr.bf16.mxu0 %v2162
        %2475 = vmatpush1.bf16.msra.mxu0 %v2161
        %2476 = vmatprep.subr.bf16.mxu0 %v2166
        %2477 = vmatpush1.bf16.msra.mxu0 %v2165
        %2478 = vmatprep.subr.bf16.mxu0 %v2170
        %2479 = vmatpush1.bf16.msra.mxu0 %v2169
        %2480 = vmatprep.subr.bf16.mxu0 %v2174
        %2481 = vmatpush1.bf16.msra.mxu0 %v2173
        %2482 = vmatprep.mubr.bf16.mxu0 %v2438
        %2483 = vmatmul.mubr.bf16.gmra.mrb[0].mxu0 %v2431
        %v2484 = vpop.f32.mrb[0].mxu0
        %v2485 = vadd.f32 0.0, %v2484
        %v2486 = vpop.f32.mrb[0].mxu0
        %v2487 = vadd.f32 0.0, %v2486
        %v2488 = vpop.f32.mrb[0].mxu0
        %v2489 = vpop.f32.mrb[0].mxu0
        %2490 = vdwg.mxu0
        %2491 = vmatprep.subr.bf16.mxu0 %v2178
        %2492 = vmatpush1.bf16.msra.mxu0 %v2177
        %2493 = vmatprep.subr.bf16.mxu0 %v2182
        %2494 = vmatpush1.bf16.msra.mxu0 %v2181
        %2495 = vmatprep.subr.bf16.mxu0 0
        %2496 = vmatpush1.bf16.msra.mxu0 0
        %2497 = vmatprep.subr.bf16.mxu0 0
        %2498 = vmatpush1.bf16.msra.mxu0 0
        %2499 = vmatprep.subr.bf16.mxu0 0
        %2500 = vmatpush1.bf16.msra.mxu0 0
        %2501 = vmatprep.subr.bf16.mxu0 0
        %2502 = vmatpush1.bf16.msra.mxu0 0
        %2503 = vmatprep.subr.bf16.mxu0 0
        %2504 = vmatpush1.bf16.msra.mxu0 0
        %2505 = vmatprep.subr.bf16.mxu0 0
        %2506 = vmatpush1.bf16.msra.mxu0 0
        %2507 = vmatprep.subr.bf16.mxu0 0
        %2508 = vmatpush1.bf16.msra.mxu0 0
        %2509 = vmatprep.subr.bf16.mxu0 0
        %2510 = vmatpush1.bf16.msra.mxu0 0
        %2511 = vmatprep.subr.bf16.mxu0 0
        %2512 = vmatpush1.bf16.msra.mxu0 0
        %2513 = vmatprep.subr.bf16.mxu0 0
        %2514 = vmatpush1.bf16.msra.mxu0 0
        %2515 = vmatprep.subr.bf16.mxu0 0
        %2516 = vmatpush1.bf16.msra.mxu0 0
        %2517 = vmatprep.subr.bf16.mxu0 0
        %2518 = vmatpush1.bf16.msra.mxu0 0
        %2519 = vmatprep.subr.bf16.mxu0 0
        %2520 = vmatpush1.bf16.msra.mxu0 0
        %2521 = vmatprep.subr.bf16.mxu0 0
        %2522 = vmatpush1.bf16.msra.mxu0 0
        %2523 = vmatprep.mubr.bf16.mxu0 0
        %2524 = vmatmul.mubr.bf16.gmra.mrb[0].mxu0 %v2448
        %v2525 = vpop.f32.mrb[0].mxu0
        %v2526 = vadd.f32 %v2485, %v2525
        %v2527 = vpop.f32.mrb[0].mxu0
        %v2528 = vadd.f32 %v2487, %v2527
        %v2529 = vpop.f32.mrb[0].mxu0
        %v2530 = vpop.f32.mrb[0].mxu0
        %2531 = vdwg.mxu0
        %2532 = vmatprep.subr.bf16.mxu0 %v2116
        %2533 = vmatpush1.bf16.msra.mxu0 %v2115
        %2534 = vmatprep.subr.bf16.mxu0 %v2120
        %2535 = vmatpush1.bf16.msra.mxu0 %v2119
        %2536 = vmatprep.subr.bf16.mxu0 %v2124
        %2537 = vmatpush1.bf16.msra.mxu0 %v2123
        %2538 = vmatprep.subr.bf16.mxu0 %v2128
        %2539 = vmatpush1.bf16.msra.mxu0 %v2127
        %2540 = vmatprep.subr.bf16.mxu0 %v2132
        %2541 = vmatpush1.bf16.msra.mxu0 %v2131
        %2542 = vmatprep.subr.bf16.mxu0 %v2136
        %2543 = vmatpush1.bf16.msra.mxu0 %v2135
        %2544 = vmatprep.subr.bf16.mxu0 %v2140
        %2545 = vmatpush1.bf16.msra.mxu0 %v2139
        %2546 = vmatprep.subr.bf16.mxu0 %v2144
        %2547 = vmatpush1.bf16.msra.mxu0 %v2143
        %2548 = vmatprep.subr.bf16.mxu0 %v2148
        %2549 = vmatpush1.bf16.msra.mxu0 %v2147
        %2550 = vmatprep.subr.bf16.mxu0 %v2152
        %2551 = vmatpush1.bf16.msra.mxu0 %v2151
        %2552 = vmatprep.subr.bf16.mxu0 %v2156
        %2553 = vmatpush1.bf16.msra.mxu0 %v2155
        %2554 = vmatprep.subr.bf16.mxu0 %v2160
        %2555 = vmatpush1.bf16.msra.mxu0 %v2159
        %2556 = vmatprep.subr.bf16.mxu0 %v2164
        %2557 = vmatpush1.bf16.msra.mxu0 %v2163
        %2558 = vmatprep.subr.bf16.mxu0 %v2168
        %2559 = vmatpush1.bf16.msra.mxu0 %v2167
        %2560 = vmatprep.subr.bf16.mxu0 %v2172
        %2561 = vmatpush1.bf16.msra.mxu0 %v2171
        %2562 = vmatprep.subr.bf16.mxu0 %v2176
        %2563 = vmatpush1.bf16.msra.mxu0 %v2175
        %2564 = vmatprep.mubr.bf16.mxu0 %v2438
        %2565 = vmatmul.mubr.bf16.gmra.mrb[0].mxu0 %v2431
        %v2566 = vpop.f32.mrb[0].mxu0
        %v2567 = vadd.f32 0.0, %v2566
        %v2568 = vpop.f32.mrb[0].mxu0
        %v2569 = vadd.f32 0.0, %v2568
        %v2570 = vpop.f32.mrb[0].mxu0
        %v2571 = vpop.f32.mrb[0].mxu0
        %2572 = vdwg.mxu0
        %2573 = vmatprep.subr.bf16.mxu0 %v2180
        %2574 = vmatpush1.bf16.msra.mxu0 %v2179
        %2575 = vmatprep.subr.bf16.mxu0 %v2184
        %2576 = vmatpush1.bf16.msra.mxu0 %v2183
        %2577 = vmatprep.subr.bf16.mxu0 0
        %2578 = vmatpush1.bf16.msra.mxu0 0
        %2579 = vmatprep.subr.bf16.mxu0 0
        %2580 = vmatpush1.bf16.msra.mxu0 0
        %2581 = vmatprep.subr.bf16.mxu0 0
        %2582 = vmatpush1.bf16.msra.mxu0 0
        %2583 = vmatprep.subr.bf16.mxu0 0
        %2584 = vmatpush1.bf16.msra.mxu0 0
        %2585 = vmatprep.subr.bf16.mxu0 0
        %2586 = vmatpush1.bf16.msra.mxu0 0
        %2587 = vmatprep.subr.bf16.mxu0 0
        %2588 = vmatpush1.bf16.msra.mxu0 0
        %2589 = vmatprep.subr.bf16.mxu0 0
        %2590 = vmatpush1.bf16.msra.mxu0 0
        %2591 = vmatprep.subr.bf16.mxu0 0
        %2592 = vmatpush1.bf16.msra.mxu0 0
        %2593 = vmatprep.subr.bf16.mxu0 0
        %2594 = vmatpush1.bf16.msra.mxu0 0
        %2595 = vmatprep.subr.bf16.mxu0 0
        %2596 = vmatpush1.bf16.msra.mxu0 0
        %2597 = vmatprep.subr.bf16.mxu0 0
        %2598 = vmatpush1.bf16.msra.mxu0 0
        %2599 = vmatprep.subr.bf16.mxu0 0
        %2600 = vmatpush1.bf16.msra.mxu0 0
        %2601 = vmatprep.subr.bf16.mxu0 0
        %2602 = vmatpush1.bf16.msra.mxu0 0
        %2603 = vmatprep.subr.bf16.mxu0 0
        %2604 = vmatpush1.bf16.msra.mxu0 0
        %2605 = vmatprep.mubr.bf16.mxu0 0
        %2606 = vmatmul.mubr.bf16.gmra.mrb[0].mxu0 %v2448
        %v2607 = vpop.f32.mrb[0].mxu0
        %v2608 = vadd.f32 %v2567, %v2607
        %v2609 = vpop.f32.mrb[0].mxu0
        %v2610 = vadd.f32 %v2569, %v2609
        %v2611 = vpop.f32.mrb[0].mxu0
        %v2612 = vpop.f32.mrb[0].mxu0
        %2613 = vdwg.mxu0
        %v2614 = vadd.f32 %v1736, %v2526
        %v2615 = vadd.f32 %v1738, %v2528
        %v2616 = vadd.f32 %v1818, %v2608
        %v2617 = vadd.f32 %v1820, %v2610
        %s2618 = scalar_lea.vmem [#allocation2], 1728
        %v2619 = vld [vmem:[%s2618] sm:$0xff]
        %v2620 = vld [vmem:[%s2618 + $0x8] sm:$0xff]
        %v2621 = vld [vmem:[%s2618 + $0x10] sm:$0xff]
        %v2622 = vld [vmem:[%s2618 + $0x18] sm:$0xff]
        %v2623 = vld [vmem:[%s2618 + $0x20] sm:$0xff]
        %v2624 = vld [vmem:[%s2618 + $0x28] sm:$0xff]
        %v2625 = vld [vmem:[%s2618 + $0x30] sm:$0xff]
        %v2626 = vld [vmem:[%s2618 + $0x38] sm:$0xff]
        %v2627 = vld [vmem:[%s2618 + $0x40] sm:$0xff]
        %v2628 = vld [vmem:[%s2618 + $0x48] sm:$0xff]
        %v2629 = vld [vmem:[%s2618 + $0x50] sm:$0xff]
        %v2630 = vld [vmem:[%s2618 + $0x58] sm:$0xff]
        %v2631 = vld [vmem:[%s2618 + $0x60] sm:$0xff]
        %v2632 = vld [vmem:[%s2618 + $0x68] sm:$0xff]
        %v2633 = vld [vmem:[%s2618 + $0x70] sm:$0xff]
        %v2634 = vld [vmem:[%s2618 + $0x78] sm:$0xff]
        %v2635 = vld [vmem:[%s2618 + $0x80] sm:$0xff]
        %v2636 = vld [vmem:[%s2618 + $0x88] sm:$0xff]
        %v2637 = vld [vmem:[%s2618 + $0x90] sm:$0xff]
        %v2638 = vld [vmem:[%s2618 + $0x98] sm:$0xff]
        %v2639 = vld [vmem:[%s2618 + $0xa0] sm:$0xff]
        %v2640 = vld [vmem:[%s2618 + $0xa8] sm:$0xff]
        %v2641 = vld [vmem:[%s2618 + $0xb0] sm:$0xff]
        %v2642 = vld [vmem:[%s2618 + $0xb8] sm:$0xff]
        %v2643 = vld [vmem:[%s2618 + $0xc0] sm:$0xff]
        %v2644 = vld [vmem:[%s2618 + $0xc8] sm:$0xff]
        %v2645 = vld [vmem:[%s2618 + $0xd0] sm:$0xff]
        %v2646 = vld [vmem:[%s2618 + $0xd8] sm:$0xff]
        %v2647 = vld [vmem:[%s2618 + $0xe0] sm:$0xff]
        %v2648 = vld [vmem:[%s2618 + $0xe8] sm:$0xff]
        %v2649 = vld [vmem:[%s2618 + $0xf0] sm:$0xff]
        %v2650 = vld [vmem:[%s2618 + $0xf8] sm:$0xff]
        %v2651 = vld [vmem:[%s2618 + $0x100] sm:$0xff]
        %v2652 = vld [vmem:[%s2618 + $0x108] sm:$0xff]
        %v2653 = vld [vmem:[%s2618 + $0x110] sm:$0xff]
        %v2654 = vld [vmem:[%s2618 + $0x118] sm:$0xff]
        %v2655 = vld [vmem:[%s2618 + $0x120] sm:$0xff]
        %v2656 = vld [vmem:[%s2618 + $0x128] sm:$0xff]
        %v2657 = vld [vmem:[%s2618 + $0x130] sm:$0xff]
        %v2658 = vld [vmem:[%s2618 + $0x138] sm:$0xff]
        %v2659 = vld [vmem:[%s2618 + $0x140] sm:$0xff]
        %v2660 = vld [vmem:[%s2618 + $0x148] sm:$0xff]
        %v2661 = vld [vmem:[%s2618 + $0x150] sm:$0xff]
        %v2662 = vld [vmem:[%s2618 + $0x158] sm:$0xff]
        %v2663 = vld [vmem:[%s2618 + $0x160] sm:$0xff]
        %v2664 = vld [vmem:[%s2618 + $0x168] sm:$0xff]
        %v2665 = vld [vmem:[%s2618 + $0x170] sm:$0xff]
        %v2666 = vld [vmem:[%s2618 + $0x178] sm:$0xff]
        %v2667 = vld [vmem:[%s2618 + $0x180] sm:$0xff]
        %v2668 = vld [vmem:[%s2618 + $0x188] sm:$0xff]
        %v2669 = vld [vmem:[%s2618 + $0x190] sm:$0xff]
        %v2670 = vld [vmem:[%s2618 + $0x198] sm:$0xff]
        %v2671 = vld [vmem:[%s2618 + $0x1a0] sm:$0xff]
        %v2672 = vld [vmem:[%s2618 + $0x1a8] sm:$0xff]
        %v2673 = vld [vmem:[%s2618 + $0x1b0] sm:$0xff]
        %v2674 = vld [vmem:[%s2618 + $0x1b8] sm:$0xff]
        %v2675 = vld [vmem:[%s2618 + $0x1c0] sm:$0xff]
        %v2676 = vld [vmem:[%s2618 + $0x1c8] sm:$0xff]
        %v2677 = vld [vmem:[%s2618 + $0x1d0] sm:$0xff]
        %v2678 = vld [vmem:[%s2618 + $0x1d8] sm:$0xff]
        %v2679 = vld [vmem:[%s2618 + $0x1e0] sm:$0xff]
        %v2680 = vld [vmem:[%s2618 + $0x1e8] sm:$0xff]
        %v2681 = vld [vmem:[%s2618 + $0x1f0] sm:$0xff]
        %v2682 = vld [vmem:[%s2618 + $0x1f8] sm:$0xff]
        %v2683 = vld [vmem:[%s2618 + $0x200] sm:$0xff]
        %v2684 = vld [vmem:[%s2618 + $0x208] sm:$0xff]
        %v2685 = vld [vmem:[%s2618 + $0x210] sm:$0xff]
        %v2686 = vld [vmem:[%s2618 + $0x218] sm:$0xff]
        %v2687 = vld [vmem:[%s2618 + $0x220] sm:$0xff]
        %v2688 = vld [vmem:[%s2618 + $0x228] sm:$0xff]
        %v2689 = vld [vmem:[%s2618 + $0x230] sm:$0xff]
        %v2690 = vld [vmem:[%s2618 + $0x238] sm:$0xff]
        %v2763 = vunpack.c.l.b16 %v2619
        %v2764 = vunpack.c.h.b16 %v2619
        %v2765 = vunpack.c.l.b16 %v2620
        %v2766 = vunpack.c.h.b16 %v2620
        %v2767 = vunpack.c.l.b16 %v2621
        %v2768 = vunpack.c.h.b16 %v2621
        %v2769 = vunpack.c.l.b16 %v2622
        %v2770 = vunpack.c.h.b16 %v2622
        %v2771 = vunpack.c.l.b16 %v2623
        %v2772 = vunpack.c.h.b16 %v2623
        %v2773 = vunpack.c.l.b16 %v2624
        %v2774 = vunpack.c.h.b16 %v2624
        %v2775 = vunpack.c.l.b16 %v2625
        %v2776 = vunpack.c.h.b16 %v2625
        %v2777 = vunpack.c.l.b16 %v2626
        %v2778 = vunpack.c.h.b16 %v2626
        %v2779 = vunpack.c.l.b16 %v2627
        %v2780 = vunpack.c.h.b16 %v2627
        %v2781 = vunpack.c.l.b16 %v2628
        %v2782 = vunpack.c.h.b16 %v2628
        %v2783 = vunpack.c.l.b16 %v2629
        %v2784 = vunpack.c.h.b16 %v2629
        %v2785 = vunpack.c.l.b16 %v2630
        %v2786 = vunpack.c.h.b16 %v2630
        %v2787 = vunpack.c.l.b16 %v2631
        %v2788 = vunpack.c.h.b16 %v2631
        %v2789 = vunpack.c.l.b16 %v2632
        %v2790 = vunpack.c.h.b16 %v2632
        %v2791 = vunpack.c.l.b16 %v2633
        %v2792 = vunpack.c.h.b16 %v2633
        %v2793 = vunpack.c.l.b16 %v2634
        %v2794 = vunpack.c.h.b16 %v2634
        %v2795 = vunpack.c.l.b16 %v2635
        %v2796 = vunpack.c.h.b16 %v2635
        %v2797 = vunpack.c.l.b16 %v2636
        %v2798 = vunpack.c.h.b16 %v2636
        %v2799 = vunpack.c.l.b16 %v2637
        %v2800 = vunpack.c.h.b16 %v2637
        %v2801 = vunpack.c.l.b16 %v2638
        %v2802 = vunpack.c.h.b16 %v2638
        %v2803 = vunpack.c.l.b16 %v2639
        %v2804 = vunpack.c.h.b16 %v2639
        %v2805 = vunpack.c.l.b16 %v2640
        %v2806 = vunpack.c.h.b16 %v2640
        %v2807 = vunpack.c.l.b16 %v2641
        %v2808 = vunpack.c.h.b16 %v2641
        %v2809 = vunpack.c.l.b16 %v2642
        %v2810 = vunpack.c.h.b16 %v2642
        %v2811 = vunpack.c.l.b16 %v2643
        %v2812 = vunpack.c.h.b16 %v2643
        %v2813 = vunpack.c.l.b16 %v2644
        %v2814 = vunpack.c.h.b16 %v2644
        %v2815 = vunpack.c.l.b16 %v2645
        %v2816 = vunpack.c.h.b16 %v2645
        %v2817 = vunpack.c.l.b16 %v2646
        %v2818 = vunpack.c.h.b16 %v2646
        %v2819 = vunpack.c.l.b16 %v2647
        %v2820 = vunpack.c.h.b16 %v2647
        %v2821 = vunpack.c.l.b16 %v2648
        %v2822 = vunpack.c.h.b16 %v2648
        %v2823 = vunpack.c.l.b16 %v2649
        %v2824 = vunpack.c.h.b16 %v2649
        %v2825 = vunpack.c.l.b16 %v2650
        %v2826 = vunpack.c.h.b16 %v2650
        %v2827 = vunpack.c.l.b16 %v2651
        %v2828 = vunpack.c.h.b16 %v2651
        %v2829 = vunpack.c.l.b16 %v2652
        %v2830 = vunpack.c.h.b16 %v2652
        %v2831 = vunpack.c.l.b16 %v2653
        %v2832 = vunpack.c.h.b16 %v2653
        %v2833 = vunpack.c.l.b16 %v2654
        %v2834 = vunpack.c.h.b16 %v2654
        %v2835 = vunpack.c.l.b16 %v2655
        %v2836 = vunpack.c.h.b16 %v2655
        %v2837 = vunpack.c.l.b16 %v2656
        %v2838 = vunpack.c.h.b16 %v2656
        %v2839 = vunpack.c.l.b16 %v2657
        %v2840 = vunpack.c.h.b16 %v2657
        %v2841 = vunpack.c.l.b16 %v2658
        %v2842 = vunpack.c.h.b16 %v2658
        %v2843 = vunpack.c.l.b16 %v2659
        %v2844 = vunpack.c.h.b16 %v2659
        %v2845 = vunpack.c.l.b16 %v2660
        %v2846 = vunpack.c.h.b16 %v2660
        %v2847 = vunpack.c.l.b16 %v2661
        %v2848 = vunpack.c.h.b16 %v2661
        %v2849 = vunpack.c.l.b16 %v2662
        %v2850 = vunpack.c.h.b16 %v2662
        %v2851 = vunpack.c.l.b16 %v2663
        %v2852 = vunpack.c.h.b16 %v2663
        %v2853 = vunpack.c.l.b16 %v2664
        %v2854 = vunpack.c.h.b16 %v2664
        %v2855 = vunpack.c.l.b16 %v2665
        %v2856 = vunpack.c.h.b16 %v2665
        %v2857 = vunpack.c.l.b16 %v2666
        %v2858 = vunpack.c.h.b16 %v2666
        %v2859 = vunpack.c.l.b16 %v2667
        %v2860 = vunpack.c.h.b16 %v2667
        %v2861 = vunpack.c.l.b16 %v2668
        %v2862 = vunpack.c.h.b16 %v2668
        %v2863 = vunpack.c.l.b16 %v2669
        %v2864 = vunpack.c.h.b16 %v2669
        %v2865 = vunpack.c.l.b16 %v2670
        %v2866 = vunpack.c.h.b16 %v2670
        %v2867 = vunpack.c.l.b16 %v2671
        %v2868 = vunpack.c.h.b16 %v2671
        %v2869 = vunpack.c.l.b16 %v2672
        %v2870 = vunpack.c.h.b16 %v2672
        %v2871 = vunpack.c.l.b16 %v2673
        %v2872 = vunpack.c.h.b16 %v2673
        %v2873 = vunpack.c.l.b16 %v2674
        %v2874 = vunpack.c.h.b16 %v2674
        %v2875 = vunpack.c.l.b16 %v2675
        %v2876 = vunpack.c.h.b16 %v2675
        %v2877 = vunpack.c.l.b16 %v2676
        %v2878 = vunpack.c.h.b16 %v2676
        %v2879 = vunpack.c.l.b16 %v2677
        %v2880 = vunpack.c.h.b16 %v2677
        %v2881 = vunpack.c.l.b16 %v2678
        %v2882 = vunpack.c.h.b16 %v2678
        %v2883 = vunpack.c.l.b16 %v2679
        %v2884 = vunpack.c.h.b16 %v2679
        %v2885 = vunpack.c.l.b16 %v2680
        %v2886 = vunpack.c.h.b16 %v2680
        %v2887 = vunpack.c.l.b16 %v2681
        %v2888 = vunpack.c.h.b16 %v2681
        %v2889 = vunpack.c.l.b16 %v2682
        %v2890 = vunpack.c.h.b16 %v2682
        %v2891 = vunpack.c.l.b16 %v2683
        %v2892 = vunpack.c.h.b16 %v2683
        %v2893 = vunpack.c.l.b16 %v2684
        %v2894 = vunpack.c.h.b16 %v2684
        %v2895 = vunpack.c.l.b16 %v2685
        %v2896 = vunpack.c.h.b16 %v2685
        %v2897 = vunpack.c.l.b16 %v2686
        %v2898 = vunpack.c.h.b16 %v2686
        %v2899 = vunpack.c.l.b16 %v2687
        %v2900 = vunpack.c.h.b16 %v2687
        %v2901 = vunpack.c.l.b16 %v2688
        %v2902 = vunpack.c.h.b16 %v2688
        %v2903 = vunpack.c.l.b16 %v2689
        %v2904 = vunpack.c.h.b16 %v2689
        %v2905 = vunpack.c.l.b16 %v2690
        %v2906 = vunpack.c.h.b16 %v2690
        %v2907 = vpack.c.b16 %v2767, %v2763
        %v2908 = vpack.c.b16 %v2768, %v2764
        %v2909 = vpack.c.b16 %v2769, %v2765
        %v2910 = vpack.c.b16 %v2770, %v2766
        %v2911 = vpack.c.b16 %v2775, %v2771
        %v2912 = vpack.c.b16 %v2776, %v2772
        %v2913 = vpack.c.b16 %v2777, %v2773
        %v2914 = vpack.c.b16 %v2778, %v2774
        %v2915 = vpack.c.b16 %v2783, %v2779
        %v2916 = vpack.c.b16 %v2784, %v2780
        %v2917 = vpack.c.b16 %v2785, %v2781
        %v2918 = vpack.c.b16 %v2786, %v2782
        %v2919 = vpack.c.b16 %v2791, %v2787
        %v2920 = vpack.c.b16 %v2792, %v2788
        %v2921 = vpack.c.b16 %v2793, %v2789
        %v2922 = vpack.c.b16 %v2794, %v2790
        %v2923 = vpack.c.b16 %v2799, %v2795
        %v2924 = vpack.c.b16 %v2800, %v2796
        %v2925 = vpack.c.b16 %v2801, %v2797
        %v2926 = vpack.c.b16 %v2802, %v2798
        %v2927 = vpack.c.b16 %v2807, %v2803
        %v2928 = vpack.c.b16 %v2808, %v2804
        %v2929 = vpack.c.b16 %v2809, %v2805
        %v2930 = vpack.c.b16 %v2810, %v2806
        %v2931 = vpack.c.b16 %v2815, %v2811
        %v2932 = vpack.c.b16 %v2816, %v2812
        %v2933 = vpack.c.b16 %v2817, %v2813
        %v2934 = vpack.c.b16 %v2818, %v2814
        %v2935 = vpack.c.b16 %v2823, %v2819
        %v2936 = vpack.c.b16 %v2824, %v2820
        %v2937 = vpack.c.b16 %v2825, %v2821
        %v2938 = vpack.c.b16 %v2826, %v2822
        %v2939 = vpack.c.b16 %v2831, %v2827
        %v2940 = vpack.c.b16 %v2832, %v2828
        %v2941 = vpack.c.b16 %v2833, %v2829
        %v2942 = vpack.c.b16 %v2834, %v2830
        %v2943 = vpack.c.b16 %v2839, %v2835
        %v2944 = vpack.c.b16 %v2840, %v2836
        %v2945 = vpack.c.b16 %v2841, %v2837
        %v2946 = vpack.c.b16 %v2842, %v2838
        %v2947 = vpack.c.b16 %v2847, %v2843
        %v2948 = vpack.c.b16 %v2848, %v2844
        %v2949 = vpack.c.b16 %v2849, %v2845
        %v2950 = vpack.c.b16 %v2850, %v2846
        %v2951 = vpack.c.b16 %v2855, %v2851
        %v2952 = vpack.c.b16 %v2856, %v2852
        %v2953 = vpack.c.b16 %v2857, %v2853
        %v2954 = vpack.c.b16 %v2858, %v2854
        %v2955 = vpack.c.b16 %v2863, %v2859
        %v2956 = vpack.c.b16 %v2864, %v2860
        %v2957 = vpack.c.b16 %v2865, %v2861
        %v2958 = vpack.c.b16 %v2866, %v2862
        %v2959 = vpack.c.b16 %v2871, %v2867
        %v2960 = vpack.c.b16 %v2872, %v2868
        %v2961 = vpack.c.b16 %v2873, %v2869
        %v2962 = vpack.c.b16 %v2874, %v2870
        %v2963 = vpack.c.b16 %v2879, %v2875
        %v2964 = vpack.c.b16 %v2880, %v2876
        %v2965 = vpack.c.b16 %v2881, %v2877
        %v2966 = vpack.c.b16 %v2882, %v2878
        %v2967 = vpack.c.b16 %v2887, %v2883
        %v2968 = vpack.c.b16 %v2888, %v2884
        %v2969 = vpack.c.b16 %v2889, %v2885
        %v2970 = vpack.c.b16 %v2890, %v2886
        %v2971 = vpack.c.b16 %v2895, %v2891
        %v2972 = vpack.c.b16 %v2896, %v2892
        %v2973 = vpack.c.b16 %v2897, %v2893
        %v2974 = vpack.c.b16 %v2898, %v2894
        %v2975 = vpack.c.b16 %v2903, %v2899
        %v2976 = vpack.c.b16 %v2904, %v2900
        %v2977 = vpack.c.b16 %v2905, %v2901
        %v2978 = vpack.c.b16 %v2906, %v2902
        %3051 = vmatprep.subr.bf16.mxu0 %v2908
        %3052 = vmatpush1.bf16.msra.mxu0 %v2907
        %3053 = vmatprep.subr.bf16.mxu0 %v2912
        %3054 = vmatpush1.bf16.msra.mxu0 %v2911
        %3055 = vmatprep.subr.bf16.mxu0 %v2916
        %3056 = vmatpush1.bf16.msra.mxu0 %v2915
        %3057 = vmatprep.subr.bf16.mxu0 %v2920
        %3058 = vmatpush1.bf16.msra.mxu0 %v2919
        %3059 = vmatprep.subr.bf16.mxu0 %v2924
        %3060 = vmatpush1.bf16.msra.mxu0 %v2923
        %3061 = vmatprep.subr.bf16.mxu0 %v2928
        %3062 = vmatpush1.bf16.msra.mxu0 %v2927
        %3063 = vmatprep.subr.bf16.mxu0 %v2932
        %3064 = vmatpush1.bf16.msra.mxu0 %v2931
        %3065 = vmatprep.subr.bf16.mxu0 %v2936
        %3066 = vmatpush1.bf16.msra.mxu0 %v2935
        %3067 = vmatprep.subr.bf16.mxu0 %v2940
        %3068 = vmatpush1.bf16.msra.mxu0 %v2939
        %3069 = vmatprep.subr.bf16.mxu0 %v2944
        %3070 = vmatpush1.bf16.msra.mxu0 %v2943
        %3071 = vmatprep.subr.bf16.mxu0 %v2948
        %3072 = vmatpush1.bf16.msra.mxu0 %v2947
        %3073 = vmatprep.subr.bf16.mxu0 %v2952
        %3074 = vmatpush1.bf16.msra.mxu0 %v2951
        %3075 = vmatprep.subr.bf16.mxu0 %v2956
        %3076 = vmatpush1.bf16.msra.mxu0 %v2955
        %3077 = vmatprep.subr.bf16.mxu0 %v2960
        %3078 = vmatpush1.bf16.msra.mxu0 %v2959
        %3079 = vmatprep.subr.bf16.mxu0 %v2964
        %3080 = vmatpush1.bf16.msra.mxu0 %v2963
        %3081 = vmatprep.subr.bf16.mxu0 %v2968
        %3082 = vmatpush1.bf16.msra.mxu0 %v2967
        %3083 = vmatprep.mubr.bf16.mxu0 %v2438
        %3084 = vmatmul.mubr.bf16.gmra.mrb[0].mxu0 %v2431
        %v3085 = vpop.f32.mrb[0].mxu0
        %v3086 = vadd.f32 0.0, %v3085
        %v3087 = vpop.f32.mrb[0].mxu0
        %v3088 = vadd.f32 0.0, %v3087
        %v3089 = vpop.f32.mrb[0].mxu0
        %v3090 = vpop.f32.mrb[0].mxu0
        %3091 = vdwg.mxu0
        %3092 = vmatprep.subr.bf16.mxu0 %v2972
        %3093 = vmatpush1.bf16.msra.mxu0 %v2971
        %3094 = vmatprep.subr.bf16.mxu0 %v2976
        %3095 = vmatpush1.bf16.msra.mxu0 %v2975
        %3096 = vmatprep.subr.bf16.mxu0 0
        %3097 = vmatpush1.bf16.msra.mxu0 0
        %3098 = vmatprep.subr.bf16.mxu0 0
        %3099 = vmatpush1.bf16.msra.mxu0 0
        %3100 = vmatprep.subr.bf16.mxu0 0
        %3101 = vmatpush1.bf16.msra.mxu0 0
        %3102 = vmatprep.subr.bf16.mxu0 0
        %3103 = vmatpush1.bf16.msra.mxu0 0
        %3104 = vmatprep.subr.bf16.mxu0 0
        %3105 = vmatpush1.bf16.msra.mxu0 0
        %3106 = vmatprep.subr.bf16.mxu0 0
        %3107 = vmatpush1.bf16.msra.mxu0 0
        %3108 = vmatprep.subr.bf16.mxu0 0
        %3109 = vmatpush1.bf16.msra.mxu0 0
        %3110 = vmatprep.subr.bf16.mxu0 0
        %3111 = vmatpush1.bf16.msra.mxu0 0
        %3112 = vmatprep.subr.bf16.mxu0 0
        %3113 = vmatpush1.bf16.msra.mxu0 0
        %3114 = vmatprep.subr.bf16.mxu0 0
        %3115 = vmatpush1.bf16.msra.mxu0 0
        %3116 = vmatprep.subr.bf16.mxu0 0
        %3117 = vmatpush1.bf16.msra.mxu0 0
        %3118 = vmatprep.subr.bf16.mxu0 0
        %3119 = vmatpush1.bf16.msra.mxu0 0
        %3120 = vmatprep.subr.bf16.mxu0 0
        %3121 = vmatpush1.bf16.msra.mxu0 0
        %3122 = vmatprep.subr.bf16.mxu0 0
        %3123 = vmatpush1.bf16.msra.mxu0 0
        %3124 = vmatprep.mubr.bf16.mxu0 0
        %3125 = vmatmul.mubr.bf16.gmra.mrb[0].mxu0 %v2448
        %v3126 = vpop.f32.mrb[0].mxu0
        %v3127 = vadd.f32 %v3086, %v3126
        %v3128 = vpop.f32.mrb[0].mxu0
        %v3129 = vadd.f32 %v3088, %v3128
        %v3130 = vpop.f32.mrb[0].mxu0
        %v3131 = vpop.f32.mrb[0].mxu0
        %3132 = vdwg.mxu0
        %3133 = vmatprep.subr.bf16.mxu0 %v2910
        %3134 = vmatpush1.bf16.msra.mxu0 %v2909
        %3135 = vmatprep.subr.bf16.mxu0 %v2914
        %3136 = vmatpush1.bf16.msra.mxu0 %v2913
        %3137 = vmatprep.subr.bf16.mxu0 %v2918
        %3138 = vmatpush1.bf16.msra.mxu0 %v2917
        %3139 = vmatprep.subr.bf16.mxu0 %v2922
        %3140 = vmatpush1.bf16.msra.mxu0 %v2921
        %3141 = vmatprep.subr.bf16.mxu0 %v2926
        %3142 = vmatpush1.bf16.msra.mxu0 %v2925
        %3143 = vmatprep.subr.bf16.mxu0 %v2930
        %3144 = vmatpush1.bf16.msra.mxu0 %v2929
        %3145 = vmatprep.subr.bf16.mxu0 %v2934
        %3146 = vmatpush1.bf16.msra.mxu0 %v2933
        %3147 = vmatprep.subr.bf16.mxu0 %v2938
        %3148 = vmatpush1.bf16.msra.mxu0 %v2937
        %3149 = vmatprep.subr.bf16.mxu0 %v2942
        %3150 = vmatpush1.bf16.msra.mxu0 %v2941
        %3151 = vmatprep.subr.bf16.mxu0 %v2946
        %3152 = vmatpush1.bf16.msra.mxu0 %v2945
        %3153 = vmatprep.subr.bf16.mxu0 %v2950
        %3154 = vmatpush1.bf16.msra.mxu0 %v2949
        %3155 = vmatprep.subr.bf16.mxu0 %v2954
        %3156 = vmatpush1.bf16.msra.mxu0 %v2953
        %3157 = vmatprep.subr.bf16.mxu0 %v2958
        %3158 = vmatpush1.bf16.msra.mxu0 %v2957
        %3159 = vmatprep.subr.bf16.mxu0 %v2962
        %3160 = vmatpush1.bf16.msra.mxu0 %v2961
        %3161 = vmatprep.subr.bf16.mxu0 %v2966
        %3162 = vmatpush1.bf16.msra.mxu0 %v2965
        %3163 = vmatprep.subr.bf16.mxu0 %v2970
        %3164 = vmatpush1.bf16.msra.mxu0 %v2969
        %3165 = vmatprep.mubr.bf16.mxu0 %v2438
        %3166 = vmatmul.mubr.bf16.gmra.mrb[0].mxu0 %v2431
        %v3167 = vpop.f32.mrb[0].mxu0
        %v3168 = vadd.f32 0.0, %v3167
        %v3169 = vpop.f32.mrb[0].mxu0
        %v3170 = vadd.f32 0.0, %v3169
        %v3171 = vpop.f32.mrb[0].mxu0
        %v3172 = vpop.f32.mrb[0].mxu0
        %3173 = vdwg.mxu0
        %3174 = vmatprep.subr.bf16.mxu0 %v2974
        %3175 = vmatpush1.bf16.msra.mxu0 %v2973
        %3176 = vmatprep.subr.bf16.mxu0 %v2978
        %3177 = vmatpush1.bf16.msra.mxu0 %v2977
        %3178 = vmatprep.subr.bf16.mxu0 0
        %3179 = vmatpush1.bf16.msra.mxu0 0
        %3180 = vmatprep.subr.bf16.mxu0 0
        %3181 = vmatpush1.bf16.msra.mxu0 0
        %3182 = vmatprep.subr.bf16.mxu0 0
        %3183 = vmatpush1.bf16.msra.mxu0 0
        %3184 = vmatprep.subr.bf16.mxu0 0
        %3185 = vmatpush1.bf16.msra.mxu0 0
        %3186 = vmatprep.subr.bf16.mxu0 0
        %3187 = vmatpush1.bf16.msra.mxu0 0
        %3188 = vmatprep.subr.bf16.mxu0 0
        %3189 = vmatpush1.bf16.msra.mxu0 0
        %3190 = vmatprep.subr.bf16.mxu0 0
        %3191 = vmatpush1.bf16.msra.mxu0 0
        %3192 = vmatprep.subr.bf16.mxu0 0
        %3193 = vmatpush1.bf16.msra.mxu0 0
        %3194 = vmatprep.subr.bf16.mxu0 0
        %3195 = vmatpush1.bf16.msra.mxu0 0
        %3196 = vmatprep.subr.bf16.mxu0 0
        %3197 = vmatpush1.bf16.msra.mxu0 0
        %3198 = vmatprep.subr.bf16.mxu0 0
        %3199 = vmatpush1.bf16.msra.mxu0 0
        %3200 = vmatprep.subr.bf16.mxu0 0
        %3201 = vmatpush1.bf16.msra.mxu0 0
        %3202 = vmatprep.subr.bf16.mxu0 0
        %3203 = vmatpush1.bf16.msra.mxu0 0
        %3204 = vmatprep.subr.bf16.mxu0 0
        %3205 = vmatpush1.bf16.msra.mxu0 0
        %3206 = vmatprep.mubr.bf16.mxu0 0
        %3207 = vmatmul.mubr.bf16.gmra.mrb[0].mxu0 %v2448
        %v3208 = vpop.f32.mrb[0].mxu0
        %v3209 = vadd.f32 %v3168, %v3208
        %v3210 = vpop.f32.mrb[0].mxu0
        %v3211 = vadd.f32 %v3170, %v3210
        %v3212 = vpop.f32.mrb[0].mxu0
        %v3213 = vpop.f32.mrb[0].mxu0
        %3214 = vdwg.mxu0
        %v3215 = vadd.f32 %v2421, %v3127
        %v3216 = vadd.f32 %v2422, %v3129
        %v3217 = vadd.f32 %v2423, %v3209
        %v3218 = vadd.f32 %v2424, %v3211
        %v3219 = vld [vmem:[%s235] sm:$0xee]
        %v3220 = vld [vmem:[%s235 + $0x8] sm:$0xe]
        %v3221 = vld [vmem:[%s235 + $0xc] sm:$0x11]
        %v3222 = vld [vmem:[%s235 + $0x14] sm:$0x1]
        %v3227 = vunpack.c.l.b16 %v3219
        %v3228 = vunpack.c.h.b16 %v3219
        %v3229 = vunpack.c.l.b16 %v3220
        %v3230 = vunpack.c.l.b16 %v3221
        %v3231 = vunpack.c.h.b16 %v3221
        %v3232 = vunpack.c.l.b16 %v3222
        %v3233 = vpack.c.b16 %v3230, %v3227
        %v3234 = vpack.c.b16 %v3231, %v3228
        %v3235 = vpack.c.b16 %v3232, %v3229
        %v3236 = vrot.slane %v3233, 1
        %v3237 = vrot.slane %v3234, 1
        %v3238 = vrot.slane %v3235, 1
        %v3242 = vsel %vm766, %v3238, 0
        %3244 = vmatprep.subr.bf16.mxu0 %v2908
        %3245 = vmatpush1.bf16.msra.mxu0 %v2907
        %3246 = vmatprep.subr.bf16.mxu0 %v2912
        %3247 = vmatpush1.bf16.msra.mxu0 %v2911
        %3248 = vmatprep.subr.bf16.mxu0 %v2916
        %3249 = vmatpush1.bf16.msra.mxu0 %v2915
        %3250 = vmatprep.subr.bf16.mxu0 %v2920
        %3251 = vmatpush1.bf16.msra.mxu0 %v2919
        %3252 = vmatprep.subr.bf16.mxu0 %v2924
        %3253 = vmatpush1.bf16.msra.mxu0 %v2923
        %3254 = vmatprep.subr.bf16.mxu0 %v2928
        %3255 = vmatpush1.bf16.msra.mxu0 %v2927
        %3256 = vmatprep.subr.bf16.mxu0 %v2932
        %3257 = vmatpush1.bf16.msra.mxu0 %v2931
        %3258 = vmatprep.subr.bf16.mxu0 %v2936
        %3259 = vmatpush1.bf16.msra.mxu0 %v2935
        %3260 = vmatprep.subr.bf16.mxu0 %v2940
        %3261 = vmatpush1.bf16.msra.mxu0 %v2939
        %3262 = vmatprep.subr.bf16.mxu0 %v2944
        %3263 = vmatpush1.bf16.msra.mxu0 %v2943
        %3264 = vmatprep.subr.bf16.mxu0 %v2948
        %3265 = vmatpush1.bf16.msra.mxu0 %v2947
        %3266 = vmatprep.subr.bf16.mxu0 %v2952
        %3267 = vmatpush1.bf16.msra.mxu0 %v2951
        %3268 = vmatprep.subr.bf16.mxu0 %v2956
        %3269 = vmatpush1.bf16.msra.mxu0 %v2955
        %3270 = vmatprep.subr.bf16.mxu0 %v2960
        %3271 = vmatpush1.bf16.msra.mxu0 %v2959
        %3272 = vmatprep.subr.bf16.mxu0 %v2964
        %3273 = vmatpush1.bf16.msra.mxu0 %v2963
        %3274 = vmatprep.subr.bf16.mxu0 %v2968
        %3275 = vmatpush1.bf16.msra.mxu0 %v2967
        %3276 = vmatprep.mubr.bf16.mxu0 %v3237
        %3277 = vmatmul.mubr.bf16.gmra.mrb[0].mxu0 %v3236
        %v3278 = vpop.f32.mrb[0].mxu0
        %v3279 = vadd.f32 0.0, %v3278
        %v3280 = vpop.f32.mrb[0].mxu0
        %v3281 = vadd.f32 0.0, %v3280
        %v3282 = vpop.f32.mrb[0].mxu0
        %v3283 = vpop.f32.mrb[0].mxu0
        %3284 = vdwg.mxu0
        %3285 = vmatprep.subr.bf16.mxu0 %v2972
        %3286 = vmatpush1.bf16.msra.mxu0 %v2971
        %3287 = vmatprep.subr.bf16.mxu0 %v2976
        %3288 = vmatpush1.bf16.msra.mxu0 %v2975
        %3289 = vmatprep.subr.bf16.mxu0 0
        %3290 = vmatpush1.bf16.msra.mxu0 0
        %3291 = vmatprep.subr.bf16.mxu0 0
        %3292 = vmatpush1.bf16.msra.mxu0 0
        %3293 = vmatprep.subr.bf16.mxu0 0
        %3294 = vmatpush1.bf16.msra.mxu0 0
        %3295 = vmatprep.subr.bf16.mxu0 0
        %3296 = vmatpush1.bf16.msra.mxu0 0
        %3297 = vmatprep.subr.bf16.mxu0 0
        %3298 = vmatpush1.bf16.msra.mxu0 0
        %3299 = vmatprep.subr.bf16.mxu0 0
        %3300 = vmatpush1.bf16.msra.mxu0 0
        %3301 = vmatprep.subr.bf16.mxu0 0
        %3302 = vmatpush1.bf16.msra.mxu0 0
        %3303 = vmatprep.subr.bf16.mxu0 0
        %3304 = vmatpush1.bf16.msra.mxu0 0
        %3305 = vmatprep.subr.bf16.mxu0 0
        %3306 = vmatpush1.bf16.msra.mxu0 0
        %3307 = vmatprep.subr.bf16.mxu0 0
        %3308 = vmatpush1.bf16.msra.mxu0 0
        %3309 = vmatprep.subr.bf16.mxu0 0
        %3310 = vmatpush1.bf16.msra.mxu0 0
        %3311 = vmatprep.subr.bf16.mxu0 0
        %3312 = vmatpush1.bf16.msra.mxu0 0
        %3313 = vmatprep.subr.bf16.mxu0 0
        %3314 = vmatpush1.bf16.msra.mxu0 0
        %3315 = vmatprep.subr.bf16.mxu0 0
        %3316 = vmatpush1.bf16.msra.mxu0 0
        %3317 = vmatprep.mubr.bf16.mxu0 0
        %3318 = vmatmul.mubr.bf16.gmra.mrb[0].mxu0 %v3242
        %v3319 = vpop.f32.mrb[0].mxu0
        %v3320 = vadd.f32 %v3279, %v3319
        %v3321 = vpop.f32.mrb[0].mxu0
        %v3322 = vadd.f32 %v3281, %v3321
        %v3323 = vpop.f32.mrb[0].mxu0
        %v3324 = vpop.f32.mrb[0].mxu0
        %3325 = vdwg.mxu0
        %3326 = vmatprep.subr.bf16.mxu0 %v2910
        %3327 = vmatpush1.bf16.msra.mxu0 %v2909
        %3328 = vmatprep.subr.bf16.mxu0 %v2914
        %3329 = vmatpush1.bf16.msra.mxu0 %v2913
        %3330 = vmatprep.subr.bf16.mxu0 %v2918
        %3331 = vmatpush1.bf16.msra.mxu0 %v2917
        %3332 = vmatprep.subr.bf16.mxu0 %v2922
        %3333 = vmatpush1.bf16.msra.mxu0 %v2921
        %3334 = vmatprep.subr.bf16.mxu0 %v2926
        %3335 = vmatpush1.bf16.msra.mxu0 %v2925
        %3336 = vmatprep.subr.bf16.mxu0 %v2930
        %3337 = vmatpush1.bf16.msra.mxu0 %v2929
        %3338 = vmatprep.subr.bf16.mxu0 %v2934
        %3339 = vmatpush1.bf16.msra.mxu0 %v2933
        %3340 = vmatprep.subr.bf16.mxu0 %v2938
        %3341 = vmatpush1.bf16.msra.mxu0 %v2937
        %3342 = vmatprep.subr.bf16.mxu0 %v2942
        %3343 = vmatpush1.bf16.msra.mxu0 %v2941
        %3344 = vmatprep.subr.bf16.mxu0 %v2946
        %3345 = vmatpush1.bf16.msra.mxu0 %v2945
        %3346 = vmatprep.subr.bf16.mxu0 %v2950
        %3347 = vmatpush1.bf16.msra.mxu0 %v2949
        %3348 = vmatprep.subr.bf16.mxu0 %v2954
        %3349 = vmatpush1.bf16.msra.mxu0 %v2953
        %3350 = vmatprep.subr.bf16.mxu0 %v2958
        %3351 = vmatpush1.bf16.msra.mxu0 %v2957
        %3352 = vmatprep.subr.bf16.mxu0 %v2962
        %3353 = vmatpush1.bf16.msra.mxu0 %v2961
        %3354 = vmatprep.subr.bf16.mxu0 %v2966
        %3355 = vmatpush1.bf16.msra.mxu0 %v2965
        %3356 = vmatprep.subr.bf16.mxu0 %v2970
        %3357 = vmatpush1.bf16.msra.mxu0 %v2969
        %3358 = vmatprep.mubr.bf16.mxu0 %v3237
        %3359 = vmatmul.mubr.bf16.gmra.mrb[0].mxu0 %v3236
        %v3360 = vpop.f32.mrb[0].mxu0
        %v3361 = vadd.f32 0.0, %v3360
        %v3362 = vpop.f32.mrb[0].mxu0
        %v3363 = vadd.f32 0.0, %v3362
        %v3364 = vpop.f32.mrb[0].mxu0
        %v3365 = vpop.f32.mrb[0].mxu0
        %3366 = vdwg.mxu0
        %3367 = vmatprep.subr.bf16.mxu0 %v2974
        %3368 = vmatpush1.bf16.msra.mxu0 %v2973
        %3369 = vmatprep.subr.bf16.mxu0 %v2978
        %3370 = vmatpush1.bf16.msra.mxu0 %v2977
        %3371 = vmatprep.subr.bf16.mxu0 0
        %3372 = vmatpush1.bf16.msra.mxu0 0
        %3373 = vmatprep.subr.bf16.mxu0 0
        %3374 = vmatpush1.bf16.msra.mxu0 0
        %3375 = vmatprep.subr.bf16.mxu0 0
        %3376 = vmatpush1.bf16.msra.mxu0 0
        %3377 = vmatprep.subr.bf16.mxu0 0
        %3378 = vmatpush1.bf16.msra.mxu0 0
        %3379 = vmatprep.subr.bf16.mxu0 0
        %3380 = vmatpush1.bf16.msra.mxu0 0
        %3381 = vmatprep.subr.bf16.mxu0 0
        %3382 = vmatpush1.bf16.msra.mxu0 0
        %3383 = vmatprep.subr.bf16.mxu0 0
        %3384 = vmatpush1.bf16.msra.mxu0 0
        %3385 = vmatprep.subr.bf16.mxu0 0
        %3386 = vmatpush1.bf16.msra.mxu0 0
        %3387 = vmatprep.subr.bf16.mxu0 0
        %3388 = vmatpush1.bf16.msra.mxu0 0
        %3389 = vmatprep.subr.bf16.mxu0 0
        %3390 = vmatpush1.bf16.msra.mxu0 0
        %3391 = vmatprep.subr.bf16.mxu0 0
        %3392 = vmatpush1.bf16.msra.mxu0 0
        %3393 = vmatprep.subr.bf16.mxu0 0
        %3394 = vmatpush1.bf16.msra.mxu0 0
        %3395 = vmatprep.subr.bf16.mxu0 0
        %3396 = vmatpush1.bf16.msra.mxu0 0
        %3397 = vmatprep.subr.bf16.mxu0 0
        %3398 = vmatpush1.bf16.msra.mxu0 0
        %3399 = vmatprep.mubr.bf16.mxu0 0
        %3400 = vmatmul.mubr.bf16.gmra.mrb[0].mxu0 %v3242
        %v3401 = vpop.f32.mrb[0].mxu0
        %v3402 = vadd.f32 %v3361, %v3401
        %v3403 = vpop.f32.mrb[0].mxu0
        %v3404 = vadd.f32 %v3363, %v3403
        %v3405 = vpop.f32.mrb[0].mxu0
        %v3406 = vpop.f32.mrb[0].mxu0
        %3407 = vdwg.mxu0
        %v3408 = vadd.f32 %v2614, %v3320
        %v3409 = vadd.f32 %v2615, %v3322
        %v3410 = vadd.f32 %v2616, %v3402
        %v3411 = vadd.f32 %v2617, %v3404
        %s3412 = scalar_lea.vmem [#allocation2], 2304
        %v3413 = vld [vmem:[%s3412] sm:$0xff]
        %v3414 = vld [vmem:[%s3412 + $0x8] sm:$0xff]
        %v3415 = vld [vmem:[%s3412 + $0x10] sm:$0xff]
        %v3416 = vld [vmem:[%s3412 + $0x18] sm:$0xff]
        %v3417 = vld [vmem:[%s3412 + $0x20] sm:$0xff]
        %v3418 = vld [vmem:[%s3412 + $0x28] sm:$0xff]
        %v3419 = vld [vmem:[%s3412 + $0x30] sm:$0xff]
        %v3420 = vld [vmem:[%s3412 + $0x38] sm:$0xff]
        %v3421 = vld [vmem:[%s3412 + $0x40] sm:$0xff]
        %v3422 = vld [vmem:[%s3412 + $0x48] sm:$0xff]
        %v3423 = vld [vmem:[%s3412 + $0x50] sm:$0xff]
        %v3424 = vld [vmem:[%s3412 + $0x58] sm:$0xff]
        %v3425 = vld [vmem:[%s3412 + $0x60] sm:$0xff]
        %v3426 = vld [vmem:[%s3412 + $0x68] sm:$0xff]
        %v3427 = vld [vmem:[%s3412 + $0x70] sm:$0xff]
        %v3428 = vld [vmem:[%s3412 + $0x78] sm:$0xff]
        %v3429 = vld [vmem:[%s3412 + $0x80] sm:$0xff]
        %v3430 = vld [vmem:[%s3412 + $0x88] sm:$0xff]
        %v3431 = vld [vmem:[%s3412 + $0x90] sm:$0xff]
        %v3432 = vld [vmem:[%s3412 + $0x98] sm:$0xff]
        %v3433 = vld [vmem:[%s3412 + $0xa0] sm:$0xff]
        %v3434 = vld [vmem:[%s3412 + $0xa8] sm:$0xff]
        %v3435 = vld [vmem:[%s3412 + $0xb0] sm:$0xff]
        %v3436 = vld [vmem:[%s3412 + $0xb8] sm:$0xff]
        %v3437 = vld [vmem:[%s3412 + $0xc0] sm:$0xff]
        %v3438 = vld [vmem:[%s3412 + $0xc8] sm:$0xff]
        %v3439 = vld [vmem:[%s3412 + $0xd0] sm:$0xff]
        %v3440 = vld [vmem:[%s3412 + $0xd8] sm:$0xff]
        %v3441 = vld [vmem:[%s3412 + $0xe0] sm:$0xff]
        %v3442 = vld [vmem:[%s3412 + $0xe8] sm:$0xff]
        %v3443 = vld [vmem:[%s3412 + $0xf0] sm:$0xff]
        %v3444 = vld [vmem:[%s3412 + $0xf8] sm:$0xff]
        %v3445 = vld [vmem:[%s3412 + $0x100] sm:$0xff]
        %v3446 = vld [vmem:[%s3412 + $0x108] sm:$0xff]
        %v3447 = vld [vmem:[%s3412 + $0x110] sm:$0xff]
        %v3448 = vld [vmem:[%s3412 + $0x118] sm:$0xff]
        %v3449 = vld [vmem:[%s3412 + $0x120] sm:$0xff]
        %v3450 = vld [vmem:[%s3412 + $0x128] sm:$0xff]
        %v3451 = vld [vmem:[%s3412 + $0x130] sm:$0xff]
        %v3452 = vld [vmem:[%s3412 + $0x138] sm:$0xff]
        %v3453 = vld [vmem:[%s3412 + $0x140] sm:$0xff]
        %v3454 = vld [vmem:[%s3412 + $0x148] sm:$0xff]
        %v3455 = vld [vmem:[%s3412 + $0x150] sm:$0xff]
        %v3456 = vld [vmem:[%s3412 + $0x158] sm:$0xff]
        %v3457 = vld [vmem:[%s3412 + $0x160] sm:$0xff]
        %v3458 = vld [vmem:[%s3412 + $0x168] sm:$0xff]
        %v3459 = vld [vmem:[%s3412 + $0x170] sm:$0xff]
        %v3460 = vld [vmem:[%s3412 + $0x178] sm:$0xff]
        %v3461 = vld [vmem:[%s3412 + $0x180] sm:$0xff]
        %v3462 = vld [vmem:[%s3412 + $0x188] sm:$0xff]
        %v3463 = vld [vmem:[%s3412 + $0x190] sm:$0xff]
        %v3464 = vld [vmem:[%s3412 + $0x198] sm:$0xff]
        %v3465 = vld [vmem:[%s3412 + $0x1a0] sm:$0xff]
        %v3466 = vld [vmem:[%s3412 + $0x1a8] sm:$0xff]
        %v3467 = vld [vmem:[%s3412 + $0x1b0] sm:$0xff]
        %v3468 = vld [vmem:[%s3412 + $0x1b8] sm:$0xff]
        %v3469 = vld [vmem:[%s3412 + $0x1c0] sm:$0xff]
        %v3470 = vld [vmem:[%s3412 + $0x1c8] sm:$0xff]
        %v3471 = vld [vmem:[%s3412 + $0x1d0] sm:$0xff]
        %v3472 = vld [vmem:[%s3412 + $0x1d8] sm:$0xff]
        %v3473 = vld [vmem:[%s3412 + $0x1e0] sm:$0xff]
        %v3474 = vld [vmem:[%s3412 + $0x1e8] sm:$0xff]
        %v3475 = vld [vmem:[%s3412 + $0x1f0] sm:$0xff]
        %v3476 = vld [vmem:[%s3412 + $0x1f8] sm:$0xff]
        %v3477 = vld [vmem:[%s3412 + $0x200] sm:$0xff]
        %v3478 = vld [vmem:[%s3412 + $0x208] sm:$0xff]
        %v3479 = vld [vmem:[%s3412 + $0x210] sm:$0xff]
        %v3480 = vld [vmem:[%s3412 + $0x218] sm:$0xff]
        %v3481 = vld [vmem:[%s3412 + $0x220] sm:$0xff]
        %v3482 = vld [vmem:[%s3412 + $0x228] sm:$0xff]
        %v3483 = vld [vmem:[%s3412 + $0x230] sm:$0xff]
        %v3484 = vld [vmem:[%s3412 + $0x238] sm:$0xff]
        %v3557 = vunpack.c.l.b16 %v3413
        %v3558 = vunpack.c.h.b16 %v3413
        %v3559 = vunpack.c.l.b16 %v3414
        %v3560 = vunpack.c.h.b16 %v3414
        %v3561 = vunpack.c.l.b16 %v3415
        %v3562 = vunpack.c.h.b16 %v3415
        %v3563 = vunpack.c.l.b16 %v3416
        %v3564 = vunpack.c.h.b16 %v3416
        %v3565 = vunpack.c.l.b16 %v3417
        %v3566 = vunpack.c.h.b16 %v3417
        %v3567 = vunpack.c.l.b16 %v3418
        %v3568 = vunpack.c.h.b16 %v3418
        %v3569 = vunpack.c.l.b16 %v3419
        %v3570 = vunpack.c.h.b16 %v3419
        %v3571 = vunpack.c.l.b16 %v3420
        %v3572 = vunpack.c.h.b16 %v3420
        %v3573 = vunpack.c.l.b16 %v3421
        %v3574 = vunpack.c.h.b16 %v3421
        %v3575 = vunpack.c.l.b16 %v3422
        %v3576 = vunpack.c.h.b16 %v3422
        %v3577 = vunpack.c.l.b16 %v3423
        %v3578 = vunpack.c.h.b16 %v3423
        %v3579 = vunpack.c.l.b16 %v3424
        %v3580 = vunpack.c.h.b16 %v3424
        %v3581 = vunpack.c.l.b16 %v3425
        %v3582 = vunpack.c.h.b16 %v3425
        %v3583 = vunpack.c.l.b16 %v3426
        %v3584 = vunpack.c.h.b16 %v3426
        %v3585 = vunpack.c.l.b16 %v3427
        %v3586 = vunpack.c.h.b16 %v3427
        %v3587 = vunpack.c.l.b16 %v3428
        %v3588 = vunpack.c.h.b16 %v3428
        %v3589 = vunpack.c.l.b16 %v3429
        %v3590 = vunpack.c.h.b16 %v3429
        %v3591 = vunpack.c.l.b16 %v3430
        %v3592 = vunpack.c.h.b16 %v3430
        %v3593 = vunpack.c.l.b16 %v3431
        %v3594 = vunpack.c.h.b16 %v3431
        %v3595 = vunpack.c.l.b16 %v3432
        %v3596 = vunpack.c.h.b16 %v3432
        %v3597 = vunpack.c.l.b16 %v3433
        %v3598 = vunpack.c.h.b16 %v3433
        %v3599 = vunpack.c.l.b16 %v3434
        %v3600 = vunpack.c.h.b16 %v3434
        %v3601 = vunpack.c.l.b16 %v3435
        %v3602 = vunpack.c.h.b16 %v3435
        %v3603 = vunpack.c.l.b16 %v3436
        %v3604 = vunpack.c.h.b16 %v3436
        %v3605 = vunpack.c.l.b16 %v3437
        %v3606 = vunpack.c.h.b16 %v3437
        %v3607 = vunpack.c.l.b16 %v3438
        %v3608 = vunpack.c.h.b16 %v3438
        %v3609 = vunpack.c.l.b16 %v3439
        %v3610 = vunpack.c.h.b16 %v3439
        %v3611 = vunpack.c.l.b16 %v3440
        %v3612 = vunpack.c.h.b16 %v3440
        %v3613 = vunpack.c.l.b16 %v3441
        %v3614 = vunpack.c.h.b16 %v3441
        %v3615 = vunpack.c.l.b16 %v3442
        %v3616 = vunpack.c.h.b16 %v3442
        %v3617 = vunpack.c.l.b16 %v3443
        %v3618 = vunpack.c.h.b16 %v3443
        %v3619 = vunpack.c.l.b16 %v3444
        %v3620 = vunpack.c.h.b16 %v3444
        %v3621 = vunpack.c.l.b16 %v3445
        %v3622 = vunpack.c.h.b16 %v3445
        %v3623 = vunpack.c.l.b16 %v3446
        %v3624 = vunpack.c.h.b16 %v3446
        %v3625 = vunpack.c.l.b16 %v3447
        %v3626 = vunpack.c.h.b16 %v3447
        %v3627 = vunpack.c.l.b16 %v3448
        %v3628 = vunpack.c.h.b16 %v3448
        %v3629 = vunpack.c.l.b16 %v3449
        %v3630 = vunpack.c.h.b16 %v3449
        %v3631 = vunpack.c.l.b16 %v3450
        %v3632 = vunpack.c.h.b16 %v3450
        %v3633 = vunpack.c.l.b16 %v3451
        %v3634 = vunpack.c.h.b16 %v3451
        %v3635 = vunpack.c.l.b16 %v3452
        %v3636 = vunpack.c.h.b16 %v3452
        %v3637 = vunpack.c.l.b16 %v3453
        %v3638 = vunpack.c.h.b16 %v3453
        %v3639 = vunpack.c.l.b16 %v3454
        %v3640 = vunpack.c.h.b16 %v3454
        %v3641 = vunpack.c.l.b16 %v3455
        %v3642 = vunpack.c.h.b16 %v3455
        %v3643 = vunpack.c.l.b16 %v3456
        %v3644 = vunpack.c.h.b16 %v3456
        %v3645 = vunpack.c.l.b16 %v3457
        %v3646 = vunpack.c.h.b16 %v3457
        %v3647 = vunpack.c.l.b16 %v3458
        %v3648 = vunpack.c.h.b16 %v3458
        %v3649 = vunpack.c.l.b16 %v3459
        %v3650 = vunpack.c.h.b16 %v3459
        %v3651 = vunpack.c.l.b16 %v3460
        %v3652 = vunpack.c.h.b16 %v3460
        %v3653 = vunpack.c.l.b16 %v3461
        %v3654 = vunpack.c.h.b16 %v3461
        %v3655 = vunpack.c.l.b16 %v3462
        %v3656 = vunpack.c.h.b16 %v3462
        %v3657 = vunpack.c.l.b16 %v3463
        %v3658 = vunpack.c.h.b16 %v3463
        %v3659 = vunpack.c.l.b16 %v3464
        %v3660 = vunpack.c.h.b16 %v3464
        %v3661 = vunpack.c.l.b16 %v3465
        %v3662 = vunpack.c.h.b16 %v3465
        %v3663 = vunpack.c.l.b16 %v3466
        %v3664 = vunpack.c.h.b16 %v3466
        %v3665 = vunpack.c.l.b16 %v3467
        %v3666 = vunpack.c.h.b16 %v3467
        %v3667 = vunpack.c.l.b16 %v3468
        %v3668 = vunpack.c.h.b16 %v3468
        %v3669 = vunpack.c.l.b16 %v3469
        %v3670 = vunpack.c.h.b16 %v3469
        %v3671 = vunpack.c.l.b16 %v3470
        %v3672 = vunpack.c.h.b16 %v3470
        %v3673 = vunpack.c.l.b16 %v3471
        %v3674 = vunpack.c.h.b16 %v3471
        %v3675 = vunpack.c.l.b16 %v3472
        %v3676 = vunpack.c.h.b16 %v3472
        %v3677 = vunpack.c.l.b16 %v3473
        %v3678 = vunpack.c.h.b16 %v3473
        %v3679 = vunpack.c.l.b16 %v3474
        %v3680 = vunpack.c.h.b16 %v3474
        %v3681 = vunpack.c.l.b16 %v3475
        %v3682 = vunpack.c.h.b16 %v3475
        %v3683 = vunpack.c.l.b16 %v3476
        %v3684 = vunpack.c.h.b16 %v3476
        %v3685 = vunpack.c.l.b16 %v3477
        %v3686 = vunpack.c.h.b16 %v3477
        %v3687 = vunpack.c.l.b16 %v3478
        %v3688 = vunpack.c.h.b16 %v3478
        %v3689 = vunpack.c.l.b16 %v3479
        %v3690 = vunpack.c.h.b16 %v3479
        %v3691 = vunpack.c.l.b16 %v3480
        %v3692 = vunpack.c.h.b16 %v3480
        %v3693 = vunpack.c.l.b16 %v3481
        %v3694 = vunpack.c.h.b16 %v3481
        %v3695 = vunpack.c.l.b16 %v3482
        %v3696 = vunpack.c.h.b16 %v3482
        %v3697 = vunpack.c.l.b16 %v3483
        %v3698 = vunpack.c.h.b16 %v3483
        %v3699 = vunpack.c.l.b16 %v3484
        %v3700 = vunpack.c.h.b16 %v3484
        %v3701 = vpack.c.b16 %v3561, %v3557
        %v3702 = vpack.c.b16 %v3562, %v3558
        %v3703 = vpack.c.b16 %v3563, %v3559
        %v3704 = vpack.c.b16 %v3564, %v3560
        %v3705 = vpack.c.b16 %v3569, %v3565
        %v3706 = vpack.c.b16 %v3570, %v3566
        %v3707 = vpack.c.b16 %v3571, %v3567
        %v3708 = vpack.c.b16 %v3572, %v3568
        %v3709 = vpack.c.b16 %v3577, %v3573
        %v3710 = vpack.c.b16 %v3578, %v3574
        %v3711 = vpack.c.b16 %v3579, %v3575
        %v3712 = vpack.c.b16 %v3580, %v3576
        %v3713 = vpack.c.b16 %v3585, %v3581
        %v3714 = vpack.c.b16 %v3586, %v3582
        %v3715 = vpack.c.b16 %v3587, %v3583
        %v3716 = vpack.c.b16 %v3588, %v3584
        %v3717 = vpack.c.b16 %v3593, %v3589
        %v3718 = vpack.c.b16 %v3594, %v3590
        %v3719 = vpack.c.b16 %v3595, %v3591
        %v3720 = vpack.c.b16 %v3596, %v3592
        %v3721 = vpack.c.b16 %v3601, %v3597
        %v3722 = vpack.c.b16 %v3602, %v3598
        %v3723 = vpack.c.b16 %v3603, %v3599
        %v3724 = vpack.c.b16 %v3604, %v3600
        %v3725 = vpack.c.b16 %v3609, %v3605
        %v3726 = vpack.c.b16 %v3610, %v3606
        %v3727 = vpack.c.b16 %v3611, %v3607
        %v3728 = vpack.c.b16 %v3612, %v3608
        %v3729 = vpack.c.b16 %v3617, %v3613
        %v3730 = vpack.c.b16 %v3618, %v3614
        %v3731 = vpack.c.b16 %v3619, %v3615
        %v3732 = vpack.c.b16 %v3620, %v3616
        %v3733 = vpack.c.b16 %v3625, %v3621
        %v3734 = vpack.c.b16 %v3626, %v3622
        %v3735 = vpack.c.b16 %v3627, %v3623
        %v3736 = vpack.c.b16 %v3628, %v3624
        %v3737 = vpack.c.b16 %v3633, %v3629
        %v3738 = vpack.c.b16 %v3634, %v3630
        %v3739 = vpack.c.b16 %v3635, %v3631
        %v3740 = vpack.c.b16 %v3636, %v3632
        %v3741 = vpack.c.b16 %v3641, %v3637
        %v3742 = vpack.c.b16 %v3642, %v3638
        %v3743 = vpack.c.b16 %v3643, %v3639
        %v3744 = vpack.c.b16 %v3644, %v3640
        %v3745 = vpack.c.b16 %v3649, %v3645
        %v3746 = vpack.c.b16 %v3650, %v3646
        %v3747 = vpack.c.b16 %v3651, %v3647
        %v3748 = vpack.c.b16 %v3652, %v3648
        %v3749 = vpack.c.b16 %v3657, %v3653
        %v3750 = vpack.c.b16 %v3658, %v3654
        %v3751 = vpack.c.b16 %v3659, %v3655
        %v3752 = vpack.c.b16 %v3660, %v3656
        %v3753 = vpack.c.b16 %v3665, %v3661
        %v3754 = vpack.c.b16 %v3666, %v3662
        %v3755 = vpack.c.b16 %v3667, %v3663
        %v3756 = vpack.c.b16 %v3668, %v3664
        %v3757 = vpack.c.b16 %v3673, %v3669
        %v3758 = vpack.c.b16 %v3674, %v3670
        %v3759 = vpack.c.b16 %v3675, %v3671
        %v3760 = vpack.c.b16 %v3676, %v3672
        %v3761 = vpack.c.b16 %v3681, %v3677
        %v3762 = vpack.c.b16 %v3682, %v3678
        %v3763 = vpack.c.b16 %v3683, %v3679
        %v3764 = vpack.c.b16 %v3684, %v3680
        %v3765 = vpack.c.b16 %v3689, %v3685
        %v3766 = vpack.c.b16 %v3690, %v3686
        %v3767 = vpack.c.b16 %v3691, %v3687
        %v3768 = vpack.c.b16 %v3692, %v3688
        %v3769 = vpack.c.b16 %v3697, %v3693
        %v3770 = vpack.c.b16 %v3698, %v3694
        %v3771 = vpack.c.b16 %v3699, %v3695
        %v3772 = vpack.c.b16 %v3700, %v3696
        %3845 = vmatprep.subr.bf16.mxu0 %v3702
        %3846 = vmatpush1.bf16.msra.mxu0 %v3701
        %3847 = vmatprep.subr.bf16.mxu0 %v3706
        %3848 = vmatpush1.bf16.msra.mxu0 %v3705
        %3849 = vmatprep.subr.bf16.mxu0 %v3710
        %3850 = vmatpush1.bf16.msra.mxu0 %v3709
        %3851 = vmatprep.subr.bf16.mxu0 %v3714
        %3852 = vmatpush1.bf16.msra.mxu0 %v3713
        %3853 = vmatprep.subr.bf16.mxu0 %v3718
        %3854 = vmatpush1.bf16.msra.mxu0 %v3717
        %3855 = vmatprep.subr.bf16.mxu0 %v3722
        %3856 = vmatpush1.bf16.msra.mxu0 %v3721
        %3857 = vmatprep.subr.bf16.mxu0 %v3726
        %3858 = vmatpush1.bf16.msra.mxu0 %v3725
        %3859 = vmatprep.subr.bf16.mxu0 %v3730
        %3860 = vmatpush1.bf16.msra.mxu0 %v3729
        %3861 = vmatprep.subr.bf16.mxu0 %v3734
        %3862 = vmatpush1.bf16.msra.mxu0 %v3733
        %3863 = vmatprep.subr.bf16.mxu0 %v3738
        %3864 = vmatpush1.bf16.msra.mxu0 %v3737
        %3865 = vmatprep.subr.bf16.mxu0 %v3742
        %3866 = vmatpush1.bf16.msra.mxu0 %v3741
        %3867 = vmatprep.subr.bf16.mxu0 %v3746
        %3868 = vmatpush1.bf16.msra.mxu0 %v3745
        %3869 = vmatprep.subr.bf16.mxu0 %v3750
        %3870 = vmatpush1.bf16.msra.mxu0 %v3749
        %3871 = vmatprep.subr.bf16.mxu0 %v3754
        %3872 = vmatpush1.bf16.msra.mxu0 %v3753
        %3873 = vmatprep.subr.bf16.mxu0 %v3758
        %3874 = vmatpush1.bf16.msra.mxu0 %v3757
        %3875 = vmatprep.subr.bf16.mxu0 %v3762
        %3876 = vmatpush1.bf16.msra.mxu0 %v3761
        %3877 = vmatprep.mubr.bf16.mxu0 %v3237
        %3878 = vmatmul.mubr.bf16.gmra.mrb[0].mxu0 %v3236
        %v3879 = vpop.f32.mrb[0].mxu0
        %v3880 = vadd.f32 0.0, %v3879
        %v3881 = vpop.f32.mrb[0].mxu0
        %v3882 = vadd.f32 0.0, %v3881
        %v3883 = vpop.f32.mrb[0].mxu0
        %v3884 = vpop.f32.mrb[0].mxu0
        %3885 = vdwg.mxu0
        %3886 = vmatprep.subr.bf16.mxu0 %v3766
        %3887 = vmatpush1.bf16.msra.mxu0 %v3765
        %3888 = vmatprep.subr.bf16.mxu0 %v3770
        %3889 = vmatpush1.bf16.msra.mxu0 %v3769
        %3890 = vmatprep.subr.bf16.mxu0 0
        %3891 = vmatpush1.bf16.msra.mxu0 0
        %3892 = vmatprep.subr.bf16.mxu0 0
        %3893 = vmatpush1.bf16.msra.mxu0 0
        %3894 = vmatprep.subr.bf16.mxu0 0
        %3895 = vmatpush1.bf16.msra.mxu0 0
        %3896 = vmatprep.subr.bf16.mxu0 0
        %3897 = vmatpush1.bf16.msra.mxu0 0
        %3898 = vmatprep.subr.bf16.mxu0 0
        %3899 = vmatpush1.bf16.msra.mxu0 0
        %3900 = vmatprep.subr.bf16.mxu0 0
        %3901 = vmatpush1.bf16.msra.mxu0 0
        %3902 = vmatprep.subr.bf16.mxu0 0
        %3903 = vmatpush1.bf16.msra.mxu0 0
        %3904 = vmatprep.subr.bf16.mxu0 0
        %3905 = vmatpush1.bf16.msra.mxu0 0
        %3906 = vmatprep.subr.bf16.mxu0 0
        %3907 = vmatpush1.bf16.msra.mxu0 0
        %3908 = vmatprep.subr.bf16.mxu0 0
        %3909 = vmatpush1.bf16.msra.mxu0 0
        %3910 = vmatprep.subr.bf16.mxu0 0
        %3911 = vmatpush1.bf16.msra.mxu0 0
        %3912 = vmatprep.subr.bf16.mxu0 0
        %3913 = vmatpush1.bf16.msra.mxu0 0
        %3914 = vmatprep.subr.bf16.mxu0 0
        %3915 = vmatpush1.bf16.msra.mxu0 0
        %3916 = vmatprep.subr.bf16.mxu0 0
        %3917 = vmatpush1.bf16.msra.mxu0 0
        %3918 = vmatprep.mubr.bf16.mxu0 0
        %3919 = vmatmul.mubr.bf16.gmra.mrb[0].mxu0 %v3242
        %v3920 = vpop.f32.mrb[0].mxu0
        %v3921 = vadd.f32 %v3880, %v3920
        %v3922 = vpop.f32.mrb[0].mxu0
        %v3923 = vadd.f32 %v3882, %v3922
        %v3924 = vpop.f32.mrb[0].mxu0
        %v3925 = vpop.f32.mrb[0].mxu0
        %3926 = vdwg.mxu0
        %3927 = vmatprep.subr.bf16.mxu0 %v3704
        %3928 = vmatpush1.bf16.msra.mxu0 %v3703
        %3929 = vmatprep.subr.bf16.mxu0 %v3708
        %3930 = vmatpush1.bf16.msra.mxu0 %v3707
        %3931 = vmatprep.subr.bf16.mxu0 %v3712
        %3932 = vmatpush1.bf16.msra.mxu0 %v3711
        %3933 = vmatprep.subr.bf16.mxu0 %v3716
        %3934 = vmatpush1.bf16.msra.mxu0 %v3715
        %3935 = vmatprep.subr.bf16.mxu0 %v3720
        %3936 = vmatpush1.bf16.msra.mxu0 %v3719
        %3937 = vmatprep.subr.bf16.mxu0 %v3724
        %3938 = vmatpush1.bf16.msra.mxu0 %v3723
        %3939 = vmatprep.subr.bf16.mxu0 %v3728
        %3940 = vmatpush1.bf16.msra.mxu0 %v3727
        %3941 = vmatprep.subr.bf16.mxu0 %v3732
        %3942 = vmatpush1.bf16.msra.mxu0 %v3731
        %3943 = vmatprep.subr.bf16.mxu0 %v3736
        %3944 = vmatpush1.bf16.msra.mxu0 %v3735
        %3945 = vmatprep.subr.bf16.mxu0 %v3740
        %3946 = vmatpush1.bf16.msra.mxu0 %v3739
        %3947 = vmatprep.subr.bf16.mxu0 %v3744
        %3948 = vmatpush1.bf16.msra.mxu0 %v3743
        %3949 = vmatprep.subr.bf16.mxu0 %v3748
        %3950 = vmatpush1.bf16.msra.mxu0 %v3747
        %3951 = vmatprep.subr.bf16.mxu0 %v3752
        %3952 = vmatpush1.bf16.msra.mxu0 %v3751
        %3953 = vmatprep.subr.bf16.mxu0 %v3756
        %3954 = vmatpush1.bf16.msra.mxu0 %v3755
        %3955 = vmatprep.subr.bf16.mxu0 %v3760
        %3956 = vmatpush1.bf16.msra.mxu0 %v3759
        %3957 = vmatprep.subr.bf16.mxu0 %v3764
        %3958 = vmatpush1.bf16.msra.mxu0 %v3763
        %3959 = vmatprep.mubr.bf16.mxu0 %v3237
        %3960 = vmatmul.mubr.bf16.gmra.mrb[0].mxu0 %v3236
        %v3961 = vpop.f32.mrb[0].mxu0
        %v3962 = vadd.f32 0.0, %v3961
        %v3963 = vpop.f32.mrb[0].mxu0
        %v3964 = vadd.f32 0.0, %v3963
        %v3965 = vpop.f32.mrb[0].mxu0
        %v3966 = vpop.f32.mrb[0].mxu0
        %3967 = vdwg.mxu0
        %3968 = vmatprep.subr.bf16.mxu0 %v3768
        %3969 = vmatpush1.bf16.msra.mxu0 %v3767
        %3970 = vmatprep.subr.bf16.mxu0 %v3772
        %3971 = vmatpush1.bf16.msra.mxu0 %v3771
        %3972 = vmatprep.subr.bf16.mxu0 0
        %3973 = vmatpush1.bf16.msra.mxu0 0
        %3974 = vmatprep.subr.bf16.mxu0 0
        %3975 = vmatpush1.bf16.msra.mxu0 0
        %3976 = vmatprep.subr.bf16.mxu0 0
        %3977 = vmatpush1.bf16.msra.mxu0 0
        %3978 = vmatprep.subr.bf16.mxu0 0
        %3979 = vmatpush1.bf16.msra.mxu0 0
        %3980 = vmatprep.subr.bf16.mxu0 0
        %3981 = vmatpush1.bf16.msra.mxu0 0
        %3982 = vmatprep.subr.bf16.mxu0 0
        %3983 = vmatpush1.bf16.msra.mxu0 0
        %3984 = vmatprep.subr.bf16.mxu0 0
        %3985 = vmatpush1.bf16.msra.mxu0 0
        %3986 = vmatprep.subr.bf16.mxu0 0
        %3987 = vmatpush1.bf16.msra.mxu0 0
        %3988 = vmatprep.subr.bf16.mxu0 0
        %3989 = vmatpush1.bf16.msra.mxu0 0
        %3990 = vmatprep.subr.bf16.mxu0 0
        %3991 = vmatpush1.bf16.msra.mxu0 0
        %3992 = vmatprep.subr.bf16.mxu0 0
        %3993 = vmatpush1.bf16.msra.mxu0 0
        %3994 = vmatprep.subr.bf16.mxu0 0
        %3995 = vmatpush1.bf16.msra.mxu0 0
        %3996 = vmatprep.subr.bf16.mxu0 0
        %3997 = vmatpush1.bf16.msra.mxu0 0
        %3998 = vmatprep.subr.bf16.mxu0 0
        %3999 = vmatpush1.bf16.msra.mxu0 0
        %4000 = vmatprep.mubr.bf16.mxu0 0
        %4001 = vmatmul.mubr.bf16.gmra.mrb[0].mxu0 %v3242
        %v4002 = vpop.f32.mrb[0].mxu0
        %v4003 = vadd.f32 %v3962, %v4002
        %v4004 = vpop.f32.mrb[0].mxu0
        %v4005 = vadd.f32 %v3964, %v4004
        %v4006 = vpop.f32.mrb[0].mxu0
        %v4007 = vpop.f32.mrb[0].mxu0
        %4008 = vdwg.mxu0
        %v4009 = vadd.f32 %v3215, %v3921
        %v4010 = vadd.f32 %v3216, %v3923
        %v4011 = vadd.f32 %v3217, %v4003
        %v4012 = vadd.f32 %v3218, %v4005
        %v4013 = vld [vmem:[%s240] sm:$0xee]
        %v4014 = vld [vmem:[%s240 + $0x8] sm:$0xe]
        %v4015 = vld [vmem:[%s240 + $0xc] sm:$0x11]
        %v4016 = vld [vmem:[%s240 + $0x14] sm:$0x1]
        %v4021 = vunpack.c.l.b16 %v4013
        %v4022 = vunpack.c.h.b16 %v4013
        %v4023 = vunpack.c.l.b16 %v4014
        %v4024 = vunpack.c.l.b16 %v4015
        %v4025 = vunpack.c.h.b16 %v4015
        %v4026 = vunpack.c.l.b16 %v4016
        %v4027 = vpack.c.b16 %v4024, %v4021
        %v4028 = vpack.c.b16 %v4025, %v4022
        %v4029 = vpack.c.b16 %v4026, %v4023
        %v4030 = vrot.slane %v4027, 1
        %v4031 = vrot.slane %v4028, 1
        %v4032 = vrot.slane %v4029, 1
        %v4036 = vsel %vm766, %v4032, 0
        %4038 = vmatprep.subr.bf16.mxu0 %v3702
        %4039 = vmatpush1.bf16.msra.mxu0 %v3701
        %4040 = vmatprep.subr.bf16.mxu0 %v3706
        %4041 = vmatpush1.bf16.msra.mxu0 %v3705
        %4042 = vmatprep.subr.bf16.mxu0 %v3710
        %4043 = vmatpush1.bf16.msra.mxu0 %v3709
        %4044 = vmatprep.subr.bf16.mxu0 %v3714
        %4045 = vmatpush1.bf16.msra.mxu0 %v3713
        %4046 = vmatprep.subr.bf16.mxu0 %v3718
        %4047 = vmatpush1.bf16.msra.mxu0 %v3717
        %4048 = vmatprep.subr.bf16.mxu0 %v3722
        %4049 = vmatpush1.bf16.msra.mxu0 %v3721
        %4050 = vmatprep.subr.bf16.mxu0 %v3726
        %4051 = vmatpush1.bf16.msra.mxu0 %v3725
        %4052 = vmatprep.subr.bf16.mxu0 %v3730
        %4053 = vmatpush1.bf16.msra.mxu0 %v3729
        %4054 = vmatprep.subr.bf16.mxu0 %v3734
        %4055 = vmatpush1.bf16.msra.mxu0 %v3733
        %4056 = vmatprep.subr.bf16.mxu0 %v3738
        %4057 = vmatpush1.bf16.msra.mxu0 %v3737
        %4058 = vmatprep.subr.bf16.mxu0 %v3742
        %4059 = vmatpush1.bf16.msra.mxu0 %v3741
        %4060 = vmatprep.subr.bf16.mxu0 %v3746
        %4061 = vmatpush1.bf16.msra.mxu0 %v3745
        %4062 = vmatprep.subr.bf16.mxu0 %v3750
        %4063 = vmatpush1.bf16.msra.mxu0 %v3749
        %4064 = vmatprep.subr.bf16.mxu0 %v3754
        %4065 = vmatpush1.bf16.msra.mxu0 %v3753
        %4066 = vmatprep.subr.bf16.mxu0 %v3758
        %4067 = vmatpush1.bf16.msra.mxu0 %v3757
        %4068 = vmatprep.subr.bf16.mxu0 %v3762
        %4069 = vmatpush1.bf16.msra.mxu0 %v3761
        %4070 = vmatprep.mubr.bf16.mxu0 %v4031
        %4071 = vmatmul.mubr.bf16.gmra.mrb[0].mxu0 %v4030
        %v4072 = vpop.f32.mrb[0].mxu0
        %v4073 = vadd.f32 0.0, %v4072
        %v4074 = vpop.f32.mrb[0].mxu0
        %v4075 = vadd.f32 0.0, %v4074
        %v4076 = vpop.f32.mrb[0].mxu0
        %v4077 = vpop.f32.mrb[0].mxu0
        %4078 = vdwg.mxu0
        %4079 = vmatprep.subr.bf16.mxu0 %v3766
        %4080 = vmatpush1.bf16.msra.mxu0 %v3765
        %4081 = vmatprep.subr.bf16.mxu0 %v3770
        %4082 = vmatpush1.bf16.msra.mxu0 %v3769
        %4083 = vmatprep.subr.bf16.mxu0 0
        %4084 = vmatpush1.bf16.msra.mxu0 0
        %4085 = vmatprep.subr.bf16.mxu0 0
        %4086 = vmatpush1.bf16.msra.mxu0 0
        %4087 = vmatprep.subr.bf16.mxu0 0
        %4088 = vmatpush1.bf16.msra.mxu0 0
        %4089 = vmatprep.subr.bf16.mxu0 0
        %4090 = vmatpush1.bf16.msra.mxu0 0
        %4091 = vmatprep.subr.bf16.mxu0 0
        %4092 = vmatpush1.bf16.msra.mxu0 0
        %4093 = vmatprep.subr.bf16.mxu0 0
        %4094 = vmatpush1.bf16.msra.mxu0 0
        %4095 = vmatprep.subr.bf16.mxu0 0
        %4096 = vmatpush1.bf16.msra.mxu0 0
        %4097 = vmatprep.subr.bf16.mxu0 0
        %4098 = vmatpush1.bf16.msra.mxu0 0
        %4099 = vmatprep.subr.bf16.mxu0 0
        %4100 = vmatpush1.bf16.msra.mxu0 0
        %4101 = vmatprep.subr.bf16.mxu0 0
        %4102 = vmatpush1.bf16.msra.mxu0 0
        %4103 = vmatprep.subr.bf16.mxu0 0
        %4104 = vmatpush1.bf16.msra.mxu0 0
        %4105 = vmatprep.subr.bf16.mxu0 0
        %4106 = vmatpush1.bf16.msra.mxu0 0
        %4107 = vmatprep.subr.bf16.mxu0 0
        %4108 = vmatpush1.bf16.msra.mxu0 0
        %4109 = vmatprep.subr.bf16.mxu0 0
        %4110 = vmatpush1.bf16.msra.mxu0 0
        %4111 = vmatprep.mubr.bf16.mxu0 0
        %4112 = vmatmul.mubr.bf16.gmra.mrb[0].mxu0 %v4036
        %v4113 = vpop.f32.mrb[0].mxu0
        %v4114 = vadd.f32 %v4073, %v4113
        %v4115 = vpop.f32.mrb[0].mxu0
        %v4116 = vadd.f32 %v4075, %v4115
        %v4117 = vpop.f32.mrb[0].mxu0
        %v4118 = vpop.f32.mrb[0].mxu0
        %4119 = vdwg.mxu0
        %4120 = vmatprep.subr.bf16.mxu0 %v3704
        %4121 = vmatpush1.bf16.msra.mxu0 %v3703
        %4122 = vmatprep.subr.bf16.mxu0 %v3708
        %4123 = vmatpush1.bf16.msra.mxu0 %v3707
        %4124 = vmatprep.subr.bf16.mxu0 %v3712
        %4125 = vmatpush1.bf16.msra.mxu0 %v3711
        %4126 = vmatprep.subr.bf16.mxu0 %v3716
        %4127 = vmatpush1.bf16.msra.mxu0 %v3715
        %4128 = vmatprep.subr.bf16.mxu0 %v3720
        %4129 = vmatpush1.bf16.msra.mxu0 %v3719
        %4130 = vmatprep.subr.bf16.mxu0 %v3724
        %4131 = vmatpush1.bf16.msra.mxu0 %v3723
        %4132 = vmatprep.subr.bf16.mxu0 %v3728
        %4133 = vmatpush1.bf16.msra.mxu0 %v3727
        %4134 = vmatprep.subr.bf16.mxu0 %v3732
        %4135 = vmatpush1.bf16.msra.mxu0 %v3731
        %4136 = vmatprep.subr.bf16.mxu0 %v3736
        %4137 = vmatpush1.bf16.msra.mxu0 %v3735
        %4138 = vmatprep.subr.bf16.mxu0 %v3740
        %4139 = vmatpush1.bf16.msra.mxu0 %v3739
        %4140 = vmatprep.subr.bf16.mxu0 %v3744
        %4141 = vmatpush1.bf16.msra.mxu0 %v3743
        %4142 = vmatprep.subr.bf16.mxu0 %v3748
        %4143 = vmatpush1.bf16.msra.mxu0 %v3747
        %4144 = vmatprep.subr.bf16.mxu0 %v3752
        %4145 = vmatpush1.bf16.msra.mxu0 %v3751
        %4146 = vmatprep.subr.bf16.mxu0 %v3756
        %4147 = vmatpush1.bf16.msra.mxu0 %v3755
        %4148 = vmatprep.subr.bf16.mxu0 %v3760
        %4149 = vmatpush1.bf16.msra.mxu0 %v3759
        %4150 = vmatprep.subr.bf16.mxu0 %v3764
        %4151 = vmatpush1.bf16.msra.mxu0 %v3763
        %4152 = vmatprep.mubr.bf16.mxu0 %v4031
        %4153 = vmatmul.mubr.bf16.gmra.mrb[0].mxu0 %v4030
        %v4154 = vpop.f32.mrb[0].mxu0
        %v4155 = vadd.f32 0.0, %v4154
        %v4156 = vpop.f32.mrb[0].mxu0
        %v4157 = vadd.f32 0.0, %v4156
        %v4158 = vpop.f32.mrb[0].mxu0
        %v4159 = vpop.f32.mrb[0].mxu0
        %4160 = vdwg.mxu0
        %4161 = vmatprep.subr.bf16.mxu0 %v3768
        %4162 = vmatpush1.bf16.msra.mxu0 %v3767
        %4163 = vmatprep.subr.bf16.mxu0 %v3772
        %4164 = vmatpush1.bf16.msra.mxu0 %v3771
        %4165 = vmatprep.subr.bf16.mxu0 0
        %4166 = vmatpush1.bf16.msra.mxu0 0
        %4167 = vmatprep.subr.bf16.mxu0 0
        %4168 = vmatpush1.bf16.msra.mxu0 0
        %4169 = vmatprep.subr.bf16.mxu0 0
        %4170 = vmatpush1.bf16.msra.mxu0 0
        %4171 = vmatprep.subr.bf16.mxu0 0
        %4172 = vmatpush1.bf16.msra.mxu0 0
        %4173 = vmatprep.subr.bf16.mxu0 0
        %4174 = vmatpush1.bf16.msra.mxu0 0
        %4175 = vmatprep.subr.bf16.mxu0 0
        %4176 = vmatpush1.bf16.msra.mxu0 0
        %4177 = vmatprep.subr.bf16.mxu0 0
        %4178 = vmatpush1.bf16.msra.mxu0 0
        %4179 = vmatprep.subr.bf16.mxu0 0
        %4180 = vmatpush1.bf16.msra.mxu0 0
        %4181 = vmatprep.subr.bf16.mxu0 0
        %4182 = vmatpush1.bf16.msra.mxu0 0
        %4183 = vmatprep.subr.bf16.mxu0 0
        %4184 = vmatpush1.bf16.msra.mxu0 0
        %4185 = vmatprep.subr.bf16.mxu0 0
        %4186 = vmatpush1.bf16.msra.mxu0 0
        %4187 = vmatprep.subr.bf16.mxu0 0
        %4188 = vmatpush1.bf16.msra.mxu0 0
        %4189 = vmatprep.subr.bf16.mxu0 0
        %4190 = vmatpush1.bf16.msra.mxu0 0
        %4191 = vmatprep.subr.bf16.mxu0 0
        %4192 = vmatpush1.bf16.msra.mxu0 0
        %4193 = vmatprep.mubr.bf16.mxu0 0
        %4194 = vmatmul.mubr.bf16.gmra.mrb[0].mxu0 %v4036
        %v4195 = vpop.f32.mrb[0].mxu0
        %v4196 = vadd.f32 %v4155, %v4195
        %v4197 = vpop.f32.mrb[0].mxu0
        %v4198 = vadd.f32 %v4157, %v4197
        %v4199 = vpop.f32.mrb[0].mxu0
        %v4200 = vpop.f32.mrb[0].mxu0
        %4201 = vdwg.mxu0
        %v4202 = vadd.f32 %v3408, %v4114
        %v4203 = vadd.f32 %v3409, %v4116
        %v4204 = vadd.f32 %v3410, %v4196
        %v4205 = vadd.f32 %v3411, %v4198
        %v4206 = vmax.f32 %v4009, %v4202
        %v4207 = vmax.f32 %v4010, %v4203
        %v4208 = vmax.f32 %v4011, %v4204
        %v4209 = vmax.f32 %v4012, %v4205
        %v4210 = vld [vmem:[#allocation4] sm:$0xf]
        %v4212 = vlaneseq
        %v4213 = vshrl.u32 %v4212, 7
        %v4214 = vsub.s32 0, %v4213
        %v4215 = vrot.slane %v4210, %v4214
        %v4216 = vlaneseq
        %v4217 = vshrl.u32 %v4216, 7
        %v4218 = vsub.s32 1, %v4217
        %v4219 = vrot.slane %v4210, %v4218
        %v4220 = vlaneseq
        %v4221 = vshrl.u32 %v4220, 7
        %v4222 = vsub.s32 2, %v4221
        %v4223 = vrot.slane %v4210, %v4222
        %v4224 = vlaneseq
        %v4225 = vshrl.u32 %v4224, 7
        %v4226 = vsub.s32 3, %v4225
        %v4227 = vrot.slane %v4210, %v4226
        %v4232 = vadd.f32 %v4206, %v4215
        %v4233 = vadd.f32 %v4207, %v4219
        %v4234 = vadd.f32 %v4208, %v4223
        %v4235 = vadd.f32 %v4209, %v4227
        %v4236 = vmax.f32 %v4232, 0.0
        %v4237 = vmax.f32 %v4233, 0.0
        %v4238 = vmax.f32 %v4234, 0.0
        %v4239 = vmax.f32 %v4235, 0.0
        %4243 = vrot.lane.b32.xlu0 %v4237, 32
        %v4244 = vpop.permute.xlu0 %4243
        %4245 = vrot.lane.b32.xlu0 %v4238, 32
        %v4246 = vpop.permute.xlu0 %4245
        %4247 = vrot.lane.b32.xlu0 %v4239, 32
        %v4248 = vpop.permute.xlu0 %4247
        %v4249 = vsel %vm766, %v4244, %v4246
        %v4250 = vsel %vm766, %v4246, %v4248
        %v4253 = vmax.f32 %v4236, %v4249
        %v4254 = vmax.f32 %v4237, %v4250
        %v4255 = vpack.c.bf16 %v4253, %v4253
        %v4256 = vpack.c.bf16 %v4254, %v4254
        %v4259 = vunpack.c.l.b16 %v4255
        %v4260 = vunpack.c.l.b16 %v4256
        %v4261 = vpack.c.b16 %v4260, %v4259
        %vm4263 = vcmask 1043456
        %vm4264 = vsmask.f32 3328
        %vm4265 = vmand %vm4263, %vm4264
        %vm4266 = vcmask 785412
        %vm4267 = vsmask.f32 7424
        %vm4268 = vmand %vm4266, %vm4267
        %vm4269 = vmor %vm4268, %vm4265
        %v4270 = vld [vmem:[%s245] sm:$0xff]
        %v4271 = vsel %vm4269, %v4261, %v4270
        %4272 = vst [vmem:[%s245] sm:$0xff] %v4271
        %p4273 = scmp.lt.s32.totalorder %s17, 1
        %s4274 = scalar_select %p4273, %s17, 1
        %s4275 = smul.addr %s4274, 2
        %s4276 = smul.addr %s4275, 4
        %s4277 = scalar_lea.vmem %s4, %s4276
        // Predicated region
        $region45: #{cnn_forward.4} parent=35 // pred_check
          %p4278 = pneg %p129
        $region46: #{cnn_forward.4} parent=35 // pred_check_branch
          %4280 = sbr.rel (%p4278) target = $region48
        $region47: #{cnn_forward.4} parent=35 // pred_region
          _
        $region48: #{cnn_forward.4} parent=35 // pred_fallthru
          _
      $region36: #{cnn_forward.4} parent=5 // pred_fallthru
        _
      %p4281 = scmp.le.s32.totalorder 2, %s12
      // Predicated region
      $region49: #{cnn_forward.4} parent=5 // pred_check
        %p4282 = pneg %p4281
      $region50: #{cnn_forward.4} parent=5 // pred_check_branch
        %4284 = sbr.rel (%p4282) target = $region52
      $region51: #{cnn_forward.4} parent=5 // pred_region
        %s4285 = ssub.s32 %s12, 2
        // Predicated region
        $region53: #{cnn_forward.4} parent=51 // pred_check
          %p4286 = pneg %p135
        $region54: #{cnn_forward.4} parent=51 // pred_check_branch
          %4288 = sbr.rel (%p4286) target = $region56
        $region55: #{cnn_forward.4} parent=51 // pred_region
          %p4289 = scmp.lt.s32.totalorder %s18, 1
          %s4290 = scalar_select %p4289, %s18, 1
          %s4291 = smul.addr %s4290, 2
          %s4292 = smul.addr %s4291, 4
          %s4293 = scalar_lea.vmem %s4, %s4292
        $region56: #{cnn_forward.4} parent=51 // pred_fallthru
          _
      $region52: #{cnn_forward.4} parent=5 // pred_fallthru
        _
    $region6: #{cnn_forward.4} parent=1 // loop_footer
      %s16 = sadd.s32 1, %s12
    $region7: #{cnn_forward.4} parent=1 // loop_footer_branch
      %11 = sbr.rel target = $region3
    $region8: #{cnn_forward.4} parent=1 // loop_exit
      _
    %4294 = vsyncpa [#allocation3], 1
    %s4295 = scalar_lea.sflag [#allocation3], 1
    %4296 = vsyncpa %s4295, 1
    %4297 = vsyncpa [#allocation5], 1

</llo_original>
